<compile_context>
chip_gen: v6e
topology: v6e:2x2x1
jax: 0.10.0
libtpu: 0.0.40
codegen_flags: <defaults>
</compile_context>

<pallas_src>
import functools

import jax
import jax.numpy as jnp
from jax import lax
from jax.experimental import pallas as pl
from jax.experimental.pallas import tpu as pltpu

BN_EPS = 1e-5     # nn.BatchNorm1d default eps
COS_EPS = 1e-8    # nn.CosineSimilarity default eps
HIDDEN = 1024


def matchnet_kernel(x_ref, w1_ref, b1_ref, w2_ref, b2_ref, w3_ref, b3_ref,
                    sy_ref, out_ref, *, n_support):
    """One grid step == one complete episode (MLP + BN + cosine attention)."""
    # ---- 3-layer MLP on the concatenated (support ++ query) rows.
    #      bf16 operands, f32 MXU accumulation. ----
    h1 = jnp.dot(x_ref[...], w1_ref[...], preferred_element_type=jnp.float32)
    h1 = jnp.maximum(h1 + b1_ref[...], 0.0)

    h2 = jnp.dot(h1.astype(jnp.bfloat16), w2_ref[...],
                 preferred_element_type=jnp.float32)
    h2 = jnp.maximum(h2 + b2_ref[...], 0.0)

    emb = jnp.dot(h2.astype(jnp.bfloat16), w3_ref[...],
                  preferred_element_type=jnp.float32) + b3_ref[...]

    emb_s = emb[:n_support]          # [Ns, H]
    emb_q = emb[n_support:]          # [Nq, H]

    # ---- BatchNorm1d(affine=False), training mode: per-call batch stats,
    #      biased variance.  Support and query keep their own statistics
    #      because the reference module calls self.bn twice. ----
    def batch_norm(v):
        mean = jnp.mean(v, axis=0, keepdims=True)
        var = jnp.mean((v - mean) ** 2, axis=0, keepdims=True)
        return (v - mean) * lax.rsqrt(var + BN_EPS)

    emb_s = batch_norm(emb_s)
    emb_q = batch_norm(emb_q)

    # ---- Cosine similarity (torch semantics: each vector divided by
    #      max(||v||, eps); rsqrt(max(ssq, eps^2)) == 1 / max(||v||, eps)). ----
    ssq_s = jnp.sum(emb_s * emb_s, axis=1, keepdims=True)     # [Ns, 1]
    ssq_q = jnp.sum(emb_q * emb_q, axis=1, keepdims=True)     # [Nq, 1]
    emb_s_u = emb_s * lax.rsqrt(jnp.maximum(ssq_s, COS_EPS * COS_EPS))
    emb_q_u = emb_q * lax.rsqrt(jnp.maximum(ssq_q, COS_EPS * COS_EPS))
    sims = lax.dot_general(emb_q_u, emb_s_u, (((1,), (1,)), ((), ())),
                           preferred_element_type=jnp.float32)  # [Nq, Ns]

    # ---- Softmax over the support axis (dim=1); exact divide so rows sum
    #      to 1 (approx reciprocal only perturbed parity, saved nothing). ----
    m = jnp.max(sims, axis=1, keepdims=True)
    e = jnp.exp(sims - m)
    p = e / jnp.sum(e, axis=1, keepdims=True)

    # ---- Attention readout against one-hot support labels. ----
    out_ref[...] = jnp.dot(p, sy_ref[...], preferred_element_type=jnp.float32)


def match_net_forward_batched(support_x, support_y, query_x, params):
    """Batched-episode forward.

    support_x: [E, Ns, D], support_y: [E, Ns, C], query_x: [E, Nq, D]
    Returns preds: [E, Nq, C].

    Weights are streamed to VMEM once and stay resident across the episode
    grid (constant index_map); the episode axis is "parallel" so v7x can
    shard it across both TensorCores.
    """
    w1, b1, w2, b2, w3, b3 = params
    n_ep, n_s, d = support_x.shape
    n_q = query_x.shape[1]
    c = support_y.shape[2]
    h = w1.shape[1]
    n = n_s + n_q

    # Cast to in-kernel dtypes in the wrapper (no in-kernel astype pass,
    # half the HBM bytes for x and the weights).
    x_all = jnp.concatenate([support_x, query_x], axis=1).astype(jnp.bfloat16)
    w1b = w1.astype(jnp.bfloat16)
    w2b = w2.astype(jnp.bfloat16)
    w3b = w3.astype(jnp.bfloat16)
    sy = support_y.astype(jnp.float32)

    kernel = functools.partial(matchnet_kernel, n_support=n_s)

    return pl.pallas_call(
        kernel,
        out_shape=jax.ShapeDtypeStruct((n_ep, n_q, c), jnp.float32),
        grid=(n_ep,),
        in_specs=[
            pl.BlockSpec((None, n, d), lambda ep: (ep, 0, 0)),    # x (per episode)
            pl.BlockSpec((d, h), lambda ep: (0, 0)),              # W1 (resident)
            pl.BlockSpec((1, h), lambda ep: (0, 0)),              # b1
            pl.BlockSpec((h, h), lambda ep: (0, 0)),              # W2 (resident)
            pl.BlockSpec((1, h), lambda ep: (0, 0)),              # b2
            pl.BlockSpec((h, h), lambda ep: (0, 0)),              # W3 (resident)
            pl.BlockSpec((1, h), lambda ep: (0, 0)),              # b3
            pl.BlockSpec((None, n_s, c), lambda ep: (ep, 0, 0)),  # support_y (per ep)
        ],
        out_specs=pl.BlockSpec((None, n_q, c), lambda ep: (ep, 0, 0)),
        compiler_params=pltpu.CompilerParams(
            # Episodes are independent -> megacore / dual-TC sharding on v7x.
            dimension_semantics=("parallel",),
            # Footprint is < 10 MiB; this is headroom, not a tiling constraint.
            vmem_limit_bytes=32 << 20,
        ),
    )(x_all, w1b, b1, w2b, b2, w3b, b3, sy)


def match_net_forward(support_x, support_y, query_x, params):
    """Single-episode forward matching MatchNet.forward (E = 1 internally)."""
    out = match_net_forward_batched(support_x[None], support_y[None],
                                    query_x[None], params)
    return out[0]


def init_params(key, input_len, hidden=HIDDEN):
    dims = [input_len, hidden, hidden, hidden]
    params = []
    keys = jax.random.split(key, 6)
    for li in range(3):
        fan_in, fan_out = dims[li], dims[li + 1]
        bound = 1.0 / jnp.sqrt(float(fan_in))
        w = jax.random.uniform(keys[2 * li], (fan_in, fan_out),
                               minval=-bound, maxval=bound, dtype=jnp.float32)
        b = jax.random.uniform(keys[2 * li + 1], (1, fan_out),
                               minval=-bound, maxval=bound, dtype=jnp.float32)
        params.extend([w, b])
    return tuple(params)


if __name__ == "__main__":
    # Small shapes consistent with the module: Ns support rows, Nq query rows,
    # input_len D, C classes, hidden width fixed at 1024 by the module.
    # Ns and Ns+Nq kept multiples of 8 (sublane-aligned row split).
    Ns, Nq, D, C = 8, 8, 128, 4

    key = jax.random.PRNGKey(0)
    k_params, k_sx, k_qx, k_sy, k_sx2, k_qx2, k_sy2 = jax.random.split(key, 7)

    params = init_params(k_params, input_len=D)

    support_x = jax.random.normal(k_sx, (Ns, D), dtype=jnp.float32)
    query_x = jax.random.normal(k_qx, (Nq, D), dtype=jnp.float32)
    labels = jax.random.randint(k_sy, (Ns,), 0, C)
    support_y = jax.nn.one_hot(labels, C, dtype=jnp.float32)        # [Ns, C]

    # --- single-episode path (matches the PyTorch module's forward) ---
    preds = match_net_forward(support_x, support_y, query_x, params)
    preds = jax.block_until_ready(preds)
    assert preds.shape == (Nq, C)

    # --- batched-episode path (arithmetic-intensity lever: E episodes share
    #     one weight stream and one pallas_call) ---
    support_x2 = jax.random.normal(k_sx2, (Ns, D), dtype=jnp.float32)
    query_x2 = jax.random.normal(k_qx2, (Nq, D), dtype=jnp.float32)
    labels2 = jax.random.randint(k_sy2, (Ns,), 0, C)
    support_y2 = jax.nn.one_hot(labels2, C, dtype=jnp.float32)

    sx_b = jnp.stack([support_x, support_x2])     # [2, Ns, D]
    qx_b = jnp.stack([query_x, query_x2])         # [2, Nq, D]
    sy_b = jnp.stack([support_y, support_y2])     # [2, Ns, C]

    preds_b = match_net_forward_batched(sx_b, sy_b, qx_b, params)
    preds_b = jax.block_until_ready(preds_b)
    assert preds_b.shape == (2, Nq, C)
    # Episode 0 of the batched call must reproduce the single-episode result.
    assert jnp.allclose(preds_b[0], preds, atol=1e-5, rtol=1e-5)

    print("KERNEL_OK")
</pallas_src>

<mosaic_0001>
module attributes {stable_mosaic.version = 11 : i64} {
  func.func @matchnet_kernel(%arg0: i32, %arg1: memref<1x16x128xbf16, #tpu.memory_space<vmem>>, %arg2: memref<128x1024xbf16, #tpu.memory_space<vmem>>, %arg3: memref<1x1024xf32, #tpu.memory_space<vmem>>, %arg4: memref<1024x1024xbf16, #tpu.memory_space<vmem>>, %arg5: memref<1x1024xf32, #tpu.memory_space<vmem>>, %arg6: memref<1024x1024xbf16, #tpu.memory_space<vmem>>, %arg7: memref<1x1024xf32, #tpu.memory_space<vmem>>, %arg8: memref<1x8x4xf32, #tpu.memory_space<vmem>>, %arg9: memref<1x8x4xf32, #tpu.memory_space<vmem>>) attributes {dimension_semantics = [#tpu.dimension_semantics<parallel>], iteration_bounds = array<i64: 1>, scalar_prefetch = 0 : i64, scratch_operands = 0 : i64, tpu.core_type = #tpu.core_type<tc>, window_params = [{transform_indices = @transform_0, window_bounds = array<i64: 1, 16, 128>}, {pipeline_mode = #tpu.pipeline_mode<synchronous>, transform_indices = @transform_1, window_bounds = array<i64: 128, 1024>}, {pipeline_mode = #tpu.pipeline_mode<synchronous>, transform_indices = @transform_2, window_bounds = array<i64: 1, 1024>}, {pipeline_mode = #tpu.pipeline_mode<synchronous>, transform_indices = @transform_3, window_bounds = array<i64: 1024, 1024>}, {pipeline_mode = #tpu.pipeline_mode<synchronous>, transform_indices = @transform_4, window_bounds = array<i64: 1, 1024>}, {pipeline_mode = #tpu.pipeline_mode<synchronous>, transform_indices = @transform_5, window_bounds = array<i64: 1024, 1024>}, {pipeline_mode = #tpu.pipeline_mode<synchronous>, transform_indices = @transform_6, window_bounds = array<i64: 1, 1024>}, {transform_indices = @transform_7, window_bounds = array<i64: 1, 8, 4>}, {transform_indices = @transform_8, window_bounds = array<i64: 1, 8, 4>}]} {
    %c0 = arith.constant 0 : index
    %c0_0 = arith.constant 0 : index
    %c0_1 = arith.constant 0 : index
    %0 = vector.load %arg1[%c0, %c0_0, %c0_1] : memref<1x16x128xbf16, #tpu.memory_space<vmem>>, vector<1x16x128xbf16>
    %1 = vector.shape_cast %0 : vector<1x16x128xbf16> to vector<16x128xbf16>
    %c0_2 = arith.constant 0 : index
    %c0_3 = arith.constant 0 : index
    %2 = vector.load %arg2[%c0_2, %c0_3] : memref<128x1024xbf16, #tpu.memory_space<vmem>>, vector<128x1024xbf16>
    %cst = arith.constant dense<0.000000e+00> : vector<16x1024xf32>
    %3 = tpu.matmul %1, %2, %cst {dimension_numbers = #tpu.dot_dimension_numbers<[1], [0], [0], [1], [0, 0, 1, 1], [], []>} : vector<16x128xbf16>, vector<128x1024xbf16>, vector<16x1024xf32> -> vector<16x1024xf32>
    %c0_4 = arith.constant 0 : index
    %c0_5 = arith.constant 0 : index
    %4 = vector.load %arg3[%c0_4, %c0_5] : memref<1x1024xf32, #tpu.memory_space<vmem>>, vector<1x1024xf32>
    %5 = vector.broadcast %4 : vector<1x1024xf32> to vector<16x1024xf32>
    %6 = arith.addf %3, %5 : vector<16x1024xf32>
    %cst_6 = arith.constant 0.000000e+00 : f32
    %7 = vector.broadcast %cst_6 : f32 to vector<16x1024xf32>
    %8 = arith.maximumf %6, %7 : vector<16x1024xf32>
    %9 = arith.truncf %8 : vector<16x1024xf32> to vector<16x1024xbf16>
    %c0_7 = arith.constant 0 : index
    %c0_8 = arith.constant 0 : index
    %10 = vector.load %arg4[%c0_7, %c0_8] : memref<1024x1024xbf16, #tpu.memory_space<vmem>>, vector<1024x1024xbf16>
    %cst_9 = arith.constant dense<0.000000e+00> : vector<16x1024xf32>
    %11 = tpu.matmul %9, %10, %cst_9 {dimension_numbers = #tpu.dot_dimension_numbers<[1], [0], [0], [1], [0, 0, 1, 1], [], []>} : vector<16x1024xbf16>, vector<1024x1024xbf16>, vector<16x1024xf32> -> vector<16x1024xf32>
    %c0_10 = arith.constant 0 : index
    %c0_11 = arith.constant 0 : index
    %12 = vector.load %arg5[%c0_10, %c0_11] : memref<1x1024xf32, #tpu.memory_space<vmem>>, vector<1x1024xf32>
    %13 = vector.broadcast %12 : vector<1x1024xf32> to vector<16x1024xf32>
    %14 = arith.addf %11, %13 : vector<16x1024xf32>
    %cst_12 = arith.constant 0.000000e+00 : f32
    %15 = vector.broadcast %cst_12 : f32 to vector<16x1024xf32>
    %16 = arith.maximumf %14, %15 : vector<16x1024xf32>
    %17 = arith.truncf %16 : vector<16x1024xf32> to vector<16x1024xbf16>
    %c0_13 = arith.constant 0 : index
    %c0_14 = arith.constant 0 : index
    %18 = vector.load %arg6[%c0_13, %c0_14] : memref<1024x1024xbf16, #tpu.memory_space<vmem>>, vector<1024x1024xbf16>
    %cst_15 = arith.constant dense<0.000000e+00> : vector<16x1024xf32>
    %19 = tpu.matmul %17, %18, %cst_15 {dimension_numbers = #tpu.dot_dimension_numbers<[1], [0], [0], [1], [0, 0, 1, 1], [], []>} : vector<16x1024xbf16>, vector<1024x1024xbf16>, vector<16x1024xf32> -> vector<16x1024xf32>
    %c0_16 = arith.constant 0 : index
    %c0_17 = arith.constant 0 : index
    %20 = vector.load %arg7[%c0_16, %c0_17] : memref<1x1024xf32, #tpu.memory_space<vmem>>, vector<1x1024xf32>
    %21 = vector.broadcast %20 : vector<1x1024xf32> to vector<16x1024xf32>
    %22 = arith.addf %19, %21 : vector<16x1024xf32>
    %23 = vector.extract_strided_slice %22 {offsets = [0, 0], sizes = [8, 1024], strides = [1, 1]} : vector<16x1024xf32> to vector<8x1024xf32>
    %24 = vector.extract_strided_slice %22 {offsets = [8, 0], sizes = [8, 1024], strides = [1, 1]} : vector<16x1024xf32> to vector<8x1024xf32>
    %cst_18 = arith.constant dense<0.000000e+00> : vector<1024xf32>
    %25 = vector.multi_reduction <add>, %23, %cst_18 [0] : vector<8x1024xf32> to vector<1024xf32>
    %26 = vector.shape_cast %25 : vector<1024xf32> to vector<1x1024xf32>
    %cst_19 = arith.constant 8.000000e+00 : f32
    %27 = vector.broadcast %cst_19 : f32 to vector<1x1024xf32>
    %28 = arith.divf %26, %27 : vector<1x1024xf32>
    %29 = vector.broadcast %28 : vector<1x1024xf32> to vector<8x1024xf32>
    %30 = arith.subf %23, %29 : vector<8x1024xf32>
    %31 = arith.mulf %30, %30 : vector<8x1024xf32>
    %cst_20 = arith.constant dense<0.000000e+00> : vector<1024xf32>
    %32 = vector.multi_reduction <add>, %31, %cst_20 [0] : vector<8x1024xf32> to vector<1024xf32>
    %33 = vector.shape_cast %32 : vector<1024xf32> to vector<1x1024xf32>
    %cst_21 = arith.constant 8.000000e+00 : f32
    %34 = vector.broadcast %cst_21 : f32 to vector<1x1024xf32>
    %35 = arith.divf %33, %34 : vector<1x1024xf32>
    %36 = vector.broadcast %28 : vector<1x1024xf32> to vector<8x1024xf32>
    %37 = arith.subf %23, %36 : vector<8x1024xf32>
    %cst_22 = arith.constant 9.99999974E-6 : f32
    %38 = vector.broadcast %cst_22 : f32 to vector<1x1024xf32>
    %39 = arith.addf %35, %38 : vector<1x1024xf32>
    %40 = math.rsqrt %39 : vector<1x1024xf32>
    %41 = vector.broadcast %40 : vector<1x1024xf32> to vector<8x1024xf32>
    %42 = arith.mulf %37, %41 : vector<8x1024xf32>
    %cst_23 = arith.constant dense<0.000000e+00> : vector<1024xf32>
    %43 = vector.multi_reduction <add>, %24, %cst_23 [0] : vector<8x1024xf32> to vector<1024xf32>
    %44 = vector.shape_cast %43 : vector<1024xf32> to vector<1x1024xf32>
    %cst_24 = arith.constant 8.000000e+00 : f32
    %45 = vector.broadcast %cst_24 : f32 to vector<1x1024xf32>
    %46 = arith.divf %44, %45 : vector<1x1024xf32>
    %47 = vector.broadcast %46 : vector<1x1024xf32> to vector<8x1024xf32>
    %48 = arith.subf %24, %47 : vector<8x1024xf32>
    %49 = arith.mulf %48, %48 : vector<8x1024xf32>
    %cst_25 = arith.constant dense<0.000000e+00> : vector<1024xf32>
    %50 = vector.multi_reduction <add>, %49, %cst_25 [0] : vector<8x1024xf32> to vector<1024xf32>
    %51 = vector.shape_cast %50 : vector<1024xf32> to vector<1x1024xf32>
    %cst_26 = arith.constant 8.000000e+00 : f32
    %52 = vector.broadcast %cst_26 : f32 to vector<1x1024xf32>
    %53 = arith.divf %51, %52 : vector<1x1024xf32>
    %54 = vector.broadcast %46 : vector<1x1024xf32> to vector<8x1024xf32>
    %55 = arith.subf %24, %54 : vector<8x1024xf32>
    %cst_27 = arith.constant 9.99999974E-6 : f32
    %56 = vector.broadcast %cst_27 : f32 to vector<1x1024xf32>
    %57 = arith.addf %53, %56 : vector<1x1024xf32>
    %58 = math.rsqrt %57 : vector<1x1024xf32>
    %59 = vector.broadcast %58 : vector<1x1024xf32> to vector<8x1024xf32>
    %60 = arith.mulf %55, %59 : vector<8x1024xf32>
    %61 = arith.mulf %42, %42 : vector<8x1024xf32>
    %cst_28 = arith.constant dense<0.000000e+00> : vector<8xf32>
    %62 = vector.multi_reduction <add>, %61, %cst_28 [1] : vector<8x1024xf32> to vector<8xf32>
    %63 = vector.shape_cast %62 : vector<8xf32> to vector<8x1xf32>
    %64 = arith.mulf %60, %60 : vector<8x1024xf32>
    %cst_29 = arith.constant dense<0.000000e+00> : vector<8xf32>
    %65 = vector.multi_reduction <add>, %64, %cst_29 [1] : vector<8x1024xf32> to vector<8xf32>
    %66 = vector.shape_cast %65 : vector<8xf32> to vector<8x1xf32>
    %cst_30 = arith.constant 1.000000e-16 : f32
    %67 = vector.broadcast %cst_30 : f32 to vector<8x1xf32>
    %68 = arith.maximumf %63, %67 : vector<8x1xf32>
    %69 = math.rsqrt %68 : vector<8x1xf32>
    %70 = vector.broadcast %69 : vector<8x1xf32> to vector<8x1024xf32>
    %71 = arith.mulf %42, %70 : vector<8x1024xf32>
    %cst_31 = arith.constant 1.000000e-16 : f32
    %72 = vector.broadcast %cst_31 : f32 to vector<8x1xf32>
    %73 = arith.maximumf %66, %72 : vector<8x1xf32>
    %74 = math.rsqrt %73 : vector<8x1xf32>
    %75 = vector.broadcast %74 : vector<8x1xf32> to vector<8x1024xf32>
    %76 = arith.mulf %60, %75 : vector<8x1024xf32>
    %cst_32 = arith.constant dense<0.000000e+00> : vector<8x8xf32>
    %77 = tpu.matmul %76, %71, %cst_32 {dimension_numbers = #tpu.dot_dimension_numbers<[1], [1], [0], [0], [0, 0, 1, 0], [], []>} : vector<8x1024xf32>, vector<8x1024xf32>, vector<8x8xf32> -> vector<8x8xf32>
    %cst_33 = arith.constant dense<0xFF800000> : vector<8xf32>
    %78 = vector.multi_reduction <maximumf>, %77, %cst_33 [1] : vector<8x8xf32> to vector<8xf32>
    %79 = vector.shape_cast %78 : vector<8xf32> to vector<8x1xf32>
    %80 = vector.broadcast %79 : vector<8x1xf32> to vector<8x8xf32>
    %81 = arith.subf %77, %80 : vector<8x8xf32>
    %82 = math.exp %81 : vector<8x8xf32>
    %cst_34 = arith.constant dense<0.000000e+00> : vector<8xf32>
    %83 = vector.multi_reduction <add>, %82, %cst_34 [1] : vector<8x8xf32> to vector<8xf32>
    %84 = vector.shape_cast %83 : vector<8xf32> to vector<8x1xf32>
    %85 = vector.broadcast %84 : vector<8x1xf32> to vector<8x8xf32>
    %86 = arith.divf %82, %85 : vector<8x8xf32>
    %c0_35 = arith.constant 0 : index
    %c0_36 = arith.constant 0 : index
    %c0_37 = arith.constant 0 : index
    %87 = vector.load %arg8[%c0_35, %c0_36, %c0_37] : memref<1x8x4xf32, #tpu.memory_space<vmem>>, vector<1x8x4xf32>
    %88 = vector.shape_cast %87 : vector<1x8x4xf32> to vector<8x4xf32>
    %cst_38 = arith.constant dense<0.000000e+00> : vector<8x4xf32>
    %89 = tpu.matmul %86, %88, %cst_38 {dimension_numbers = #tpu.dot_dimension_numbers<[1], [0], [0], [1], [0, 0, 1, 1], [], []>} : vector<8x8xf32>, vector<8x4xf32>, vector<8x4xf32> -> vector<8x4xf32>
    %c0_39 = arith.constant 0 : index
    %c0_40 = arith.constant 0 : index
    %c0_41 = arith.constant 0 : index
    %90 = vector.load %arg9[%c0_39, %c0_40, %c0_41] : memref<1x8x4xf32, #tpu.memory_space<vmem>>, vector<1x8x4xf32>
    %91 = vector.shape_cast %90 : vector<1x8x4xf32> to vector<8x4xf32>
    %92 = vector.shape_cast %89 : vector<8x4xf32> to vector<1x8x4xf32>
    tpu.vector_store %arg9[%c0_39, %c0_40, %c0_41], %92 {strides = array<i32>} : memref<1x8x4xf32, #tpu.memory_space<vmem>>, vector<1x8x4xf32>,
    return
  }
  func.func @transform_0(%arg0: i32) -> (i32, i32, i32) {
    %c0_i32 = arith.constant 0 : i32
    %c0_i32_0 = arith.constant 0 : i32
    %c0_i32_1 = arith.constant 0 : i32
    return %arg0, %c0_i32, %c0_i32_0 : i32, i32, i32
  }
  func.func @transform_1(%arg0: i32) -> (i32, i32) {
    %c0_i32 = arith.constant 0 : i32
    %c0_i32_0 = arith.constant 0 : i32
    %c0_i32_1 = arith.constant 0 : i32
    return %c0_i32, %c0_i32_0 : i32, i32
  }
  func.func @transform_2(%arg0: i32) -> (i32, i32) {
    %c0_i32 = arith.constant 0 : i32
    %c0_i32_0 = arith.constant 0 : i32
    %c0_i32_1 = arith.constant 0 : i32
    return %c0_i32, %c0_i32_0 : i32, i32
  }
  func.func @transform_3(%arg0: i32) -> (i32, i32) {
    %c0_i32 = arith.constant 0 : i32
    %c0_i32_0 = arith.constant 0 : i32
    %c0_i32_1 = arith.constant 0 : i32
    return %c0_i32, %c0_i32_0 : i32, i32
  }
  func.func @transform_4(%arg0: i32) -> (i32, i32) {
    %c0_i32 = arith.constant 0 : i32
    %c0_i32_0 = arith.constant 0 : i32
    %c0_i32_1 = arith.constant 0 : i32
    return %c0_i32, %c0_i32_0 : i32, i32
  }
  func.func @transform_5(%arg0: i32) -> (i32, i32) {
    %c0_i32 = arith.constant 0 : i32
    %c0_i32_0 = arith.constant 0 : i32
    %c0_i32_1 = arith.constant 0 : i32
    return %c0_i32, %c0_i32_0 : i32, i32
  }
  func.func @transform_6(%arg0: i32) -> (i32, i32) {
    %c0_i32 = arith.constant 0 : i32
    %c0_i32_0 = arith.constant 0 : i32
    %c0_i32_1 = arith.constant 0 : i32
    return %c0_i32, %c0_i32_0 : i32, i32
  }
  func.func @transform_7(%arg0: i32) -> (i32, i32, i32) {
    %c0_i32 = arith.constant 0 : i32
    %c0_i32_0 = arith.constant 0 : i32
    %c0_i32_1 = arith.constant 0 : i32
    return %arg0, %c0_i32, %c0_i32_0 : i32, i32, i32
  }
  func.func @transform_8(%arg0: i32) -> (i32, i32, i32) {
    %c0_i32 = arith.constant 0 : i32
    %c0_i32_0 = arith.constant 0 : i32
    %c0_i32_1 = arith.constant 0 : i32
    return %arg0, %c0_i32, %c0_i32_0 : i32, i32, i32
  }
}

</mosaic_0001>

<llo_original>
// kernel: tpu_custom_call.1
$region0: #{tpu_custom_call.1}
  #allocation0 [shape = 'u32[]', space=smem, size = 0x4, offset = 0x4, fixed_abs, tag = 'smem constant byte address 0x4 - core index']
  #allocation1 [shape = 'u32[144,128]{1,0:T(1,128)}', space=vmem, size = 0x12000, scoped, tag = 'internal scratch']
  %s0 = inlined_call_operand.hbm [shape: bf16[1,16,128], index: 0, kind: input, shape index: {}]
  %s1 = inlined_call_operand.hbm [shape: bf16[128,1024], index: 1, kind: input, shape index: {}]
  %s2 = inlined_call_operand.hbm [shape: f32[1,1024], index: 2, kind: input, shape index: {}]
  %s3 = inlined_call_operand.hbm [shape: bf16[1024,1024], index: 3, kind: input, shape index: {}]
  %s4 = inlined_call_operand.hbm [shape: f32[1,1024], index: 4, kind: input, shape index: {}]
  %s5 = inlined_call_operand.hbm [shape: bf16[1024,1024], index: 5, kind: input, shape index: {}]
  %s6 = inlined_call_operand.hbm [shape: f32[1,1024], index: 6, kind: input, shape index: {}]
  %s7 = inlined_call_operand.vmem [shape: f32[1,8,4], index: 7, kind: input, shape index: {}]
  %s8 = inlined_call_operand.vmem [shape: f32[1,8,4], index: 8, kind: output, shape index: {}]
  %s9 = sld [smem:[#allocation0]]
  $region70: #{tpu_custom_call.1} parent=0
    _
  %s11 = ssub.s32 1, %s9
  %s12 = scalar_select 0, %s11, %s9
  $region1: #{tpu_custom_call.1} parent=0
    #allocation2 [shape = 'u8[4096]{0}', space=vmem, size = 0x1000, scoped, tag = 'input window, operand 0, single buffered']
    #allocation3 [shape = 's32[1]{0}', space=sflag, size = 0x4, scoped, tag = 'scoped memory for tpu_custom_call.1']
    #allocation4 [shape = 'u8[262144]{0}', space=vmem, size = 0x40000, scoped, tag = 'input window, operand 1, single buffered']
    #allocation5 [shape = 's32[1]{0}', space=sflag, size = 0x4, scoped, tag = 'scoped memory for tpu_custom_call.1']
    #allocation6 [shape = 'u8[4096]{0}', space=vmem, size = 0x1000, scoped, tag = 'input window, operand 2, single buffered']
    #allocation7 [shape = 'u8[2097152]{0}', space=vmem, size = 0x200000, scoped, tag = 'input window, operand 3, single buffered']
    #allocation8 [shape = 's32[1]{0}', space=sflag, size = 0x4, scoped, tag = 'scoped memory for tpu_custom_call.1']
    #allocation9 [shape = 'u8[4096]{0}', space=vmem, size = 0x1000, scoped, tag = 'input window, operand 4, single buffered']
    #allocation10 [shape = 'u8[2097152]{0}', space=vmem, size = 0x200000, scoped, tag = 'input window, operand 5, single buffered']
    #allocation11 [shape = 's32[1]{0}', space=sflag, size = 0x4, scoped, tag = 'scoped memory for tpu_custom_call.1']
    #allocation12 [shape = 'u8[4096]{0}', space=vmem, size = 0x1000, scoped, tag = 'input window, operand 6, single buffered']
    %13 = vsyncpa [#allocation3], 0
    %14 = vsyncpa [#allocation5], 0
    %15 = vsyncpa [#allocation8], 0
    %16 = vsyncpa [#allocation11], 0
    // Predicated region
    $region2: #{tpu_custom_call.1} parent=1 // pred_check
      _
    $region3: #{tpu_custom_call.1} parent=1 // pred_check_branch
      %18 = sbr.rel (0) target = $region5
    $region4: #{tpu_custom_call.1} parent=1 // pred_region
      %s20 = ssub.s32 128, 128
      %21 = vsyncadd [#allocation3], %s20
      %s22 = sshll.u32 [#allocation2], 4
      %s23 = int_to_ptr.vmem [resolvable:$true] %s22
      %28 = dma.hbm_to_vmem [thread:$0]  %s0, 128, %s23, [#allocation3], 64, 64, 4
    $region5: #{tpu_custom_call.1} parent=1 // pred_fallthru
      _
    // Predicated region
    $region6: #{tpu_custom_call.1} parent=1 // pred_check
      _
    $region7: #{tpu_custom_call.1} parent=1 // pred_check_branch
      %30 = sbr.rel (0) target = $region9
    $region8: #{tpu_custom_call.1} parent=1 // pred_region
      %s32 = ssub.s32 8192, 8192
      %33 = vsyncadd [#allocation5], %s32
      %s34 = sshll.u32 [#allocation4], 4
      %s35 = int_to_ptr.vmem [resolvable:$true] %s34
      %40 = dma.hbm_to_vmem [thread:$0]  %s1, 8192, %s35, [#allocation5], 512, 512, 32
    $region9: #{tpu_custom_call.1} parent=1 // pred_fallthru
      _
    // Predicated region
    $region10: #{tpu_custom_call.1} parent=1 // pred_check
      _
    $region11: #{tpu_custom_call.1} parent=1 // pred_check_branch
      %42 = sbr.rel (0) target = $region13
    $region12: #{tpu_custom_call.1} parent=1 // pred_region
      %s44 = ssub.s32 128, 128
      %45 = vsyncadd [#allocation5], %s44
      %s47 = sshll.u32 [#allocation6], 4
      %s48 = int_to_ptr.vmem [resolvable:$true] %s47
      %50 = dma.hbm_to_vmem [thread:$0]  %s2, 128, %s48, [#allocation5]
    $region13: #{tpu_custom_call.1} parent=1 // pred_fallthru
      _
    // Predicated region
    $region14: #{tpu_custom_call.1} parent=1 // pred_check
      _
    $region15: #{tpu_custom_call.1} parent=1 // pred_check_branch
      %52 = sbr.rel (0) target = $region17
    $region16: #{tpu_custom_call.1} parent=1 // pred_region
      %s54 = ssub.s32 65536, 65536
      %55 = vsyncadd [#allocation8], %s54
      %s56 = sshll.u32 [#allocation7], 4
      %s57 = int_to_ptr.vmem [resolvable:$true] %s56
      %62 = dma.hbm_to_vmem [thread:$0]  %s3, 65536, %s57, [#allocation8], 512, 512, 32
    $region17: #{tpu_custom_call.1} parent=1 // pred_fallthru
      _
    // Predicated region
    $region18: #{tpu_custom_call.1} parent=1 // pred_check
      _
    $region19: #{tpu_custom_call.1} parent=1 // pred_check_branch
      %64 = sbr.rel (0) target = $region21
    $region20: #{tpu_custom_call.1} parent=1 // pred_region
      %s66 = ssub.s32 128, 128
      %67 = vsyncadd [#allocation8], %s66
      %s69 = sshll.u32 [#allocation9], 4
      %s70 = int_to_ptr.vmem [resolvable:$true] %s69
      %72 = dma.hbm_to_vmem [thread:$0]  %s4, 128, %s70, [#allocation8]
    $region21: #{tpu_custom_call.1} parent=1 // pred_fallthru
      _
    // Predicated region
    $region22: #{tpu_custom_call.1} parent=1 // pred_check
      _
    $region23: #{tpu_custom_call.1} parent=1 // pred_check_branch
      %74 = sbr.rel (0) target = $region25
    $region24: #{tpu_custom_call.1} parent=1 // pred_region
      %s76 = ssub.s32 65536, 65536
      %77 = vsyncadd [#allocation11], %s76
      %s78 = sshll.u32 [#allocation10], 4
      %s79 = int_to_ptr.vmem [resolvable:$true] %s78
      %84 = dma.hbm_to_vmem [thread:$0]  %s5, 65536, %s79, [#allocation11], 512, 512, 32
    $region25: #{tpu_custom_call.1} parent=1 // pred_fallthru
      _
    // Predicated region
    $region26: #{tpu_custom_call.1} parent=1 // pred_check
      _
    $region27: #{tpu_custom_call.1} parent=1 // pred_check_branch
      %86 = sbr.rel (0) target = $region29
    $region28: #{tpu_custom_call.1} parent=1 // pred_region
      %s88 = ssub.s32 128, 128
      %89 = vsyncadd [#allocation11], %s88
      %s91 = sshll.u32 [#allocation12], 4
      %s92 = int_to_ptr.vmem [resolvable:$true] %s91
      %94 = dma.hbm_to_vmem [thread:$0]  %s6, 128, %s92, [#allocation11]
    $region29: #{tpu_custom_call.1} parent=1 // pred_fallthru
      _
    // Predicated region
    $region30: #{tpu_custom_call.1} parent=1 // pred_check
      _
    $region31: #{tpu_custom_call.1} parent=1 // pred_check_branch
      %96 = sbr.rel (0) target = $region33
    $region32: #{tpu_custom_call.1} parent=1 // pred_region
      _
    $region33: #{tpu_custom_call.1} parent=1 // pred_fallthru
      _
    // Predicated region
    $region34: #{tpu_custom_call.1} parent=1 // pred_check
      _
    $region35: #{tpu_custom_call.1} parent=1 // pred_check_branch
      %98 = sbr.rel (0) target = $region37
    $region36: #{tpu_custom_call.1} parent=1 // pred_region
      %99 = dma.done [#allocation3], 128
    $region37: #{tpu_custom_call.1} parent=1 // pred_fallthru
      _
    // Predicated region
    $region38: #{tpu_custom_call.1} parent=1 // pred_check
      _
    $region39: #{tpu_custom_call.1} parent=1 // pred_check_branch
      %101 = sbr.rel (0) target = $region41
    $region40: #{tpu_custom_call.1} parent=1 // pred_region
      %102 = dma.done [#allocation5], 8192
    $region41: #{tpu_custom_call.1} parent=1 // pred_fallthru
      _
    // Predicated region
    $region42: #{tpu_custom_call.1} parent=1 // pred_check
      _
    $region43: #{tpu_custom_call.1} parent=1 // pred_check_branch
      %104 = sbr.rel (0) target = $region45
    $region44: #{tpu_custom_call.1} parent=1 // pred_region
      %105 = dma.done [#allocation5], 128
    $region45: #{tpu_custom_call.1} parent=1 // pred_fallthru
      _
    // Predicated region
    $region46: #{tpu_custom_call.1} parent=1 // pred_check
      _
    $region47: #{tpu_custom_call.1} parent=1 // pred_check_branch
      %107 = sbr.rel (0) target = $region49
    $region48: #{tpu_custom_call.1} parent=1 // pred_region
      %108 = dma.done [#allocation8], 65536
    $region49: #{tpu_custom_call.1} parent=1 // pred_fallthru
      _
    // Predicated region
    $region50: #{tpu_custom_call.1} parent=1 // pred_check
      _
    $region51: #{tpu_custom_call.1} parent=1 // pred_check_branch
      %110 = sbr.rel (0) target = $region53
    $region52: #{tpu_custom_call.1} parent=1 // pred_region
      %111 = dma.done [#allocation8], 128
    $region53: #{tpu_custom_call.1} parent=1 // pred_fallthru
      _
    // Predicated region
    $region54: #{tpu_custom_call.1} parent=1 // pred_check
      _
    $region55: #{tpu_custom_call.1} parent=1 // pred_check_branch
      %113 = sbr.rel (0) target = $region57
    $region56: #{tpu_custom_call.1} parent=1 // pred_region
      %114 = dma.done [#allocation11], 65536
    $region57: #{tpu_custom_call.1} parent=1 // pred_fallthru
      _
    // Predicated region
    $region58: #{tpu_custom_call.1} parent=1 // pred_check
      _
    $region59: #{tpu_custom_call.1} parent=1 // pred_check_branch
      %116 = sbr.rel (0) target = $region61
    $region60: #{tpu_custom_call.1} parent=1 // pred_region
      %117 = dma.done [#allocation11], 128
    $region61: #{tpu_custom_call.1} parent=1 // pred_fallthru
      _
    %v119 = vld [vmem:[#allocation2] sm:$0xf]
    %v120 = vld [vmem:[#allocation2 + $0x4] sm:$0xf]
    %v121 = vld [vmem:[#allocation4] sm:$0xff]
    %v122 = vld [vmem:[#allocation4 + $0x8] sm:$0xff]
    %v123 = vld [vmem:[#allocation4 + $0x10] sm:$0xff]
    %v124 = vld [vmem:[#allocation4 + $0x18] sm:$0xff]
    %v125 = vld [vmem:[#allocation4 + $0x20] sm:$0xff]
    %v126 = vld [vmem:[#allocation4 + $0x28] sm:$0xff]
    %v127 = vld [vmem:[#allocation4 + $0x30] sm:$0xff]
    %v128 = vld [vmem:[#allocation4 + $0x38] sm:$0xff]
    %v129 = vld [vmem:[#allocation4 + $0x40] sm:$0xff]
    %v130 = vld [vmem:[#allocation4 + $0x48] sm:$0xff]
    %v131 = vld [vmem:[#allocation4 + $0x50] sm:$0xff]
    %v132 = vld [vmem:[#allocation4 + $0x58] sm:$0xff]
    %v133 = vld [vmem:[#allocation4 + $0x60] sm:$0xff]
    %v134 = vld [vmem:[#allocation4 + $0x68] sm:$0xff]
    %v135 = vld [vmem:[#allocation4 + $0x70] sm:$0xff]
    %v136 = vld [vmem:[#allocation4 + $0x78] sm:$0xff]
    %v137 = vld [vmem:[#allocation4 + $0x80] sm:$0xff]
    %v138 = vld [vmem:[#allocation4 + $0x88] sm:$0xff]
    %v139 = vld [vmem:[#allocation4 + $0x90] sm:$0xff]
    %v140 = vld [vmem:[#allocation4 + $0x98] sm:$0xff]
    %v141 = vld [vmem:[#allocation4 + $0xa0] sm:$0xff]
    %v142 = vld [vmem:[#allocation4 + $0xa8] sm:$0xff]
    %v143 = vld [vmem:[#allocation4 + $0xb0] sm:$0xff]
    %v144 = vld [vmem:[#allocation4 + $0xb8] sm:$0xff]
    %v145 = vld [vmem:[#allocation4 + $0xc0] sm:$0xff]
    %v146 = vld [vmem:[#allocation4 + $0xc8] sm:$0xff]
    %v147 = vld [vmem:[#allocation4 + $0xd0] sm:$0xff]
    %v148 = vld [vmem:[#allocation4 + $0xd8] sm:$0xff]
    %v149 = vld [vmem:[#allocation4 + $0xe0] sm:$0xff]
    %v150 = vld [vmem:[#allocation4 + $0xe8] sm:$0xff]
    %v151 = vld [vmem:[#allocation4 + $0xf0] sm:$0xff]
    %v152 = vld [vmem:[#allocation4 + $0xf8] sm:$0xff]
    %v153 = vld [vmem:[#allocation4 + $0x100] sm:$0xff]
    %v154 = vld [vmem:[#allocation4 + $0x108] sm:$0xff]
    %v155 = vld [vmem:[#allocation4 + $0x110] sm:$0xff]
    %v156 = vld [vmem:[#allocation4 + $0x118] sm:$0xff]
    %v157 = vld [vmem:[#allocation4 + $0x120] sm:$0xff]
    %v158 = vld [vmem:[#allocation4 + $0x128] sm:$0xff]
    %v159 = vld [vmem:[#allocation4 + $0x130] sm:$0xff]
    %v160 = vld [vmem:[#allocation4 + $0x138] sm:$0xff]
    %v161 = vld [vmem:[#allocation4 + $0x140] sm:$0xff]
    %v162 = vld [vmem:[#allocation4 + $0x148] sm:$0xff]
    %v163 = vld [vmem:[#allocation4 + $0x150] sm:$0xff]
    %v164 = vld [vmem:[#allocation4 + $0x158] sm:$0xff]
    %v165 = vld [vmem:[#allocation4 + $0x160] sm:$0xff]
    %v166 = vld [vmem:[#allocation4 + $0x168] sm:$0xff]
    %v167 = vld [vmem:[#allocation4 + $0x170] sm:$0xff]
    %v168 = vld [vmem:[#allocation4 + $0x178] sm:$0xff]
    %v169 = vld [vmem:[#allocation4 + $0x180] sm:$0xff]
    %v170 = vld [vmem:[#allocation4 + $0x188] sm:$0xff]
    %v171 = vld [vmem:[#allocation4 + $0x190] sm:$0xff]
    %v172 = vld [vmem:[#allocation4 + $0x198] sm:$0xff]
    %v173 = vld [vmem:[#allocation4 + $0x1a0] sm:$0xff]
    %v174 = vld [vmem:[#allocation4 + $0x1a8] sm:$0xff]
    %v175 = vld [vmem:[#allocation4 + $0x1b0] sm:$0xff]
    %v176 = vld [vmem:[#allocation4 + $0x1b8] sm:$0xff]
    %v177 = vld [vmem:[#allocation4 + $0x1c0] sm:$0xff]
    %v178 = vld [vmem:[#allocation4 + $0x1c8] sm:$0xff]
    %v179 = vld [vmem:[#allocation4 + $0x1d0] sm:$0xff]
    %v180 = vld [vmem:[#allocation4 + $0x1d8] sm:$0xff]
    %v181 = vld [vmem:[#allocation4 + $0x1e0] sm:$0xff]
    %v182 = vld [vmem:[#allocation4 + $0x1e8] sm:$0xff]
    %v183 = vld [vmem:[#allocation4 + $0x1f0] sm:$0xff]
    %v184 = vld [vmem:[#allocation4 + $0x1f8] sm:$0xff]
    %v185 = vld [vmem:[#allocation6] sm:$0xff]
    %v187 = vlaneseq
    %v188 = vshrl.u32 %v187, 7
    %v189 = vsub.s32 0, %v188
    %v190 = vrot.slane %v185, %v189
    %v191 = vlaneseq
    %v192 = vshrl.u32 %v191, 7
    %v193 = vsub.s32 1, %v192
    %v194 = vrot.slane %v185, %v193
    %v195 = vlaneseq
    %v196 = vshrl.u32 %v195, 7
    %v197 = vsub.s32 2, %v196
    %v198 = vrot.slane %v185, %v197
    %v199 = vlaneseq
    %v200 = vshrl.u32 %v199, 7
    %v201 = vsub.s32 3, %v200
    %v202 = vrot.slane %v185, %v201
    %v203 = vlaneseq
    %v204 = vshrl.u32 %v203, 7
    %v205 = vsub.s32 4, %v204
    %v206 = vrot.slane %v185, %v205
    %v207 = vlaneseq
    %v208 = vshrl.u32 %v207, 7
    %v209 = vsub.s32 5, %v208
    %v210 = vrot.slane %v185, %v209
    %v211 = vlaneseq
    %v212 = vshrl.u32 %v211, 7
    %v213 = vsub.s32 6, %v212
    %v214 = vrot.slane %v185, %v213
    %v215 = vlaneseq
    %v216 = vshrl.u32 %v215, 7
    %v217 = vsub.s32 7, %v216
    %v218 = vrot.slane %v185, %v217
    %v229 = vunpack.c.l.b16 %v119
    %v230 = vunpack.c.l.b16 %v120
    %v231 = vpack.c.b16 %v230, %v229
    %v297 = vunpack.c.l.b16 %v121
    %v298 = vunpack.c.h.b16 %v121
    %v299 = vunpack.c.l.b16 %v122
    %v300 = vunpack.c.h.b16 %v122
    %v301 = vunpack.c.l.b16 %v123
    %v302 = vunpack.c.h.b16 %v123
    %v303 = vunpack.c.l.b16 %v124
    %v304 = vunpack.c.h.b16 %v124
    %v305 = vunpack.c.l.b16 %v125
    %v306 = vunpack.c.h.b16 %v125
    %v307 = vunpack.c.l.b16 %v126
    %v308 = vunpack.c.h.b16 %v126
    %v309 = vunpack.c.l.b16 %v127
    %v310 = vunpack.c.h.b16 %v127
    %v311 = vunpack.c.l.b16 %v128
    %v312 = vunpack.c.h.b16 %v128
    %v313 = vunpack.c.l.b16 %v129
    %v314 = vunpack.c.h.b16 %v129
    %v315 = vunpack.c.l.b16 %v130
    %v316 = vunpack.c.h.b16 %v130
    %v317 = vunpack.c.l.b16 %v131
    %v318 = vunpack.c.h.b16 %v131
    %v319 = vunpack.c.l.b16 %v132
    %v320 = vunpack.c.h.b16 %v132
    %v321 = vunpack.c.l.b16 %v133
    %v322 = vunpack.c.h.b16 %v133
    %v323 = vunpack.c.l.b16 %v134
    %v324 = vunpack.c.h.b16 %v134
    %v325 = vunpack.c.l.b16 %v135
    %v326 = vunpack.c.h.b16 %v135
    %v327 = vunpack.c.l.b16 %v136
    %v328 = vunpack.c.h.b16 %v136
    %v329 = vunpack.c.l.b16 %v137
    %v330 = vunpack.c.h.b16 %v137
    %v331 = vunpack.c.l.b16 %v138
    %v332 = vunpack.c.h.b16 %v138
    %v333 = vunpack.c.l.b16 %v139
    %v334 = vunpack.c.h.b16 %v139
    %v335 = vunpack.c.l.b16 %v140
    %v336 = vunpack.c.h.b16 %v140
    %v337 = vunpack.c.l.b16 %v141
    %v338 = vunpack.c.h.b16 %v141
    %v339 = vunpack.c.l.b16 %v142
    %v340 = vunpack.c.h.b16 %v142
    %v341 = vunpack.c.l.b16 %v143
    %v342 = vunpack.c.h.b16 %v143
    %v343 = vunpack.c.l.b16 %v144
    %v344 = vunpack.c.h.b16 %v144
    %v345 = vunpack.c.l.b16 %v145
    %v346 = vunpack.c.h.b16 %v145
    %v347 = vunpack.c.l.b16 %v146
    %v348 = vunpack.c.h.b16 %v146
    %v349 = vunpack.c.l.b16 %v147
    %v350 = vunpack.c.h.b16 %v147
    %v351 = vunpack.c.l.b16 %v148
    %v352 = vunpack.c.h.b16 %v148
    %v353 = vunpack.c.l.b16 %v149
    %v354 = vunpack.c.h.b16 %v149
    %v355 = vunpack.c.l.b16 %v150
    %v356 = vunpack.c.h.b16 %v150
    %v357 = vunpack.c.l.b16 %v151
    %v358 = vunpack.c.h.b16 %v151
    %v359 = vunpack.c.l.b16 %v152
    %v360 = vunpack.c.h.b16 %v152
    %v361 = vunpack.c.l.b16 %v153
    %v362 = vunpack.c.h.b16 %v153
    %v363 = vunpack.c.l.b16 %v154
    %v364 = vunpack.c.h.b16 %v154
    %v365 = vunpack.c.l.b16 %v155
    %v366 = vunpack.c.h.b16 %v155
    %v367 = vunpack.c.l.b16 %v156
    %v368 = vunpack.c.h.b16 %v156
    %v369 = vunpack.c.l.b16 %v157
    %v370 = vunpack.c.h.b16 %v157
    %v371 = vunpack.c.l.b16 %v158
    %v372 = vunpack.c.h.b16 %v158
    %v373 = vunpack.c.l.b16 %v159
    %v374 = vunpack.c.h.b16 %v159
    %v375 = vunpack.c.l.b16 %v160
    %v376 = vunpack.c.h.b16 %v160
    %v377 = vunpack.c.l.b16 %v161
    %v378 = vunpack.c.h.b16 %v161
    %v379 = vunpack.c.l.b16 %v162
    %v380 = vunpack.c.h.b16 %v162
    %v381 = vunpack.c.l.b16 %v163
    %v382 = vunpack.c.h.b16 %v163
    %v383 = vunpack.c.l.b16 %v164
    %v384 = vunpack.c.h.b16 %v164
    %v385 = vunpack.c.l.b16 %v165
    %v386 = vunpack.c.h.b16 %v165
    %v387 = vunpack.c.l.b16 %v166
    %v388 = vunpack.c.h.b16 %v166
    %v389 = vunpack.c.l.b16 %v167
    %v390 = vunpack.c.h.b16 %v167
    %v391 = vunpack.c.l.b16 %v168
    %v392 = vunpack.c.h.b16 %v168
    %v393 = vunpack.c.l.b16 %v169
    %v394 = vunpack.c.h.b16 %v169
    %v395 = vunpack.c.l.b16 %v170
    %v396 = vunpack.c.h.b16 %v170
    %v397 = vunpack.c.l.b16 %v171
    %v398 = vunpack.c.h.b16 %v171
    %v399 = vunpack.c.l.b16 %v172
    %v400 = vunpack.c.h.b16 %v172
    %v401 = vunpack.c.l.b16 %v173
    %v402 = vunpack.c.h.b16 %v173
    %v403 = vunpack.c.l.b16 %v174
    %v404 = vunpack.c.h.b16 %v174
    %v405 = vunpack.c.l.b16 %v175
    %v406 = vunpack.c.h.b16 %v175
    %v407 = vunpack.c.l.b16 %v176
    %v408 = vunpack.c.h.b16 %v176
    %v409 = vunpack.c.l.b16 %v177
    %v410 = vunpack.c.h.b16 %v177
    %v411 = vunpack.c.l.b16 %v178
    %v412 = vunpack.c.h.b16 %v178
    %v413 = vunpack.c.l.b16 %v179
    %v414 = vunpack.c.h.b16 %v179
    %v415 = vunpack.c.l.b16 %v180
    %v416 = vunpack.c.h.b16 %v180
    %v417 = vunpack.c.l.b16 %v181
    %v418 = vunpack.c.h.b16 %v181
    %v419 = vunpack.c.l.b16 %v182
    %v420 = vunpack.c.h.b16 %v182
    %v421 = vunpack.c.l.b16 %v183
    %v422 = vunpack.c.h.b16 %v183
    %v423 = vunpack.c.l.b16 %v184
    %v424 = vunpack.c.h.b16 %v184
    %v425 = vpack.c.b16 %v305, %v297
    %v426 = vpack.c.b16 %v306, %v298
    %v427 = vpack.c.b16 %v307, %v299
    %v428 = vpack.c.b16 %v308, %v300
    %v429 = vpack.c.b16 %v309, %v301
    %v430 = vpack.c.b16 %v310, %v302
    %v431 = vpack.c.b16 %v311, %v303
    %v432 = vpack.c.b16 %v312, %v304
    %v433 = vpack.c.b16 %v321, %v313
    %v434 = vpack.c.b16 %v322, %v314
    %v435 = vpack.c.b16 %v323, %v315
    %v436 = vpack.c.b16 %v324, %v316
    %v437 = vpack.c.b16 %v325, %v317
    %v438 = vpack.c.b16 %v326, %v318
    %v439 = vpack.c.b16 %v327, %v319
    %v440 = vpack.c.b16 %v328, %v320
    %v441 = vpack.c.b16 %v337, %v329
    %v442 = vpack.c.b16 %v338, %v330
    %v443 = vpack.c.b16 %v339, %v331
    %v444 = vpack.c.b16 %v340, %v332
    %v445 = vpack.c.b16 %v341, %v333
    %v446 = vpack.c.b16 %v342, %v334
    %v447 = vpack.c.b16 %v343, %v335
    %v448 = vpack.c.b16 %v344, %v336
    %v449 = vpack.c.b16 %v353, %v345
    %v450 = vpack.c.b16 %v354, %v346
    %v451 = vpack.c.b16 %v355, %v347
    %v452 = vpack.c.b16 %v356, %v348
    %v453 = vpack.c.b16 %v357, %v349
    %v454 = vpack.c.b16 %v358, %v350
    %v455 = vpack.c.b16 %v359, %v351
    %v456 = vpack.c.b16 %v360, %v352
    %v457 = vpack.c.b16 %v369, %v361
    %v458 = vpack.c.b16 %v370, %v362
    %v459 = vpack.c.b16 %v371, %v363
    %v460 = vpack.c.b16 %v372, %v364
    %v461 = vpack.c.b16 %v373, %v365
    %v462 = vpack.c.b16 %v374, %v366
    %v463 = vpack.c.b16 %v375, %v367
    %v464 = vpack.c.b16 %v376, %v368
    %v465 = vpack.c.b16 %v385, %v377
    %v466 = vpack.c.b16 %v386, %v378
    %v467 = vpack.c.b16 %v387, %v379
    %v468 = vpack.c.b16 %v388, %v380
    %v469 = vpack.c.b16 %v389, %v381
    %v470 = vpack.c.b16 %v390, %v382
    %v471 = vpack.c.b16 %v391, %v383
    %v472 = vpack.c.b16 %v392, %v384
    %v473 = vpack.c.b16 %v401, %v393
    %v474 = vpack.c.b16 %v402, %v394
    %v475 = vpack.c.b16 %v403, %v395
    %v476 = vpack.c.b16 %v404, %v396
    %v477 = vpack.c.b16 %v405, %v397
    %v478 = vpack.c.b16 %v406, %v398
    %v479 = vpack.c.b16 %v407, %v399
    %v480 = vpack.c.b16 %v408, %v400
    %v481 = vpack.c.b16 %v417, %v409
    %v482 = vpack.c.b16 %v418, %v410
    %v483 = vpack.c.b16 %v419, %v411
    %v484 = vpack.c.b16 %v420, %v412
    %v485 = vpack.c.b16 %v421, %v413
    %v486 = vpack.c.b16 %v422, %v414
    %v487 = vpack.c.b16 %v423, %v415
    %v488 = vpack.c.b16 %v424, %v416
    %553 = vmatprep.subr.bf16.mxu0 %v482
    %554 = vmatpush1.bf16.msra.mxu0 %v481
    %555 = vmatprep.subr.bf16.mxu0 %v474
    %556 = vmatpush1.bf16.msra.mxu0 %v473
    %557 = vmatprep.subr.bf16.mxu0 %v466
    %558 = vmatpush1.bf16.msra.mxu0 %v465
    %559 = vmatprep.subr.bf16.mxu0 %v458
    %560 = vmatpush1.bf16.msra.mxu0 %v457
    %561 = vmatprep.subr.bf16.mxu0 %v450
    %562 = vmatpush1.bf16.msra.mxu0 %v449
    %563 = vmatprep.subr.bf16.mxu0 %v442
    %564 = vmatpush1.bf16.msra.mxu0 %v441
    %565 = vmatprep.subr.bf16.mxu0 %v434
    %566 = vmatpush1.bf16.msra.mxu0 %v433
    %567 = vmatprep.subr.bf16.mxu0 %v426
    %568 = vmatpush1.bf16.msra.mxu0 %v425
    %569 = vmatprep.subr.bf16.mxu0 0
    %570 = vmatpush2.bf16.msra.mxu0 0
    %571 = vmatprep.subr.bf16.mxu0 0
    %572 = vmatpush2.bf16.msra.mxu0 0
    %573 = vmatprep.subr.bf16.mxu0 0
    %574 = vmatpush2.bf16.msra.mxu0 0
    %575 = vmatprep.subr.bf16.mxu0 0
    %576 = vmatpush2.bf16.msra.mxu0 0
    %577 = vmatprep.subr.bf16.mxu0 0
    %578 = vmatpush2.bf16.msra.mxu0 0
    %579 = vmatprep.subr.bf16.mxu0 0
    %580 = vmatpush2.bf16.msra.mxu0 0
    %581 = vmatprep.subr.bf16.mxu0 0
    %582 = vmatpush2.bf16.msra.mxu0 0
    %583 = vmatprep.subr.bf16.mxu0 0
    %584 = vmatpush2.bf16.msra.mxu0 0
    %585 = vmatprep.mubr.bf16.mxu0 0
    %586 = vmatmul.mubr.bf16.gmra.mxu0 %v231
    %v587 = vpop.f32.mrf.mxu0
    %v588 = vadd.f32 %v190, %v587
    %v589 = vpop.f32.mrf.mxu0
    %v590 = vadd.f32 %v194, %v589
    %v591 = vpop.f32.mrf.mxu0
    %v592 = vadd.f32 %v190, %v591
    %v593 = vpop.f32.mrf.mxu0
    %v594 = vadd.f32 %v194, %v593
    %595 = vdwg.mxu0
    %596 = vmatprep.subr.bf16.mxu0 %v484
    %597 = vmatpush1.bf16.msra.mxu0 %v483
    %598 = vmatprep.subr.bf16.mxu0 %v476
    %599 = vmatpush1.bf16.msra.mxu0 %v475
    %600 = vmatprep.subr.bf16.mxu0 %v468
    %601 = vmatpush1.bf16.msra.mxu0 %v467
    %602 = vmatprep.subr.bf16.mxu0 %v460
    %603 = vmatpush1.bf16.msra.mxu0 %v459
    %604 = vmatprep.subr.bf16.mxu0 %v452
    %605 = vmatpush1.bf16.msra.mxu0 %v451
    %606 = vmatprep.subr.bf16.mxu0 %v444
    %607 = vmatpush1.bf16.msra.mxu0 %v443
    %608 = vmatprep.subr.bf16.mxu0 %v436
    %609 = vmatpush1.bf16.msra.mxu0 %v435
    %610 = vmatprep.subr.bf16.mxu0 %v428
    %611 = vmatpush1.bf16.msra.mxu0 %v427
    %612 = vmatprep.subr.bf16.mxu0 0
    %613 = vmatpush2.bf16.msra.mxu0 0
    %614 = vmatprep.subr.bf16.mxu0 0
    %615 = vmatpush2.bf16.msra.mxu0 0
    %616 = vmatprep.subr.bf16.mxu0 0
    %617 = vmatpush2.bf16.msra.mxu0 0
    %618 = vmatprep.subr.bf16.mxu0 0
    %619 = vmatpush2.bf16.msra.mxu0 0
    %620 = vmatprep.subr.bf16.mxu0 0
    %621 = vmatpush2.bf16.msra.mxu0 0
    %622 = vmatprep.subr.bf16.mxu0 0
    %623 = vmatpush2.bf16.msra.mxu0 0
    %624 = vmatprep.subr.bf16.mxu0 0
    %625 = vmatpush2.bf16.msra.mxu0 0
    %626 = vmatprep.subr.bf16.mxu0 0
    %627 = vmatpush2.bf16.msra.mxu0 0
    %628 = vmatprep.mubr.bf16.mxu0 0
    %629 = vmatmul.mubr.bf16.gmra.mxu0 %v231
    %v630 = vpop.f32.mrf.mxu0
    %v631 = vadd.f32 %v198, %v630
    %v632 = vpop.f32.mrf.mxu0
    %v633 = vadd.f32 %v202, %v632
    %v634 = vpop.f32.mrf.mxu0
    %v635 = vadd.f32 %v198, %v634
    %v636 = vpop.f32.mrf.mxu0
    %v637 = vadd.f32 %v202, %v636
    %638 = vdwg.mxu0
    %639 = vmatprep.subr.bf16.mxu0 %v486
    %640 = vmatpush1.bf16.msra.mxu0 %v485
    %641 = vmatprep.subr.bf16.mxu0 %v478
    %642 = vmatpush1.bf16.msra.mxu0 %v477
    %643 = vmatprep.subr.bf16.mxu0 %v470
    %644 = vmatpush1.bf16.msra.mxu0 %v469
    %645 = vmatprep.subr.bf16.mxu0 %v462
    %646 = vmatpush1.bf16.msra.mxu0 %v461
    %647 = vmatprep.subr.bf16.mxu0 %v454
    %648 = vmatpush1.bf16.msra.mxu0 %v453
    %649 = vmatprep.subr.bf16.mxu0 %v446
    %650 = vmatpush1.bf16.msra.mxu0 %v445
    %651 = vmatprep.subr.bf16.mxu0 %v438
    %652 = vmatpush1.bf16.msra.mxu0 %v437
    %653 = vmatprep.subr.bf16.mxu0 %v430
    %654 = vmatpush1.bf16.msra.mxu0 %v429
    %655 = vmatprep.subr.bf16.mxu0 0
    %656 = vmatpush2.bf16.msra.mxu0 0
    %657 = vmatprep.subr.bf16.mxu0 0
    %658 = vmatpush2.bf16.msra.mxu0 0
    %659 = vmatprep.subr.bf16.mxu0 0
    %660 = vmatpush2.bf16.msra.mxu0 0
    %661 = vmatprep.subr.bf16.mxu0 0
    %662 = vmatpush2.bf16.msra.mxu0 0
    %663 = vmatprep.subr.bf16.mxu0 0
    %664 = vmatpush2.bf16.msra.mxu0 0
    %665 = vmatprep.subr.bf16.mxu0 0
    %666 = vmatpush2.bf16.msra.mxu0 0
    %667 = vmatprep.subr.bf16.mxu0 0
    %668 = vmatpush2.bf16.msra.mxu0 0
    %669 = vmatprep.subr.bf16.mxu0 0
    %670 = vmatpush2.bf16.msra.mxu0 0
    %671 = vmatprep.mubr.bf16.mxu0 0
    %672 = vmatmul.mubr.bf16.gmra.mxu0 %v231
    %v673 = vpop.f32.mrf.mxu0
    %v674 = vadd.f32 %v206, %v673
    %v675 = vpop.f32.mrf.mxu0
    %v676 = vadd.f32 %v210, %v675
    %v677 = vpop.f32.mrf.mxu0
    %v678 = vadd.f32 %v206, %v677
    %v679 = vpop.f32.mrf.mxu0
    %v680 = vadd.f32 %v210, %v679
    %681 = vdwg.mxu0
    %682 = vmatprep.subr.bf16.mxu0 %v488
    %683 = vmatpush1.bf16.msra.mxu0 %v487
    %684 = vmatprep.subr.bf16.mxu0 %v480
    %685 = vmatpush1.bf16.msra.mxu0 %v479
    %686 = vmatprep.subr.bf16.mxu0 %v472
    %687 = vmatpush1.bf16.msra.mxu0 %v471
    %688 = vmatprep.subr.bf16.mxu0 %v464
    %689 = vmatpush1.bf16.msra.mxu0 %v463
    %690 = vmatprep.subr.bf16.mxu0 %v456
    %691 = vmatpush1.bf16.msra.mxu0 %v455
    %692 = vmatprep.subr.bf16.mxu0 %v448
    %693 = vmatpush1.bf16.msra.mxu0 %v447
    %694 = vmatprep.subr.bf16.mxu0 %v440
    %695 = vmatpush1.bf16.msra.mxu0 %v439
    %696 = vmatprep.subr.bf16.mxu0 %v432
    %697 = vmatpush1.bf16.msra.mxu0 %v431
    %698 = vmatprep.subr.bf16.mxu0 0
    %699 = vmatpush2.bf16.msra.mxu0 0
    %700 = vmatprep.subr.bf16.mxu0 0
    %701 = vmatpush2.bf16.msra.mxu0 0
    %702 = vmatprep.subr.bf16.mxu0 0
    %703 = vmatpush2.bf16.msra.mxu0 0
    %704 = vmatprep.subr.bf16.mxu0 0
    %705 = vmatpush2.bf16.msra.mxu0 0
    %706 = vmatprep.subr.bf16.mxu0 0
    %707 = vmatpush2.bf16.msra.mxu0 0
    %708 = vmatprep.subr.bf16.mxu0 0
    %709 = vmatpush2.bf16.msra.mxu0 0
    %710 = vmatprep.subr.bf16.mxu0 0
    %711 = vmatpush2.bf16.msra.mxu0 0
    %712 = vmatprep.subr.bf16.mxu0 0
    %713 = vmatpush2.bf16.msra.mxu0 0
    %714 = vmatprep.mubr.bf16.mxu0 0
    %715 = vmatmul.mubr.bf16.gmra.mxu0 %v231
    %v716 = vpop.f32.mrf.mxu0
    %v717 = vadd.f32 %v214, %v716
    %v718 = vpop.f32.mrf.mxu0
    %v719 = vadd.f32 %v218, %v718
    %v720 = vpop.f32.mrf.mxu0
    %v721 = vadd.f32 %v214, %v720
    %v722 = vpop.f32.mrf.mxu0
    %v723 = vadd.f32 %v218, %v722
    %724 = vdwg.mxu0
    %v725 = vmax.f32 %v588, 0.0
    %v726 = vmax.f32 %v590, 0.0
    %v727 = vmax.f32 %v631, 0.0
    %v728 = vmax.f32 %v633, 0.0
    %v729 = vmax.f32 %v674, 0.0
    %v730 = vmax.f32 %v676, 0.0
    %v731 = vmax.f32 %v717, 0.0
    %v732 = vmax.f32 %v719, 0.0
    %v733 = vmax.f32 %v592, 0.0
    %v734 = vmax.f32 %v594, 0.0
    %v735 = vmax.f32 %v635, 0.0
    %v736 = vmax.f32 %v637, 0.0
    %v737 = vmax.f32 %v678, 0.0
    %v738 = vmax.f32 %v680, 0.0
    %v739 = vmax.f32 %v721, 0.0
    %v740 = vmax.f32 %v723, 0.0
    %v741 = vpack.c.bf16 %v733, %v725
    %v742 = vpack.c.bf16 %v734, %v726
    %v743 = vpack.c.bf16 %v735, %v727
    %v744 = vpack.c.bf16 %v736, %v728
    %v745 = vpack.c.bf16 %v737, %v729
    %v746 = vpack.c.bf16 %v738, %v730
    %v747 = vpack.c.bf16 %v739, %v731
    %v748 = vpack.c.bf16 %v740, %v732
    %v749 = vld [vmem:[#allocation7] sm:$0xff]
    %v750 = vld [vmem:[#allocation7 + $0x8] sm:$0xff]
    %v751 = vld [vmem:[#allocation7 + $0x10] sm:$0xff]
    %v752 = vld [vmem:[#allocation7 + $0x18] sm:$0xff]
    %v753 = vld [vmem:[#allocation7 + $0x20] sm:$0xff]
    %v754 = vld [vmem:[#allocation7 + $0x28] sm:$0xff]
    %v755 = vld [vmem:[#allocation7 + $0x30] sm:$0xff]
    %v756 = vld [vmem:[#allocation7 + $0x38] sm:$0xff]
    %v757 = vld [vmem:[#allocation7 + $0x40] sm:$0xff]
    %v758 = vld [vmem:[#allocation7 + $0x48] sm:$0xff]
    %v759 = vld [vmem:[#allocation7 + $0x50] sm:$0xff]
    %v760 = vld [vmem:[#allocation7 + $0x58] sm:$0xff]
    %v761 = vld [vmem:[#allocation7 + $0x60] sm:$0xff]
    %v762 = vld [vmem:[#allocation7 + $0x68] sm:$0xff]
    %v763 = vld [vmem:[#allocation7 + $0x70] sm:$0xff]
    %v764 = vld [vmem:[#allocation7 + $0x78] sm:$0xff]
    %v765 = vld [vmem:[#allocation7 + $0x80] sm:$0xff]
    %v766 = vld [vmem:[#allocation7 + $0x88] sm:$0xff]
    %v767 = vld [vmem:[#allocation7 + $0x90] sm:$0xff]
    %v768 = vld [vmem:[#allocation7 + $0x98] sm:$0xff]
    %v769 = vld [vmem:[#allocation7 + $0xa0] sm:$0xff]
    %v770 = vld [vmem:[#allocation7 + $0xa8] sm:$0xff]
    %v771 = vld [vmem:[#allocation7 + $0xb0] sm:$0xff]
    %v772 = vld [vmem:[#allocation7 + $0xb8] sm:$0xff]
    %v773 = vld [vmem:[#allocation7 + $0xc0] sm:$0xff]
    %v774 = vld [vmem:[#allocation7 + $0xc8] sm:$0xff]
    %v775 = vld [vmem:[#allocation7 + $0xd0] sm:$0xff]
    %v776 = vld [vmem:[#allocation7 + $0xd8] sm:$0xff]
    %v777 = vld [vmem:[#allocation7 + $0xe0] sm:$0xff]
    %v778 = vld [vmem:[#allocation7 + $0xe8] sm:$0xff]
    %v779 = vld [vmem:[#allocation7 + $0xf0] sm:$0xff]
    %v780 = vld [vmem:[#allocation7 + $0xf8] sm:$0xff]
    %v781 = vld [vmem:[#allocation7 + $0x100] sm:$0xff]
    %v782 = vld [vmem:[#allocation7 + $0x108] sm:$0xff]
    %v783 = vld [vmem:[#allocation7 + $0x110] sm:$0xff]
    %v784 = vld [vmem:[#allocation7 + $0x118] sm:$0xff]
    %v785 = vld [vmem:[#allocation7 + $0x120] sm:$0xff]
    %v786 = vld [vmem:[#allocation7 + $0x128] sm:$0xff]
    %v787 = vld [vmem:[#allocation7 + $0x130] sm:$0xff]
    %v788 = vld [vmem:[#allocation7 + $0x138] sm:$0xff]
    %v789 = vld [vmem:[#allocation7 + $0x140] sm:$0xff]
    %v790 = vld [vmem:[#allocation7 + $0x148] sm:$0xff]
    %v791 = vld [vmem:[#allocation7 + $0x150] sm:$0xff]
    %v792 = vld [vmem:[#allocation7 + $0x158] sm:$0xff]
    %v793 = vld [vmem:[#allocation7 + $0x160] sm:$0xff]
    %v794 = vld [vmem:[#allocation7 + $0x168] sm:$0xff]
    %v795 = vld [vmem:[#allocation7 + $0x170] sm:$0xff]
    %v796 = vld [vmem:[#allocation7 + $0x178] sm:$0xff]
    %v797 = vld [vmem:[#allocation7 + $0x180] sm:$0xff]
    %v798 = vld [vmem:[#allocation7 + $0x188] sm:$0xff]
    %v799 = vld [vmem:[#allocation7 + $0x190] sm:$0xff]
    %v800 = vld [vmem:[#allocation7 + $0x198] sm:$0xff]
    %v801 = vld [vmem:[#allocation7 + $0x1a0] sm:$0xff]
    %v802 = vld [vmem:[#allocation7 + $0x1a8] sm:$0xff]
    %v803 = vld [vmem:[#allocation7 + $0x1b0] sm:$0xff]
    %v804 = vld [vmem:[#allocation7 + $0x1b8] sm:$0xff]
    %v805 = vld [vmem:[#allocation7 + $0x1c0] sm:$0xff]
    %v806 = vld [vmem:[#allocation7 + $0x1c8] sm:$0xff]
    %v807 = vld [vmem:[#allocation7 + $0x1d0] sm:$0xff]
    %v808 = vld [vmem:[#allocation7 + $0x1d8] sm:$0xff]
    %v809 = vld [vmem:[#allocation7 + $0x1e0] sm:$0xff]
    %v810 = vld [vmem:[#allocation7 + $0x1e8] sm:$0xff]
    %v811 = vld [vmem:[#allocation7 + $0x1f0] sm:$0xff]
    %v812 = vld [vmem:[#allocation7 + $0x1f8] sm:$0xff]
    %v813 = vld [vmem:[#allocation7 + $0x200] sm:$0xff]
    %v814 = vld [vmem:[#allocation7 + $0x208] sm:$0xff]
    %v815 = vld [vmem:[#allocation7 + $0x210] sm:$0xff]
    %v816 = vld [vmem:[#allocation7 + $0x218] sm:$0xff]
    %v817 = vld [vmem:[#allocation7 + $0x220] sm:$0xff]
    %v818 = vld [vmem:[#allocation7 + $0x228] sm:$0xff]
    %v819 = vld [vmem:[#allocation7 + $0x230] sm:$0xff]
    %v820 = vld [vmem:[#allocation7 + $0x238] sm:$0xff]
    %v821 = vld [vmem:[#allocation7 + $0x240] sm:$0xff]
    %v822 = vld [vmem:[#allocation7 + $0x248] sm:$0xff]
    %v823 = vld [vmem:[#allocation7 + $0x250] sm:$0xff]
    %v824 = vld [vmem:[#allocation7 + $0x258] sm:$0xff]
    %v825 = vld [vmem:[#allocation7 + $0x260] sm:$0xff]
    %v826 = vld [vmem:[#allocation7 + $0x268] sm:$0xff]
    %v827 = vld [vmem:[#allocation7 + $0x270] sm:$0xff]
    %v828 = vld [vmem:[#allocation7 + $0x278] sm:$0xff]
    %v829 = vld [vmem:[#allocation7 + $0x280] sm:$0xff]
    %v830 = vld [vmem:[#allocation7 + $0x288] sm:$0xff]
    %v831 = vld [vmem:[#allocation7 + $0x290] sm:$0xff]
    %v832 = vld [vmem:[#allocation7 + $0x298] sm:$0xff]
    %v833 = vld [vmem:[#allocation7 + $0x2a0] sm:$0xff]
    %v834 = vld [vmem:[#allocation7 + $0x2a8] sm:$0xff]
    %v835 = vld [vmem:[#allocation7 + $0x2b0] sm:$0xff]
    %v836 = vld [vmem:[#allocation7 + $0x2b8] sm:$0xff]
    %v837 = vld [vmem:[#allocation7 + $0x2c0] sm:$0xff]
    %v838 = vld [vmem:[#allocation7 + $0x2c8] sm:$0xff]
    %v839 = vld [vmem:[#allocation7 + $0x2d0] sm:$0xff]
    %v840 = vld [vmem:[#allocation7 + $0x2d8] sm:$0xff]
    %v841 = vld [vmem:[#allocation7 + $0x2e0] sm:$0xff]
    %v842 = vld [vmem:[#allocation7 + $0x2e8] sm:$0xff]
    %v843 = vld [vmem:[#allocation7 + $0x2f0] sm:$0xff]
    %v844 = vld [vmem:[#allocation7 + $0x2f8] sm:$0xff]
    %v845 = vld [vmem:[#allocation7 + $0x300] sm:$0xff]
    %v846 = vld [vmem:[#allocation7 + $0x308] sm:$0xff]
    %v847 = vld [vmem:[#allocation7 + $0x310] sm:$0xff]
    %v848 = vld [vmem:[#allocation7 + $0x318] sm:$0xff]
    %v849 = vld [vmem:[#allocation7 + $0x320] sm:$0xff]
    %v850 = vld [vmem:[#allocation7 + $0x328] sm:$0xff]
    %v851 = vld [vmem:[#allocation7 + $0x330] sm:$0xff]
    %v852 = vld [vmem:[#allocation7 + $0x338] sm:$0xff]
    %v853 = vld [vmem:[#allocation7 + $0x340] sm:$0xff]
    %v854 = vld [vmem:[#allocation7 + $0x348] sm:$0xff]
    %v855 = vld [vmem:[#allocation7 + $0x350] sm:$0xff]
    %v856 = vld [vmem:[#allocation7 + $0x358] sm:$0xff]
    %v857 = vld [vmem:[#allocation7 + $0x360] sm:$0xff]
    %v858 = vld [vmem:[#allocation7 + $0x368] sm:$0xff]
    %v859 = vld [vmem:[#allocation7 + $0x370] sm:$0xff]
    %v860 = vld [vmem:[#allocation7 + $0x378] sm:$0xff]
    %v861 = vld [vmem:[#allocation7 + $0x380] sm:$0xff]
    %v862 = vld [vmem:[#allocation7 + $0x388] sm:$0xff]
    %v863 = vld [vmem:[#allocation7 + $0x390] sm:$0xff]
    %v864 = vld [vmem:[#allocation7 + $0x398] sm:$0xff]
    %v865 = vld [vmem:[#allocation7 + $0x3a0] sm:$0xff]
    %v866 = vld [vmem:[#allocation7 + $0x3a8] sm:$0xff]
    %v867 = vld [vmem:[#allocation7 + $0x3b0] sm:$0xff]
    %v868 = vld [vmem:[#allocation7 + $0x3b8] sm:$0xff]
    %v869 = vld [vmem:[#allocation7 + $0x3c0] sm:$0xff]
    %v870 = vld [vmem:[#allocation7 + $0x3c8] sm:$0xff]
    %v871 = vld [vmem:[#allocation7 + $0x3d0] sm:$0xff]
    %v872 = vld [vmem:[#allocation7 + $0x3d8] sm:$0xff]
    %v873 = vld [vmem:[#allocation7 + $0x3e0] sm:$0xff]
    %v874 = vld [vmem:[#allocation7 + $0x3e8] sm:$0xff]
    %v875 = vld [vmem:[#allocation7 + $0x3f0] sm:$0xff]
    %v876 = vld [vmem:[#allocation7 + $0x3f8] sm:$0xff]
    %v877 = vld [vmem:[#allocation7 + $0x400] sm:$0xff]
    %v878 = vld [vmem:[#allocation7 + $0x408] sm:$0xff]
    %v879 = vld [vmem:[#allocation7 + $0x410] sm:$0xff]
    %v880 = vld [vmem:[#allocation7 + $0x418] sm:$0xff]
    %v881 = vld [vmem:[#allocation7 + $0x420] sm:$0xff]
    %v882 = vld [vmem:[#allocation7 + $0x428] sm:$0xff]
    %v883 = vld [vmem:[#allocation7 + $0x430] sm:$0xff]
    %v884 = vld [vmem:[#allocation7 + $0x438] sm:$0xff]
    %v885 = vld [vmem:[#allocation7 + $0x440] sm:$0xff]
    %v886 = vld [vmem:[#allocation7 + $0x448] sm:$0xff]
    %v887 = vld [vmem:[#allocation7 + $0x450] sm:$0xff]
    %v888 = vld [vmem:[#allocation7 + $0x458] sm:$0xff]
    %v889 = vld [vmem:[#allocation7 + $0x460] sm:$0xff]
    %v890 = vld [vmem:[#allocation7 + $0x468] sm:$0xff]
    %v891 = vld [vmem:[#allocation7 + $0x470] sm:$0xff]
    %v892 = vld [vmem:[#allocation7 + $0x478] sm:$0xff]
    %v893 = vld [vmem:[#allocation7 + $0x480] sm:$0xff]
    %v894 = vld [vmem:[#allocation7 + $0x488] sm:$0xff]
    %v895 = vld [vmem:[#allocation7 + $0x490] sm:$0xff]
    %v896 = vld [vmem:[#allocation7 + $0x498] sm:$0xff]
    %v897 = vld [vmem:[#allocation7 + $0x4a0] sm:$0xff]
    %v898 = vld [vmem:[#allocation7 + $0x4a8] sm:$0xff]
    %v899 = vld [vmem:[#allocation7 + $0x4b0] sm:$0xff]
    %v900 = vld [vmem:[#allocation7 + $0x4b8] sm:$0xff]
    %v901 = vld [vmem:[#allocation7 + $0x4c0] sm:$0xff]
    %v902 = vld [vmem:[#allocation7 + $0x4c8] sm:$0xff]
    %v903 = vld [vmem:[#allocation7 + $0x4d0] sm:$0xff]
    %v904 = vld [vmem:[#allocation7 + $0x4d8] sm:$0xff]
    %v905 = vld [vmem:[#allocation7 + $0x4e0] sm:$0xff]
    %v906 = vld [vmem:[#allocation7 + $0x4e8] sm:$0xff]
    %v907 = vld [vmem:[#allocation7 + $0x4f0] sm:$0xff]
    %v908 = vld [vmem:[#allocation7 + $0x4f8] sm:$0xff]
    %v909 = vld [vmem:[#allocation7 + $0x500] sm:$0xff]
    %v910 = vld [vmem:[#allocation7 + $0x508] sm:$0xff]
    %v911 = vld [vmem:[#allocation7 + $0x510] sm:$0xff]
    %v912 = vld [vmem:[#allocation7 + $0x518] sm:$0xff]
    %v913 = vld [vmem:[#allocation7 + $0x520] sm:$0xff]
    %v914 = vld [vmem:[#allocation7 + $0x528] sm:$0xff]
    %v915 = vld [vmem:[#allocation7 + $0x530] sm:$0xff]
    %v916 = vld [vmem:[#allocation7 + $0x538] sm:$0xff]
    %v917 = vld [vmem:[#allocation7 + $0x540] sm:$0xff]
    %v918 = vld [vmem:[#allocation7 + $0x548] sm:$0xff]
    %v919 = vld [vmem:[#allocation7 + $0x550] sm:$0xff]
    %v920 = vld [vmem:[#allocation7 + $0x558] sm:$0xff]
    %v921 = vld [vmem:[#allocation7 + $0x560] sm:$0xff]
    %v922 = vld [vmem:[#allocation7 + $0x568] sm:$0xff]
    %v923 = vld [vmem:[#allocation7 + $0x570] sm:$0xff]
    %v924 = vld [vmem:[#allocation7 + $0x578] sm:$0xff]
    %v925 = vld [vmem:[#allocation7 + $0x580] sm:$0xff]
    %v926 = vld [vmem:[#allocation7 + $0x588] sm:$0xff]
    %v927 = vld [vmem:[#allocation7 + $0x590] sm:$0xff]
    %v928 = vld [vmem:[#allocation7 + $0x598] sm:$0xff]
    %v929 = vld [vmem:[#allocation7 + $0x5a0] sm:$0xff]
    %v930 = vld [vmem:[#allocation7 + $0x5a8] sm:$0xff]
    %v931 = vld [vmem:[#allocation7 + $0x5b0] sm:$0xff]
    %v932 = vld [vmem:[#allocation7 + $0x5b8] sm:$0xff]
    %v933 = vld [vmem:[#allocation7 + $0x5c0] sm:$0xff]
    %v934 = vld [vmem:[#allocation7 + $0x5c8] sm:$0xff]
    %v935 = vld [vmem:[#allocation7 + $0x5d0] sm:$0xff]
    %v936 = vld [vmem:[#allocation7 + $0x5d8] sm:$0xff]
    %v937 = vld [vmem:[#allocation7 + $0x5e0] sm:$0xff]
    %v938 = vld [vmem:[#allocation7 + $0x5e8] sm:$0xff]
    %v939 = vld [vmem:[#allocation7 + $0x5f0] sm:$0xff]
    %v940 = vld [vmem:[#allocation7 + $0x5f8] sm:$0xff]
    %v941 = vld [vmem:[#allocation7 + $0x600] sm:$0xff]
    %v942 = vld [vmem:[#allocation7 + $0x608] sm:$0xff]
    %v943 = vld [vmem:[#allocation7 + $0x610] sm:$0xff]
    %v944 = vld [vmem:[#allocation7 + $0x618] sm:$0xff]
    %v945 = vld [vmem:[#allocation7 + $0x620] sm:$0xff]
    %v946 = vld [vmem:[#allocation7 + $0x628] sm:$0xff]
    %v947 = vld [vmem:[#allocation7 + $0x630] sm:$0xff]
    %v948 = vld [vmem:[#allocation7 + $0x638] sm:$0xff]
    %v949 = vld [vmem:[#allocation7 + $0x640] sm:$0xff]
    %v950 = vld [vmem:[#allocation7 + $0x648] sm:$0xff]
    %v951 = vld [vmem:[#allocation7 + $0x650] sm:$0xff]
    %v952 = vld [vmem:[#allocation7 + $0x658] sm:$0xff]
    %v953 = vld [vmem:[#allocation7 + $0x660] sm:$0xff]
    %v954 = vld [vmem:[#allocation7 + $0x668] sm:$0xff]
    %v955 = vld [vmem:[#allocation7 + $0x670] sm:$0xff]
    %v956 = vld [vmem:[#allocation7 + $0x678] sm:$0xff]
    %v957 = vld [vmem:[#allocation7 + $0x680] sm:$0xff]
    %v958 = vld [vmem:[#allocation7 + $0x688] sm:$0xff]
    %v959 = vld [vmem:[#allocation7 + $0x690] sm:$0xff]
    %v960 = vld [vmem:[#allocation7 + $0x698] sm:$0xff]
    %v961 = vld [vmem:[#allocation7 + $0x6a0] sm:$0xff]
    %v962 = vld [vmem:[#allocation7 + $0x6a8] sm:$0xff]
    %v963 = vld [vmem:[#allocation7 + $0x6b0] sm:$0xff]
    %v964 = vld [vmem:[#allocation7 + $0x6b8] sm:$0xff]
    %v965 = vld [vmem:[#allocation7 + $0x6c0] sm:$0xff]
    %v966 = vld [vmem:[#allocation7 + $0x6c8] sm:$0xff]
    %v967 = vld [vmem:[#allocation7 + $0x6d0] sm:$0xff]
    %v968 = vld [vmem:[#allocation7 + $0x6d8] sm:$0xff]
    %v969 = vld [vmem:[#allocation7 + $0x6e0] sm:$0xff]
    %v970 = vld [vmem:[#allocation7 + $0x6e8] sm:$0xff]
    %v971 = vld [vmem:[#allocation7 + $0x6f0] sm:$0xff]
    %v972 = vld [vmem:[#allocation7 + $0x6f8] sm:$0xff]
    %v973 = vld [vmem:[#allocation7 + $0x700] sm:$0xff]
    %v974 = vld [vmem:[#allocation7 + $0x708] sm:$0xff]
    %v975 = vld [vmem:[#allocation7 + $0x710] sm:$0xff]
    %v976 = vld [vmem:[#allocation7 + $0x718] sm:$0xff]
    %v977 = vld [vmem:[#allocation7 + $0x720] sm:$0xff]
    %v978 = vld [vmem:[#allocation7 + $0x728] sm:$0xff]
    %v979 = vld [vmem:[#allocation7 + $0x730] sm:$0xff]
    %v980 = vld [vmem:[#allocation7 + $0x738] sm:$0xff]
    %v981 = vld [vmem:[#allocation7 + $0x740] sm:$0xff]
    %v982 = vld [vmem:[#allocation7 + $0x748] sm:$0xff]
    %v983 = vld [vmem:[#allocation7 + $0x750] sm:$0xff]
    %v984 = vld [vmem:[#allocation7 + $0x758] sm:$0xff]
    %v985 = vld [vmem:[#allocation7 + $0x760] sm:$0xff]
    %v986 = vld [vmem:[#allocation7 + $0x768] sm:$0xff]
    %v987 = vld [vmem:[#allocation7 + $0x770] sm:$0xff]
    %v988 = vld [vmem:[#allocation7 + $0x778] sm:$0xff]
    %v989 = vld [vmem:[#allocation7 + $0x780] sm:$0xff]
    %v990 = vld [vmem:[#allocation7 + $0x788] sm:$0xff]
    %v991 = vld [vmem:[#allocation7 + $0x790] sm:$0xff]
    %v992 = vld [vmem:[#allocation7 + $0x798] sm:$0xff]
    %v993 = vld [vmem:[#allocation7 + $0x7a0] sm:$0xff]
    %v994 = vld [vmem:[#allocation7 + $0x7a8] sm:$0xff]
    %v995 = vld [vmem:[#allocation7 + $0x7b0] sm:$0xff]
    %v996 = vld [vmem:[#allocation7 + $0x7b8] sm:$0xff]
    %v997 = vld [vmem:[#allocation7 + $0x7c0] sm:$0xff]
    %v998 = vld [vmem:[#allocation7 + $0x7c8] sm:$0xff]
    %v999 = vld [vmem:[#allocation7 + $0x7d0] sm:$0xff]
    %v1000 = vld [vmem:[#allocation7 + $0x7d8] sm:$0xff]
    %v1001 = vld [vmem:[#allocation7 + $0x7e0] sm:$0xff]
    %v1002 = vld [vmem:[#allocation7 + $0x7e8] sm:$0xff]
    %v1003 = vld [vmem:[#allocation7 + $0x7f0] sm:$0xff]
    %v1004 = vld [vmem:[#allocation7 + $0x7f8] sm:$0xff]
    %v1005 = vld [vmem:[#allocation7 + $0x800] sm:$0xff]
    %v1006 = vld [vmem:[#allocation7 + $0x808] sm:$0xff]
    %v1007 = vld [vmem:[#allocation7 + $0x810] sm:$0xff]
    %v1008 = vld [vmem:[#allocation7 + $0x818] sm:$0xff]
    %v1009 = vld [vmem:[#allocation7 + $0x820] sm:$0xff]
    %v1010 = vld [vmem:[#allocation7 + $0x828] sm:$0xff]
    %v1011 = vld [vmem:[#allocation7 + $0x830] sm:$0xff]
    %v1012 = vld [vmem:[#allocation7 + $0x838] sm:$0xff]
    %v1013 = vld [vmem:[#allocation7 + $0x840] sm:$0xff]
    %v1014 = vld [vmem:[#allocation7 + $0x848] sm:$0xff]
    %v1015 = vld [vmem:[#allocation7 + $0x850] sm:$0xff]
    %v1016 = vld [vmem:[#allocation7 + $0x858] sm:$0xff]
    %v1017 = vld [vmem:[#allocation7 + $0x860] sm:$0xff]
    %v1018 = vld [vmem:[#allocation7 + $0x868] sm:$0xff]
    %v1019 = vld [vmem:[#allocation7 + $0x870] sm:$0xff]
    %v1020 = vld [vmem:[#allocation7 + $0x878] sm:$0xff]
    %v1021 = vld [vmem:[#allocation7 + $0x880] sm:$0xff]
    %v1022 = vld [vmem:[#allocation7 + $0x888] sm:$0xff]
    %v1023 = vld [vmem:[#allocation7 + $0x890] sm:$0xff]
    %v1024 = vld [vmem:[#allocation7 + $0x898] sm:$0xff]
    %v1025 = vld [vmem:[#allocation7 + $0x8a0] sm:$0xff]
    %v1026 = vld [vmem:[#allocation7 + $0x8a8] sm:$0xff]
    %v1027 = vld [vmem:[#allocation7 + $0x8b0] sm:$0xff]
    %v1028 = vld [vmem:[#allocation7 + $0x8b8] sm:$0xff]
    %v1029 = vld [vmem:[#allocation7 + $0x8c0] sm:$0xff]
    %v1030 = vld [vmem:[#allocation7 + $0x8c8] sm:$0xff]
    %v1031 = vld [vmem:[#allocation7 + $0x8d0] sm:$0xff]
    %v1032 = vld [vmem:[#allocation7 + $0x8d8] sm:$0xff]
    %v1033 = vld [vmem:[#allocation7 + $0x8e0] sm:$0xff]
    %v1034 = vld [vmem:[#allocation7 + $0x8e8] sm:$0xff]
    %v1035 = vld [vmem:[#allocation7 + $0x8f0] sm:$0xff]
    %v1036 = vld [vmem:[#allocation7 + $0x8f8] sm:$0xff]
    %v1037 = vld [vmem:[#allocation7 + $0x900] sm:$0xff]
    %v1038 = vld [vmem:[#allocation7 + $0x908] sm:$0xff]
    %v1039 = vld [vmem:[#allocation7 + $0x910] sm:$0xff]
    %v1040 = vld [vmem:[#allocation7 + $0x918] sm:$0xff]
    %v1041 = vld [vmem:[#allocation7 + $0x920] sm:$0xff]
    %v1042 = vld [vmem:[#allocation7 + $0x928] sm:$0xff]
    %v1043 = vld [vmem:[#allocation7 + $0x930] sm:$0xff]
    %v1044 = vld [vmem:[#allocation7 + $0x938] sm:$0xff]
    %v1045 = vld [vmem:[#allocation7 + $0x940] sm:$0xff]
    %v1046 = vld [vmem:[#allocation7 + $0x948] sm:$0xff]
    %v1047 = vld [vmem:[#allocation7 + $0x950] sm:$0xff]
    %v1048 = vld [vmem:[#allocation7 + $0x958] sm:$0xff]
    %v1049 = vld [vmem:[#allocation7 + $0x960] sm:$0xff]
    %v1050 = vld [vmem:[#allocation7 + $0x968] sm:$0xff]
    %v1051 = vld [vmem:[#allocation7 + $0x970] sm:$0xff]
    %v1052 = vld [vmem:[#allocation7 + $0x978] sm:$0xff]
    %v1053 = vld [vmem:[#allocation7 + $0x980] sm:$0xff]
    %v1054 = vld [vmem:[#allocation7 + $0x988] sm:$0xff]
    %v1055 = vld [vmem:[#allocation7 + $0x990] sm:$0xff]
    %v1056 = vld [vmem:[#allocation7 + $0x998] sm:$0xff]
    %v1057 = vld [vmem:[#allocation7 + $0x9a0] sm:$0xff]
    %v1058 = vld [vmem:[#allocation7 + $0x9a8] sm:$0xff]
    %v1059 = vld [vmem:[#allocation7 + $0x9b0] sm:$0xff]
    %v1060 = vld [vmem:[#allocation7 + $0x9b8] sm:$0xff]
    %v1061 = vld [vmem:[#allocation7 + $0x9c0] sm:$0xff]
    %v1062 = vld [vmem:[#allocation7 + $0x9c8] sm:$0xff]
    %v1063 = vld [vmem:[#allocation7 + $0x9d0] sm:$0xff]
    %v1064 = vld [vmem:[#allocation7 + $0x9d8] sm:$0xff]
    %v1065 = vld [vmem:[#allocation7 + $0x9e0] sm:$0xff]
    %v1066 = vld [vmem:[#allocation7 + $0x9e8] sm:$0xff]
    %v1067 = vld [vmem:[#allocation7 + $0x9f0] sm:$0xff]
    %v1068 = vld [vmem:[#allocation7 + $0x9f8] sm:$0xff]
    %v1069 = vld [vmem:[#allocation7 + $0xa00] sm:$0xff]
    %v1070 = vld [vmem:[#allocation7 + $0xa08] sm:$0xff]
    %v1071 = vld [vmem:[#allocation7 + $0xa10] sm:$0xff]
    %v1072 = vld [vmem:[#allocation7 + $0xa18] sm:$0xff]
    %v1073 = vld [vmem:[#allocation7 + $0xa20] sm:$0xff]
    %v1074 = vld [vmem:[#allocation7 + $0xa28] sm:$0xff]
    %v1075 = vld [vmem:[#allocation7 + $0xa30] sm:$0xff]
    %v1076 = vld [vmem:[#allocation7 + $0xa38] sm:$0xff]
    %v1077 = vld [vmem:[#allocation7 + $0xa40] sm:$0xff]
    %v1078 = vld [vmem:[#allocation7 + $0xa48] sm:$0xff]
    %v1079 = vld [vmem:[#allocation7 + $0xa50] sm:$0xff]
    %v1080 = vld [vmem:[#allocation7 + $0xa58] sm:$0xff]
    %v1081 = vld [vmem:[#allocation7 + $0xa60] sm:$0xff]
    %v1082 = vld [vmem:[#allocation7 + $0xa68] sm:$0xff]
    %v1083 = vld [vmem:[#allocation7 + $0xa70] sm:$0xff]
    %v1084 = vld [vmem:[#allocation7 + $0xa78] sm:$0xff]
    %v1085 = vld [vmem:[#allocation7 + $0xa80] sm:$0xff]
    %v1086 = vld [vmem:[#allocation7 + $0xa88] sm:$0xff]
    %v1087 = vld [vmem:[#allocation7 + $0xa90] sm:$0xff]
    %v1088 = vld [vmem:[#allocation7 + $0xa98] sm:$0xff]
    %v1089 = vld [vmem:[#allocation7 + $0xaa0] sm:$0xff]
    %v1090 = vld [vmem:[#allocation7 + $0xaa8] sm:$0xff]
    %v1091 = vld [vmem:[#allocation7 + $0xab0] sm:$0xff]
    %v1092 = vld [vmem:[#allocation7 + $0xab8] sm:$0xff]
    %v1093 = vld [vmem:[#allocation7 + $0xac0] sm:$0xff]
    %v1094 = vld [vmem:[#allocation7 + $0xac8] sm:$0xff]
    %v1095 = vld [vmem:[#allocation7 + $0xad0] sm:$0xff]
    %v1096 = vld [vmem:[#allocation7 + $0xad8] sm:$0xff]
    %v1097 = vld [vmem:[#allocation7 + $0xae0] sm:$0xff]
    %v1098 = vld [vmem:[#allocation7 + $0xae8] sm:$0xff]
    %v1099 = vld [vmem:[#allocation7 + $0xaf0] sm:$0xff]
    %v1100 = vld [vmem:[#allocation7 + $0xaf8] sm:$0xff]
    %v1101 = vld [vmem:[#allocation7 + $0xb00] sm:$0xff]
    %v1102 = vld [vmem:[#allocation7 + $0xb08] sm:$0xff]
    %v1103 = vld [vmem:[#allocation7 + $0xb10] sm:$0xff]
    %v1104 = vld [vmem:[#allocation7 + $0xb18] sm:$0xff]
    %v1105 = vld [vmem:[#allocation7 + $0xb20] sm:$0xff]
    %v1106 = vld [vmem:[#allocation7 + $0xb28] sm:$0xff]
    %v1107 = vld [vmem:[#allocation7 + $0xb30] sm:$0xff]
    %v1108 = vld [vmem:[#allocation7 + $0xb38] sm:$0xff]
    %v1109 = vld [vmem:[#allocation7 + $0xb40] sm:$0xff]
    %v1110 = vld [vmem:[#allocation7 + $0xb48] sm:$0xff]
    %v1111 = vld [vmem:[#allocation7 + $0xb50] sm:$0xff]
    %v1112 = vld [vmem:[#allocation7 + $0xb58] sm:$0xff]
    %v1113 = vld [vmem:[#allocation7 + $0xb60] sm:$0xff]
    %v1114 = vld [vmem:[#allocation7 + $0xb68] sm:$0xff]
    %v1115 = vld [vmem:[#allocation7 + $0xb70] sm:$0xff]
    %v1116 = vld [vmem:[#allocation7 + $0xb78] sm:$0xff]
    %v1117 = vld [vmem:[#allocation7 + $0xb80] sm:$0xff]
    %v1118 = vld [vmem:[#allocation7 + $0xb88] sm:$0xff]
    %v1119 = vld [vmem:[#allocation7 + $0xb90] sm:$0xff]
    %v1120 = vld [vmem:[#allocation7 + $0xb98] sm:$0xff]
    %v1121 = vld [vmem:[#allocation7 + $0xba0] sm:$0xff]
    %v1122 = vld [vmem:[#allocation7 + $0xba8] sm:$0xff]
    %v1123 = vld [vmem:[#allocation7 + $0xbb0] sm:$0xff]
    %v1124 = vld [vmem:[#allocation7 + $0xbb8] sm:$0xff]
    %v1125 = vld [vmem:[#allocation7 + $0xbc0] sm:$0xff]
    %v1126 = vld [vmem:[#allocation7 + $0xbc8] sm:$0xff]
    %v1127 = vld [vmem:[#allocation7 + $0xbd0] sm:$0xff]
    %v1128 = vld [vmem:[#allocation7 + $0xbd8] sm:$0xff]
    %v1129 = vld [vmem:[#allocation7 + $0xbe0] sm:$0xff]
    %v1130 = vld [vmem:[#allocation7 + $0xbe8] sm:$0xff]
    %v1131 = vld [vmem:[#allocation7 + $0xbf0] sm:$0xff]
    %v1132 = vld [vmem:[#allocation7 + $0xbf8] sm:$0xff]
    %v1133 = vld [vmem:[#allocation7 + $0xc00] sm:$0xff]
    %v1134 = vld [vmem:[#allocation7 + $0xc08] sm:$0xff]
    %v1135 = vld [vmem:[#allocation7 + $0xc10] sm:$0xff]
    %v1136 = vld [vmem:[#allocation7 + $0xc18] sm:$0xff]
    %v1137 = vld [vmem:[#allocation7 + $0xc20] sm:$0xff]
    %v1138 = vld [vmem:[#allocation7 + $0xc28] sm:$0xff]
    %v1139 = vld [vmem:[#allocation7 + $0xc30] sm:$0xff]
    %v1140 = vld [vmem:[#allocation7 + $0xc38] sm:$0xff]
    %v1141 = vld [vmem:[#allocation7 + $0xc40] sm:$0xff]
    %v1142 = vld [vmem:[#allocation7 + $0xc48] sm:$0xff]
    %v1143 = vld [vmem:[#allocation7 + $0xc50] sm:$0xff]
    %v1144 = vld [vmem:[#allocation7 + $0xc58] sm:$0xff]
    %v1145 = vld [vmem:[#allocation7 + $0xc60] sm:$0xff]
    %v1146 = vld [vmem:[#allocation7 + $0xc68] sm:$0xff]
    %v1147 = vld [vmem:[#allocation7 + $0xc70] sm:$0xff]
    %v1148 = vld [vmem:[#allocation7 + $0xc78] sm:$0xff]
    %v1149 = vld [vmem:[#allocation7 + $0xc80] sm:$0xff]
    %v1150 = vld [vmem:[#allocation7 + $0xc88] sm:$0xff]
    %v1151 = vld [vmem:[#allocation7 + $0xc90] sm:$0xff]
    %v1152 = vld [vmem:[#allocation7 + $0xc98] sm:$0xff]
    %v1153 = vld [vmem:[#allocation7 + $0xca0] sm:$0xff]
    %v1154 = vld [vmem:[#allocation7 + $0xca8] sm:$0xff]
    %v1155 = vld [vmem:[#allocation7 + $0xcb0] sm:$0xff]
    %v1156 = vld [vmem:[#allocation7 + $0xcb8] sm:$0xff]
    %v1157 = vld [vmem:[#allocation7 + $0xcc0] sm:$0xff]
    %v1158 = vld [vmem:[#allocation7 + $0xcc8] sm:$0xff]
    %v1159 = vld [vmem:[#allocation7 + $0xcd0] sm:$0xff]
    %v1160 = vld [vmem:[#allocation7 + $0xcd8] sm:$0xff]
    %v1161 = vld [vmem:[#allocation7 + $0xce0] sm:$0xff]
    %v1162 = vld [vmem:[#allocation7 + $0xce8] sm:$0xff]
    %v1163 = vld [vmem:[#allocation7 + $0xcf0] sm:$0xff]
    %v1164 = vld [vmem:[#allocation7 + $0xcf8] sm:$0xff]
    %v1165 = vld [vmem:[#allocation7 + $0xd00] sm:$0xff]
    %v1166 = vld [vmem:[#allocation7 + $0xd08] sm:$0xff]
    %v1167 = vld [vmem:[#allocation7 + $0xd10] sm:$0xff]
    %v1168 = vld [vmem:[#allocation7 + $0xd18] sm:$0xff]
    %v1169 = vld [vmem:[#allocation7 + $0xd20] sm:$0xff]
    %v1170 = vld [vmem:[#allocation7 + $0xd28] sm:$0xff]
    %v1171 = vld [vmem:[#allocation7 + $0xd30] sm:$0xff]
    %v1172 = vld [vmem:[#allocation7 + $0xd38] sm:$0xff]
    %v1173 = vld [vmem:[#allocation7 + $0xd40] sm:$0xff]
    %v1174 = vld [vmem:[#allocation7 + $0xd48] sm:$0xff]
    %v1175 = vld [vmem:[#allocation7 + $0xd50] sm:$0xff]
    %v1176 = vld [vmem:[#allocation7 + $0xd58] sm:$0xff]
    %v1177 = vld [vmem:[#allocation7 + $0xd60] sm:$0xff]
    %v1178 = vld [vmem:[#allocation7 + $0xd68] sm:$0xff]
    %v1179 = vld [vmem:[#allocation7 + $0xd70] sm:$0xff]
    %v1180 = vld [vmem:[#allocation7 + $0xd78] sm:$0xff]
    %v1181 = vld [vmem:[#allocation7 + $0xd80] sm:$0xff]
    %v1182 = vld [vmem:[#allocation7 + $0xd88] sm:$0xff]
    %v1183 = vld [vmem:[#allocation7 + $0xd90] sm:$0xff]
    %v1184 = vld [vmem:[#allocation7 + $0xd98] sm:$0xff]
    %v1185 = vld [vmem:[#allocation7 + $0xda0] sm:$0xff]
    %v1186 = vld [vmem:[#allocation7 + $0xda8] sm:$0xff]
    %v1187 = vld [vmem:[#allocation7 + $0xdb0] sm:$0xff]
    %v1188 = vld [vmem:[#allocation7 + $0xdb8] sm:$0xff]
    %v1189 = vld [vmem:[#allocation7 + $0xdc0] sm:$0xff]
    %v1190 = vld [vmem:[#allocation7 + $0xdc8] sm:$0xff]
    %v1191 = vld [vmem:[#allocation7 + $0xdd0] sm:$0xff]
    %v1192 = vld [vmem:[#allocation7 + $0xdd8] sm:$0xff]
    %v1193 = vld [vmem:[#allocation7 + $0xde0] sm:$0xff]
    %v1194 = vld [vmem:[#allocation7 + $0xde8] sm:$0xff]
    %v1195 = vld [vmem:[#allocation7 + $0xdf0] sm:$0xff]
    %v1196 = vld [vmem:[#allocation7 + $0xdf8] sm:$0xff]
    %v1197 = vld [vmem:[#allocation7 + $0xe00] sm:$0xff]
    %v1198 = vld [vmem:[#allocation7 + $0xe08] sm:$0xff]
    %v1199 = vld [vmem:[#allocation7 + $0xe10] sm:$0xff]
    %v1200 = vld [vmem:[#allocation7 + $0xe18] sm:$0xff]
    %v1201 = vld [vmem:[#allocation7 + $0xe20] sm:$0xff]
    %v1202 = vld [vmem:[#allocation7 + $0xe28] sm:$0xff]
    %v1203 = vld [vmem:[#allocation7 + $0xe30] sm:$0xff]
    %v1204 = vld [vmem:[#allocation7 + $0xe38] sm:$0xff]
    %v1205 = vld [vmem:[#allocation7 + $0xe40] sm:$0xff]
    %v1206 = vld [vmem:[#allocation7 + $0xe48] sm:$0xff]
    %v1207 = vld [vmem:[#allocation7 + $0xe50] sm:$0xff]
    %v1208 = vld [vmem:[#allocation7 + $0xe58] sm:$0xff]
    %v1209 = vld [vmem:[#allocation7 + $0xe60] sm:$0xff]
    %v1210 = vld [vmem:[#allocation7 + $0xe68] sm:$0xff]
    %v1211 = vld [vmem:[#allocation7 + $0xe70] sm:$0xff]
    %v1212 = vld [vmem:[#allocation7 + $0xe78] sm:$0xff]
    %v1213 = vld [vmem:[#allocation7 + $0xe80] sm:$0xff]
    %v1214 = vld [vmem:[#allocation7 + $0xe88] sm:$0xff]
    %v1215 = vld [vmem:[#allocation7 + $0xe90] sm:$0xff]
    %v1216 = vld [vmem:[#allocation7 + $0xe98] sm:$0xff]
    %v1217 = vld [vmem:[#allocation7 + $0xea0] sm:$0xff]
    %v1218 = vld [vmem:[#allocation7 + $0xea8] sm:$0xff]
    %v1219 = vld [vmem:[#allocation7 + $0xeb0] sm:$0xff]
    %v1220 = vld [vmem:[#allocation7 + $0xeb8] sm:$0xff]
    %v1221 = vld [vmem:[#allocation7 + $0xec0] sm:$0xff]
    %v1222 = vld [vmem:[#allocation7 + $0xec8] sm:$0xff]
    %v1223 = vld [vmem:[#allocation7 + $0xed0] sm:$0xff]
    %v1224 = vld [vmem:[#allocation7 + $0xed8] sm:$0xff]
    %v1225 = vld [vmem:[#allocation7 + $0xee0] sm:$0xff]
    %v1226 = vld [vmem:[#allocation7 + $0xee8] sm:$0xff]
    %v1227 = vld [vmem:[#allocation7 + $0xef0] sm:$0xff]
    %v1228 = vld [vmem:[#allocation7 + $0xef8] sm:$0xff]
    %v1229 = vld [vmem:[#allocation7 + $0xf00] sm:$0xff]
    %v1230 = vld [vmem:[#allocation7 + $0xf08] sm:$0xff]
    %v1231 = vld [vmem:[#allocation7 + $0xf10] sm:$0xff]
    %v1232 = vld [vmem:[#allocation7 + $0xf18] sm:$0xff]
    %v1233 = vld [vmem:[#allocation7 + $0xf20] sm:$0xff]
    %v1234 = vld [vmem:[#allocation7 + $0xf28] sm:$0xff]
    %v1235 = vld [vmem:[#allocation7 + $0xf30] sm:$0xff]
    %v1236 = vld [vmem:[#allocation7 + $0xf38] sm:$0xff]
    %v1237 = vld [vmem:[#allocation7 + $0xf40] sm:$0xff]
    %v1238 = vld [vmem:[#allocation7 + $0xf48] sm:$0xff]
    %v1239 = vld [vmem:[#allocation7 + $0xf50] sm:$0xff]
    %v1240 = vld [vmem:[#allocation7 + $0xf58] sm:$0xff]
    %v1241 = vld [vmem:[#allocation7 + $0xf60] sm:$0xff]
    %v1242 = vld [vmem:[#allocation7 + $0xf68] sm:$0xff]
    %v1243 = vld [vmem:[#allocation7 + $0xf70] sm:$0xff]
    %v1244 = vld [vmem:[#allocation7 + $0xf78] sm:$0xff]
    %v1245 = vld [vmem:[#allocation7 + $0xf80] sm:$0xff]
    %v1246 = vld [vmem:[#allocation7 + $0xf88] sm:$0xff]
    %v1247 = vld [vmem:[#allocation7 + $0xf90] sm:$0xff]
    %v1248 = vld [vmem:[#allocation7 + $0xf98] sm:$0xff]
    %v1249 = vld [vmem:[#allocation7 + $0xfa0] sm:$0xff]
    %v1250 = vld [vmem:[#allocation7 + $0xfa8] sm:$0xff]
    %v1251 = vld [vmem:[#allocation7 + $0xfb0] sm:$0xff]
    %v1252 = vld [vmem:[#allocation7 + $0xfb8] sm:$0xff]
    %v1253 = vld [vmem:[#allocation7 + $0xfc0] sm:$0xff]
    %v1254 = vld [vmem:[#allocation7 + $0xfc8] sm:$0xff]
    %v1255 = vld [vmem:[#allocation7 + $0xfd0] sm:$0xff]
    %v1256 = vld [vmem:[#allocation7 + $0xfd8] sm:$0xff]
    %v1257 = vld [vmem:[#allocation7 + $0xfe0] sm:$0xff]
    %v1258 = vld [vmem:[#allocation7 + $0xfe8] sm:$0xff]
    %v1259 = vld [vmem:[#allocation7 + $0xff0] sm:$0xff]
    %v1260 = vld [vmem:[#allocation7 + $0xff8] sm:$0xff]
    %v1261 = vld [vmem:[#allocation9] sm:$0xff]
    %v1263 = vlaneseq
    %v1264 = vshrl.u32 %v1263, 7
    %v1265 = vsub.s32 0, %v1264
    %v1266 = vrot.slane %v1261, %v1265
    %v1267 = vlaneseq
    %v1268 = vshrl.u32 %v1267, 7
    %v1269 = vsub.s32 1, %v1268
    %v1270 = vrot.slane %v1261, %v1269
    %v1271 = vlaneseq
    %v1272 = vshrl.u32 %v1271, 7
    %v1273 = vsub.s32 2, %v1272
    %v1274 = vrot.slane %v1261, %v1273
    %v1275 = vlaneseq
    %v1276 = vshrl.u32 %v1275, 7
    %v1277 = vsub.s32 3, %v1276
    %v1278 = vrot.slane %v1261, %v1277
    %v1279 = vlaneseq
    %v1280 = vshrl.u32 %v1279, 7
    %v1281 = vsub.s32 4, %v1280
    %v1282 = vrot.slane %v1261, %v1281
    %v1283 = vlaneseq
    %v1284 = vshrl.u32 %v1283, 7
    %v1285 = vsub.s32 5, %v1284
    %v1286 = vrot.slane %v1261, %v1285
    %v1287 = vlaneseq
    %v1288 = vshrl.u32 %v1287, 7
    %v1289 = vsub.s32 6, %v1288
    %v1290 = vrot.slane %v1261, %v1289
    %v1291 = vlaneseq
    %v1292 = vshrl.u32 %v1291, 7
    %v1293 = vsub.s32 7, %v1292
    %v1294 = vrot.slane %v1261, %v1293
    %v1815 = vunpack.c.l.b16 %v749
    %v1816 = vunpack.c.h.b16 %v749
    %v1817 = vunpack.c.l.b16 %v750
    %v1818 = vunpack.c.h.b16 %v750
    %v1819 = vunpack.c.l.b16 %v751
    %v1820 = vunpack.c.h.b16 %v751
    %v1821 = vunpack.c.l.b16 %v752
    %v1822 = vunpack.c.h.b16 %v752
    %v1823 = vunpack.c.l.b16 %v753
    %v1824 = vunpack.c.h.b16 %v753
    %v1825 = vunpack.c.l.b16 %v754
    %v1826 = vunpack.c.h.b16 %v754
    %v1827 = vunpack.c.l.b16 %v755
    %v1828 = vunpack.c.h.b16 %v755
    %v1829 = vunpack.c.l.b16 %v756
    %v1830 = vunpack.c.h.b16 %v756
    %v1831 = vunpack.c.l.b16 %v757
    %v1832 = vunpack.c.h.b16 %v757
    %v1833 = vunpack.c.l.b16 %v758
    %v1834 = vunpack.c.h.b16 %v758
    %v1835 = vunpack.c.l.b16 %v759
    %v1836 = vunpack.c.h.b16 %v759
    %v1837 = vunpack.c.l.b16 %v760
    %v1838 = vunpack.c.h.b16 %v760
    %v1839 = vunpack.c.l.b16 %v761
    %v1840 = vunpack.c.h.b16 %v761
    %v1841 = vunpack.c.l.b16 %v762
    %v1842 = vunpack.c.h.b16 %v762
    %v1843 = vunpack.c.l.b16 %v763
    %v1844 = vunpack.c.h.b16 %v763
    %v1845 = vunpack.c.l.b16 %v764
    %v1846 = vunpack.c.h.b16 %v764
    %v1847 = vunpack.c.l.b16 %v765
    %v1848 = vunpack.c.h.b16 %v765
    %v1849 = vunpack.c.l.b16 %v766
    %v1850 = vunpack.c.h.b16 %v766
    %v1851 = vunpack.c.l.b16 %v767
    %v1852 = vunpack.c.h.b16 %v767
    %v1853 = vunpack.c.l.b16 %v768
    %v1854 = vunpack.c.h.b16 %v768
    %v1855 = vunpack.c.l.b16 %v769
    %v1856 = vunpack.c.h.b16 %v769
    %v1857 = vunpack.c.l.b16 %v770
    %v1858 = vunpack.c.h.b16 %v770
    %v1859 = vunpack.c.l.b16 %v771
    %v1860 = vunpack.c.h.b16 %v771
    %v1861 = vunpack.c.l.b16 %v772
    %v1862 = vunpack.c.h.b16 %v772
    %v1863 = vunpack.c.l.b16 %v773
    %v1864 = vunpack.c.h.b16 %v773
    %v1865 = vunpack.c.l.b16 %v774
    %v1866 = vunpack.c.h.b16 %v774
    %v1867 = vunpack.c.l.b16 %v775
    %v1868 = vunpack.c.h.b16 %v775
    %v1869 = vunpack.c.l.b16 %v776
    %v1870 = vunpack.c.h.b16 %v776
    %v1871 = vunpack.c.l.b16 %v777
    %v1872 = vunpack.c.h.b16 %v777
    %v1873 = vunpack.c.l.b16 %v778
    %v1874 = vunpack.c.h.b16 %v778
    %v1875 = vunpack.c.l.b16 %v779
    %v1876 = vunpack.c.h.b16 %v779
    %v1877 = vunpack.c.l.b16 %v780
    %v1878 = vunpack.c.h.b16 %v780
    %v1879 = vunpack.c.l.b16 %v781
    %v1880 = vunpack.c.h.b16 %v781
    %v1881 = vunpack.c.l.b16 %v782
    %v1882 = vunpack.c.h.b16 %v782
    %v1883 = vunpack.c.l.b16 %v783
    %v1884 = vunpack.c.h.b16 %v783
    %v1885 = vunpack.c.l.b16 %v784
    %v1886 = vunpack.c.h.b16 %v784
    %v1887 = vunpack.c.l.b16 %v785
    %v1888 = vunpack.c.h.b16 %v785
    %v1889 = vunpack.c.l.b16 %v786
    %v1890 = vunpack.c.h.b16 %v786
    %v1891 = vunpack.c.l.b16 %v787
    %v1892 = vunpack.c.h.b16 %v787
    %v1893 = vunpack.c.l.b16 %v788
    %v1894 = vunpack.c.h.b16 %v788
    %v1895 = vunpack.c.l.b16 %v789
    %v1896 = vunpack.c.h.b16 %v789
    %v1897 = vunpack.c.l.b16 %v790
    %v1898 = vunpack.c.h.b16 %v790
    %v1899 = vunpack.c.l.b16 %v791
    %v1900 = vunpack.c.h.b16 %v791
    %v1901 = vunpack.c.l.b16 %v792
    %v1902 = vunpack.c.h.b16 %v792
    %v1903 = vunpack.c.l.b16 %v793
    %v1904 = vunpack.c.h.b16 %v793
    %v1905 = vunpack.c.l.b16 %v794
    %v1906 = vunpack.c.h.b16 %v794
    %v1907 = vunpack.c.l.b16 %v795
    %v1908 = vunpack.c.h.b16 %v795
    %v1909 = vunpack.c.l.b16 %v796
    %v1910 = vunpack.c.h.b16 %v796
    %v1911 = vunpack.c.l.b16 %v797
    %v1912 = vunpack.c.h.b16 %v797
    %v1913 = vunpack.c.l.b16 %v798
    %v1914 = vunpack.c.h.b16 %v798
    %v1915 = vunpack.c.l.b16 %v799
    %v1916 = vunpack.c.h.b16 %v799
    %v1917 = vunpack.c.l.b16 %v800
    %v1918 = vunpack.c.h.b16 %v800
    %v1919 = vunpack.c.l.b16 %v801
    %v1920 = vunpack.c.h.b16 %v801
    %v1921 = vunpack.c.l.b16 %v802
    %v1922 = vunpack.c.h.b16 %v802
    %v1923 = vunpack.c.l.b16 %v803
    %v1924 = vunpack.c.h.b16 %v803
    %v1925 = vunpack.c.l.b16 %v804
    %v1926 = vunpack.c.h.b16 %v804
    %v1927 = vunpack.c.l.b16 %v805
    %v1928 = vunpack.c.h.b16 %v805
    %v1929 = vunpack.c.l.b16 %v806
    %v1930 = vunpack.c.h.b16 %v806
    %v1931 = vunpack.c.l.b16 %v807
    %v1932 = vunpack.c.h.b16 %v807
    %v1933 = vunpack.c.l.b16 %v808
    %v1934 = vunpack.c.h.b16 %v808
    %v1935 = vunpack.c.l.b16 %v809
    %v1936 = vunpack.c.h.b16 %v809
    %v1937 = vunpack.c.l.b16 %v810
    %v1938 = vunpack.c.h.b16 %v810
    %v1939 = vunpack.c.l.b16 %v811
    %v1940 = vunpack.c.h.b16 %v811
    %v1941 = vunpack.c.l.b16 %v812
    %v1942 = vunpack.c.h.b16 %v812
    %v1943 = vunpack.c.l.b16 %v813
    %v1944 = vunpack.c.h.b16 %v813
    %v1945 = vunpack.c.l.b16 %v814
    %v1946 = vunpack.c.h.b16 %v814
    %v1947 = vunpack.c.l.b16 %v815
    %v1948 = vunpack.c.h.b16 %v815
    %v1949 = vunpack.c.l.b16 %v816
    %v1950 = vunpack.c.h.b16 %v816
    %v1951 = vunpack.c.l.b16 %v817
    %v1952 = vunpack.c.h.b16 %v817
    %v1953 = vunpack.c.l.b16 %v818
    %v1954 = vunpack.c.h.b16 %v818
    %v1955 = vunpack.c.l.b16 %v819
    %v1956 = vunpack.c.h.b16 %v819
    %v1957 = vunpack.c.l.b16 %v820
    %v1958 = vunpack.c.h.b16 %v820
    %v1959 = vunpack.c.l.b16 %v821
    %v1960 = vunpack.c.h.b16 %v821
    %v1961 = vunpack.c.l.b16 %v822
    %v1962 = vunpack.c.h.b16 %v822
    %v1963 = vunpack.c.l.b16 %v823
    %v1964 = vunpack.c.h.b16 %v823
    %v1965 = vunpack.c.l.b16 %v824
    %v1966 = vunpack.c.h.b16 %v824
    %v1967 = vunpack.c.l.b16 %v825
    %v1968 = vunpack.c.h.b16 %v825
    %v1969 = vunpack.c.l.b16 %v826
    %v1970 = vunpack.c.h.b16 %v826
    %v1971 = vunpack.c.l.b16 %v827
    %v1972 = vunpack.c.h.b16 %v827
    %v1973 = vunpack.c.l.b16 %v828
    %v1974 = vunpack.c.h.b16 %v828
    %v1975 = vunpack.c.l.b16 %v829
    %v1976 = vunpack.c.h.b16 %v829
    %v1977 = vunpack.c.l.b16 %v830
    %v1978 = vunpack.c.h.b16 %v830
    %v1979 = vunpack.c.l.b16 %v831
    %v1980 = vunpack.c.h.b16 %v831
    %v1981 = vunpack.c.l.b16 %v832
    %v1982 = vunpack.c.h.b16 %v832
    %v1983 = vunpack.c.l.b16 %v833
    %v1984 = vunpack.c.h.b16 %v833
    %v1985 = vunpack.c.l.b16 %v834
    %v1986 = vunpack.c.h.b16 %v834
    %v1987 = vunpack.c.l.b16 %v835
    %v1988 = vunpack.c.h.b16 %v835
    %v1989 = vunpack.c.l.b16 %v836
    %v1990 = vunpack.c.h.b16 %v836
    %v1991 = vunpack.c.l.b16 %v837
    %v1992 = vunpack.c.h.b16 %v837
    %v1993 = vunpack.c.l.b16 %v838
    %v1994 = vunpack.c.h.b16 %v838
    %v1995 = vunpack.c.l.b16 %v839
    %v1996 = vunpack.c.h.b16 %v839
    %v1997 = vunpack.c.l.b16 %v840
    %v1998 = vunpack.c.h.b16 %v840
    %v1999 = vunpack.c.l.b16 %v841
    %v2000 = vunpack.c.h.b16 %v841
    %v2001 = vunpack.c.l.b16 %v842
    %v2002 = vunpack.c.h.b16 %v842
    %v2003 = vunpack.c.l.b16 %v843
    %v2004 = vunpack.c.h.b16 %v843
    %v2005 = vunpack.c.l.b16 %v844
    %v2006 = vunpack.c.h.b16 %v844
    %v2007 = vunpack.c.l.b16 %v845
    %v2008 = vunpack.c.h.b16 %v845
    %v2009 = vunpack.c.l.b16 %v846
    %v2010 = vunpack.c.h.b16 %v846
    %v2011 = vunpack.c.l.b16 %v847
    %v2012 = vunpack.c.h.b16 %v847
    %v2013 = vunpack.c.l.b16 %v848
    %v2014 = vunpack.c.h.b16 %v848
    %v2015 = vunpack.c.l.b16 %v849
    %v2016 = vunpack.c.h.b16 %v849
    %v2017 = vunpack.c.l.b16 %v850
    %v2018 = vunpack.c.h.b16 %v850
    %v2019 = vunpack.c.l.b16 %v851
    %v2020 = vunpack.c.h.b16 %v851
    %v2021 = vunpack.c.l.b16 %v852
    %v2022 = vunpack.c.h.b16 %v852
    %v2023 = vunpack.c.l.b16 %v853
    %v2024 = vunpack.c.h.b16 %v853
    %v2025 = vunpack.c.l.b16 %v854
    %v2026 = vunpack.c.h.b16 %v854
    %v2027 = vunpack.c.l.b16 %v855
    %v2028 = vunpack.c.h.b16 %v855
    %v2029 = vunpack.c.l.b16 %v856
    %v2030 = vunpack.c.h.b16 %v856
    %v2031 = vunpack.c.l.b16 %v857
    %v2032 = vunpack.c.h.b16 %v857
    %v2033 = vunpack.c.l.b16 %v858
    %v2034 = vunpack.c.h.b16 %v858
    %v2035 = vunpack.c.l.b16 %v859
    %v2036 = vunpack.c.h.b16 %v859
    %v2037 = vunpack.c.l.b16 %v860
    %v2038 = vunpack.c.h.b16 %v860
    %v2039 = vunpack.c.l.b16 %v861
    %v2040 = vunpack.c.h.b16 %v861
    %v2041 = vunpack.c.l.b16 %v862
    %v2042 = vunpack.c.h.b16 %v862
    %v2043 = vunpack.c.l.b16 %v863
    %v2044 = vunpack.c.h.b16 %v863
    %v2045 = vunpack.c.l.b16 %v864
    %v2046 = vunpack.c.h.b16 %v864
    %v2047 = vunpack.c.l.b16 %v865
    %v2048 = vunpack.c.h.b16 %v865
    %v2049 = vunpack.c.l.b16 %v866
    %v2050 = vunpack.c.h.b16 %v866
    %v2051 = vunpack.c.l.b16 %v867
    %v2052 = vunpack.c.h.b16 %v867
    %v2053 = vunpack.c.l.b16 %v868
    %v2054 = vunpack.c.h.b16 %v868
    %v2055 = vunpack.c.l.b16 %v869
    %v2056 = vunpack.c.h.b16 %v869
    %v2057 = vunpack.c.l.b16 %v870
    %v2058 = vunpack.c.h.b16 %v870
    %v2059 = vunpack.c.l.b16 %v871
    %v2060 = vunpack.c.h.b16 %v871
    %v2061 = vunpack.c.l.b16 %v872
    %v2062 = vunpack.c.h.b16 %v872
    %v2063 = vunpack.c.l.b16 %v873
    %v2064 = vunpack.c.h.b16 %v873
    %v2065 = vunpack.c.l.b16 %v874
    %v2066 = vunpack.c.h.b16 %v874
    %v2067 = vunpack.c.l.b16 %v875
    %v2068 = vunpack.c.h.b16 %v875
    %v2069 = vunpack.c.l.b16 %v876
    %v2070 = vunpack.c.h.b16 %v876
    %v2071 = vunpack.c.l.b16 %v877
    %v2072 = vunpack.c.h.b16 %v877
    %v2073 = vunpack.c.l.b16 %v878
    %v2074 = vunpack.c.h.b16 %v878
    %v2075 = vunpack.c.l.b16 %v879
    %v2076 = vunpack.c.h.b16 %v879
    %v2077 = vunpack.c.l.b16 %v880
    %v2078 = vunpack.c.h.b16 %v880
    %v2079 = vunpack.c.l.b16 %v881
    %v2080 = vunpack.c.h.b16 %v881
    %v2081 = vunpack.c.l.b16 %v882
    %v2082 = vunpack.c.h.b16 %v882
    %v2083 = vunpack.c.l.b16 %v883
    %v2084 = vunpack.c.h.b16 %v883
    %v2085 = vunpack.c.l.b16 %v884
    %v2086 = vunpack.c.h.b16 %v884
    %v2087 = vunpack.c.l.b16 %v885
    %v2088 = vunpack.c.h.b16 %v885
    %v2089 = vunpack.c.l.b16 %v886
    %v2090 = vunpack.c.h.b16 %v886
    %v2091 = vunpack.c.l.b16 %v887
    %v2092 = vunpack.c.h.b16 %v887
    %v2093 = vunpack.c.l.b16 %v888
    %v2094 = vunpack.c.h.b16 %v888
    %v2095 = vunpack.c.l.b16 %v889
    %v2096 = vunpack.c.h.b16 %v889
    %v2097 = vunpack.c.l.b16 %v890
    %v2098 = vunpack.c.h.b16 %v890
    %v2099 = vunpack.c.l.b16 %v891
    %v2100 = vunpack.c.h.b16 %v891
    %v2101 = vunpack.c.l.b16 %v892
    %v2102 = vunpack.c.h.b16 %v892
    %v2103 = vunpack.c.l.b16 %v893
    %v2104 = vunpack.c.h.b16 %v893
    %v2105 = vunpack.c.l.b16 %v894
    %v2106 = vunpack.c.h.b16 %v894
    %v2107 = vunpack.c.l.b16 %v895
    %v2108 = vunpack.c.h.b16 %v895
    %v2109 = vunpack.c.l.b16 %v896
    %v2110 = vunpack.c.h.b16 %v896
    %v2111 = vunpack.c.l.b16 %v897
    %v2112 = vunpack.c.h.b16 %v897
    %v2113 = vunpack.c.l.b16 %v898
    %v2114 = vunpack.c.h.b16 %v898
    %v2115 = vunpack.c.l.b16 %v899
    %v2116 = vunpack.c.h.b16 %v899
    %v2117 = vunpack.c.l.b16 %v900
    %v2118 = vunpack.c.h.b16 %v900
    %v2119 = vunpack.c.l.b16 %v901
    %v2120 = vunpack.c.h.b16 %v901
    %v2121 = vunpack.c.l.b16 %v902
    %v2122 = vunpack.c.h.b16 %v902
    %v2123 = vunpack.c.l.b16 %v903
    %v2124 = vunpack.c.h.b16 %v903
    %v2125 = vunpack.c.l.b16 %v904
    %v2126 = vunpack.c.h.b16 %v904
    %v2127 = vunpack.c.l.b16 %v905
    %v2128 = vunpack.c.h.b16 %v905
    %v2129 = vunpack.c.l.b16 %v906
    %v2130 = vunpack.c.h.b16 %v906
    %v2131 = vunpack.c.l.b16 %v907
    %v2132 = vunpack.c.h.b16 %v907
    %v2133 = vunpack.c.l.b16 %v908
    %v2134 = vunpack.c.h.b16 %v908
    %v2135 = vunpack.c.l.b16 %v909
    %v2136 = vunpack.c.h.b16 %v909
    %v2137 = vunpack.c.l.b16 %v910
    %v2138 = vunpack.c.h.b16 %v910
    %v2139 = vunpack.c.l.b16 %v911
    %v2140 = vunpack.c.h.b16 %v911
    %v2141 = vunpack.c.l.b16 %v912
    %v2142 = vunpack.c.h.b16 %v912
    %v2143 = vunpack.c.l.b16 %v913
    %v2144 = vunpack.c.h.b16 %v913
    %v2145 = vunpack.c.l.b16 %v914
    %v2146 = vunpack.c.h.b16 %v914
    %v2147 = vunpack.c.l.b16 %v915
    %v2148 = vunpack.c.h.b16 %v915
    %v2149 = vunpack.c.l.b16 %v916
    %v2150 = vunpack.c.h.b16 %v916
    %v2151 = vunpack.c.l.b16 %v917
    %v2152 = vunpack.c.h.b16 %v917
    %v2153 = vunpack.c.l.b16 %v918
    %v2154 = vunpack.c.h.b16 %v918
    %v2155 = vunpack.c.l.b16 %v919
    %v2156 = vunpack.c.h.b16 %v919
    %v2157 = vunpack.c.l.b16 %v920
    %v2158 = vunpack.c.h.b16 %v920
    %v2159 = vunpack.c.l.b16 %v921
    %v2160 = vunpack.c.h.b16 %v921
    %v2161 = vunpack.c.l.b16 %v922
    %v2162 = vunpack.c.h.b16 %v922
    %v2163 = vunpack.c.l.b16 %v923
    %v2164 = vunpack.c.h.b16 %v923
    %v2165 = vunpack.c.l.b16 %v924
    %v2166 = vunpack.c.h.b16 %v924
    %v2167 = vunpack.c.l.b16 %v925
    %v2168 = vunpack.c.h.b16 %v925
    %v2169 = vunpack.c.l.b16 %v926
    %v2170 = vunpack.c.h.b16 %v926
    %v2171 = vunpack.c.l.b16 %v927
    %v2172 = vunpack.c.h.b16 %v927
    %v2173 = vunpack.c.l.b16 %v928
    %v2174 = vunpack.c.h.b16 %v928
    %v2175 = vunpack.c.l.b16 %v929
    %v2176 = vunpack.c.h.b16 %v929
    %v2177 = vunpack.c.l.b16 %v930
    %v2178 = vunpack.c.h.b16 %v930
    %v2179 = vunpack.c.l.b16 %v931
    %v2180 = vunpack.c.h.b16 %v931
    %v2181 = vunpack.c.l.b16 %v932
    %v2182 = vunpack.c.h.b16 %v932
    %v2183 = vunpack.c.l.b16 %v933
    %v2184 = vunpack.c.h.b16 %v933
    %v2185 = vunpack.c.l.b16 %v934
    %v2186 = vunpack.c.h.b16 %v934
    %v2187 = vunpack.c.l.b16 %v935
    %v2188 = vunpack.c.h.b16 %v935
    %v2189 = vunpack.c.l.b16 %v936
    %v2190 = vunpack.c.h.b16 %v936
    %v2191 = vunpack.c.l.b16 %v937
    %v2192 = vunpack.c.h.b16 %v937
    %v2193 = vunpack.c.l.b16 %v938
    %v2194 = vunpack.c.h.b16 %v938
    %v2195 = vunpack.c.l.b16 %v939
    %v2196 = vunpack.c.h.b16 %v939
    %v2197 = vunpack.c.l.b16 %v940
    %v2198 = vunpack.c.h.b16 %v940
    %v2199 = vunpack.c.l.b16 %v941
    %v2200 = vunpack.c.h.b16 %v941
    %v2201 = vunpack.c.l.b16 %v942
    %v2202 = vunpack.c.h.b16 %v942
    %v2203 = vunpack.c.l.b16 %v943
    %v2204 = vunpack.c.h.b16 %v943
    %v2205 = vunpack.c.l.b16 %v944
    %v2206 = vunpack.c.h.b16 %v944
    %v2207 = vunpack.c.l.b16 %v945
    %v2208 = vunpack.c.h.b16 %v945
    %v2209 = vunpack.c.l.b16 %v946
    %v2210 = vunpack.c.h.b16 %v946
    %v2211 = vunpack.c.l.b16 %v947
    %v2212 = vunpack.c.h.b16 %v947
    %v2213 = vunpack.c.l.b16 %v948
    %v2214 = vunpack.c.h.b16 %v948
    %v2215 = vunpack.c.l.b16 %v949
    %v2216 = vunpack.c.h.b16 %v949
    %v2217 = vunpack.c.l.b16 %v950
    %v2218 = vunpack.c.h.b16 %v950
    %v2219 = vunpack.c.l.b16 %v951
    %v2220 = vunpack.c.h.b16 %v951
    %v2221 = vunpack.c.l.b16 %v952
    %v2222 = vunpack.c.h.b16 %v952
    %v2223 = vunpack.c.l.b16 %v953
    %v2224 = vunpack.c.h.b16 %v953
    %v2225 = vunpack.c.l.b16 %v954
    %v2226 = vunpack.c.h.b16 %v954
    %v2227 = vunpack.c.l.b16 %v955
    %v2228 = vunpack.c.h.b16 %v955
    %v2229 = vunpack.c.l.b16 %v956
    %v2230 = vunpack.c.h.b16 %v956
    %v2231 = vunpack.c.l.b16 %v957
    %v2232 = vunpack.c.h.b16 %v957
    %v2233 = vunpack.c.l.b16 %v958
    %v2234 = vunpack.c.h.b16 %v958
    %v2235 = vunpack.c.l.b16 %v959
    %v2236 = vunpack.c.h.b16 %v959
    %v2237 = vunpack.c.l.b16 %v960
    %v2238 = vunpack.c.h.b16 %v960
    %v2239 = vunpack.c.l.b16 %v961
    %v2240 = vunpack.c.h.b16 %v961
    %v2241 = vunpack.c.l.b16 %v962
    %v2242 = vunpack.c.h.b16 %v962
    %v2243 = vunpack.c.l.b16 %v963
    %v2244 = vunpack.c.h.b16 %v963
    %v2245 = vunpack.c.l.b16 %v964
    %v2246 = vunpack.c.h.b16 %v964
    %v2247 = vunpack.c.l.b16 %v965
    %v2248 = vunpack.c.h.b16 %v965
    %v2249 = vunpack.c.l.b16 %v966
    %v2250 = vunpack.c.h.b16 %v966
    %v2251 = vunpack.c.l.b16 %v967
    %v2252 = vunpack.c.h.b16 %v967
    %v2253 = vunpack.c.l.b16 %v968
    %v2254 = vunpack.c.h.b16 %v968
    %v2255 = vunpack.c.l.b16 %v969
    %v2256 = vunpack.c.h.b16 %v969
    %v2257 = vunpack.c.l.b16 %v970
    %v2258 = vunpack.c.h.b16 %v970
    %v2259 = vunpack.c.l.b16 %v971
    %v2260 = vunpack.c.h.b16 %v971
    %v2261 = vunpack.c.l.b16 %v972
    %v2262 = vunpack.c.h.b16 %v972
    %v2263 = vunpack.c.l.b16 %v973
    %v2264 = vunpack.c.h.b16 %v973
    %v2265 = vunpack.c.l.b16 %v974
    %v2266 = vunpack.c.h.b16 %v974
    %v2267 = vunpack.c.l.b16 %v975
    %v2268 = vunpack.c.h.b16 %v975
    %v2269 = vunpack.c.l.b16 %v976
    %v2270 = vunpack.c.h.b16 %v976
    %v2271 = vunpack.c.l.b16 %v977
    %v2272 = vunpack.c.h.b16 %v977
    %v2273 = vunpack.c.l.b16 %v978
    %v2274 = vunpack.c.h.b16 %v978
    %v2275 = vunpack.c.l.b16 %v979
    %v2276 = vunpack.c.h.b16 %v979
    %v2277 = vunpack.c.l.b16 %v980
    %v2278 = vunpack.c.h.b16 %v980
    %v2279 = vunpack.c.l.b16 %v981
    %v2280 = vunpack.c.h.b16 %v981
    %v2281 = vunpack.c.l.b16 %v982
    %v2282 = vunpack.c.h.b16 %v982
    %v2283 = vunpack.c.l.b16 %v983
    %v2284 = vunpack.c.h.b16 %v983
    %v2285 = vunpack.c.l.b16 %v984
    %v2286 = vunpack.c.h.b16 %v984
    %v2287 = vunpack.c.l.b16 %v985
    %v2288 = vunpack.c.h.b16 %v985
    %v2289 = vunpack.c.l.b16 %v986
    %v2290 = vunpack.c.h.b16 %v986
    %v2291 = vunpack.c.l.b16 %v987
    %v2292 = vunpack.c.h.b16 %v987
    %v2293 = vunpack.c.l.b16 %v988
    %v2294 = vunpack.c.h.b16 %v988
    %v2295 = vunpack.c.l.b16 %v989
    %v2296 = vunpack.c.h.b16 %v989
    %v2297 = vunpack.c.l.b16 %v990
    %v2298 = vunpack.c.h.b16 %v990
    %v2299 = vunpack.c.l.b16 %v991
    %v2300 = vunpack.c.h.b16 %v991
    %v2301 = vunpack.c.l.b16 %v992
    %v2302 = vunpack.c.h.b16 %v992
    %v2303 = vunpack.c.l.b16 %v993
    %v2304 = vunpack.c.h.b16 %v993
    %v2305 = vunpack.c.l.b16 %v994
    %v2306 = vunpack.c.h.b16 %v994
    %v2307 = vunpack.c.l.b16 %v995
    %v2308 = vunpack.c.h.b16 %v995
    %v2309 = vunpack.c.l.b16 %v996
    %v2310 = vunpack.c.h.b16 %v996
    %v2311 = vunpack.c.l.b16 %v997
    %v2312 = vunpack.c.h.b16 %v997
    %v2313 = vunpack.c.l.b16 %v998
    %v2314 = vunpack.c.h.b16 %v998
    %v2315 = vunpack.c.l.b16 %v999
    %v2316 = vunpack.c.h.b16 %v999
    %v2317 = vunpack.c.l.b16 %v1000
    %v2318 = vunpack.c.h.b16 %v1000
    %v2319 = vunpack.c.l.b16 %v1001
    %v2320 = vunpack.c.h.b16 %v1001
    %v2321 = vunpack.c.l.b16 %v1002
    %v2322 = vunpack.c.h.b16 %v1002
    %v2323 = vunpack.c.l.b16 %v1003
    %v2324 = vunpack.c.h.b16 %v1003
    %v2325 = vunpack.c.l.b16 %v1004
    %v2326 = vunpack.c.h.b16 %v1004
    %v2327 = vunpack.c.l.b16 %v1005
    %v2328 = vunpack.c.h.b16 %v1005
    %v2329 = vunpack.c.l.b16 %v1006
    %v2330 = vunpack.c.h.b16 %v1006
    %v2331 = vunpack.c.l.b16 %v1007
    %v2332 = vunpack.c.h.b16 %v1007
    %v2333 = vunpack.c.l.b16 %v1008
    %v2334 = vunpack.c.h.b16 %v1008
    %v2335 = vunpack.c.l.b16 %v1009
    %v2336 = vunpack.c.h.b16 %v1009
    %v2337 = vunpack.c.l.b16 %v1010
    %v2338 = vunpack.c.h.b16 %v1010
    %v2339 = vunpack.c.l.b16 %v1011
    %v2340 = vunpack.c.h.b16 %v1011
    %v2341 = vunpack.c.l.b16 %v1012
    %v2342 = vunpack.c.h.b16 %v1012
    %v2343 = vunpack.c.l.b16 %v1013
    %v2344 = vunpack.c.h.b16 %v1013
    %v2345 = vunpack.c.l.b16 %v1014
    %v2346 = vunpack.c.h.b16 %v1014
    %v2347 = vunpack.c.l.b16 %v1015
    %v2348 = vunpack.c.h.b16 %v1015
    %v2349 = vunpack.c.l.b16 %v1016
    %v2350 = vunpack.c.h.b16 %v1016
    %v2351 = vunpack.c.l.b16 %v1017
    %v2352 = vunpack.c.h.b16 %v1017
    %v2353 = vunpack.c.l.b16 %v1018
    %v2354 = vunpack.c.h.b16 %v1018
    %v2355 = vunpack.c.l.b16 %v1019
    %v2356 = vunpack.c.h.b16 %v1019
    %v2357 = vunpack.c.l.b16 %v1020
    %v2358 = vunpack.c.h.b16 %v1020
    %v2359 = vunpack.c.l.b16 %v1021
    %v2360 = vunpack.c.h.b16 %v1021
    %v2361 = vunpack.c.l.b16 %v1022
    %v2362 = vunpack.c.h.b16 %v1022
    %v2363 = vunpack.c.l.b16 %v1023
    %v2364 = vunpack.c.h.b16 %v1023
    %v2365 = vunpack.c.l.b16 %v1024
    %v2366 = vunpack.c.h.b16 %v1024
    %v2367 = vunpack.c.l.b16 %v1025
    %v2368 = vunpack.c.h.b16 %v1025
    %v2369 = vunpack.c.l.b16 %v1026
    %v2370 = vunpack.c.h.b16 %v1026
    %v2371 = vunpack.c.l.b16 %v1027
    %v2372 = vunpack.c.h.b16 %v1027
    %v2373 = vunpack.c.l.b16 %v1028
    %v2374 = vunpack.c.h.b16 %v1028
    %v2375 = vunpack.c.l.b16 %v1029
    %v2376 = vunpack.c.h.b16 %v1029
    %v2377 = vunpack.c.l.b16 %v1030
    %v2378 = vunpack.c.h.b16 %v1030
    %v2379 = vunpack.c.l.b16 %v1031
    %v2380 = vunpack.c.h.b16 %v1031
    %v2381 = vunpack.c.l.b16 %v1032
    %v2382 = vunpack.c.h.b16 %v1032
    %v2383 = vunpack.c.l.b16 %v1033
    %v2384 = vunpack.c.h.b16 %v1033
    %v2385 = vunpack.c.l.b16 %v1034
    %v2386 = vunpack.c.h.b16 %v1034
    %v2387 = vunpack.c.l.b16 %v1035
    %v2388 = vunpack.c.h.b16 %v1035
    %v2389 = vunpack.c.l.b16 %v1036
    %v2390 = vunpack.c.h.b16 %v1036
    %v2391 = vunpack.c.l.b16 %v1037
    %v2392 = vunpack.c.h.b16 %v1037
    %v2393 = vunpack.c.l.b16 %v1038
    %v2394 = vunpack.c.h.b16 %v1038
    %v2395 = vunpack.c.l.b16 %v1039
    %v2396 = vunpack.c.h.b16 %v1039
    %v2397 = vunpack.c.l.b16 %v1040
    %v2398 = vunpack.c.h.b16 %v1040
    %v2399 = vunpack.c.l.b16 %v1041
    %v2400 = vunpack.c.h.b16 %v1041
    %v2401 = vunpack.c.l.b16 %v1042
    %v2402 = vunpack.c.h.b16 %v1042
    %v2403 = vunpack.c.l.b16 %v1043
    %v2404 = vunpack.c.h.b16 %v1043
    %v2405 = vunpack.c.l.b16 %v1044
    %v2406 = vunpack.c.h.b16 %v1044
    %v2407 = vunpack.c.l.b16 %v1045
    %v2408 = vunpack.c.h.b16 %v1045
    %v2409 = vunpack.c.l.b16 %v1046
    %v2410 = vunpack.c.h.b16 %v1046
    %v2411 = vunpack.c.l.b16 %v1047
    %v2412 = vunpack.c.h.b16 %v1047
    %v2413 = vunpack.c.l.b16 %v1048
    %v2414 = vunpack.c.h.b16 %v1048
    %v2415 = vunpack.c.l.b16 %v1049
    %v2416 = vunpack.c.h.b16 %v1049
    %v2417 = vunpack.c.l.b16 %v1050
    %v2418 = vunpack.c.h.b16 %v1050
    %v2419 = vunpack.c.l.b16 %v1051
    %v2420 = vunpack.c.h.b16 %v1051
    %v2421 = vunpack.c.l.b16 %v1052
    %v2422 = vunpack.c.h.b16 %v1052
    %v2423 = vunpack.c.l.b16 %v1053
    %v2424 = vunpack.c.h.b16 %v1053
    %v2425 = vunpack.c.l.b16 %v1054
    %v2426 = vunpack.c.h.b16 %v1054
    %v2427 = vunpack.c.l.b16 %v1055
    %v2428 = vunpack.c.h.b16 %v1055
    %v2429 = vunpack.c.l.b16 %v1056
    %v2430 = vunpack.c.h.b16 %v1056
    %v2431 = vunpack.c.l.b16 %v1057
    %v2432 = vunpack.c.h.b16 %v1057
    %v2433 = vunpack.c.l.b16 %v1058
    %v2434 = vunpack.c.h.b16 %v1058
    %v2435 = vunpack.c.l.b16 %v1059
    %v2436 = vunpack.c.h.b16 %v1059
    %v2437 = vunpack.c.l.b16 %v1060
    %v2438 = vunpack.c.h.b16 %v1060
    %v2439 = vunpack.c.l.b16 %v1061
    %v2440 = vunpack.c.h.b16 %v1061
    %v2441 = vunpack.c.l.b16 %v1062
    %v2442 = vunpack.c.h.b16 %v1062
    %v2443 = vunpack.c.l.b16 %v1063
    %v2444 = vunpack.c.h.b16 %v1063
    %v2445 = vunpack.c.l.b16 %v1064
    %v2446 = vunpack.c.h.b16 %v1064
    %v2447 = vunpack.c.l.b16 %v1065
    %v2448 = vunpack.c.h.b16 %v1065
    %v2449 = vunpack.c.l.b16 %v1066
    %v2450 = vunpack.c.h.b16 %v1066
    %v2451 = vunpack.c.l.b16 %v1067
    %v2452 = vunpack.c.h.b16 %v1067
    %v2453 = vunpack.c.l.b16 %v1068
    %v2454 = vunpack.c.h.b16 %v1068
    %v2455 = vunpack.c.l.b16 %v1069
    %v2456 = vunpack.c.h.b16 %v1069
    %v2457 = vunpack.c.l.b16 %v1070
    %v2458 = vunpack.c.h.b16 %v1070
    %v2459 = vunpack.c.l.b16 %v1071
    %v2460 = vunpack.c.h.b16 %v1071
    %v2461 = vunpack.c.l.b16 %v1072
    %v2462 = vunpack.c.h.b16 %v1072
    %v2463 = vunpack.c.l.b16 %v1073
    %v2464 = vunpack.c.h.b16 %v1073
    %v2465 = vunpack.c.l.b16 %v1074
    %v2466 = vunpack.c.h.b16 %v1074
    %v2467 = vunpack.c.l.b16 %v1075
    %v2468 = vunpack.c.h.b16 %v1075
    %v2469 = vunpack.c.l.b16 %v1076
    %v2470 = vunpack.c.h.b16 %v1076
    %v2471 = vunpack.c.l.b16 %v1077
    %v2472 = vunpack.c.h.b16 %v1077
    %v2473 = vunpack.c.l.b16 %v1078
    %v2474 = vunpack.c.h.b16 %v1078
    %v2475 = vunpack.c.l.b16 %v1079
    %v2476 = vunpack.c.h.b16 %v1079
    %v2477 = vunpack.c.l.b16 %v1080
    %v2478 = vunpack.c.h.b16 %v1080
    %v2479 = vunpack.c.l.b16 %v1081
    %v2480 = vunpack.c.h.b16 %v1081
    %v2481 = vunpack.c.l.b16 %v1082
    %v2482 = vunpack.c.h.b16 %v1082
    %v2483 = vunpack.c.l.b16 %v1083
    %v2484 = vunpack.c.h.b16 %v1083
    %v2485 = vunpack.c.l.b16 %v1084
    %v2486 = vunpack.c.h.b16 %v1084
    %v2487 = vunpack.c.l.b16 %v1085
    %v2488 = vunpack.c.h.b16 %v1085
    %v2489 = vunpack.c.l.b16 %v1086
    %v2490 = vunpack.c.h.b16 %v1086
    %v2491 = vunpack.c.l.b16 %v1087
    %v2492 = vunpack.c.h.b16 %v1087
    %v2493 = vunpack.c.l.b16 %v1088
    %v2494 = vunpack.c.h.b16 %v1088
    %v2495 = vunpack.c.l.b16 %v1089
    %v2496 = vunpack.c.h.b16 %v1089
    %v2497 = vunpack.c.l.b16 %v1090
    %v2498 = vunpack.c.h.b16 %v1090
    %v2499 = vunpack.c.l.b16 %v1091
    %v2500 = vunpack.c.h.b16 %v1091
    %v2501 = vunpack.c.l.b16 %v1092
    %v2502 = vunpack.c.h.b16 %v1092
    %v2503 = vunpack.c.l.b16 %v1093
    %v2504 = vunpack.c.h.b16 %v1093
    %v2505 = vunpack.c.l.b16 %v1094
    %v2506 = vunpack.c.h.b16 %v1094
    %v2507 = vunpack.c.l.b16 %v1095
    %v2508 = vunpack.c.h.b16 %v1095
    %v2509 = vunpack.c.l.b16 %v1096
    %v2510 = vunpack.c.h.b16 %v1096
    %v2511 = vunpack.c.l.b16 %v1097
    %v2512 = vunpack.c.h.b16 %v1097
    %v2513 = vunpack.c.l.b16 %v1098
    %v2514 = vunpack.c.h.b16 %v1098
    %v2515 = vunpack.c.l.b16 %v1099
    %v2516 = vunpack.c.h.b16 %v1099
    %v2517 = vunpack.c.l.b16 %v1100
    %v2518 = vunpack.c.h.b16 %v1100
    %v2519 = vunpack.c.l.b16 %v1101
    %v2520 = vunpack.c.h.b16 %v1101
    %v2521 = vunpack.c.l.b16 %v1102
    %v2522 = vunpack.c.h.b16 %v1102
    %v2523 = vunpack.c.l.b16 %v1103
    %v2524 = vunpack.c.h.b16 %v1103
    %v2525 = vunpack.c.l.b16 %v1104
    %v2526 = vunpack.c.h.b16 %v1104
    %v2527 = vunpack.c.l.b16 %v1105
    %v2528 = vunpack.c.h.b16 %v1105
    %v2529 = vunpack.c.l.b16 %v1106
    %v2530 = vunpack.c.h.b16 %v1106
    %v2531 = vunpack.c.l.b16 %v1107
    %v2532 = vunpack.c.h.b16 %v1107
    %v2533 = vunpack.c.l.b16 %v1108
    %v2534 = vunpack.c.h.b16 %v1108
    %v2535 = vunpack.c.l.b16 %v1109
    %v2536 = vunpack.c.h.b16 %v1109
    %v2537 = vunpack.c.l.b16 %v1110
    %v2538 = vunpack.c.h.b16 %v1110
    %v2539 = vunpack.c.l.b16 %v1111
    %v2540 = vunpack.c.h.b16 %v1111
    %v2541 = vunpack.c.l.b16 %v1112
    %v2542 = vunpack.c.h.b16 %v1112
    %v2543 = vunpack.c.l.b16 %v1113
    %v2544 = vunpack.c.h.b16 %v1113
    %v2545 = vunpack.c.l.b16 %v1114
    %v2546 = vunpack.c.h.b16 %v1114
    %v2547 = vunpack.c.l.b16 %v1115
    %v2548 = vunpack.c.h.b16 %v1115
    %v2549 = vunpack.c.l.b16 %v1116
    %v2550 = vunpack.c.h.b16 %v1116
    %v2551 = vunpack.c.l.b16 %v1117
    %v2552 = vunpack.c.h.b16 %v1117
    %v2553 = vunpack.c.l.b16 %v1118
    %v2554 = vunpack.c.h.b16 %v1118
    %v2555 = vunpack.c.l.b16 %v1119
    %v2556 = vunpack.c.h.b16 %v1119
    %v2557 = vunpack.c.l.b16 %v1120
    %v2558 = vunpack.c.h.b16 %v1120
    %v2559 = vunpack.c.l.b16 %v1121
    %v2560 = vunpack.c.h.b16 %v1121
    %v2561 = vunpack.c.l.b16 %v1122
    %v2562 = vunpack.c.h.b16 %v1122
    %v2563 = vunpack.c.l.b16 %v1123
    %v2564 = vunpack.c.h.b16 %v1123
    %v2565 = vunpack.c.l.b16 %v1124
    %v2566 = vunpack.c.h.b16 %v1124
    %v2567 = vunpack.c.l.b16 %v1125
    %v2568 = vunpack.c.h.b16 %v1125
    %v2569 = vunpack.c.l.b16 %v1126
    %v2570 = vunpack.c.h.b16 %v1126
    %v2571 = vunpack.c.l.b16 %v1127
    %v2572 = vunpack.c.h.b16 %v1127
    %v2573 = vunpack.c.l.b16 %v1128
    %v2574 = vunpack.c.h.b16 %v1128
    %v2575 = vunpack.c.l.b16 %v1129
    %v2576 = vunpack.c.h.b16 %v1129
    %v2577 = vunpack.c.l.b16 %v1130
    %v2578 = vunpack.c.h.b16 %v1130
    %v2579 = vunpack.c.l.b16 %v1131
    %v2580 = vunpack.c.h.b16 %v1131
    %v2581 = vunpack.c.l.b16 %v1132
    %v2582 = vunpack.c.h.b16 %v1132
    %v2583 = vunpack.c.l.b16 %v1133
    %v2584 = vunpack.c.h.b16 %v1133
    %v2585 = vunpack.c.l.b16 %v1134
    %v2586 = vunpack.c.h.b16 %v1134
    %v2587 = vunpack.c.l.b16 %v1135
    %v2588 = vunpack.c.h.b16 %v1135
    %v2589 = vunpack.c.l.b16 %v1136
    %v2590 = vunpack.c.h.b16 %v1136
    %v2591 = vunpack.c.l.b16 %v1137
    %v2592 = vunpack.c.h.b16 %v1137
    %v2593 = vunpack.c.l.b16 %v1138
    %v2594 = vunpack.c.h.b16 %v1138
    %v2595 = vunpack.c.l.b16 %v1139
    %v2596 = vunpack.c.h.b16 %v1139
    %v2597 = vunpack.c.l.b16 %v1140
    %v2598 = vunpack.c.h.b16 %v1140
    %v2599 = vunpack.c.l.b16 %v1141
    %v2600 = vunpack.c.h.b16 %v1141
    %v2601 = vunpack.c.l.b16 %v1142
    %v2602 = vunpack.c.h.b16 %v1142
    %v2603 = vunpack.c.l.b16 %v1143
    %v2604 = vunpack.c.h.b16 %v1143
    %v2605 = vunpack.c.l.b16 %v1144
    %v2606 = vunpack.c.h.b16 %v1144
    %v2607 = vunpack.c.l.b16 %v1145
    %v2608 = vunpack.c.h.b16 %v1145
    %v2609 = vunpack.c.l.b16 %v1146
    %v2610 = vunpack.c.h.b16 %v1146
    %v2611 = vunpack.c.l.b16 %v1147
    %v2612 = vunpack.c.h.b16 %v1147
    %v2613 = vunpack.c.l.b16 %v1148
    %v2614 = vunpack.c.h.b16 %v1148
    %v2615 = vunpack.c.l.b16 %v1149
    %v2616 = vunpack.c.h.b16 %v1149
    %v2617 = vunpack.c.l.b16 %v1150
    %v2618 = vunpack.c.h.b16 %v1150
    %v2619 = vunpack.c.l.b16 %v1151
    %v2620 = vunpack.c.h.b16 %v1151
    %v2621 = vunpack.c.l.b16 %v1152
    %v2622 = vunpack.c.h.b16 %v1152
    %v2623 = vunpack.c.l.b16 %v1153
    %v2624 = vunpack.c.h.b16 %v1153
    %v2625 = vunpack.c.l.b16 %v1154
    %v2626 = vunpack.c.h.b16 %v1154
    %v2627 = vunpack.c.l.b16 %v1155
    %v2628 = vunpack.c.h.b16 %v1155
    %v2629 = vunpack.c.l.b16 %v1156
    %v2630 = vunpack.c.h.b16 %v1156
    %v2631 = vunpack.c.l.b16 %v1157
    %v2632 = vunpack.c.h.b16 %v1157
    %v2633 = vunpack.c.l.b16 %v1158
    %v2634 = vunpack.c.h.b16 %v1158
    %v2635 = vunpack.c.l.b16 %v1159
    %v2636 = vunpack.c.h.b16 %v1159
    %v2637 = vunpack.c.l.b16 %v1160
    %v2638 = vunpack.c.h.b16 %v1160
    %v2639 = vunpack.c.l.b16 %v1161
    %v2640 = vunpack.c.h.b16 %v1161
    %v2641 = vunpack.c.l.b16 %v1162
    %v2642 = vunpack.c.h.b16 %v1162
    %v2643 = vunpack.c.l.b16 %v1163
    %v2644 = vunpack.c.h.b16 %v1163
    %v2645 = vunpack.c.l.b16 %v1164
    %v2646 = vunpack.c.h.b16 %v1164
    %v2647 = vunpack.c.l.b16 %v1165
    %v2648 = vunpack.c.h.b16 %v1165
    %v2649 = vunpack.c.l.b16 %v1166
    %v2650 = vunpack.c.h.b16 %v1166
    %v2651 = vunpack.c.l.b16 %v1167
    %v2652 = vunpack.c.h.b16 %v1167
    %v2653 = vunpack.c.l.b16 %v1168
    %v2654 = vunpack.c.h.b16 %v1168
    %v2655 = vunpack.c.l.b16 %v1169
    %v2656 = vunpack.c.h.b16 %v1169
    %v2657 = vunpack.c.l.b16 %v1170
    %v2658 = vunpack.c.h.b16 %v1170
    %v2659 = vunpack.c.l.b16 %v1171
    %v2660 = vunpack.c.h.b16 %v1171
    %v2661 = vunpack.c.l.b16 %v1172
    %v2662 = vunpack.c.h.b16 %v1172
    %v2663 = vunpack.c.l.b16 %v1173
    %v2664 = vunpack.c.h.b16 %v1173
    %v2665 = vunpack.c.l.b16 %v1174
    %v2666 = vunpack.c.h.b16 %v1174
    %v2667 = vunpack.c.l.b16 %v1175
    %v2668 = vunpack.c.h.b16 %v1175
    %v2669 = vunpack.c.l.b16 %v1176
    %v2670 = vunpack.c.h.b16 %v1176
    %v2671 = vunpack.c.l.b16 %v1177
    %v2672 = vunpack.c.h.b16 %v1177
    %v2673 = vunpack.c.l.b16 %v1178
    %v2674 = vunpack.c.h.b16 %v1178
    %v2675 = vunpack.c.l.b16 %v1179
    %v2676 = vunpack.c.h.b16 %v1179
    %v2677 = vunpack.c.l.b16 %v1180
    %v2678 = vunpack.c.h.b16 %v1180
    %v2679 = vunpack.c.l.b16 %v1181
    %v2680 = vunpack.c.h.b16 %v1181
    %v2681 = vunpack.c.l.b16 %v1182
    %v2682 = vunpack.c.h.b16 %v1182
    %v2683 = vunpack.c.l.b16 %v1183
    %v2684 = vunpack.c.h.b16 %v1183
    %v2685 = vunpack.c.l.b16 %v1184
    %v2686 = vunpack.c.h.b16 %v1184
    %v2687 = vunpack.c.l.b16 %v1185
    %v2688 = vunpack.c.h.b16 %v1185
    %v2689 = vunpack.c.l.b16 %v1186
    %v2690 = vunpack.c.h.b16 %v1186
    %v2691 = vunpack.c.l.b16 %v1187
    %v2692 = vunpack.c.h.b16 %v1187
    %v2693 = vunpack.c.l.b16 %v1188
    %v2694 = vunpack.c.h.b16 %v1188
    %v2695 = vunpack.c.l.b16 %v1189
    %v2696 = vunpack.c.h.b16 %v1189
    %v2697 = vunpack.c.l.b16 %v1190
    %v2698 = vunpack.c.h.b16 %v1190
    %v2699 = vunpack.c.l.b16 %v1191
    %v2700 = vunpack.c.h.b16 %v1191
    %v2701 = vunpack.c.l.b16 %v1192
    %v2702 = vunpack.c.h.b16 %v1192
    %v2703 = vunpack.c.l.b16 %v1193
    %v2704 = vunpack.c.h.b16 %v1193
    %v2705 = vunpack.c.l.b16 %v1194
    %v2706 = vunpack.c.h.b16 %v1194
    %v2707 = vunpack.c.l.b16 %v1195
    %v2708 = vunpack.c.h.b16 %v1195
    %v2709 = vunpack.c.l.b16 %v1196
    %v2710 = vunpack.c.h.b16 %v1196
    %v2711 = vunpack.c.l.b16 %v1197
    %v2712 = vunpack.c.h.b16 %v1197
    %v2713 = vunpack.c.l.b16 %v1198
    %v2714 = vunpack.c.h.b16 %v1198
    %v2715 = vunpack.c.l.b16 %v1199
    %v2716 = vunpack.c.h.b16 %v1199
    %v2717 = vunpack.c.l.b16 %v1200
    %v2718 = vunpack.c.h.b16 %v1200
    %v2719 = vunpack.c.l.b16 %v1201
    %v2720 = vunpack.c.h.b16 %v1201
    %v2721 = vunpack.c.l.b16 %v1202
    %v2722 = vunpack.c.h.b16 %v1202
    %v2723 = vunpack.c.l.b16 %v1203
    %v2724 = vunpack.c.h.b16 %v1203
    %v2725 = vunpack.c.l.b16 %v1204
    %v2726 = vunpack.c.h.b16 %v1204
    %v2727 = vunpack.c.l.b16 %v1205
    %v2728 = vunpack.c.h.b16 %v1205
    %v2729 = vunpack.c.l.b16 %v1206
    %v2730 = vunpack.c.h.b16 %v1206
    %v2731 = vunpack.c.l.b16 %v1207
    %v2732 = vunpack.c.h.b16 %v1207
    %v2733 = vunpack.c.l.b16 %v1208
    %v2734 = vunpack.c.h.b16 %v1208
    %v2735 = vunpack.c.l.b16 %v1209
    %v2736 = vunpack.c.h.b16 %v1209
    %v2737 = vunpack.c.l.b16 %v1210
    %v2738 = vunpack.c.h.b16 %v1210
    %v2739 = vunpack.c.l.b16 %v1211
    %v2740 = vunpack.c.h.b16 %v1211
    %v2741 = vunpack.c.l.b16 %v1212
    %v2742 = vunpack.c.h.b16 %v1212
    %v2743 = vunpack.c.l.b16 %v1213
    %v2744 = vunpack.c.h.b16 %v1213
    %v2745 = vunpack.c.l.b16 %v1214
    %v2746 = vunpack.c.h.b16 %v1214
    %v2747 = vunpack.c.l.b16 %v1215
    %v2748 = vunpack.c.h.b16 %v1215
    %v2749 = vunpack.c.l.b16 %v1216
    %v2750 = vunpack.c.h.b16 %v1216
    %v2751 = vunpack.c.l.b16 %v1217
    %v2752 = vunpack.c.h.b16 %v1217
    %v2753 = vunpack.c.l.b16 %v1218
    %v2754 = vunpack.c.h.b16 %v1218
    %v2755 = vunpack.c.l.b16 %v1219
    %v2756 = vunpack.c.h.b16 %v1219
    %v2757 = vunpack.c.l.b16 %v1220
    %v2758 = vunpack.c.h.b16 %v1220
    %v2759 = vunpack.c.l.b16 %v1221
    %v2760 = vunpack.c.h.b16 %v1221
    %v2761 = vunpack.c.l.b16 %v1222
    %v2762 = vunpack.c.h.b16 %v1222
    %v2763 = vunpack.c.l.b16 %v1223
    %v2764 = vunpack.c.h.b16 %v1223
    %v2765 = vunpack.c.l.b16 %v1224
    %v2766 = vunpack.c.h.b16 %v1224
    %v2767 = vunpack.c.l.b16 %v1225
    %v2768 = vunpack.c.h.b16 %v1225
    %v2769 = vunpack.c.l.b16 %v1226
    %v2770 = vunpack.c.h.b16 %v1226
    %v2771 = vunpack.c.l.b16 %v1227
    %v2772 = vunpack.c.h.b16 %v1227
    %v2773 = vunpack.c.l.b16 %v1228
    %v2774 = vunpack.c.h.b16 %v1228
    %v2775 = vunpack.c.l.b16 %v1229
    %v2776 = vunpack.c.h.b16 %v1229
    %v2777 = vunpack.c.l.b16 %v1230
    %v2778 = vunpack.c.h.b16 %v1230
    %v2779 = vunpack.c.l.b16 %v1231
    %v2780 = vunpack.c.h.b16 %v1231
    %v2781 = vunpack.c.l.b16 %v1232
    %v2782 = vunpack.c.h.b16 %v1232
    %v2783 = vunpack.c.l.b16 %v1233
    %v2784 = vunpack.c.h.b16 %v1233
    %v2785 = vunpack.c.l.b16 %v1234
    %v2786 = vunpack.c.h.b16 %v1234
    %v2787 = vunpack.c.l.b16 %v1235
    %v2788 = vunpack.c.h.b16 %v1235
    %v2789 = vunpack.c.l.b16 %v1236
    %v2790 = vunpack.c.h.b16 %v1236
    %v2791 = vunpack.c.l.b16 %v1237
    %v2792 = vunpack.c.h.b16 %v1237
    %v2793 = vunpack.c.l.b16 %v1238
    %v2794 = vunpack.c.h.b16 %v1238
    %v2795 = vunpack.c.l.b16 %v1239
    %v2796 = vunpack.c.h.b16 %v1239
    %v2797 = vunpack.c.l.b16 %v1240
    %v2798 = vunpack.c.h.b16 %v1240
    %v2799 = vunpack.c.l.b16 %v1241
    %v2800 = vunpack.c.h.b16 %v1241
    %v2801 = vunpack.c.l.b16 %v1242
    %v2802 = vunpack.c.h.b16 %v1242
    %v2803 = vunpack.c.l.b16 %v1243
    %v2804 = vunpack.c.h.b16 %v1243
    %v2805 = vunpack.c.l.b16 %v1244
    %v2806 = vunpack.c.h.b16 %v1244
    %v2807 = vunpack.c.l.b16 %v1245
    %v2808 = vunpack.c.h.b16 %v1245
    %v2809 = vunpack.c.l.b16 %v1246
    %v2810 = vunpack.c.h.b16 %v1246
    %v2811 = vunpack.c.l.b16 %v1247
    %v2812 = vunpack.c.h.b16 %v1247
    %v2813 = vunpack.c.l.b16 %v1248
    %v2814 = vunpack.c.h.b16 %v1248
    %v2815 = vunpack.c.l.b16 %v1249
    %v2816 = vunpack.c.h.b16 %v1249
    %v2817 = vunpack.c.l.b16 %v1250
    %v2818 = vunpack.c.h.b16 %v1250
    %v2819 = vunpack.c.l.b16 %v1251
    %v2820 = vunpack.c.h.b16 %v1251
    %v2821 = vunpack.c.l.b16 %v1252
    %v2822 = vunpack.c.h.b16 %v1252
    %v2823 = vunpack.c.l.b16 %v1253
    %v2824 = vunpack.c.h.b16 %v1253
    %v2825 = vunpack.c.l.b16 %v1254
    %v2826 = vunpack.c.h.b16 %v1254
    %v2827 = vunpack.c.l.b16 %v1255
    %v2828 = vunpack.c.h.b16 %v1255
    %v2829 = vunpack.c.l.b16 %v1256
    %v2830 = vunpack.c.h.b16 %v1256
    %v2831 = vunpack.c.l.b16 %v1257
    %v2832 = vunpack.c.h.b16 %v1257
    %v2833 = vunpack.c.l.b16 %v1258
    %v2834 = vunpack.c.h.b16 %v1258
    %v2835 = vunpack.c.l.b16 %v1259
    %v2836 = vunpack.c.h.b16 %v1259
    %v2837 = vunpack.c.l.b16 %v1260
    %v2838 = vunpack.c.h.b16 %v1260
    %v2839 = vpack.c.b16 %v1823, %v1815
    %v2840 = vpack.c.b16 %v1824, %v1816
    %v2841 = vpack.c.b16 %v1825, %v1817
    %v2842 = vpack.c.b16 %v1826, %v1818
    %v2843 = vpack.c.b16 %v1827, %v1819
    %v2844 = vpack.c.b16 %v1828, %v1820
    %v2845 = vpack.c.b16 %v1829, %v1821
    %v2846 = vpack.c.b16 %v1830, %v1822
    %v2847 = vpack.c.b16 %v1839, %v1831
    %v2848 = vpack.c.b16 %v1840, %v1832
    %v2849 = vpack.c.b16 %v1841, %v1833
    %v2850 = vpack.c.b16 %v1842, %v1834
    %v2851 = vpack.c.b16 %v1843, %v1835
    %v2852 = vpack.c.b16 %v1844, %v1836
    %v2853 = vpack.c.b16 %v1845, %v1837
    %v2854 = vpack.c.b16 %v1846, %v1838
    %v2855 = vpack.c.b16 %v1855, %v1847
    %v2856 = vpack.c.b16 %v1856, %v1848
    %v2857 = vpack.c.b16 %v1857, %v1849
    %v2858 = vpack.c.b16 %v1858, %v1850
    %v2859 = vpack.c.b16 %v1859, %v1851
    %v2860 = vpack.c.b16 %v1860, %v1852
    %v2861 = vpack.c.b16 %v1861, %v1853
    %v2862 = vpack.c.b16 %v1862, %v1854
    %v2863 = vpack.c.b16 %v1871, %v1863
    %v2864 = vpack.c.b16 %v1872, %v1864
    %v2865 = vpack.c.b16 %v1873, %v1865
    %v2866 = vpack.c.b16 %v1874, %v1866
    %v2867 = vpack.c.b16 %v1875, %v1867
    %v2868 = vpack.c.b16 %v1876, %v1868
    %v2869 = vpack.c.b16 %v1877, %v1869
    %v2870 = vpack.c.b16 %v1878, %v1870
    %v2871 = vpack.c.b16 %v1887, %v1879
    %v2872 = vpack.c.b16 %v1888, %v1880
    %v2873 = vpack.c.b16 %v1889, %v1881
    %v2874 = vpack.c.b16 %v1890, %v1882
    %v2875 = vpack.c.b16 %v1891, %v1883
    %v2876 = vpack.c.b16 %v1892, %v1884
    %v2877 = vpack.c.b16 %v1893, %v1885
    %v2878 = vpack.c.b16 %v1894, %v1886
    %v2879 = vpack.c.b16 %v1903, %v1895
    %v2880 = vpack.c.b16 %v1904, %v1896
    %v2881 = vpack.c.b16 %v1905, %v1897
    %v2882 = vpack.c.b16 %v1906, %v1898
    %v2883 = vpack.c.b16 %v1907, %v1899
    %v2884 = vpack.c.b16 %v1908, %v1900
    %v2885 = vpack.c.b16 %v1909, %v1901
    %v2886 = vpack.c.b16 %v1910, %v1902
    %v2887 = vpack.c.b16 %v1919, %v1911
    %v2888 = vpack.c.b16 %v1920, %v1912
    %v2889 = vpack.c.b16 %v1921, %v1913
    %v2890 = vpack.c.b16 %v1922, %v1914
    %v2891 = vpack.c.b16 %v1923, %v1915
    %v2892 = vpack.c.b16 %v1924, %v1916
    %v2893 = vpack.c.b16 %v1925, %v1917
    %v2894 = vpack.c.b16 %v1926, %v1918
    %v2895 = vpack.c.b16 %v1935, %v1927
    %v2896 = vpack.c.b16 %v1936, %v1928
    %v2897 = vpack.c.b16 %v1937, %v1929
    %v2898 = vpack.c.b16 %v1938, %v1930
    %v2899 = vpack.c.b16 %v1939, %v1931
    %v2900 = vpack.c.b16 %v1940, %v1932
    %v2901 = vpack.c.b16 %v1941, %v1933
    %v2902 = vpack.c.b16 %v1942, %v1934
    %v2903 = vpack.c.b16 %v1951, %v1943
    %v2904 = vpack.c.b16 %v1952, %v1944
    %v2905 = vpack.c.b16 %v1953, %v1945
    %v2906 = vpack.c.b16 %v1954, %v1946
    %v2907 = vpack.c.b16 %v1955, %v1947
    %v2908 = vpack.c.b16 %v1956, %v1948
    %v2909 = vpack.c.b16 %v1957, %v1949
    %v2910 = vpack.c.b16 %v1958, %v1950
    %v2911 = vpack.c.b16 %v1967, %v1959
    %v2912 = vpack.c.b16 %v1968, %v1960
    %v2913 = vpack.c.b16 %v1969, %v1961
    %v2914 = vpack.c.b16 %v1970, %v1962
    %v2915 = vpack.c.b16 %v1971, %v1963
    %v2916 = vpack.c.b16 %v1972, %v1964
    %v2917 = vpack.c.b16 %v1973, %v1965
    %v2918 = vpack.c.b16 %v1974, %v1966
    %v2919 = vpack.c.b16 %v1983, %v1975
    %v2920 = vpack.c.b16 %v1984, %v1976
    %v2921 = vpack.c.b16 %v1985, %v1977
    %v2922 = vpack.c.b16 %v1986, %v1978
    %v2923 = vpack.c.b16 %v1987, %v1979
    %v2924 = vpack.c.b16 %v1988, %v1980
    %v2925 = vpack.c.b16 %v1989, %v1981
    %v2926 = vpack.c.b16 %v1990, %v1982
    %v2927 = vpack.c.b16 %v1999, %v1991
    %v2928 = vpack.c.b16 %v2000, %v1992
    %v2929 = vpack.c.b16 %v2001, %v1993
    %v2930 = vpack.c.b16 %v2002, %v1994
    %v2931 = vpack.c.b16 %v2003, %v1995
    %v2932 = vpack.c.b16 %v2004, %v1996
    %v2933 = vpack.c.b16 %v2005, %v1997
    %v2934 = vpack.c.b16 %v2006, %v1998
    %v2935 = vpack.c.b16 %v2015, %v2007
    %v2936 = vpack.c.b16 %v2016, %v2008
    %v2937 = vpack.c.b16 %v2017, %v2009
    %v2938 = vpack.c.b16 %v2018, %v2010
    %v2939 = vpack.c.b16 %v2019, %v2011
    %v2940 = vpack.c.b16 %v2020, %v2012
    %v2941 = vpack.c.b16 %v2021, %v2013
    %v2942 = vpack.c.b16 %v2022, %v2014
    %v2943 = vpack.c.b16 %v2031, %v2023
    %v2944 = vpack.c.b16 %v2032, %v2024
    %v2945 = vpack.c.b16 %v2033, %v2025
    %v2946 = vpack.c.b16 %v2034, %v2026
    %v2947 = vpack.c.b16 %v2035, %v2027
    %v2948 = vpack.c.b16 %v2036, %v2028
    %v2949 = vpack.c.b16 %v2037, %v2029
    %v2950 = vpack.c.b16 %v2038, %v2030
    %v2951 = vpack.c.b16 %v2047, %v2039
    %v2952 = vpack.c.b16 %v2048, %v2040
    %v2953 = vpack.c.b16 %v2049, %v2041
    %v2954 = vpack.c.b16 %v2050, %v2042
    %v2955 = vpack.c.b16 %v2051, %v2043
    %v2956 = vpack.c.b16 %v2052, %v2044
    %v2957 = vpack.c.b16 %v2053, %v2045
    %v2958 = vpack.c.b16 %v2054, %v2046
    %v2959 = vpack.c.b16 %v2063, %v2055
    %v2960 = vpack.c.b16 %v2064, %v2056
    %v2961 = vpack.c.b16 %v2065, %v2057
    %v2962 = vpack.c.b16 %v2066, %v2058
    %v2963 = vpack.c.b16 %v2067, %v2059
    %v2964 = vpack.c.b16 %v2068, %v2060
    %v2965 = vpack.c.b16 %v2069, %v2061
    %v2966 = vpack.c.b16 %v2070, %v2062
    %v2967 = vpack.c.b16 %v2079, %v2071
    %v2968 = vpack.c.b16 %v2080, %v2072
    %v2969 = vpack.c.b16 %v2081, %v2073
    %v2970 = vpack.c.b16 %v2082, %v2074
    %v2971 = vpack.c.b16 %v2083, %v2075
    %v2972 = vpack.c.b16 %v2084, %v2076
    %v2973 = vpack.c.b16 %v2085, %v2077
    %v2974 = vpack.c.b16 %v2086, %v2078
    %v2975 = vpack.c.b16 %v2095, %v2087
    %v2976 = vpack.c.b16 %v2096, %v2088
    %v2977 = vpack.c.b16 %v2097, %v2089
    %v2978 = vpack.c.b16 %v2098, %v2090
    %v2979 = vpack.c.b16 %v2099, %v2091
    %v2980 = vpack.c.b16 %v2100, %v2092
    %v2981 = vpack.c.b16 %v2101, %v2093
    %v2982 = vpack.c.b16 %v2102, %v2094
    %v2983 = vpack.c.b16 %v2111, %v2103
    %v2984 = vpack.c.b16 %v2112, %v2104
    %v2985 = vpack.c.b16 %v2113, %v2105
    %v2986 = vpack.c.b16 %v2114, %v2106
    %v2987 = vpack.c.b16 %v2115, %v2107
    %v2988 = vpack.c.b16 %v2116, %v2108
    %v2989 = vpack.c.b16 %v2117, %v2109
    %v2990 = vpack.c.b16 %v2118, %v2110
    %v2991 = vpack.c.b16 %v2127, %v2119
    %v2992 = vpack.c.b16 %v2128, %v2120
    %v2993 = vpack.c.b16 %v2129, %v2121
    %v2994 = vpack.c.b16 %v2130, %v2122
    %v2995 = vpack.c.b16 %v2131, %v2123
    %v2996 = vpack.c.b16 %v2132, %v2124
    %v2997 = vpack.c.b16 %v2133, %v2125
    %v2998 = vpack.c.b16 %v2134, %v2126
    %v2999 = vpack.c.b16 %v2143, %v2135
    %v3000 = vpack.c.b16 %v2144, %v2136
    %v3001 = vpack.c.b16 %v2145, %v2137
    %v3002 = vpack.c.b16 %v2146, %v2138
    %v3003 = vpack.c.b16 %v2147, %v2139
    %v3004 = vpack.c.b16 %v2148, %v2140
    %v3005 = vpack.c.b16 %v2149, %v2141
    %v3006 = vpack.c.b16 %v2150, %v2142
    %v3007 = vpack.c.b16 %v2159, %v2151
    %v3008 = vpack.c.b16 %v2160, %v2152
    %v3009 = vpack.c.b16 %v2161, %v2153
    %v3010 = vpack.c.b16 %v2162, %v2154
    %v3011 = vpack.c.b16 %v2163, %v2155
    %v3012 = vpack.c.b16 %v2164, %v2156
    %v3013 = vpack.c.b16 %v2165, %v2157
    %v3014 = vpack.c.b16 %v2166, %v2158
    %v3015 = vpack.c.b16 %v2175, %v2167
    %v3016 = vpack.c.b16 %v2176, %v2168
    %v3017 = vpack.c.b16 %v2177, %v2169
    %v3018 = vpack.c.b16 %v2178, %v2170
    %v3019 = vpack.c.b16 %v2179, %v2171
    %v3020 = vpack.c.b16 %v2180, %v2172
    %v3021 = vpack.c.b16 %v2181, %v2173
    %v3022 = vpack.c.b16 %v2182, %v2174
    %v3023 = vpack.c.b16 %v2191, %v2183
    %v3024 = vpack.c.b16 %v2192, %v2184
    %v3025 = vpack.c.b16 %v2193, %v2185
    %v3026 = vpack.c.b16 %v2194, %v2186
    %v3027 = vpack.c.b16 %v2195, %v2187
    %v3028 = vpack.c.b16 %v2196, %v2188
    %v3029 = vpack.c.b16 %v2197, %v2189
    %v3030 = vpack.c.b16 %v2198, %v2190
    %v3031 = vpack.c.b16 %v2207, %v2199
    %v3032 = vpack.c.b16 %v2208, %v2200
    %v3033 = vpack.c.b16 %v2209, %v2201
    %v3034 = vpack.c.b16 %v2210, %v2202
    %v3035 = vpack.c.b16 %v2211, %v2203
    %v3036 = vpack.c.b16 %v2212, %v2204
    %v3037 = vpack.c.b16 %v2213, %v2205
    %v3038 = vpack.c.b16 %v2214, %v2206
    %v3039 = vpack.c.b16 %v2223, %v2215
    %v3040 = vpack.c.b16 %v2224, %v2216
    %v3041 = vpack.c.b16 %v2225, %v2217
    %v3042 = vpack.c.b16 %v2226, %v2218
    %v3043 = vpack.c.b16 %v2227, %v2219
    %v3044 = vpack.c.b16 %v2228, %v2220
    %v3045 = vpack.c.b16 %v2229, %v2221
    %v3046 = vpack.c.b16 %v2230, %v2222
    %v3047 = vpack.c.b16 %v2239, %v2231
    %v3048 = vpack.c.b16 %v2240, %v2232
    %v3049 = vpack.c.b16 %v2241, %v2233
    %v3050 = vpack.c.b16 %v2242, %v2234
    %v3051 = vpack.c.b16 %v2243, %v2235
    %v3052 = vpack.c.b16 %v2244, %v2236
    %v3053 = vpack.c.b16 %v2245, %v2237
    %v3054 = vpack.c.b16 %v2246, %v2238
    %v3055 = vpack.c.b16 %v2255, %v2247
    %v3056 = vpack.c.b16 %v2256, %v2248
    %v3057 = vpack.c.b16 %v2257, %v2249
    %v3058 = vpack.c.b16 %v2258, %v2250
    %v3059 = vpack.c.b16 %v2259, %v2251
    %v3060 = vpack.c.b16 %v2260, %v2252
    %v3061 = vpack.c.b16 %v2261, %v2253
    %v3062 = vpack.c.b16 %v2262, %v2254
    %v3063 = vpack.c.b16 %v2271, %v2263
    %v3064 = vpack.c.b16 %v2272, %v2264
    %v3065 = vpack.c.b16 %v2273, %v2265
    %v3066 = vpack.c.b16 %v2274, %v2266
    %v3067 = vpack.c.b16 %v2275, %v2267
    %v3068 = vpack.c.b16 %v2276, %v2268
    %v3069 = vpack.c.b16 %v2277, %v2269
    %v3070 = vpack.c.b16 %v2278, %v2270
    %v3071 = vpack.c.b16 %v2287, %v2279
    %v3072 = vpack.c.b16 %v2288, %v2280
    %v3073 = vpack.c.b16 %v2289, %v2281
    %v3074 = vpack.c.b16 %v2290, %v2282
    %v3075 = vpack.c.b16 %v2291, %v2283
    %v3076 = vpack.c.b16 %v2292, %v2284
    %v3077 = vpack.c.b16 %v2293, %v2285
    %v3078 = vpack.c.b16 %v2294, %v2286
    %v3079 = vpack.c.b16 %v2303, %v2295
    %v3080 = vpack.c.b16 %v2304, %v2296
    %v3081 = vpack.c.b16 %v2305, %v2297
    %v3082 = vpack.c.b16 %v2306, %v2298
    %v3083 = vpack.c.b16 %v2307, %v2299
    %v3084 = vpack.c.b16 %v2308, %v2300
    %v3085 = vpack.c.b16 %v2309, %v2301
    %v3086 = vpack.c.b16 %v2310, %v2302
    %v3087 = vpack.c.b16 %v2319, %v2311
    %v3088 = vpack.c.b16 %v2320, %v2312
    %v3089 = vpack.c.b16 %v2321, %v2313
    %v3090 = vpack.c.b16 %v2322, %v2314
    %v3091 = vpack.c.b16 %v2323, %v2315
    %v3092 = vpack.c.b16 %v2324, %v2316
    %v3093 = vpack.c.b16 %v2325, %v2317
    %v3094 = vpack.c.b16 %v2326, %v2318
    %v3095 = vpack.c.b16 %v2335, %v2327
    %v3096 = vpack.c.b16 %v2336, %v2328
    %v3097 = vpack.c.b16 %v2337, %v2329
    %v3098 = vpack.c.b16 %v2338, %v2330
    %v3099 = vpack.c.b16 %v2339, %v2331
    %v3100 = vpack.c.b16 %v2340, %v2332
    %v3101 = vpack.c.b16 %v2341, %v2333
    %v3102 = vpack.c.b16 %v2342, %v2334
    %v3103 = vpack.c.b16 %v2351, %v2343
    %v3104 = vpack.c.b16 %v2352, %v2344
    %v3105 = vpack.c.b16 %v2353, %v2345
    %v3106 = vpack.c.b16 %v2354, %v2346
    %v3107 = vpack.c.b16 %v2355, %v2347
    %v3108 = vpack.c.b16 %v2356, %v2348
    %v3109 = vpack.c.b16 %v2357, %v2349
    %v3110 = vpack.c.b16 %v2358, %v2350
    %v3111 = vpack.c.b16 %v2367, %v2359
    %v3112 = vpack.c.b16 %v2368, %v2360
    %v3113 = vpack.c.b16 %v2369, %v2361
    %v3114 = vpack.c.b16 %v2370, %v2362
    %v3115 = vpack.c.b16 %v2371, %v2363
    %v3116 = vpack.c.b16 %v2372, %v2364
    %v3117 = vpack.c.b16 %v2373, %v2365
    %v3118 = vpack.c.b16 %v2374, %v2366
    %v3119 = vpack.c.b16 %v2383, %v2375
    %v3120 = vpack.c.b16 %v2384, %v2376
    %v3121 = vpack.c.b16 %v2385, %v2377
    %v3122 = vpack.c.b16 %v2386, %v2378
    %v3123 = vpack.c.b16 %v2387, %v2379
    %v3124 = vpack.c.b16 %v2388, %v2380
    %v3125 = vpack.c.b16 %v2389, %v2381
    %v3126 = vpack.c.b16 %v2390, %v2382
    %v3127 = vpack.c.b16 %v2399, %v2391
    %v3128 = vpack.c.b16 %v2400, %v2392
    %v3129 = vpack.c.b16 %v2401, %v2393
    %v3130 = vpack.c.b16 %v2402, %v2394
    %v3131 = vpack.c.b16 %v2403, %v2395
    %v3132 = vpack.c.b16 %v2404, %v2396
    %v3133 = vpack.c.b16 %v2405, %v2397
    %v3134 = vpack.c.b16 %v2406, %v2398
    %v3135 = vpack.c.b16 %v2415, %v2407
    %v3136 = vpack.c.b16 %v2416, %v2408
    %v3137 = vpack.c.b16 %v2417, %v2409
    %v3138 = vpack.c.b16 %v2418, %v2410
    %v3139 = vpack.c.b16 %v2419, %v2411
    %v3140 = vpack.c.b16 %v2420, %v2412
    %v3141 = vpack.c.b16 %v2421, %v2413
    %v3142 = vpack.c.b16 %v2422, %v2414
    %v3143 = vpack.c.b16 %v2431, %v2423
    %v3144 = vpack.c.b16 %v2432, %v2424
    %v3145 = vpack.c.b16 %v2433, %v2425
    %v3146 = vpack.c.b16 %v2434, %v2426
    %v3147 = vpack.c.b16 %v2435, %v2427
    %v3148 = vpack.c.b16 %v2436, %v2428
    %v3149 = vpack.c.b16 %v2437, %v2429
    %v3150 = vpack.c.b16 %v2438, %v2430
    %v3151 = vpack.c.b16 %v2447, %v2439
    %v3152 = vpack.c.b16 %v2448, %v2440
    %v3153 = vpack.c.b16 %v2449, %v2441
    %v3154 = vpack.c.b16 %v2450, %v2442
    %v3155 = vpack.c.b16 %v2451, %v2443
    %v3156 = vpack.c.b16 %v2452, %v2444
    %v3157 = vpack.c.b16 %v2453, %v2445
    %v3158 = vpack.c.b16 %v2454, %v2446
    %v3159 = vpack.c.b16 %v2463, %v2455
    %v3160 = vpack.c.b16 %v2464, %v2456
    %v3161 = vpack.c.b16 %v2465, %v2457
    %v3162 = vpack.c.b16 %v2466, %v2458
    %v3163 = vpack.c.b16 %v2467, %v2459
    %v3164 = vpack.c.b16 %v2468, %v2460
    %v3165 = vpack.c.b16 %v2469, %v2461
    %v3166 = vpack.c.b16 %v2470, %v2462
    %v3167 = vpack.c.b16 %v2479, %v2471
    %v3168 = vpack.c.b16 %v2480, %v2472
    %v3169 = vpack.c.b16 %v2481, %v2473
    %v3170 = vpack.c.b16 %v2482, %v2474
    %v3171 = vpack.c.b16 %v2483, %v2475
    %v3172 = vpack.c.b16 %v2484, %v2476
    %v3173 = vpack.c.b16 %v2485, %v2477
    %v3174 = vpack.c.b16 %v2486, %v2478
    %v3175 = vpack.c.b16 %v2495, %v2487
    %v3176 = vpack.c.b16 %v2496, %v2488
    %v3177 = vpack.c.b16 %v2497, %v2489
    %v3178 = vpack.c.b16 %v2498, %v2490
    %v3179 = vpack.c.b16 %v2499, %v2491
    %v3180 = vpack.c.b16 %v2500, %v2492
    %v3181 = vpack.c.b16 %v2501, %v2493
    %v3182 = vpack.c.b16 %v2502, %v2494
    %v3183 = vpack.c.b16 %v2511, %v2503
    %v3184 = vpack.c.b16 %v2512, %v2504
    %v3185 = vpack.c.b16 %v2513, %v2505
    %v3186 = vpack.c.b16 %v2514, %v2506
    %v3187 = vpack.c.b16 %v2515, %v2507
    %v3188 = vpack.c.b16 %v2516, %v2508
    %v3189 = vpack.c.b16 %v2517, %v2509
    %v3190 = vpack.c.b16 %v2518, %v2510
    %v3191 = vpack.c.b16 %v2527, %v2519
    %v3192 = vpack.c.b16 %v2528, %v2520
    %v3193 = vpack.c.b16 %v2529, %v2521
    %v3194 = vpack.c.b16 %v2530, %v2522
    %v3195 = vpack.c.b16 %v2531, %v2523
    %v3196 = vpack.c.b16 %v2532, %v2524
    %v3197 = vpack.c.b16 %v2533, %v2525
    %v3198 = vpack.c.b16 %v2534, %v2526
    %v3199 = vpack.c.b16 %v2543, %v2535
    %v3200 = vpack.c.b16 %v2544, %v2536
    %v3201 = vpack.c.b16 %v2545, %v2537
    %v3202 = vpack.c.b16 %v2546, %v2538
    %v3203 = vpack.c.b16 %v2547, %v2539
    %v3204 = vpack.c.b16 %v2548, %v2540
    %v3205 = vpack.c.b16 %v2549, %v2541
    %v3206 = vpack.c.b16 %v2550, %v2542
    %v3207 = vpack.c.b16 %v2559, %v2551
    %v3208 = vpack.c.b16 %v2560, %v2552
    %v3209 = vpack.c.b16 %v2561, %v2553
    %v3210 = vpack.c.b16 %v2562, %v2554
    %v3211 = vpack.c.b16 %v2563, %v2555
    %v3212 = vpack.c.b16 %v2564, %v2556
    %v3213 = vpack.c.b16 %v2565, %v2557
    %v3214 = vpack.c.b16 %v2566, %v2558
    %v3215 = vpack.c.b16 %v2575, %v2567
    %v3216 = vpack.c.b16 %v2576, %v2568
    %v3217 = vpack.c.b16 %v2577, %v2569
    %v3218 = vpack.c.b16 %v2578, %v2570
    %v3219 = vpack.c.b16 %v2579, %v2571
    %v3220 = vpack.c.b16 %v2580, %v2572
    %v3221 = vpack.c.b16 %v2581, %v2573
    %v3222 = vpack.c.b16 %v2582, %v2574
    %v3223 = vpack.c.b16 %v2591, %v2583
    %v3224 = vpack.c.b16 %v2592, %v2584
    %v3225 = vpack.c.b16 %v2593, %v2585
    %v3226 = vpack.c.b16 %v2594, %v2586
    %v3227 = vpack.c.b16 %v2595, %v2587
    %v3228 = vpack.c.b16 %v2596, %v2588
    %v3229 = vpack.c.b16 %v2597, %v2589
    %v3230 = vpack.c.b16 %v2598, %v2590
    %v3231 = vpack.c.b16 %v2607, %v2599
    %v3232 = vpack.c.b16 %v2608, %v2600
    %v3233 = vpack.c.b16 %v2609, %v2601
    %v3234 = vpack.c.b16 %v2610, %v2602
    %v3235 = vpack.c.b16 %v2611, %v2603
    %v3236 = vpack.c.b16 %v2612, %v2604
    %v3237 = vpack.c.b16 %v2613, %v2605
    %v3238 = vpack.c.b16 %v2614, %v2606
    %v3239 = vpack.c.b16 %v2623, %v2615
    %v3240 = vpack.c.b16 %v2624, %v2616
    %v3241 = vpack.c.b16 %v2625, %v2617
    %v3242 = vpack.c.b16 %v2626, %v2618
    %v3243 = vpack.c.b16 %v2627, %v2619
    %v3244 = vpack.c.b16 %v2628, %v2620
    %v3245 = vpack.c.b16 %v2629, %v2621
    %v3246 = vpack.c.b16 %v2630, %v2622
    %v3247 = vpack.c.b16 %v2639, %v2631
    %v3248 = vpack.c.b16 %v2640, %v2632
    %v3249 = vpack.c.b16 %v2641, %v2633
    %v3250 = vpack.c.b16 %v2642, %v2634
    %v3251 = vpack.c.b16 %v2643, %v2635
    %v3252 = vpack.c.b16 %v2644, %v2636
    %v3253 = vpack.c.b16 %v2645, %v2637
    %v3254 = vpack.c.b16 %v2646, %v2638
    %v3255 = vpack.c.b16 %v2655, %v2647
    %v3256 = vpack.c.b16 %v2656, %v2648
    %v3257 = vpack.c.b16 %v2657, %v2649
    %v3258 = vpack.c.b16 %v2658, %v2650
    %v3259 = vpack.c.b16 %v2659, %v2651
    %v3260 = vpack.c.b16 %v2660, %v2652
    %v3261 = vpack.c.b16 %v2661, %v2653
    %v3262 = vpack.c.b16 %v2662, %v2654
    %v3263 = vpack.c.b16 %v2671, %v2663
    %v3264 = vpack.c.b16 %v2672, %v2664
    %v3265 = vpack.c.b16 %v2673, %v2665
    %v3266 = vpack.c.b16 %v2674, %v2666
    %v3267 = vpack.c.b16 %v2675, %v2667
    %v3268 = vpack.c.b16 %v2676, %v2668
    %v3269 = vpack.c.b16 %v2677, %v2669
    %v3270 = vpack.c.b16 %v2678, %v2670
    %v3271 = vpack.c.b16 %v2687, %v2679
    %v3272 = vpack.c.b16 %v2688, %v2680
    %v3273 = vpack.c.b16 %v2689, %v2681
    %v3274 = vpack.c.b16 %v2690, %v2682
    %v3275 = vpack.c.b16 %v2691, %v2683
    %v3276 = vpack.c.b16 %v2692, %v2684
    %v3277 = vpack.c.b16 %v2693, %v2685
    %v3278 = vpack.c.b16 %v2694, %v2686
    %v3279 = vpack.c.b16 %v2703, %v2695
    %v3280 = vpack.c.b16 %v2704, %v2696
    %v3281 = vpack.c.b16 %v2705, %v2697
    %v3282 = vpack.c.b16 %v2706, %v2698
    %v3283 = vpack.c.b16 %v2707, %v2699
    %v3284 = vpack.c.b16 %v2708, %v2700
    %v3285 = vpack.c.b16 %v2709, %v2701
    %v3286 = vpack.c.b16 %v2710, %v2702
    %v3287 = vpack.c.b16 %v2719, %v2711
    %v3288 = vpack.c.b16 %v2720, %v2712
    %v3289 = vpack.c.b16 %v2721, %v2713
    %v3290 = vpack.c.b16 %v2722, %v2714
    %v3291 = vpack.c.b16 %v2723, %v2715
    %v3292 = vpack.c.b16 %v2724, %v2716
    %v3293 = vpack.c.b16 %v2725, %v2717
    %v3294 = vpack.c.b16 %v2726, %v2718
    %v3295 = vpack.c.b16 %v2735, %v2727
    %v3296 = vpack.c.b16 %v2736, %v2728
    %v3297 = vpack.c.b16 %v2737, %v2729
    %v3298 = vpack.c.b16 %v2738, %v2730
    %v3299 = vpack.c.b16 %v2739, %v2731
    %v3300 = vpack.c.b16 %v2740, %v2732
    %v3301 = vpack.c.b16 %v2741, %v2733
    %v3302 = vpack.c.b16 %v2742, %v2734
    %v3303 = vpack.c.b16 %v2751, %v2743
    %v3304 = vpack.c.b16 %v2752, %v2744
    %v3305 = vpack.c.b16 %v2753, %v2745
    %v3306 = vpack.c.b16 %v2754, %v2746
    %v3307 = vpack.c.b16 %v2755, %v2747
    %v3308 = vpack.c.b16 %v2756, %v2748
    %v3309 = vpack.c.b16 %v2757, %v2749
    %v3310 = vpack.c.b16 %v2758, %v2750
    %v3311 = vpack.c.b16 %v2767, %v2759
    %v3312 = vpack.c.b16 %v2768, %v2760
    %v3313 = vpack.c.b16 %v2769, %v2761
    %v3314 = vpack.c.b16 %v2770, %v2762
    %v3315 = vpack.c.b16 %v2771, %v2763
    %v3316 = vpack.c.b16 %v2772, %v2764
    %v3317 = vpack.c.b16 %v2773, %v2765
    %v3318 = vpack.c.b16 %v2774, %v2766
    %v3319 = vpack.c.b16 %v2783, %v2775
    %v3320 = vpack.c.b16 %v2784, %v2776
    %v3321 = vpack.c.b16 %v2785, %v2777
    %v3322 = vpack.c.b16 %v2786, %v2778
    %v3323 = vpack.c.b16 %v2787, %v2779
    %v3324 = vpack.c.b16 %v2788, %v2780
    %v3325 = vpack.c.b16 %v2789, %v2781
    %v3326 = vpack.c.b16 %v2790, %v2782
    %v3327 = vpack.c.b16 %v2799, %v2791
    %v3328 = vpack.c.b16 %v2800, %v2792
    %v3329 = vpack.c.b16 %v2801, %v2793
    %v3330 = vpack.c.b16 %v2802, %v2794
    %v3331 = vpack.c.b16 %v2803, %v2795
    %v3332 = vpack.c.b16 %v2804, %v2796
    %v3333 = vpack.c.b16 %v2805, %v2797
    %v3334 = vpack.c.b16 %v2806, %v2798
    %v3335 = vpack.c.b16 %v2815, %v2807
    %v3336 = vpack.c.b16 %v2816, %v2808
    %v3337 = vpack.c.b16 %v2817, %v2809
    %v3338 = vpack.c.b16 %v2818, %v2810
    %v3339 = vpack.c.b16 %v2819, %v2811
    %v3340 = vpack.c.b16 %v2820, %v2812
    %v3341 = vpack.c.b16 %v2821, %v2813
    %v3342 = vpack.c.b16 %v2822, %v2814
    %v3343 = vpack.c.b16 %v2831, %v2823
    %v3344 = vpack.c.b16 %v2832, %v2824
    %v3345 = vpack.c.b16 %v2833, %v2825
    %v3346 = vpack.c.b16 %v2834, %v2826
    %v3347 = vpack.c.b16 %v2835, %v2827
    %v3348 = vpack.c.b16 %v2836, %v2828
    %v3349 = vpack.c.b16 %v2837, %v2829
    %v3350 = vpack.c.b16 %v2838, %v2830
    %3863 = vmatprep.subr.bf16.mxu0 %v2896
    %3864 = vmatpush1.bf16.msra.mxu0 %v2895
    %3865 = vmatprep.subr.bf16.mxu0 %v2888
    %3866 = vmatpush1.bf16.msra.mxu0 %v2887
    %3867 = vmatprep.subr.bf16.mxu0 %v2880
    %3868 = vmatpush1.bf16.msra.mxu0 %v2879
    %3869 = vmatprep.subr.bf16.mxu0 %v2872
    %3870 = vmatpush1.bf16.msra.mxu0 %v2871
    %3871 = vmatprep.subr.bf16.mxu0 %v2864
    %3872 = vmatpush1.bf16.msra.mxu0 %v2863
    %3873 = vmatprep.subr.bf16.mxu0 %v2856
    %3874 = vmatpush1.bf16.msra.mxu0 %v2855
    %3875 = vmatprep.subr.bf16.mxu0 %v2848
    %3876 = vmatpush1.bf16.msra.mxu0 %v2847
    %3877 = vmatprep.subr.bf16.mxu0 %v2840
    %3878 = vmatpush1.bf16.msra.mxu0 %v2839
    %3879 = vmatprep.subr.bf16.mxu0 %v2960
    %3880 = vmatpush2.bf16.msra.mxu0 %v2959
    %3881 = vmatprep.subr.bf16.mxu0 %v2952
    %3882 = vmatpush2.bf16.msra.mxu0 %v2951
    %3883 = vmatprep.subr.bf16.mxu0 %v2944
    %3884 = vmatpush2.bf16.msra.mxu0 %v2943
    %3885 = vmatprep.subr.bf16.mxu0 %v2936
    %3886 = vmatpush2.bf16.msra.mxu0 %v2935
    %3887 = vmatprep.subr.bf16.mxu0 %v2928
    %3888 = vmatpush2.bf16.msra.mxu0 %v2927
    %3889 = vmatprep.subr.bf16.mxu0 %v2920
    %3890 = vmatpush2.bf16.msra.mxu0 %v2919
    %3891 = vmatprep.subr.bf16.mxu0 %v2912
    %3892 = vmatpush2.bf16.msra.mxu0 %v2911
    %3893 = vmatprep.subr.bf16.mxu0 %v2904
    %3894 = vmatpush2.bf16.msra.mxu0 %v2903
    %3895 = vmatprep.mubr.bf16.mxu0 %v742
    %3896 = vmatmul.mubr.bf16.gmra.mxu0 %v741
    %v3897 = vpop.f32.mrf.mxu0
    %v3898 = vadd.f32 %v1266, %v3897
    %v3899 = vpop.f32.mrf.mxu0
    %v3900 = vadd.f32 %v1270, %v3899
    %v3901 = vpop.f32.mrf.mxu0
    %v3902 = vadd.f32 %v1266, %v3901
    %v3903 = vpop.f32.mrf.mxu0
    %v3904 = vadd.f32 %v1270, %v3903
    %3905 = vdwg.mxu0
    %3906 = vmatprep.subr.bf16.mxu0 %v3024
    %3907 = vmatpush1.bf16.msra.mxu0 %v3023
    %3908 = vmatprep.subr.bf16.mxu0 %v3016
    %3909 = vmatpush1.bf16.msra.mxu0 %v3015
    %3910 = vmatprep.subr.bf16.mxu0 %v3008
    %3911 = vmatpush1.bf16.msra.mxu0 %v3007
    %3912 = vmatprep.subr.bf16.mxu0 %v3000
    %3913 = vmatpush1.bf16.msra.mxu0 %v2999
    %3914 = vmatprep.subr.bf16.mxu0 %v2992
    %3915 = vmatpush1.bf16.msra.mxu0 %v2991
    %3916 = vmatprep.subr.bf16.mxu0 %v2984
    %3917 = vmatpush1.bf16.msra.mxu0 %v2983
    %3918 = vmatprep.subr.bf16.mxu0 %v2976
    %3919 = vmatpush1.bf16.msra.mxu0 %v2975
    %3920 = vmatprep.subr.bf16.mxu0 %v2968
    %3921 = vmatpush1.bf16.msra.mxu0 %v2967
    %3922 = vmatprep.subr.bf16.mxu0 %v3088
    %3923 = vmatpush2.bf16.msra.mxu0 %v3087
    %3924 = vmatprep.subr.bf16.mxu0 %v3080
    %3925 = vmatpush2.bf16.msra.mxu0 %v3079
    %3926 = vmatprep.subr.bf16.mxu0 %v3072
    %3927 = vmatpush2.bf16.msra.mxu0 %v3071
    %3928 = vmatprep.subr.bf16.mxu0 %v3064
    %3929 = vmatpush2.bf16.msra.mxu0 %v3063
    %3930 = vmatprep.subr.bf16.mxu0 %v3056
    %3931 = vmatpush2.bf16.msra.mxu0 %v3055
    %3932 = vmatprep.subr.bf16.mxu0 %v3048
    %3933 = vmatpush2.bf16.msra.mxu0 %v3047
    %3934 = vmatprep.subr.bf16.mxu0 %v3040
    %3935 = vmatpush2.bf16.msra.mxu0 %v3039
    %3936 = vmatprep.subr.bf16.mxu0 %v3032
    %3937 = vmatpush2.bf16.msra.mxu0 %v3031
    %3938 = vmatprep.mubr.bf16.mxu0 %v744
    %3939 = vmatmul.mubr.bf16.gmra.mxu0 %v743
    %v3940 = vpop.f32.mrf.mxu0
    %v3941 = vadd.f32 %v3898, %v3940
    %v3942 = vpop.f32.mrf.mxu0
    %v3943 = vadd.f32 %v3900, %v3942
    %v3944 = vpop.f32.mrf.mxu0
    %v3945 = vadd.f32 %v3902, %v3944
    %v3946 = vpop.f32.mrf.mxu0
    %v3947 = vadd.f32 %v3904, %v3946
    %3948 = vdwg.mxu0
    %3949 = vmatprep.subr.bf16.mxu0 %v3152
    %3950 = vmatpush1.bf16.msra.mxu0 %v3151
    %3951 = vmatprep.subr.bf16.mxu0 %v3144
    %3952 = vmatpush1.bf16.msra.mxu0 %v3143
    %3953 = vmatprep.subr.bf16.mxu0 %v3136
    %3954 = vmatpush1.bf16.msra.mxu0 %v3135
    %3955 = vmatprep.subr.bf16.mxu0 %v3128
    %3956 = vmatpush1.bf16.msra.mxu0 %v3127
    %3957 = vmatprep.subr.bf16.mxu0 %v3120
    %3958 = vmatpush1.bf16.msra.mxu0 %v3119
    %3959 = vmatprep.subr.bf16.mxu0 %v3112
    %3960 = vmatpush1.bf16.msra.mxu0 %v3111
    %3961 = vmatprep.subr.bf16.mxu0 %v3104
    %3962 = vmatpush1.bf16.msra.mxu0 %v3103
    %3963 = vmatprep.subr.bf16.mxu0 %v3096
    %3964 = vmatpush1.bf16.msra.mxu0 %v3095
    %3965 = vmatprep.subr.bf16.mxu0 %v3216
    %3966 = vmatpush2.bf16.msra.mxu0 %v3215
    %3967 = vmatprep.subr.bf16.mxu0 %v3208
    %3968 = vmatpush2.bf16.msra.mxu0 %v3207
    %3969 = vmatprep.subr.bf16.mxu0 %v3200
    %3970 = vmatpush2.bf16.msra.mxu0 %v3199
    %3971 = vmatprep.subr.bf16.mxu0 %v3192
    %3972 = vmatpush2.bf16.msra.mxu0 %v3191
    %3973 = vmatprep.subr.bf16.mxu0 %v3184
    %3974 = vmatpush2.bf16.msra.mxu0 %v3183
    %3975 = vmatprep.subr.bf16.mxu0 %v3176
    %3976 = vmatpush2.bf16.msra.mxu0 %v3175
    %3977 = vmatprep.subr.bf16.mxu0 %v3168
    %3978 = vmatpush2.bf16.msra.mxu0 %v3167
    %3979 = vmatprep.subr.bf16.mxu0 %v3160
    %3980 = vmatpush2.bf16.msra.mxu0 %v3159
    %3981 = vmatprep.mubr.bf16.mxu0 %v746
    %3982 = vmatmul.mubr.bf16.gmra.mxu0 %v745
    %v3983 = vpop.f32.mrf.mxu0
    %v3984 = vadd.f32 %v3941, %v3983
    %v3985 = vpop.f32.mrf.mxu0
    %v3986 = vadd.f32 %v3943, %v3985
    %v3987 = vpop.f32.mrf.mxu0
    %v3988 = vadd.f32 %v3945, %v3987
    %v3989 = vpop.f32.mrf.mxu0
    %v3990 = vadd.f32 %v3947, %v3989
    %3991 = vdwg.mxu0
    %3992 = vmatprep.subr.bf16.mxu0 %v3280
    %3993 = vmatpush1.bf16.msra.mxu0 %v3279
    %3994 = vmatprep.subr.bf16.mxu0 %v3272
    %3995 = vmatpush1.bf16.msra.mxu0 %v3271
    %3996 = vmatprep.subr.bf16.mxu0 %v3264
    %3997 = vmatpush1.bf16.msra.mxu0 %v3263
    %3998 = vmatprep.subr.bf16.mxu0 %v3256
    %3999 = vmatpush1.bf16.msra.mxu0 %v3255
    %4000 = vmatprep.subr.bf16.mxu0 %v3248
    %4001 = vmatpush1.bf16.msra.mxu0 %v3247
    %4002 = vmatprep.subr.bf16.mxu0 %v3240
    %4003 = vmatpush1.bf16.msra.mxu0 %v3239
    %4004 = vmatprep.subr.bf16.mxu0 %v3232
    %4005 = vmatpush1.bf16.msra.mxu0 %v3231
    %4006 = vmatprep.subr.bf16.mxu0 %v3224
    %4007 = vmatpush1.bf16.msra.mxu0 %v3223
    %4008 = vmatprep.subr.bf16.mxu0 %v3344
    %4009 = vmatpush2.bf16.msra.mxu0 %v3343
    %4010 = vmatprep.subr.bf16.mxu0 %v3336
    %4011 = vmatpush2.bf16.msra.mxu0 %v3335
    %4012 = vmatprep.subr.bf16.mxu0 %v3328
    %4013 = vmatpush2.bf16.msra.mxu0 %v3327
    %4014 = vmatprep.subr.bf16.mxu0 %v3320
    %4015 = vmatpush2.bf16.msra.mxu0 %v3319
    %4016 = vmatprep.subr.bf16.mxu0 %v3312
    %4017 = vmatpush2.bf16.msra.mxu0 %v3311
    %4018 = vmatprep.subr.bf16.mxu0 %v3304
    %4019 = vmatpush2.bf16.msra.mxu0 %v3303
    %4020 = vmatprep.subr.bf16.mxu0 %v3296
    %4021 = vmatpush2.bf16.msra.mxu0 %v3295
    %4022 = vmatprep.subr.bf16.mxu0 %v3288
    %4023 = vmatpush2.bf16.msra.mxu0 %v3287
    %4024 = vmatprep.mubr.bf16.mxu0 %v748
    %4025 = vmatmul.mubr.bf16.gmra.mxu0 %v747
    %v4026 = vpop.f32.mrf.mxu0
    %v4027 = vadd.f32 %v3984, %v4026
    %v4028 = vpop.f32.mrf.mxu0
    %v4029 = vadd.f32 %v3986, %v4028
    %v4030 = vpop.f32.mrf.mxu0
    %v4031 = vadd.f32 %v3988, %v4030
    %v4032 = vpop.f32.mrf.mxu0
    %v4033 = vadd.f32 %v3990, %v4032
    %4034 = vdwg.mxu0
    %4035 = vmatprep.subr.bf16.mxu0 %v2898
    %4036 = vmatpush1.bf16.msra.mxu0 %v2897
    %4037 = vmatprep.subr.bf16.mxu0 %v2890
    %4038 = vmatpush1.bf16.msra.mxu0 %v2889
    %4039 = vmatprep.subr.bf16.mxu0 %v2882
    %4040 = vmatpush1.bf16.msra.mxu0 %v2881
    %4041 = vmatprep.subr.bf16.mxu0 %v2874
    %4042 = vmatpush1.bf16.msra.mxu0 %v2873
    %4043 = vmatprep.subr.bf16.mxu0 %v2866
    %4044 = vmatpush1.bf16.msra.mxu0 %v2865
    %4045 = vmatprep.subr.bf16.mxu0 %v2858
    %4046 = vmatpush1.bf16.msra.mxu0 %v2857
    %4047 = vmatprep.subr.bf16.mxu0 %v2850
    %4048 = vmatpush1.bf16.msra.mxu0 %v2849
    %4049 = vmatprep.subr.bf16.mxu0 %v2842
    %4050 = vmatpush1.bf16.msra.mxu0 %v2841
    %4051 = vmatprep.subr.bf16.mxu0 %v2962
    %4052 = vmatpush2.bf16.msra.mxu0 %v2961
    %4053 = vmatprep.subr.bf16.mxu0 %v2954
    %4054 = vmatpush2.bf16.msra.mxu0 %v2953
    %4055 = vmatprep.subr.bf16.mxu0 %v2946
    %4056 = vmatpush2.bf16.msra.mxu0 %v2945
    %4057 = vmatprep.subr.bf16.mxu0 %v2938
    %4058 = vmatpush2.bf16.msra.mxu0 %v2937
    %4059 = vmatprep.subr.bf16.mxu0 %v2930
    %4060 = vmatpush2.bf16.msra.mxu0 %v2929
    %4061 = vmatprep.subr.bf16.mxu0 %v2922
    %4062 = vmatpush2.bf16.msra.mxu0 %v2921
    %4063 = vmatprep.subr.bf16.mxu0 %v2914
    %4064 = vmatpush2.bf16.msra.mxu0 %v2913
    %4065 = vmatprep.subr.bf16.mxu0 %v2906
    %4066 = vmatpush2.bf16.msra.mxu0 %v2905
    %4067 = vmatprep.mubr.bf16.mxu0 %v742
    %4068 = vmatmul.mubr.bf16.gmra.mxu0 %v741
    %v4069 = vpop.f32.mrf.mxu0
    %v4070 = vadd.f32 %v1274, %v4069
    %v4071 = vpop.f32.mrf.mxu0
    %v4072 = vadd.f32 %v1278, %v4071
    %v4073 = vpop.f32.mrf.mxu0
    %v4074 = vadd.f32 %v1274, %v4073
    %v4075 = vpop.f32.mrf.mxu0
    %v4076 = vadd.f32 %v1278, %v4075
    %4077 = vdwg.mxu0
    %4078 = vmatprep.subr.bf16.mxu0 %v3026
    %4079 = vmatpush1.bf16.msra.mxu0 %v3025
    %4080 = vmatprep.subr.bf16.mxu0 %v3018
    %4081 = vmatpush1.bf16.msra.mxu0 %v3017
    %4082 = vmatprep.subr.bf16.mxu0 %v3010
    %4083 = vmatpush1.bf16.msra.mxu0 %v3009
    %4084 = vmatprep.subr.bf16.mxu0 %v3002
    %4085 = vmatpush1.bf16.msra.mxu0 %v3001
    %4086 = vmatprep.subr.bf16.mxu0 %v2994
    %4087 = vmatpush1.bf16.msra.mxu0 %v2993
    %4088 = vmatprep.subr.bf16.mxu0 %v2986
    %4089 = vmatpush1.bf16.msra.mxu0 %v2985
    %4090 = vmatprep.subr.bf16.mxu0 %v2978
    %4091 = vmatpush1.bf16.msra.mxu0 %v2977
    %4092 = vmatprep.subr.bf16.mxu0 %v2970
    %4093 = vmatpush1.bf16.msra.mxu0 %v2969
    %4094 = vmatprep.subr.bf16.mxu0 %v3090
    %4095 = vmatpush2.bf16.msra.mxu0 %v3089
    %4096 = vmatprep.subr.bf16.mxu0 %v3082
    %4097 = vmatpush2.bf16.msra.mxu0 %v3081
    %4098 = vmatprep.subr.bf16.mxu0 %v3074
    %4099 = vmatpush2.bf16.msra.mxu0 %v3073
    %4100 = vmatprep.subr.bf16.mxu0 %v3066
    %4101 = vmatpush2.bf16.msra.mxu0 %v3065
    %4102 = vmatprep.subr.bf16.mxu0 %v3058
    %4103 = vmatpush2.bf16.msra.mxu0 %v3057
    %4104 = vmatprep.subr.bf16.mxu0 %v3050
    %4105 = vmatpush2.bf16.msra.mxu0 %v3049
    %4106 = vmatprep.subr.bf16.mxu0 %v3042
    %4107 = vmatpush2.bf16.msra.mxu0 %v3041
    %4108 = vmatprep.subr.bf16.mxu0 %v3034
    %4109 = vmatpush2.bf16.msra.mxu0 %v3033
    %4110 = vmatprep.mubr.bf16.mxu0 %v744
    %4111 = vmatmul.mubr.bf16.gmra.mxu0 %v743
    %v4112 = vpop.f32.mrf.mxu0
    %v4113 = vadd.f32 %v4070, %v4112
    %v4114 = vpop.f32.mrf.mxu0
    %v4115 = vadd.f32 %v4072, %v4114
    %v4116 = vpop.f32.mrf.mxu0
    %v4117 = vadd.f32 %v4074, %v4116
    %v4118 = vpop.f32.mrf.mxu0
    %v4119 = vadd.f32 %v4076, %v4118
    %4120 = vdwg.mxu0
    %4121 = vmatprep.subr.bf16.mxu0 %v3154
    %4122 = vmatpush1.bf16.msra.mxu0 %v3153
    %4123 = vmatprep.subr.bf16.mxu0 %v3146
    %4124 = vmatpush1.bf16.msra.mxu0 %v3145
    %4125 = vmatprep.subr.bf16.mxu0 %v3138
    %4126 = vmatpush1.bf16.msra.mxu0 %v3137
    %4127 = vmatprep.subr.bf16.mxu0 %v3130
    %4128 = vmatpush1.bf16.msra.mxu0 %v3129
    %4129 = vmatprep.subr.bf16.mxu0 %v3122
    %4130 = vmatpush1.bf16.msra.mxu0 %v3121
    %4131 = vmatprep.subr.bf16.mxu0 %v3114
    %4132 = vmatpush1.bf16.msra.mxu0 %v3113
    %4133 = vmatprep.subr.bf16.mxu0 %v3106
    %4134 = vmatpush1.bf16.msra.mxu0 %v3105
    %4135 = vmatprep.subr.bf16.mxu0 %v3098
    %4136 = vmatpush1.bf16.msra.mxu0 %v3097
    %4137 = vmatprep.subr.bf16.mxu0 %v3218
    %4138 = vmatpush2.bf16.msra.mxu0 %v3217
    %4139 = vmatprep.subr.bf16.mxu0 %v3210
    %4140 = vmatpush2.bf16.msra.mxu0 %v3209
    %4141 = vmatprep.subr.bf16.mxu0 %v3202
    %4142 = vmatpush2.bf16.msra.mxu0 %v3201
    %4143 = vmatprep.subr.bf16.mxu0 %v3194
    %4144 = vmatpush2.bf16.msra.mxu0 %v3193
    %4145 = vmatprep.subr.bf16.mxu0 %v3186
    %4146 = vmatpush2.bf16.msra.mxu0 %v3185
    %4147 = vmatprep.subr.bf16.mxu0 %v3178
    %4148 = vmatpush2.bf16.msra.mxu0 %v3177
    %4149 = vmatprep.subr.bf16.mxu0 %v3170
    %4150 = vmatpush2.bf16.msra.mxu0 %v3169
    %4151 = vmatprep.subr.bf16.mxu0 %v3162
    %4152 = vmatpush2.bf16.msra.mxu0 %v3161
    %4153 = vmatprep.mubr.bf16.mxu0 %v746
    %4154 = vmatmul.mubr.bf16.gmra.mxu0 %v745
    %v4155 = vpop.f32.mrf.mxu0
    %v4156 = vadd.f32 %v4113, %v4155
    %v4157 = vpop.f32.mrf.mxu0
    %v4158 = vadd.f32 %v4115, %v4157
    %v4159 = vpop.f32.mrf.mxu0
    %v4160 = vadd.f32 %v4117, %v4159
    %v4161 = vpop.f32.mrf.mxu0
    %v4162 = vadd.f32 %v4119, %v4161
    %4163 = vdwg.mxu0
    %4164 = vmatprep.subr.bf16.mxu0 %v3282
    %4165 = vmatpush1.bf16.msra.mxu0 %v3281
    %4166 = vmatprep.subr.bf16.mxu0 %v3274
    %4167 = vmatpush1.bf16.msra.mxu0 %v3273
    %4168 = vmatprep.subr.bf16.mxu0 %v3266
    %4169 = vmatpush1.bf16.msra.mxu0 %v3265
    %4170 = vmatprep.subr.bf16.mxu0 %v3258
    %4171 = vmatpush1.bf16.msra.mxu0 %v3257
    %4172 = vmatprep.subr.bf16.mxu0 %v3250
    %4173 = vmatpush1.bf16.msra.mxu0 %v3249
    %4174 = vmatprep.subr.bf16.mxu0 %v3242
    %4175 = vmatpush1.bf16.msra.mxu0 %v3241
    %4176 = vmatprep.subr.bf16.mxu0 %v3234
    %4177 = vmatpush1.bf16.msra.mxu0 %v3233
    %4178 = vmatprep.subr.bf16.mxu0 %v3226
    %4179 = vmatpush1.bf16.msra.mxu0 %v3225
    %4180 = vmatprep.subr.bf16.mxu0 %v3346
    %4181 = vmatpush2.bf16.msra.mxu0 %v3345
    %4182 = vmatprep.subr.bf16.mxu0 %v3338
    %4183 = vmatpush2.bf16.msra.mxu0 %v3337
    %4184 = vmatprep.subr.bf16.mxu0 %v3330
    %4185 = vmatpush2.bf16.msra.mxu0 %v3329
    %4186 = vmatprep.subr.bf16.mxu0 %v3322
    %4187 = vmatpush2.bf16.msra.mxu0 %v3321
    %4188 = vmatprep.subr.bf16.mxu0 %v3314
    %4189 = vmatpush2.bf16.msra.mxu0 %v3313
    %4190 = vmatprep.subr.bf16.mxu0 %v3306
    %4191 = vmatpush2.bf16.msra.mxu0 %v3305
    %4192 = vmatprep.subr.bf16.mxu0 %v3298
    %4193 = vmatpush2.bf16.msra.mxu0 %v3297
    %4194 = vmatprep.subr.bf16.mxu0 %v3290
    %4195 = vmatpush2.bf16.msra.mxu0 %v3289
    %4196 = vmatprep.mubr.bf16.mxu0 %v748
    %4197 = vmatmul.mubr.bf16.gmra.mxu0 %v747
    %v4198 = vpop.f32.mrf.mxu0
    %v4199 = vadd.f32 %v4156, %v4198
    %v4200 = vpop.f32.mrf.mxu0
    %v4201 = vadd.f32 %v4158, %v4200
    %v4202 = vpop.f32.mrf.mxu0
    %v4203 = vadd.f32 %v4160, %v4202
    %v4204 = vpop.f32.mrf.mxu0
    %v4205 = vadd.f32 %v4162, %v4204
    %4206 = vdwg.mxu0
    %4207 = vmatprep.subr.bf16.mxu0 %v2900
    %4208 = vmatpush1.bf16.msra.mxu0 %v2899
    %4209 = vmatprep.subr.bf16.mxu0 %v2892
    %4210 = vmatpush1.bf16.msra.mxu0 %v2891
    %4211 = vmatprep.subr.bf16.mxu0 %v2884
    %4212 = vmatpush1.bf16.msra.mxu0 %v2883
    %4213 = vmatprep.subr.bf16.mxu0 %v2876
    %4214 = vmatpush1.bf16.msra.mxu0 %v2875
    %4215 = vmatprep.subr.bf16.mxu0 %v2868
    %4216 = vmatpush1.bf16.msra.mxu0 %v2867
    %4217 = vmatprep.subr.bf16.mxu0 %v2860
    %4218 = vmatpush1.bf16.msra.mxu0 %v2859
    %4219 = vmatprep.subr.bf16.mxu0 %v2852
    %4220 = vmatpush1.bf16.msra.mxu0 %v2851
    %4221 = vmatprep.subr.bf16.mxu0 %v2844
    %4222 = vmatpush1.bf16.msra.mxu0 %v2843
    %4223 = vmatprep.subr.bf16.mxu0 %v2964
    %4224 = vmatpush2.bf16.msra.mxu0 %v2963
    %4225 = vmatprep.subr.bf16.mxu0 %v2956
    %4226 = vmatpush2.bf16.msra.mxu0 %v2955
    %4227 = vmatprep.subr.bf16.mxu0 %v2948
    %4228 = vmatpush2.bf16.msra.mxu0 %v2947
    %4229 = vmatprep.subr.bf16.mxu0 %v2940
    %4230 = vmatpush2.bf16.msra.mxu0 %v2939
    %4231 = vmatprep.subr.bf16.mxu0 %v2932
    %4232 = vmatpush2.bf16.msra.mxu0 %v2931
    %4233 = vmatprep.subr.bf16.mxu0 %v2924
    %4234 = vmatpush2.bf16.msra.mxu0 %v2923
    %4235 = vmatprep.subr.bf16.mxu0 %v2916
    %4236 = vmatpush2.bf16.msra.mxu0 %v2915
    %4237 = vmatprep.subr.bf16.mxu0 %v2908
    %4238 = vmatpush2.bf16.msra.mxu0 %v2907
    %4239 = vmatprep.mubr.bf16.mxu0 %v742
    %4240 = vmatmul.mubr.bf16.gmra.mxu0 %v741
    %v4241 = vpop.f32.mrf.mxu0
    %v4242 = vadd.f32 %v1282, %v4241
    %v4243 = vpop.f32.mrf.mxu0
    %v4244 = vadd.f32 %v1286, %v4243
    %v4245 = vpop.f32.mrf.mxu0
    %v4246 = vadd.f32 %v1282, %v4245
    %v4247 = vpop.f32.mrf.mxu0
    %v4248 = vadd.f32 %v1286, %v4247
    %4249 = vdwg.mxu0
    %4250 = vmatprep.subr.bf16.mxu0 %v3028
    %4251 = vmatpush1.bf16.msra.mxu0 %v3027
    %4252 = vmatprep.subr.bf16.mxu0 %v3020
    %4253 = vmatpush1.bf16.msra.mxu0 %v3019
    %4254 = vmatprep.subr.bf16.mxu0 %v3012
    %4255 = vmatpush1.bf16.msra.mxu0 %v3011
    %4256 = vmatprep.subr.bf16.mxu0 %v3004
    %4257 = vmatpush1.bf16.msra.mxu0 %v3003
    %4258 = vmatprep.subr.bf16.mxu0 %v2996
    %4259 = vmatpush1.bf16.msra.mxu0 %v2995
    %4260 = vmatprep.subr.bf16.mxu0 %v2988
    %4261 = vmatpush1.bf16.msra.mxu0 %v2987
    %4262 = vmatprep.subr.bf16.mxu0 %v2980
    %4263 = vmatpush1.bf16.msra.mxu0 %v2979
    %4264 = vmatprep.subr.bf16.mxu0 %v2972
    %4265 = vmatpush1.bf16.msra.mxu0 %v2971
    %4266 = vmatprep.subr.bf16.mxu0 %v3092
    %4267 = vmatpush2.bf16.msra.mxu0 %v3091
    %4268 = vmatprep.subr.bf16.mxu0 %v3084
    %4269 = vmatpush2.bf16.msra.mxu0 %v3083
    %4270 = vmatprep.subr.bf16.mxu0 %v3076
    %4271 = vmatpush2.bf16.msra.mxu0 %v3075
    %4272 = vmatprep.subr.bf16.mxu0 %v3068
    %4273 = vmatpush2.bf16.msra.mxu0 %v3067
    %4274 = vmatprep.subr.bf16.mxu0 %v3060
    %4275 = vmatpush2.bf16.msra.mxu0 %v3059
    %4276 = vmatprep.subr.bf16.mxu0 %v3052
    %4277 = vmatpush2.bf16.msra.mxu0 %v3051
    %4278 = vmatprep.subr.bf16.mxu0 %v3044
    %4279 = vmatpush2.bf16.msra.mxu0 %v3043
    %4280 = vmatprep.subr.bf16.mxu0 %v3036
    %4281 = vmatpush2.bf16.msra.mxu0 %v3035
    %4282 = vmatprep.mubr.bf16.mxu0 %v744
    %4283 = vmatmul.mubr.bf16.gmra.mxu0 %v743
    %v4284 = vpop.f32.mrf.mxu0
    %v4285 = vadd.f32 %v4242, %v4284
    %v4286 = vpop.f32.mrf.mxu0
    %v4287 = vadd.f32 %v4244, %v4286
    %v4288 = vpop.f32.mrf.mxu0
    %v4289 = vadd.f32 %v4246, %v4288
    %v4290 = vpop.f32.mrf.mxu0
    %v4291 = vadd.f32 %v4248, %v4290
    %4292 = vdwg.mxu0
    %4293 = vmatprep.subr.bf16.mxu0 %v3156
    %4294 = vmatpush1.bf16.msra.mxu0 %v3155
    %4295 = vmatprep.subr.bf16.mxu0 %v3148
    %4296 = vmatpush1.bf16.msra.mxu0 %v3147
    %4297 = vmatprep.subr.bf16.mxu0 %v3140
    %4298 = vmatpush1.bf16.msra.mxu0 %v3139
    %4299 = vmatprep.subr.bf16.mxu0 %v3132
    %4300 = vmatpush1.bf16.msra.mxu0 %v3131
    %4301 = vmatprep.subr.bf16.mxu0 %v3124
    %4302 = vmatpush1.bf16.msra.mxu0 %v3123
    %4303 = vmatprep.subr.bf16.mxu0 %v3116
    %4304 = vmatpush1.bf16.msra.mxu0 %v3115
    %4305 = vmatprep.subr.bf16.mxu0 %v3108
    %4306 = vmatpush1.bf16.msra.mxu0 %v3107
    %4307 = vmatprep.subr.bf16.mxu0 %v3100
    %4308 = vmatpush1.bf16.msra.mxu0 %v3099
    %4309 = vmatprep.subr.bf16.mxu0 %v3220
    %4310 = vmatpush2.bf16.msra.mxu0 %v3219
    %4311 = vmatprep.subr.bf16.mxu0 %v3212
    %4312 = vmatpush2.bf16.msra.mxu0 %v3211
    %4313 = vmatprep.subr.bf16.mxu0 %v3204
    %4314 = vmatpush2.bf16.msra.mxu0 %v3203
    %4315 = vmatprep.subr.bf16.mxu0 %v3196
    %4316 = vmatpush2.bf16.msra.mxu0 %v3195
    %4317 = vmatprep.subr.bf16.mxu0 %v3188
    %4318 = vmatpush2.bf16.msra.mxu0 %v3187
    %4319 = vmatprep.subr.bf16.mxu0 %v3180
    %4320 = vmatpush2.bf16.msra.mxu0 %v3179
    %4321 = vmatprep.subr.bf16.mxu0 %v3172
    %4322 = vmatpush2.bf16.msra.mxu0 %v3171
    %4323 = vmatprep.subr.bf16.mxu0 %v3164
    %4324 = vmatpush2.bf16.msra.mxu0 %v3163
    %4325 = vmatprep.mubr.bf16.mxu0 %v746
    %4326 = vmatmul.mubr.bf16.gmra.mxu0 %v745
    %v4327 = vpop.f32.mrf.mxu0
    %v4328 = vadd.f32 %v4285, %v4327
    %v4329 = vpop.f32.mrf.mxu0
    %v4330 = vadd.f32 %v4287, %v4329
    %v4331 = vpop.f32.mrf.mxu0
    %v4332 = vadd.f32 %v4289, %v4331
    %v4333 = vpop.f32.mrf.mxu0
    %v4334 = vadd.f32 %v4291, %v4333
    %4335 = vdwg.mxu0
    %4336 = vmatprep.subr.bf16.mxu0 %v3284
    %4337 = vmatpush1.bf16.msra.mxu0 %v3283
    %4338 = vmatprep.subr.bf16.mxu0 %v3276
    %4339 = vmatpush1.bf16.msra.mxu0 %v3275
    %4340 = vmatprep.subr.bf16.mxu0 %v3268
    %4341 = vmatpush1.bf16.msra.mxu0 %v3267
    %4342 = vmatprep.subr.bf16.mxu0 %v3260
    %4343 = vmatpush1.bf16.msra.mxu0 %v3259
    %4344 = vmatprep.subr.bf16.mxu0 %v3252
    %4345 = vmatpush1.bf16.msra.mxu0 %v3251
    %4346 = vmatprep.subr.bf16.mxu0 %v3244
    %4347 = vmatpush1.bf16.msra.mxu0 %v3243
    %4348 = vmatprep.subr.bf16.mxu0 %v3236
    %4349 = vmatpush1.bf16.msra.mxu0 %v3235
    %4350 = vmatprep.subr.bf16.mxu0 %v3228
    %4351 = vmatpush1.bf16.msra.mxu0 %v3227
    %4352 = vmatprep.subr.bf16.mxu0 %v3348
    %4353 = vmatpush2.bf16.msra.mxu0 %v3347
    %4354 = vmatprep.subr.bf16.mxu0 %v3340
    %4355 = vmatpush2.bf16.msra.mxu0 %v3339
    %4356 = vmatprep.subr.bf16.mxu0 %v3332
    %4357 = vmatpush2.bf16.msra.mxu0 %v3331
    %4358 = vmatprep.subr.bf16.mxu0 %v3324
    %4359 = vmatpush2.bf16.msra.mxu0 %v3323
    %4360 = vmatprep.subr.bf16.mxu0 %v3316
    %4361 = vmatpush2.bf16.msra.mxu0 %v3315
    %4362 = vmatprep.subr.bf16.mxu0 %v3308
    %4363 = vmatpush2.bf16.msra.mxu0 %v3307
    %4364 = vmatprep.subr.bf16.mxu0 %v3300
    %4365 = vmatpush2.bf16.msra.mxu0 %v3299
    %4366 = vmatprep.subr.bf16.mxu0 %v3292
    %4367 = vmatpush2.bf16.msra.mxu0 %v3291
    %4368 = vmatprep.mubr.bf16.mxu0 %v748
    %4369 = vmatmul.mubr.bf16.gmra.mxu0 %v747
    %v4370 = vpop.f32.mrf.mxu0
    %v4371 = vadd.f32 %v4328, %v4370
    %v4372 = vpop.f32.mrf.mxu0
    %v4373 = vadd.f32 %v4330, %v4372
    %v4374 = vpop.f32.mrf.mxu0
    %v4375 = vadd.f32 %v4332, %v4374
    %v4376 = vpop.f32.mrf.mxu0
    %v4377 = vadd.f32 %v4334, %v4376
    %4378 = vdwg.mxu0
    %4379 = vmatprep.subr.bf16.mxu0 %v2902
    %4380 = vmatpush1.bf16.msra.mxu0 %v2901
    %4381 = vmatprep.subr.bf16.mxu0 %v2894
    %4382 = vmatpush1.bf16.msra.mxu0 %v2893
    %4383 = vmatprep.subr.bf16.mxu0 %v2886
    %4384 = vmatpush1.bf16.msra.mxu0 %v2885
    %4385 = vmatprep.subr.bf16.mxu0 %v2878
    %4386 = vmatpush1.bf16.msra.mxu0 %v2877
    %4387 = vmatprep.subr.bf16.mxu0 %v2870
    %4388 = vmatpush1.bf16.msra.mxu0 %v2869
    %4389 = vmatprep.subr.bf16.mxu0 %v2862
    %4390 = vmatpush1.bf16.msra.mxu0 %v2861
    %4391 = vmatprep.subr.bf16.mxu0 %v2854
    %4392 = vmatpush1.bf16.msra.mxu0 %v2853
    %4393 = vmatprep.subr.bf16.mxu0 %v2846
    %4394 = vmatpush1.bf16.msra.mxu0 %v2845
    %4395 = vmatprep.subr.bf16.mxu0 %v2966
    %4396 = vmatpush2.bf16.msra.mxu0 %v2965
    %4397 = vmatprep.subr.bf16.mxu0 %v2958
    %4398 = vmatpush2.bf16.msra.mxu0 %v2957
    %4399 = vmatprep.subr.bf16.mxu0 %v2950
    %4400 = vmatpush2.bf16.msra.mxu0 %v2949
    %4401 = vmatprep.subr.bf16.mxu0 %v2942
    %4402 = vmatpush2.bf16.msra.mxu0 %v2941
    %4403 = vmatprep.subr.bf16.mxu0 %v2934
    %4404 = vmatpush2.bf16.msra.mxu0 %v2933
    %4405 = vmatprep.subr.bf16.mxu0 %v2926
    %4406 = vmatpush2.bf16.msra.mxu0 %v2925
    %4407 = vmatprep.subr.bf16.mxu0 %v2918
    %4408 = vmatpush2.bf16.msra.mxu0 %v2917
    %4409 = vmatprep.subr.bf16.mxu0 %v2910
    %4410 = vmatpush2.bf16.msra.mxu0 %v2909
    %4411 = vmatprep.mubr.bf16.mxu0 %v742
    %4412 = vmatmul.mubr.bf16.gmra.mxu0 %v741
    %v4413 = vpop.f32.mrf.mxu0
    %v4414 = vadd.f32 %v1290, %v4413
    %v4415 = vpop.f32.mrf.mxu0
    %v4416 = vadd.f32 %v1294, %v4415
    %v4417 = vpop.f32.mrf.mxu0
    %v4418 = vadd.f32 %v1290, %v4417
    %v4419 = vpop.f32.mrf.mxu0
    %v4420 = vadd.f32 %v1294, %v4419
    %4421 = vdwg.mxu0
    %4422 = vmatprep.subr.bf16.mxu0 %v3030
    %4423 = vmatpush1.bf16.msra.mxu0 %v3029
    %4424 = vmatprep.subr.bf16.mxu0 %v3022
    %4425 = vmatpush1.bf16.msra.mxu0 %v3021
    %4426 = vmatprep.subr.bf16.mxu0 %v3014
    %4427 = vmatpush1.bf16.msra.mxu0 %v3013
    %4428 = vmatprep.subr.bf16.mxu0 %v3006
    %4429 = vmatpush1.bf16.msra.mxu0 %v3005
    %4430 = vmatprep.subr.bf16.mxu0 %v2998
    %4431 = vmatpush1.bf16.msra.mxu0 %v2997
    %4432 = vmatprep.subr.bf16.mxu0 %v2990
    %4433 = vmatpush1.bf16.msra.mxu0 %v2989
    %4434 = vmatprep.subr.bf16.mxu0 %v2982
    %4435 = vmatpush1.bf16.msra.mxu0 %v2981
    %4436 = vmatprep.subr.bf16.mxu0 %v2974
    %4437 = vmatpush1.bf16.msra.mxu0 %v2973
    %4438 = vmatprep.subr.bf16.mxu0 %v3094
    %4439 = vmatpush2.bf16.msra.mxu0 %v3093
    %4440 = vmatprep.subr.bf16.mxu0 %v3086
    %4441 = vmatpush2.bf16.msra.mxu0 %v3085
    %4442 = vmatprep.subr.bf16.mxu0 %v3078
    %4443 = vmatpush2.bf16.msra.mxu0 %v3077
    %4444 = vmatprep.subr.bf16.mxu0 %v3070
    %4445 = vmatpush2.bf16.msra.mxu0 %v3069
    %4446 = vmatprep.subr.bf16.mxu0 %v3062
    %4447 = vmatpush2.bf16.msra.mxu0 %v3061
    %4448 = vmatprep.subr.bf16.mxu0 %v3054
    %4449 = vmatpush2.bf16.msra.mxu0 %v3053
    %4450 = vmatprep.subr.bf16.mxu0 %v3046
    %4451 = vmatpush2.bf16.msra.mxu0 %v3045
    %4452 = vmatprep.subr.bf16.mxu0 %v3038
    %4453 = vmatpush2.bf16.msra.mxu0 %v3037
    %4454 = vmatprep.mubr.bf16.mxu0 %v744
    %4455 = vmatmul.mubr.bf16.gmra.mxu0 %v743
    %v4456 = vpop.f32.mrf.mxu0
    %v4457 = vadd.f32 %v4414, %v4456
    %v4458 = vpop.f32.mrf.mxu0
    %v4459 = vadd.f32 %v4416, %v4458
    %v4460 = vpop.f32.mrf.mxu0
    %v4461 = vadd.f32 %v4418, %v4460
    %v4462 = vpop.f32.mrf.mxu0
    %v4463 = vadd.f32 %v4420, %v4462
    %4464 = vdwg.mxu0
    %4465 = vmatprep.subr.bf16.mxu0 %v3158
    %4466 = vmatpush1.bf16.msra.mxu0 %v3157
    %4467 = vmatprep.subr.bf16.mxu0 %v3150
    %4468 = vmatpush1.bf16.msra.mxu0 %v3149
    %4469 = vmatprep.subr.bf16.mxu0 %v3142
    %4470 = vmatpush1.bf16.msra.mxu0 %v3141
    %4471 = vmatprep.subr.bf16.mxu0 %v3134
    %4472 = vmatpush1.bf16.msra.mxu0 %v3133
    %4473 = vmatprep.subr.bf16.mxu0 %v3126
    %4474 = vmatpush1.bf16.msra.mxu0 %v3125
    %4475 = vmatprep.subr.bf16.mxu0 %v3118
    %4476 = vmatpush1.bf16.msra.mxu0 %v3117
    %4477 = vmatprep.subr.bf16.mxu0 %v3110
    %4478 = vmatpush1.bf16.msra.mxu0 %v3109
    %4479 = vmatprep.subr.bf16.mxu0 %v3102
    %4480 = vmatpush1.bf16.msra.mxu0 %v3101
    %4481 = vmatprep.subr.bf16.mxu0 %v3222
    %4482 = vmatpush2.bf16.msra.mxu0 %v3221
    %4483 = vmatprep.subr.bf16.mxu0 %v3214
    %4484 = vmatpush2.bf16.msra.mxu0 %v3213
    %4485 = vmatprep.subr.bf16.mxu0 %v3206
    %4486 = vmatpush2.bf16.msra.mxu0 %v3205
    %4487 = vmatprep.subr.bf16.mxu0 %v3198
    %4488 = vmatpush2.bf16.msra.mxu0 %v3197
    %4489 = vmatprep.subr.bf16.mxu0 %v3190
    %4490 = vmatpush2.bf16.msra.mxu0 %v3189
    %4491 = vmatprep.subr.bf16.mxu0 %v3182
    %4492 = vmatpush2.bf16.msra.mxu0 %v3181
    %4493 = vmatprep.subr.bf16.mxu0 %v3174
    %4494 = vmatpush2.bf16.msra.mxu0 %v3173
    %4495 = vmatprep.subr.bf16.mxu0 %v3166
    %4496 = vmatpush2.bf16.msra.mxu0 %v3165
    %4497 = vmatprep.mubr.bf16.mxu0 %v746
    %4498 = vmatmul.mubr.bf16.gmra.mxu0 %v745
    %v4499 = vpop.f32.mrf.mxu0
    %v4500 = vadd.f32 %v4457, %v4499
    %v4501 = vpop.f32.mrf.mxu0
    %v4502 = vadd.f32 %v4459, %v4501
    %v4503 = vpop.f32.mrf.mxu0
    %v4504 = vadd.f32 %v4461, %v4503
    %v4505 = vpop.f32.mrf.mxu0
    %v4506 = vadd.f32 %v4463, %v4505
    %4507 = vdwg.mxu0
    %4508 = vmatprep.subr.bf16.mxu0 %v3286
    %4509 = vmatpush1.bf16.msra.mxu0 %v3285
    %4510 = vmatprep.subr.bf16.mxu0 %v3278
    %4511 = vmatpush1.bf16.msra.mxu0 %v3277
    %4512 = vmatprep.subr.bf16.mxu0 %v3270
    %4513 = vmatpush1.bf16.msra.mxu0 %v3269
    %4514 = vmatprep.subr.bf16.mxu0 %v3262
    %4515 = vmatpush1.bf16.msra.mxu0 %v3261
    %4516 = vmatprep.subr.bf16.mxu0 %v3254
    %4517 = vmatpush1.bf16.msra.mxu0 %v3253
    %4518 = vmatprep.subr.bf16.mxu0 %v3246
    %4519 = vmatpush1.bf16.msra.mxu0 %v3245
    %4520 = vmatprep.subr.bf16.mxu0 %v3238
    %4521 = vmatpush1.bf16.msra.mxu0 %v3237
    %4522 = vmatprep.subr.bf16.mxu0 %v3230
    %4523 = vmatpush1.bf16.msra.mxu0 %v3229
    %4524 = vmatprep.subr.bf16.mxu0 %v3350
    %4525 = vmatpush2.bf16.msra.mxu0 %v3349
    %4526 = vmatprep.subr.bf16.mxu0 %v3342
    %4527 = vmatpush2.bf16.msra.mxu0 %v3341
    %4528 = vmatprep.subr.bf16.mxu0 %v3334
    %4529 = vmatpush2.bf16.msra.mxu0 %v3333
    %4530 = vmatprep.subr.bf16.mxu0 %v3326
    %4531 = vmatpush2.bf16.msra.mxu0 %v3325
    %4532 = vmatprep.subr.bf16.mxu0 %v3318
    %4533 = vmatpush2.bf16.msra.mxu0 %v3317
    %4534 = vmatprep.subr.bf16.mxu0 %v3310
    %4535 = vmatpush2.bf16.msra.mxu0 %v3309
    %4536 = vmatprep.subr.bf16.mxu0 %v3302
    %4537 = vmatpush2.bf16.msra.mxu0 %v3301
    %4538 = vmatprep.subr.bf16.mxu0 %v3294
    %4539 = vmatpush2.bf16.msra.mxu0 %v3293
    %4540 = vmatprep.mubr.bf16.mxu0 %v748
    %4541 = vmatmul.mubr.bf16.gmra.mxu0 %v747
    %v4542 = vpop.f32.mrf.mxu0
    %v4543 = vadd.f32 %v4500, %v4542
    %v4544 = vpop.f32.mrf.mxu0
    %v4545 = vadd.f32 %v4502, %v4544
    %v4546 = vpop.f32.mrf.mxu0
    %v4547 = vadd.f32 %v4504, %v4546
    %v4548 = vpop.f32.mrf.mxu0
    %v4549 = vadd.f32 %v4506, %v4548
    %4550 = vdwg.mxu0
    %v4551 = vmax.f32 %v4027, 0.0
    %v4552 = vmax.f32 %v4029, 0.0
    %v4553 = vmax.f32 %v4199, 0.0
    %v4554 = vmax.f32 %v4201, 0.0
    %v4555 = vmax.f32 %v4371, 0.0
    %v4556 = vmax.f32 %v4373, 0.0
    %v4557 = vmax.f32 %v4543, 0.0
    %v4558 = vmax.f32 %v4545, 0.0
    %v4559 = vmax.f32 %v4031, 0.0
    %v4560 = vmax.f32 %v4033, 0.0
    %v4561 = vmax.f32 %v4203, 0.0
    %v4562 = vmax.f32 %v4205, 0.0
    %v4563 = vmax.f32 %v4375, 0.0
    %v4564 = vmax.f32 %v4377, 0.0
    %v4565 = vmax.f32 %v4547, 0.0
    %v4566 = vmax.f32 %v4549, 0.0
    %v4567 = vpack.c.bf16 %v4559, %v4551
    %v4568 = vpack.c.bf16 %v4560, %v4552
    %v4569 = vpack.c.bf16 %v4561, %v4553
    %v4570 = vpack.c.bf16 %v4562, %v4554
    %v4571 = vpack.c.bf16 %v4563, %v4555
    %v4572 = vpack.c.bf16 %v4564, %v4556
    %v4573 = vpack.c.bf16 %v4565, %v4557
    %v4574 = vpack.c.bf16 %v4566, %v4558
    %v4575 = vld [vmem:[#allocation10] sm:$0xff]
    %v4576 = vld [vmem:[#allocation10 + $0x8] sm:$0xff]
    %v4577 = vld [vmem:[#allocation10 + $0x10] sm:$0xff]
    %v4578 = vld [vmem:[#allocation10 + $0x18] sm:$0xff]
    %v4579 = vld [vmem:[#allocation10 + $0x20] sm:$0xff]
    %v4580 = vld [vmem:[#allocation10 + $0x28] sm:$0xff]
    %v4581 = vld [vmem:[#allocation10 + $0x30] sm:$0xff]
    %v4582 = vld [vmem:[#allocation10 + $0x38] sm:$0xff]
    %v4583 = vld [vmem:[#allocation10 + $0x40] sm:$0xff]
    %v4584 = vld [vmem:[#allocation10 + $0x48] sm:$0xff]
    %v4585 = vld [vmem:[#allocation10 + $0x50] sm:$0xff]
    %v4586 = vld [vmem:[#allocation10 + $0x58] sm:$0xff]
    %v4587 = vld [vmem:[#allocation10 + $0x60] sm:$0xff]
    %v4588 = vld [vmem:[#allocation10 + $0x68] sm:$0xff]
    %v4589 = vld [vmem:[#allocation10 + $0x70] sm:$0xff]
    %v4590 = vld [vmem:[#allocation10 + $0x78] sm:$0xff]
    %v4591 = vld [vmem:[#allocation10 + $0x80] sm:$0xff]
    %v4592 = vld [vmem:[#allocation10 + $0x88] sm:$0xff]
    %v4593 = vld [vmem:[#allocation10 + $0x90] sm:$0xff]
    %v4594 = vld [vmem:[#allocation10 + $0x98] sm:$0xff]
    %v4595 = vld [vmem:[#allocation10 + $0xa0] sm:$0xff]
    %v4596 = vld [vmem:[#allocation10 + $0xa8] sm:$0xff]
    %v4597 = vld [vmem:[#allocation10 + $0xb0] sm:$0xff]
    %v4598 = vld [vmem:[#allocation10 + $0xb8] sm:$0xff]
    %v4599 = vld [vmem:[#allocation10 + $0xc0] sm:$0xff]
    %v4600 = vld [vmem:[#allocation10 + $0xc8] sm:$0xff]
    %v4601 = vld [vmem:[#allocation10 + $0xd0] sm:$0xff]
    %v4602 = vld [vmem:[#allocation10 + $0xd8] sm:$0xff]
    %v4603 = vld [vmem:[#allocation10 + $0xe0] sm:$0xff]
    %v4604 = vld [vmem:[#allocation10 + $0xe8] sm:$0xff]
    %v4605 = vld [vmem:[#allocation10 + $0xf0] sm:$0xff]
    %v4606 = vld [vmem:[#allocation10 + $0xf8] sm:$0xff]
    %v4607 = vld [vmem:[#allocation10 + $0x100] sm:$0xff]
    %v4608 = vld [vmem:[#allocation10 + $0x108] sm:$0xff]
    %v4609 = vld [vmem:[#allocation10 + $0x110] sm:$0xff]
    %v4610 = vld [vmem:[#allocation10 + $0x118] sm:$0xff]
    %v4611 = vld [vmem:[#allocation10 + $0x120] sm:$0xff]
    %v4612 = vld [vmem:[#allocation10 + $0x128] sm:$0xff]
    %v4613 = vld [vmem:[#allocation10 + $0x130] sm:$0xff]
    %v4614 = vld [vmem:[#allocation10 + $0x138] sm:$0xff]
    %v4615 = vld [vmem:[#allocation10 + $0x140] sm:$0xff]
    %v4616 = vld [vmem:[#allocation10 + $0x148] sm:$0xff]
    %v4617 = vld [vmem:[#allocation10 + $0x150] sm:$0xff]
    %v4618 = vld [vmem:[#allocation10 + $0x158] sm:$0xff]
    %v4619 = vld [vmem:[#allocation10 + $0x160] sm:$0xff]
    %v4620 = vld [vmem:[#allocation10 + $0x168] sm:$0xff]
    %v4621 = vld [vmem:[#allocation10 + $0x170] sm:$0xff]
    %v4622 = vld [vmem:[#allocation10 + $0x178] sm:$0xff]
    %v4623 = vld [vmem:[#allocation10 + $0x180] sm:$0xff]
    %v4624 = vld [vmem:[#allocation10 + $0x188] sm:$0xff]
    %v4625 = vld [vmem:[#allocation10 + $0x190] sm:$0xff]
    %v4626 = vld [vmem:[#allocation10 + $0x198] sm:$0xff]
    %v4627 = vld [vmem:[#allocation10 + $0x1a0] sm:$0xff]
    %v4628 = vld [vmem:[#allocation10 + $0x1a8] sm:$0xff]
    %v4629 = vld [vmem:[#allocation10 + $0x1b0] sm:$0xff]
    %v4630 = vld [vmem:[#allocation10 + $0x1b8] sm:$0xff]
    %v4631 = vld [vmem:[#allocation10 + $0x1c0] sm:$0xff]
    %v4632 = vld [vmem:[#allocation10 + $0x1c8] sm:$0xff]
    %v4633 = vld [vmem:[#allocation10 + $0x1d0] sm:$0xff]
    %v4634 = vld [vmem:[#allocation10 + $0x1d8] sm:$0xff]
    %v4635 = vld [vmem:[#allocation10 + $0x1e0] sm:$0xff]
    %v4636 = vld [vmem:[#allocation10 + $0x1e8] sm:$0xff]
    %v4637 = vld [vmem:[#allocation10 + $0x1f0] sm:$0xff]
    %v4638 = vld [vmem:[#allocation10 + $0x1f8] sm:$0xff]
    %v4639 = vld [vmem:[#allocation10 + $0x200] sm:$0xff]
    %v4640 = vld [vmem:[#allocation10 + $0x208] sm:$0xff]
    %v4641 = vld [vmem:[#allocation10 + $0x210] sm:$0xff]
    %v4642 = vld [vmem:[#allocation10 + $0x218] sm:$0xff]
    %v4643 = vld [vmem:[#allocation10 + $0x220] sm:$0xff]
    %v4644 = vld [vmem:[#allocation10 + $0x228] sm:$0xff]
    %v4645 = vld [vmem:[#allocation10 + $0x230] sm:$0xff]
    %v4646 = vld [vmem:[#allocation10 + $0x238] sm:$0xff]
    %v4647 = vld [vmem:[#allocation10 + $0x240] sm:$0xff]
    %v4648 = vld [vmem:[#allocation10 + $0x248] sm:$0xff]
    %v4649 = vld [vmem:[#allocation10 + $0x250] sm:$0xff]
    %v4650 = vld [vmem:[#allocation10 + $0x258] sm:$0xff]
    %v4651 = vld [vmem:[#allocation10 + $0x260] sm:$0xff]
    %v4652 = vld [vmem:[#allocation10 + $0x268] sm:$0xff]
    %v4653 = vld [vmem:[#allocation10 + $0x270] sm:$0xff]
    %v4654 = vld [vmem:[#allocation10 + $0x278] sm:$0xff]
    %v4655 = vld [vmem:[#allocation10 + $0x280] sm:$0xff]
    %v4656 = vld [vmem:[#allocation10 + $0x288] sm:$0xff]
    %v4657 = vld [vmem:[#allocation10 + $0x290] sm:$0xff]
    %v4658 = vld [vmem:[#allocation10 + $0x298] sm:$0xff]
    %v4659 = vld [vmem:[#allocation10 + $0x2a0] sm:$0xff]
    %v4660 = vld [vmem:[#allocation10 + $0x2a8] sm:$0xff]
    %v4661 = vld [vmem:[#allocation10 + $0x2b0] sm:$0xff]
    %v4662 = vld [vmem:[#allocation10 + $0x2b8] sm:$0xff]
    %v4663 = vld [vmem:[#allocation10 + $0x2c0] sm:$0xff]
    %v4664 = vld [vmem:[#allocation10 + $0x2c8] sm:$0xff]
    %v4665 = vld [vmem:[#allocation10 + $0x2d0] sm:$0xff]
    %v4666 = vld [vmem:[#allocation10 + $0x2d8] sm:$0xff]
    %v4667 = vld [vmem:[#allocation10 + $0x2e0] sm:$0xff]
    %v4668 = vld [vmem:[#allocation10 + $0x2e8] sm:$0xff]
    %v4669 = vld [vmem:[#allocation10 + $0x2f0] sm:$0xff]
    %v4670 = vld [vmem:[#allocation10 + $0x2f8] sm:$0xff]
    %v4671 = vld [vmem:[#allocation10 + $0x300] sm:$0xff]
    %v4672 = vld [vmem:[#allocation10 + $0x308] sm:$0xff]
    %v4673 = vld [vmem:[#allocation10 + $0x310] sm:$0xff]
    %v4674 = vld [vmem:[#allocation10 + $0x318] sm:$0xff]
    %v4675 = vld [vmem:[#allocation10 + $0x320] sm:$0xff]
    %v4676 = vld [vmem:[#allocation10 + $0x328] sm:$0xff]
    %v4677 = vld [vmem:[#allocation10 + $0x330] sm:$0xff]
    %v4678 = vld [vmem:[#allocation10 + $0x338] sm:$0xff]
    %v4679 = vld [vmem:[#allocation10 + $0x340] sm:$0xff]
    %v4680 = vld [vmem:[#allocation10 + $0x348] sm:$0xff]
    %v4681 = vld [vmem:[#allocation10 + $0x350] sm:$0xff]
    %v4682 = vld [vmem:[#allocation10 + $0x358] sm:$0xff]
    %v4683 = vld [vmem:[#allocation10 + $0x360] sm:$0xff]
    %v4684 = vld [vmem:[#allocation10 + $0x368] sm:$0xff]
    %v4685 = vld [vmem:[#allocation10 + $0x370] sm:$0xff]
    %v4686 = vld [vmem:[#allocation10 + $0x378] sm:$0xff]
    %v4687 = vld [vmem:[#allocation10 + $0x380] sm:$0xff]
    %v4688 = vld [vmem:[#allocation10 + $0x388] sm:$0xff]
    %v4689 = vld [vmem:[#allocation10 + $0x390] sm:$0xff]
    %v4690 = vld [vmem:[#allocation10 + $0x398] sm:$0xff]
    %v4691 = vld [vmem:[#allocation10 + $0x3a0] sm:$0xff]
    %v4692 = vld [vmem:[#allocation10 + $0x3a8] sm:$0xff]
    %v4693 = vld [vmem:[#allocation10 + $0x3b0] sm:$0xff]
    %v4694 = vld [vmem:[#allocation10 + $0x3b8] sm:$0xff]
    %v4695 = vld [vmem:[#allocation10 + $0x3c0] sm:$0xff]
    %v4696 = vld [vmem:[#allocation10 + $0x3c8] sm:$0xff]
    %v4697 = vld [vmem:[#allocation10 + $0x3d0] sm:$0xff]
    %v4698 = vld [vmem:[#allocation10 + $0x3d8] sm:$0xff]
    %v4699 = vld [vmem:[#allocation10 + $0x3e0] sm:$0xff]
    %v4700 = vld [vmem:[#allocation10 + $0x3e8] sm:$0xff]
    %v4701 = vld [vmem:[#allocation10 + $0x3f0] sm:$0xff]
    %v4702 = vld [vmem:[#allocation10 + $0x3f8] sm:$0xff]
    %v4703 = vld [vmem:[#allocation10 + $0x400] sm:$0xff]
    %v4704 = vld [vmem:[#allocation10 + $0x408] sm:$0xff]
    %v4705 = vld [vmem:[#allocation10 + $0x410] sm:$0xff]
    %v4706 = vld [vmem:[#allocation10 + $0x418] sm:$0xff]
    %v4707 = vld [vmem:[#allocation10 + $0x420] sm:$0xff]
    %v4708 = vld [vmem:[#allocation10 + $0x428] sm:$0xff]
    %v4709 = vld [vmem:[#allocation10 + $0x430] sm:$0xff]
    %v4710 = vld [vmem:[#allocation10 + $0x438] sm:$0xff]
    %v4711 = vld [vmem:[#allocation10 + $0x440] sm:$0xff]
    %v4712 = vld [vmem:[#allocation10 + $0x448] sm:$0xff]
    %v4713 = vld [vmem:[#allocation10 + $0x450] sm:$0xff]
    %v4714 = vld [vmem:[#allocation10 + $0x458] sm:$0xff]
    %v4715 = vld [vmem:[#allocation10 + $0x460] sm:$0xff]
    %v4716 = vld [vmem:[#allocation10 + $0x468] sm:$0xff]
    %v4717 = vld [vmem:[#allocation10 + $0x470] sm:$0xff]
    %v4718 = vld [vmem:[#allocation10 + $0x478] sm:$0xff]
    %v4719 = vld [vmem:[#allocation10 + $0x480] sm:$0xff]
    %v4720 = vld [vmem:[#allocation10 + $0x488] sm:$0xff]
    %v4721 = vld [vmem:[#allocation10 + $0x490] sm:$0xff]
    %v4722 = vld [vmem:[#allocation10 + $0x498] sm:$0xff]
    %v4723 = vld [vmem:[#allocation10 + $0x4a0] sm:$0xff]
    %v4724 = vld [vmem:[#allocation10 + $0x4a8] sm:$0xff]
    %v4725 = vld [vmem:[#allocation10 + $0x4b0] sm:$0xff]
    %v4726 = vld [vmem:[#allocation10 + $0x4b8] sm:$0xff]
    %v4727 = vld [vmem:[#allocation10 + $0x4c0] sm:$0xff]
    %v4728 = vld [vmem:[#allocation10 + $0x4c8] sm:$0xff]
    %v4729 = vld [vmem:[#allocation10 + $0x4d0] sm:$0xff]
    %v4730 = vld [vmem:[#allocation10 + $0x4d8] sm:$0xff]
    %v4731 = vld [vmem:[#allocation10 + $0x4e0] sm:$0xff]
    %v4732 = vld [vmem:[#allocation10 + $0x4e8] sm:$0xff]
    %v4733 = vld [vmem:[#allocation10 + $0x4f0] sm:$0xff]
    %v4734 = vld [vmem:[#allocation10 + $0x4f8] sm:$0xff]
    %v4735 = vld [vmem:[#allocation10 + $0x500] sm:$0xff]
    %v4736 = vld [vmem:[#allocation10 + $0x508] sm:$0xff]
    %v4737 = vld [vmem:[#allocation10 + $0x510] sm:$0xff]
    %v4738 = vld [vmem:[#allocation10 + $0x518] sm:$0xff]
    %v4739 = vld [vmem:[#allocation10 + $0x520] sm:$0xff]
    %v4740 = vld [vmem:[#allocation10 + $0x528] sm:$0xff]
    %v4741 = vld [vmem:[#allocation10 + $0x530] sm:$0xff]
    %v4742 = vld [vmem:[#allocation10 + $0x538] sm:$0xff]
    %v4743 = vld [vmem:[#allocation10 + $0x540] sm:$0xff]
    %v4744 = vld [vmem:[#allocation10 + $0x548] sm:$0xff]
    %v4745 = vld [vmem:[#allocation10 + $0x550] sm:$0xff]
    %v4746 = vld [vmem:[#allocation10 + $0x558] sm:$0xff]
    %v4747 = vld [vmem:[#allocation10 + $0x560] sm:$0xff]
    %v4748 = vld [vmem:[#allocation10 + $0x568] sm:$0xff]
    %v4749 = vld [vmem:[#allocation10 + $0x570] sm:$0xff]
    %v4750 = vld [vmem:[#allocation10 + $0x578] sm:$0xff]
    %v4751 = vld [vmem:[#allocation10 + $0x580] sm:$0xff]
    %v4752 = vld [vmem:[#allocation10 + $0x588] sm:$0xff]
    %v4753 = vld [vmem:[#allocation10 + $0x590] sm:$0xff]
    %v4754 = vld [vmem:[#allocation10 + $0x598] sm:$0xff]
    %v4755 = vld [vmem:[#allocation10 + $0x5a0] sm:$0xff]
    %v4756 = vld [vmem:[#allocation10 + $0x5a8] sm:$0xff]
    %v4757 = vld [vmem:[#allocation10 + $0x5b0] sm:$0xff]
    %v4758 = vld [vmem:[#allocation10 + $0x5b8] sm:$0xff]
    %v4759 = vld [vmem:[#allocation10 + $0x5c0] sm:$0xff]
    %v4760 = vld [vmem:[#allocation10 + $0x5c8] sm:$0xff]
    %v4761 = vld [vmem:[#allocation10 + $0x5d0] sm:$0xff]
    %v4762 = vld [vmem:[#allocation10 + $0x5d8] sm:$0xff]
    %v4763 = vld [vmem:[#allocation10 + $0x5e0] sm:$0xff]
    %v4764 = vld [vmem:[#allocation10 + $0x5e8] sm:$0xff]
    %v4765 = vld [vmem:[#allocation10 + $0x5f0] sm:$0xff]
    %v4766 = vld [vmem:[#allocation10 + $0x5f8] sm:$0xff]
    %v4767 = vld [vmem:[#allocation10 + $0x600] sm:$0xff]
    %v4768 = vld [vmem:[#allocation10 + $0x608] sm:$0xff]
    %v4769 = vld [vmem:[#allocation10 + $0x610] sm:$0xff]
    %v4770 = vld [vmem:[#allocation10 + $0x618] sm:$0xff]
    %v4771 = vld [vmem:[#allocation10 + $0x620] sm:$0xff]
    %v4772 = vld [vmem:[#allocation10 + $0x628] sm:$0xff]
    %v4773 = vld [vmem:[#allocation10 + $0x630] sm:$0xff]
    %v4774 = vld [vmem:[#allocation10 + $0x638] sm:$0xff]
    %v4775 = vld [vmem:[#allocation10 + $0x640] sm:$0xff]
    %v4776 = vld [vmem:[#allocation10 + $0x648] sm:$0xff]
    %v4777 = vld [vmem:[#allocation10 + $0x650] sm:$0xff]
    %v4778 = vld [vmem:[#allocation10 + $0x658] sm:$0xff]
    %v4779 = vld [vmem:[#allocation10 + $0x660] sm:$0xff]
    %v4780 = vld [vmem:[#allocation10 + $0x668] sm:$0xff]
    %v4781 = vld [vmem:[#allocation10 + $0x670] sm:$0xff]
    %v4782 = vld [vmem:[#allocation10 + $0x678] sm:$0xff]
    %v4783 = vld [vmem:[#allocation10 + $0x680] sm:$0xff]
    %v4784 = vld [vmem:[#allocation10 + $0x688] sm:$0xff]
    %v4785 = vld [vmem:[#allocation10 + $0x690] sm:$0xff]
    %v4786 = vld [vmem:[#allocation10 + $0x698] sm:$0xff]
    %v4787 = vld [vmem:[#allocation10 + $0x6a0] sm:$0xff]
    %v4788 = vld [vmem:[#allocation10 + $0x6a8] sm:$0xff]
    %v4789 = vld [vmem:[#allocation10 + $0x6b0] sm:$0xff]
    %v4790 = vld [vmem:[#allocation10 + $0x6b8] sm:$0xff]
    %v4791 = vld [vmem:[#allocation10 + $0x6c0] sm:$0xff]
    %v4792 = vld [vmem:[#allocation10 + $0x6c8] sm:$0xff]
    %v4793 = vld [vmem:[#allocation10 + $0x6d0] sm:$0xff]
    %v4794 = vld [vmem:[#allocation10 + $0x6d8] sm:$0xff]
    %v4795 = vld [vmem:[#allocation10 + $0x6e0] sm:$0xff]
    %v4796 = vld [vmem:[#allocation10 + $0x6e8] sm:$0xff]
    %v4797 = vld [vmem:[#allocation10 + $0x6f0] sm:$0xff]
    %v4798 = vld [vmem:[#allocation10 + $0x6f8] sm:$0xff]
    %v4799 = vld [vmem:[#allocation10 + $0x700] sm:$0xff]
    %v4800 = vld [vmem:[#allocation10 + $0x708] sm:$0xff]
    %v4801 = vld [vmem:[#allocation10 + $0x710] sm:$0xff]
    %v4802 = vld [vmem:[#allocation10 + $0x718] sm:$0xff]
    %v4803 = vld [vmem:[#allocation10 + $0x720] sm:$0xff]
    %v4804 = vld [vmem:[#allocation10 + $0x728] sm:$0xff]
    %v4805 = vld [vmem:[#allocation10 + $0x730] sm:$0xff]
    %v4806 = vld [vmem:[#allocation10 + $0x738] sm:$0xff]
    %v4807 = vld [vmem:[#allocation10 + $0x740] sm:$0xff]
    %v4808 = vld [vmem:[#allocation10 + $0x748] sm:$0xff]
    %v4809 = vld [vmem:[#allocation10 + $0x750] sm:$0xff]
    %v4810 = vld [vmem:[#allocation10 + $0x758] sm:$0xff]
    %v4811 = vld [vmem:[#allocation10 + $0x760] sm:$0xff]
    %v4812 = vld [vmem:[#allocation10 + $0x768] sm:$0xff]
    %v4813 = vld [vmem:[#allocation10 + $0x770] sm:$0xff]
    %v4814 = vld [vmem:[#allocation10 + $0x778] sm:$0xff]
    %v4815 = vld [vmem:[#allocation10 + $0x780] sm:$0xff]
    %v4816 = vld [vmem:[#allocation10 + $0x788] sm:$0xff]
    %v4817 = vld [vmem:[#allocation10 + $0x790] sm:$0xff]
    %v4818 = vld [vmem:[#allocation10 + $0x798] sm:$0xff]
    %v4819 = vld [vmem:[#allocation10 + $0x7a0] sm:$0xff]
    %v4820 = vld [vmem:[#allocation10 + $0x7a8] sm:$0xff]
    %v4821 = vld [vmem:[#allocation10 + $0x7b0] sm:$0xff]
    %v4822 = vld [vmem:[#allocation10 + $0x7b8] sm:$0xff]
    %v4823 = vld [vmem:[#allocation10 + $0x7c0] sm:$0xff]
    %v4824 = vld [vmem:[#allocation10 + $0x7c8] sm:$0xff]
    %v4825 = vld [vmem:[#allocation10 + $0x7d0] sm:$0xff]
    %v4826 = vld [vmem:[#allocation10 + $0x7d8] sm:$0xff]
    %v4827 = vld [vmem:[#allocation10 + $0x7e0] sm:$0xff]
    %v4828 = vld [vmem:[#allocation10 + $0x7e8] sm:$0xff]
    %v4829 = vld [vmem:[#allocation10 + $0x7f0] sm:$0xff]
    %v4830 = vld [vmem:[#allocation10 + $0x7f8] sm:$0xff]
    %v4831 = vld [vmem:[#allocation10 + $0x800] sm:$0xff]
    %v4832 = vld [vmem:[#allocation10 + $0x808] sm:$0xff]
    %v4833 = vld [vmem:[#allocation10 + $0x810] sm:$0xff]
    %v4834 = vld [vmem:[#allocation10 + $0x818] sm:$0xff]
    %v4835 = vld [vmem:[#allocation10 + $0x820] sm:$0xff]
    %v4836 = vld [vmem:[#allocation10 + $0x828] sm:$0xff]
    %v4837 = vld [vmem:[#allocation10 + $0x830] sm:$0xff]
    %v4838 = vld [vmem:[#allocation10 + $0x838] sm:$0xff]
    %v4839 = vld [vmem:[#allocation10 + $0x840] sm:$0xff]
    %v4840 = vld [vmem:[#allocation10 + $0x848] sm:$0xff]
    %v4841 = vld [vmem:[#allocation10 + $0x850] sm:$0xff]
    %v4842 = vld [vmem:[#allocation10 + $0x858] sm:$0xff]
    %v4843 = vld [vmem:[#allocation10 + $0x860] sm:$0xff]
    %v4844 = vld [vmem:[#allocation10 + $0x868] sm:$0xff]
    %v4845 = vld [vmem:[#allocation10 + $0x870] sm:$0xff]
    %v4846 = vld [vmem:[#allocation10 + $0x878] sm:$0xff]
    %v4847 = vld [vmem:[#allocation10 + $0x880] sm:$0xff]
    %v4848 = vld [vmem:[#allocation10 + $0x888] sm:$0xff]
    %v4849 = vld [vmem:[#allocation10 + $0x890] sm:$0xff]
    %v4850 = vld [vmem:[#allocation10 + $0x898] sm:$0xff]
    %v4851 = vld [vmem:[#allocation10 + $0x8a0] sm:$0xff]
    %v4852 = vld [vmem:[#allocation10 + $0x8a8] sm:$0xff]
    %v4853 = vld [vmem:[#allocation10 + $0x8b0] sm:$0xff]
    %v4854 = vld [vmem:[#allocation10 + $0x8b8] sm:$0xff]
    %v4855 = vld [vmem:[#allocation10 + $0x8c0] sm:$0xff]
    %v4856 = vld [vmem:[#allocation10 + $0x8c8] sm:$0xff]
    %v4857 = vld [vmem:[#allocation10 + $0x8d0] sm:$0xff]
    %v4858 = vld [vmem:[#allocation10 + $0x8d8] sm:$0xff]
    %v4859 = vld [vmem:[#allocation10 + $0x8e0] sm:$0xff]
    %v4860 = vld [vmem:[#allocation10 + $0x8e8] sm:$0xff]
    %v4861 = vld [vmem:[#allocation10 + $0x8f0] sm:$0xff]
    %v4862 = vld [vmem:[#allocation10 + $0x8f8] sm:$0xff]
    %v4863 = vld [vmem:[#allocation10 + $0x900] sm:$0xff]
    %v4864 = vld [vmem:[#allocation10 + $0x908] sm:$0xff]
    %v4865 = vld [vmem:[#allocation10 + $0x910] sm:$0xff]
    %v4866 = vld [vmem:[#allocation10 + $0x918] sm:$0xff]
    %v4867 = vld [vmem:[#allocation10 + $0x920] sm:$0xff]
    %v4868 = vld [vmem:[#allocation10 + $0x928] sm:$0xff]
    %v4869 = vld [vmem:[#allocation10 + $0x930] sm:$0xff]
    %v4870 = vld [vmem:[#allocation10 + $0x938] sm:$0xff]
    %v4871 = vld [vmem:[#allocation10 + $0x940] sm:$0xff]
    %v4872 = vld [vmem:[#allocation10 + $0x948] sm:$0xff]
    %v4873 = vld [vmem:[#allocation10 + $0x950] sm:$0xff]
    %v4874 = vld [vmem:[#allocation10 + $0x958] sm:$0xff]
    %v4875 = vld [vmem:[#allocation10 + $0x960] sm:$0xff]
    %v4876 = vld [vmem:[#allocation10 + $0x968] sm:$0xff]
    %v4877 = vld [vmem:[#allocation10 + $0x970] sm:$0xff]
    %v4878 = vld [vmem:[#allocation10 + $0x978] sm:$0xff]
    %v4879 = vld [vmem:[#allocation10 + $0x980] sm:$0xff]
    %v4880 = vld [vmem:[#allocation10 + $0x988] sm:$0xff]
    %v4881 = vld [vmem:[#allocation10 + $0x990] sm:$0xff]
    %v4882 = vld [vmem:[#allocation10 + $0x998] sm:$0xff]
    %v4883 = vld [vmem:[#allocation10 + $0x9a0] sm:$0xff]
    %v4884 = vld [vmem:[#allocation10 + $0x9a8] sm:$0xff]
    %v4885 = vld [vmem:[#allocation10 + $0x9b0] sm:$0xff]
    %v4886 = vld [vmem:[#allocation10 + $0x9b8] sm:$0xff]
    %v4887 = vld [vmem:[#allocation10 + $0x9c0] sm:$0xff]
    %v4888 = vld [vmem:[#allocation10 + $0x9c8] sm:$0xff]
    %v4889 = vld [vmem:[#allocation10 + $0x9d0] sm:$0xff]
    %v4890 = vld [vmem:[#allocation10 + $0x9d8] sm:$0xff]
    %v4891 = vld [vmem:[#allocation10 + $0x9e0] sm:$0xff]
    %v4892 = vld [vmem:[#allocation10 + $0x9e8] sm:$0xff]
    %v4893 = vld [vmem:[#allocation10 + $0x9f0] sm:$0xff]
    %v4894 = vld [vmem:[#allocation10 + $0x9f8] sm:$0xff]
    %v4895 = vld [vmem:[#allocation10 + $0xa00] sm:$0xff]
    %v4896 = vld [vmem:[#allocation10 + $0xa08] sm:$0xff]
    %v4897 = vld [vmem:[#allocation10 + $0xa10] sm:$0xff]
    %v4898 = vld [vmem:[#allocation10 + $0xa18] sm:$0xff]
    %v4899 = vld [vmem:[#allocation10 + $0xa20] sm:$0xff]
    %v4900 = vld [vmem:[#allocation10 + $0xa28] sm:$0xff]
    %v4901 = vld [vmem:[#allocation10 + $0xa30] sm:$0xff]
    %v4902 = vld [vmem:[#allocation10 + $0xa38] sm:$0xff]
    %v4903 = vld [vmem:[#allocation10 + $0xa40] sm:$0xff]
    %v4904 = vld [vmem:[#allocation10 + $0xa48] sm:$0xff]
    %v4905 = vld [vmem:[#allocation10 + $0xa50] sm:$0xff]
    %v4906 = vld [vmem:[#allocation10 + $0xa58] sm:$0xff]
    %v4907 = vld [vmem:[#allocation10 + $0xa60] sm:$0xff]
    %v4908 = vld [vmem:[#allocation10 + $0xa68] sm:$0xff]
    %v4909 = vld [vmem:[#allocation10 + $0xa70] sm:$0xff]
    %v4910 = vld [vmem:[#allocation10 + $0xa78] sm:$0xff]
    %v4911 = vld [vmem:[#allocation10 + $0xa80] sm:$0xff]
    %v4912 = vld [vmem:[#allocation10 + $0xa88] sm:$0xff]
    %v4913 = vld [vmem:[#allocation10 + $0xa90] sm:$0xff]
    %v4914 = vld [vmem:[#allocation10 + $0xa98] sm:$0xff]
    %v4915 = vld [vmem:[#allocation10 + $0xaa0] sm:$0xff]
    %v4916 = vld [vmem:[#allocation10 + $0xaa8] sm:$0xff]
    %v4917 = vld [vmem:[#allocation10 + $0xab0] sm:$0xff]
    %v4918 = vld [vmem:[#allocation10 + $0xab8] sm:$0xff]
    %v4919 = vld [vmem:[#allocation10 + $0xac0] sm:$0xff]
    %v4920 = vld [vmem:[#allocation10 + $0xac8] sm:$0xff]
    %v4921 = vld [vmem:[#allocation10 + $0xad0] sm:$0xff]
    %v4922 = vld [vmem:[#allocation10 + $0xad8] sm:$0xff]
    %v4923 = vld [vmem:[#allocation10 + $0xae0] sm:$0xff]
    %v4924 = vld [vmem:[#allocation10 + $0xae8] sm:$0xff]
    %v4925 = vld [vmem:[#allocation10 + $0xaf0] sm:$0xff]
    %v4926 = vld [vmem:[#allocation10 + $0xaf8] sm:$0xff]
    %v4927 = vld [vmem:[#allocation10 + $0xb00] sm:$0xff]
    %v4928 = vld [vmem:[#allocation10 + $0xb08] sm:$0xff]
    %v4929 = vld [vmem:[#allocation10 + $0xb10] sm:$0xff]
    %v4930 = vld [vmem:[#allocation10 + $0xb18] sm:$0xff]
    %v4931 = vld [vmem:[#allocation10 + $0xb20] sm:$0xff]
    %v4932 = vld [vmem:[#allocation10 + $0xb28] sm:$0xff]
    %v4933 = vld [vmem:[#allocation10 + $0xb30] sm:$0xff]
    %v4934 = vld [vmem:[#allocation10 + $0xb38] sm:$0xff]
    %v4935 = vld [vmem:[#allocation10 + $0xb40] sm:$0xff]
    %v4936 = vld [vmem:[#allocation10 + $0xb48] sm:$0xff]
    %v4937 = vld [vmem:[#allocation10 + $0xb50] sm:$0xff]
    %v4938 = vld [vmem:[#allocation10 + $0xb58] sm:$0xff]
    %v4939 = vld [vmem:[#allocation10 + $0xb60] sm:$0xff]
    %v4940 = vld [vmem:[#allocation10 + $0xb68] sm:$0xff]
    %v4941 = vld [vmem:[#allocation10 + $0xb70] sm:$0xff]
    %v4942 = vld [vmem:[#allocation10 + $0xb78] sm:$0xff]
    %v4943 = vld [vmem:[#allocation10 + $0xb80] sm:$0xff]
    %v4944 = vld [vmem:[#allocation10 + $0xb88] sm:$0xff]
    %v4945 = vld [vmem:[#allocation10 + $0xb90] sm:$0xff]
    %v4946 = vld [vmem:[#allocation10 + $0xb98] sm:$0xff]
    %v4947 = vld [vmem:[#allocation10 + $0xba0] sm:$0xff]
    %v4948 = vld [vmem:[#allocation10 + $0xba8] sm:$0xff]
    %v4949 = vld [vmem:[#allocation10 + $0xbb0] sm:$0xff]
    %v4950 = vld [vmem:[#allocation10 + $0xbb8] sm:$0xff]
    %v4951 = vld [vmem:[#allocation10 + $0xbc0] sm:$0xff]
    %v4952 = vld [vmem:[#allocation10 + $0xbc8] sm:$0xff]
    %v4953 = vld [vmem:[#allocation10 + $0xbd0] sm:$0xff]
    %v4954 = vld [vmem:[#allocation10 + $0xbd8] sm:$0xff]
    %v4955 = vld [vmem:[#allocation10 + $0xbe0] sm:$0xff]
    %v4956 = vld [vmem:[#allocation10 + $0xbe8] sm:$0xff]
    %v4957 = vld [vmem:[#allocation10 + $0xbf0] sm:$0xff]
    %v4958 = vld [vmem:[#allocation10 + $0xbf8] sm:$0xff]
    %v4959 = vld [vmem:[#allocation10 + $0xc00] sm:$0xff]
    %v4960 = vld [vmem:[#allocation10 + $0xc08] sm:$0xff]
    %v4961 = vld [vmem:[#allocation10 + $0xc10] sm:$0xff]
    %v4962 = vld [vmem:[#allocation10 + $0xc18] sm:$0xff]
    %v4963 = vld [vmem:[#allocation10 + $0xc20] sm:$0xff]
    %v4964 = vld [vmem:[#allocation10 + $0xc28] sm:$0xff]
    %v4965 = vld [vmem:[#allocation10 + $0xc30] sm:$0xff]
    %v4966 = vld [vmem:[#allocation10 + $0xc38] sm:$0xff]
    %v4967 = vld [vmem:[#allocation10 + $0xc40] sm:$0xff]
    %v4968 = vld [vmem:[#allocation10 + $0xc48] sm:$0xff]
    %v4969 = vld [vmem:[#allocation10 + $0xc50] sm:$0xff]
    %v4970 = vld [vmem:[#allocation10 + $0xc58] sm:$0xff]
    %v4971 = vld [vmem:[#allocation10 + $0xc60] sm:$0xff]
    %v4972 = vld [vmem:[#allocation10 + $0xc68] sm:$0xff]
    %v4973 = vld [vmem:[#allocation10 + $0xc70] sm:$0xff]
    %v4974 = vld [vmem:[#allocation10 + $0xc78] sm:$0xff]
    %v4975 = vld [vmem:[#allocation10 + $0xc80] sm:$0xff]
    %v4976 = vld [vmem:[#allocation10 + $0xc88] sm:$0xff]
    %v4977 = vld [vmem:[#allocation10 + $0xc90] sm:$0xff]
    %v4978 = vld [vmem:[#allocation10 + $0xc98] sm:$0xff]
    %v4979 = vld [vmem:[#allocation10 + $0xca0] sm:$0xff]
    %v4980 = vld [vmem:[#allocation10 + $0xca8] sm:$0xff]
    %v4981 = vld [vmem:[#allocation10 + $0xcb0] sm:$0xff]
    %v4982 = vld [vmem:[#allocation10 + $0xcb8] sm:$0xff]
    %v4983 = vld [vmem:[#allocation10 + $0xcc0] sm:$0xff]
    %v4984 = vld [vmem:[#allocation10 + $0xcc8] sm:$0xff]
    %v4985 = vld [vmem:[#allocation10 + $0xcd0] sm:$0xff]
    %v4986 = vld [vmem:[#allocation10 + $0xcd8] sm:$0xff]
    %v4987 = vld [vmem:[#allocation10 + $0xce0] sm:$0xff]
    %v4988 = vld [vmem:[#allocation10 + $0xce8] sm:$0xff]
    %v4989 = vld [vmem:[#allocation10 + $0xcf0] sm:$0xff]
    %v4990 = vld [vmem:[#allocation10 + $0xcf8] sm:$0xff]
    %v4991 = vld [vmem:[#allocation10 + $0xd00] sm:$0xff]
    %v4992 = vld [vmem:[#allocation10 + $0xd08] sm:$0xff]
    %v4993 = vld [vmem:[#allocation10 + $0xd10] sm:$0xff]
    %v4994 = vld [vmem:[#allocation10 + $0xd18] sm:$0xff]
    %v4995 = vld [vmem:[#allocation10 + $0xd20] sm:$0xff]
    %v4996 = vld [vmem:[#allocation10 + $0xd28] sm:$0xff]
    %v4997 = vld [vmem:[#allocation10 + $0xd30] sm:$0xff]
    %v4998 = vld [vmem:[#allocation10 + $0xd38] sm:$0xff]
    %v4999 = vld [vmem:[#allocation10 + $0xd40] sm:$0xff]
    %v5000 = vld [vmem:[#allocation10 + $0xd48] sm:$0xff]
    %v5001 = vld [vmem:[#allocation10 + $0xd50] sm:$0xff]
    %v5002 = vld [vmem:[#allocation10 + $0xd58] sm:$0xff]
    %v5003 = vld [vmem:[#allocation10 + $0xd60] sm:$0xff]
    %v5004 = vld [vmem:[#allocation10 + $0xd68] sm:$0xff]
    %v5005 = vld [vmem:[#allocation10 + $0xd70] sm:$0xff]
    %v5006 = vld [vmem:[#allocation10 + $0xd78] sm:$0xff]
    %v5007 = vld [vmem:[#allocation10 + $0xd80] sm:$0xff]
    %v5008 = vld [vmem:[#allocation10 + $0xd88] sm:$0xff]
    %v5009 = vld [vmem:[#allocation10 + $0xd90] sm:$0xff]
    %v5010 = vld [vmem:[#allocation10 + $0xd98] sm:$0xff]
    %v5011 = vld [vmem:[#allocation10 + $0xda0] sm:$0xff]
    %v5012 = vld [vmem:[#allocation10 + $0xda8] sm:$0xff]
    %v5013 = vld [vmem:[#allocation10 + $0xdb0] sm:$0xff]
    %v5014 = vld [vmem:[#allocation10 + $0xdb8] sm:$0xff]
    %v5015 = vld [vmem:[#allocation10 + $0xdc0] sm:$0xff]
    %v5016 = vld [vmem:[#allocation10 + $0xdc8] sm:$0xff]
    %v5017 = vld [vmem:[#allocation10 + $0xdd0] sm:$0xff]
    %v5018 = vld [vmem:[#allocation10 + $0xdd8] sm:$0xff]
    %v5019 = vld [vmem:[#allocation10 + $0xde0] sm:$0xff]
    %v5020 = vld [vmem:[#allocation10 + $0xde8] sm:$0xff]
    %v5021 = vld [vmem:[#allocation10 + $0xdf0] sm:$0xff]
    %v5022 = vld [vmem:[#allocation10 + $0xdf8] sm:$0xff]
    %v5023 = vld [vmem:[#allocation10 + $0xe00] sm:$0xff]
    %v5024 = vld [vmem:[#allocation10 + $0xe08] sm:$0xff]
    %v5025 = vld [vmem:[#allocation10 + $0xe10] sm:$0xff]
    %v5026 = vld [vmem:[#allocation10 + $0xe18] sm:$0xff]
    %v5027 = vld [vmem:[#allocation10 + $0xe20] sm:$0xff]
    %v5028 = vld [vmem:[#allocation10 + $0xe28] sm:$0xff]
    %v5029 = vld [vmem:[#allocation10 + $0xe30] sm:$0xff]
    %v5030 = vld [vmem:[#allocation10 + $0xe38] sm:$0xff]
    %v5031 = vld [vmem:[#allocation10 + $0xe40] sm:$0xff]
    %v5032 = vld [vmem:[#allocation10 + $0xe48] sm:$0xff]
    %v5033 = vld [vmem:[#allocation10 + $0xe50] sm:$0xff]
    %v5034 = vld [vmem:[#allocation10 + $0xe58] sm:$0xff]
    %v5035 = vld [vmem:[#allocation10 + $0xe60] sm:$0xff]
    %v5036 = vld [vmem:[#allocation10 + $0xe68] sm:$0xff]
    %v5037 = vld [vmem:[#allocation10 + $0xe70] sm:$0xff]
    %v5038 = vld [vmem:[#allocation10 + $0xe78] sm:$0xff]
    %v5039 = vld [vmem:[#allocation10 + $0xe80] sm:$0xff]
    %v5040 = vld [vmem:[#allocation10 + $0xe88] sm:$0xff]
    %v5041 = vld [vmem:[#allocation10 + $0xe90] sm:$0xff]
    %v5042 = vld [vmem:[#allocation10 + $0xe98] sm:$0xff]
    %v5043 = vld [vmem:[#allocation10 + $0xea0] sm:$0xff]
    %v5044 = vld [vmem:[#allocation10 + $0xea8] sm:$0xff]
    %v5045 = vld [vmem:[#allocation10 + $0xeb0] sm:$0xff]
    %v5046 = vld [vmem:[#allocation10 + $0xeb8] sm:$0xff]
    %v5047 = vld [vmem:[#allocation10 + $0xec0] sm:$0xff]
    %v5048 = vld [vmem:[#allocation10 + $0xec8] sm:$0xff]
    %v5049 = vld [vmem:[#allocation10 + $0xed0] sm:$0xff]
    %v5050 = vld [vmem:[#allocation10 + $0xed8] sm:$0xff]
    %v5051 = vld [vmem:[#allocation10 + $0xee0] sm:$0xff]
    %v5052 = vld [vmem:[#allocation10 + $0xee8] sm:$0xff]
    %v5053 = vld [vmem:[#allocation10 + $0xef0] sm:$0xff]
    %v5054 = vld [vmem:[#allocation10 + $0xef8] sm:$0xff]
    %v5055 = vld [vmem:[#allocation10 + $0xf00] sm:$0xff]
    %v5056 = vld [vmem:[#allocation10 + $0xf08] sm:$0xff]
    %v5057 = vld [vmem:[#allocation10 + $0xf10] sm:$0xff]
    %v5058 = vld [vmem:[#allocation10 + $0xf18] sm:$0xff]
    %v5059 = vld [vmem:[#allocation10 + $0xf20] sm:$0xff]
    %v5060 = vld [vmem:[#allocation10 + $0xf28] sm:$0xff]
    %v5061 = vld [vmem:[#allocation10 + $0xf30] sm:$0xff]
    %v5062 = vld [vmem:[#allocation10 + $0xf38] sm:$0xff]
    %v5063 = vld [vmem:[#allocation10 + $0xf40] sm:$0xff]
    %v5064 = vld [vmem:[#allocation10 + $0xf48] sm:$0xff]
    %v5065 = vld [vmem:[#allocation10 + $0xf50] sm:$0xff]
    %v5066 = vld [vmem:[#allocation10 + $0xf58] sm:$0xff]
    %v5067 = vld [vmem:[#allocation10 + $0xf60] sm:$0xff]
    %v5068 = vld [vmem:[#allocation10 + $0xf68] sm:$0xff]
    %v5069 = vld [vmem:[#allocation10 + $0xf70] sm:$0xff]
    %v5070 = vld [vmem:[#allocation10 + $0xf78] sm:$0xff]
    %v5071 = vld [vmem:[#allocation10 + $0xf80] sm:$0xff]
    %v5072 = vld [vmem:[#allocation10 + $0xf88] sm:$0xff]
    %v5073 = vld [vmem:[#allocation10 + $0xf90] sm:$0xff]
    %v5074 = vld [vmem:[#allocation10 + $0xf98] sm:$0xff]
    %v5075 = vld [vmem:[#allocation10 + $0xfa0] sm:$0xff]
    %v5076 = vld [vmem:[#allocation10 + $0xfa8] sm:$0xff]
    %v5077 = vld [vmem:[#allocation10 + $0xfb0] sm:$0xff]
    %v5078 = vld [vmem:[#allocation10 + $0xfb8] sm:$0xff]
    %v5079 = vld [vmem:[#allocation10 + $0xfc0] sm:$0xff]
    %v5080 = vld [vmem:[#allocation10 + $0xfc8] sm:$0xff]
    %v5081 = vld [vmem:[#allocation10 + $0xfd0] sm:$0xff]
    %v5082 = vld [vmem:[#allocation10 + $0xfd8] sm:$0xff]
    %v5083 = vld [vmem:[#allocation10 + $0xfe0] sm:$0xff]
    %v5084 = vld [vmem:[#allocation10 + $0xfe8] sm:$0xff]
    %v5085 = vld [vmem:[#allocation10 + $0xff0] sm:$0xff]
    %v5086 = vld [vmem:[#allocation10 + $0xff8] sm:$0xff]
    %v5087 = vld [vmem:[#allocation12] sm:$0xff]
    %v5089 = vlaneseq
    %v5090 = vshrl.u32 %v5089, 7
    %v5091 = vsub.s32 0, %v5090
    %v5092 = vrot.slane %v5087, %v5091
    %v5093 = vlaneseq
    %v5094 = vshrl.u32 %v5093, 7
    %v5095 = vsub.s32 1, %v5094
    %v5096 = vrot.slane %v5087, %v5095
    %v5097 = vlaneseq
    %v5098 = vshrl.u32 %v5097, 7
    %v5099 = vsub.s32 2, %v5098
    %v5100 = vrot.slane %v5087, %v5099
    %v5101 = vlaneseq
    %v5102 = vshrl.u32 %v5101, 7
    %v5103 = vsub.s32 3, %v5102
    %v5104 = vrot.slane %v5087, %v5103
    %v5105 = vlaneseq
    %v5106 = vshrl.u32 %v5105, 7
    %v5107 = vsub.s32 4, %v5106
    %v5108 = vrot.slane %v5087, %v5107
    %v5109 = vlaneseq
    %v5110 = vshrl.u32 %v5109, 7
    %v5111 = vsub.s32 5, %v5110
    %v5112 = vrot.slane %v5087, %v5111
    %v5113 = vlaneseq
    %v5114 = vshrl.u32 %v5113, 7
    %v5115 = vsub.s32 6, %v5114
    %v5116 = vrot.slane %v5087, %v5115
    %v5117 = vlaneseq
    %v5118 = vshrl.u32 %v5117, 7
    %v5119 = vsub.s32 7, %v5118
    %v5120 = vrot.slane %v5087, %v5119
    %v5641 = vunpack.c.l.b16 %v4575
    %v5642 = vunpack.c.h.b16 %v4575
    %v5643 = vunpack.c.l.b16 %v4576
    %v5644 = vunpack.c.h.b16 %v4576
    %v5645 = vunpack.c.l.b16 %v4577
    %v5646 = vunpack.c.h.b16 %v4577
    %v5647 = vunpack.c.l.b16 %v4578
    %v5648 = vunpack.c.h.b16 %v4578
    %v5649 = vunpack.c.l.b16 %v4579
    %v5650 = vunpack.c.h.b16 %v4579
    %v5651 = vunpack.c.l.b16 %v4580
    %v5652 = vunpack.c.h.b16 %v4580
    %v5653 = vunpack.c.l.b16 %v4581
    %v5654 = vunpack.c.h.b16 %v4581
    %v5655 = vunpack.c.l.b16 %v4582
    %v5656 = vunpack.c.h.b16 %v4582
    %v5657 = vunpack.c.l.b16 %v4583
    %v5658 = vunpack.c.h.b16 %v4583
    %v5659 = vunpack.c.l.b16 %v4584
    %v5660 = vunpack.c.h.b16 %v4584
    %v5661 = vunpack.c.l.b16 %v4585
    %v5662 = vunpack.c.h.b16 %v4585
    %v5663 = vunpack.c.l.b16 %v4586
    %v5664 = vunpack.c.h.b16 %v4586
    %v5665 = vunpack.c.l.b16 %v4587
    %v5666 = vunpack.c.h.b16 %v4587
    %v5667 = vunpack.c.l.b16 %v4588
    %v5668 = vunpack.c.h.b16 %v4588
    %v5669 = vunpack.c.l.b16 %v4589
    %v5670 = vunpack.c.h.b16 %v4589
    %v5671 = vunpack.c.l.b16 %v4590
    %v5672 = vunpack.c.h.b16 %v4590
    %v5673 = vunpack.c.l.b16 %v4591
    %v5674 = vunpack.c.h.b16 %v4591
    %v5675 = vunpack.c.l.b16 %v4592
    %v5676 = vunpack.c.h.b16 %v4592
    %v5677 = vunpack.c.l.b16 %v4593
    %v5678 = vunpack.c.h.b16 %v4593
    %v5679 = vunpack.c.l.b16 %v4594
    %v5680 = vunpack.c.h.b16 %v4594
    %v5681 = vunpack.c.l.b16 %v4595
    %v5682 = vunpack.c.h.b16 %v4595
    %v5683 = vunpack.c.l.b16 %v4596
    %v5684 = vunpack.c.h.b16 %v4596
    %v5685 = vunpack.c.l.b16 %v4597
    %v5686 = vunpack.c.h.b16 %v4597
    %v5687 = vunpack.c.l.b16 %v4598
    %v5688 = vunpack.c.h.b16 %v4598
    %v5689 = vunpack.c.l.b16 %v4599
    %v5690 = vunpack.c.h.b16 %v4599
    %v5691 = vunpack.c.l.b16 %v4600
    %v5692 = vunpack.c.h.b16 %v4600
    %v5693 = vunpack.c.l.b16 %v4601
    %v5694 = vunpack.c.h.b16 %v4601
    %v5695 = vunpack.c.l.b16 %v4602
    %v5696 = vunpack.c.h.b16 %v4602
    %v5697 = vunpack.c.l.b16 %v4603
    %v5698 = vunpack.c.h.b16 %v4603
    %v5699 = vunpack.c.l.b16 %v4604
    %v5700 = vunpack.c.h.b16 %v4604
    %v5701 = vunpack.c.l.b16 %v4605
    %v5702 = vunpack.c.h.b16 %v4605
    %v5703 = vunpack.c.l.b16 %v4606
    %v5704 = vunpack.c.h.b16 %v4606
    %v5705 = vunpack.c.l.b16 %v4607
    %v5706 = vunpack.c.h.b16 %v4607
    %v5707 = vunpack.c.l.b16 %v4608
    %v5708 = vunpack.c.h.b16 %v4608
    %v5709 = vunpack.c.l.b16 %v4609
    %v5710 = vunpack.c.h.b16 %v4609
    %v5711 = vunpack.c.l.b16 %v4610
    %v5712 = vunpack.c.h.b16 %v4610
    %v5713 = vunpack.c.l.b16 %v4611
    %v5714 = vunpack.c.h.b16 %v4611
    %v5715 = vunpack.c.l.b16 %v4612
    %v5716 = vunpack.c.h.b16 %v4612
    %v5717 = vunpack.c.l.b16 %v4613
    %v5718 = vunpack.c.h.b16 %v4613
    %v5719 = vunpack.c.l.b16 %v4614
    %v5720 = vunpack.c.h.b16 %v4614
    %v5721 = vunpack.c.l.b16 %v4615
    %v5722 = vunpack.c.h.b16 %v4615
    %v5723 = vunpack.c.l.b16 %v4616
    %v5724 = vunpack.c.h.b16 %v4616
    %v5725 = vunpack.c.l.b16 %v4617
    %v5726 = vunpack.c.h.b16 %v4617
    %v5727 = vunpack.c.l.b16 %v4618
    %v5728 = vunpack.c.h.b16 %v4618
    %v5729 = vunpack.c.l.b16 %v4619
    %v5730 = vunpack.c.h.b16 %v4619
    %v5731 = vunpack.c.l.b16 %v4620
    %v5732 = vunpack.c.h.b16 %v4620
    %v5733 = vunpack.c.l.b16 %v4621
    %v5734 = vunpack.c.h.b16 %v4621
    %v5735 = vunpack.c.l.b16 %v4622
    %v5736 = vunpack.c.h.b16 %v4622
    %v5737 = vunpack.c.l.b16 %v4623
    %v5738 = vunpack.c.h.b16 %v4623
    %v5739 = vunpack.c.l.b16 %v4624
    %v5740 = vunpack.c.h.b16 %v4624
    %v5741 = vunpack.c.l.b16 %v4625
    %v5742 = vunpack.c.h.b16 %v4625
    %v5743 = vunpack.c.l.b16 %v4626
    %v5744 = vunpack.c.h.b16 %v4626
    %v5745 = vunpack.c.l.b16 %v4627
    %v5746 = vunpack.c.h.b16 %v4627
    %v5747 = vunpack.c.l.b16 %v4628
    %v5748 = vunpack.c.h.b16 %v4628
    %v5749 = vunpack.c.l.b16 %v4629
    %v5750 = vunpack.c.h.b16 %v4629
    %v5751 = vunpack.c.l.b16 %v4630
    %v5752 = vunpack.c.h.b16 %v4630
    %v5753 = vunpack.c.l.b16 %v4631
    %v5754 = vunpack.c.h.b16 %v4631
    %v5755 = vunpack.c.l.b16 %v4632
    %v5756 = vunpack.c.h.b16 %v4632
    %v5757 = vunpack.c.l.b16 %v4633
    %v5758 = vunpack.c.h.b16 %v4633
    %v5759 = vunpack.c.l.b16 %v4634
    %v5760 = vunpack.c.h.b16 %v4634
    %v5761 = vunpack.c.l.b16 %v4635
    %v5762 = vunpack.c.h.b16 %v4635
    %v5763 = vunpack.c.l.b16 %v4636
    %v5764 = vunpack.c.h.b16 %v4636
    %v5765 = vunpack.c.l.b16 %v4637
    %v5766 = vunpack.c.h.b16 %v4637
    %v5767 = vunpack.c.l.b16 %v4638
    %v5768 = vunpack.c.h.b16 %v4638
    %v5769 = vunpack.c.l.b16 %v4639
    %v5770 = vunpack.c.h.b16 %v4639
    %v5771 = vunpack.c.l.b16 %v4640
    %v5772 = vunpack.c.h.b16 %v4640
    %v5773 = vunpack.c.l.b16 %v4641
    %v5774 = vunpack.c.h.b16 %v4641
    %v5775 = vunpack.c.l.b16 %v4642
    %v5776 = vunpack.c.h.b16 %v4642
    %v5777 = vunpack.c.l.b16 %v4643
    %v5778 = vunpack.c.h.b16 %v4643
    %v5779 = vunpack.c.l.b16 %v4644
    %v5780 = vunpack.c.h.b16 %v4644
    %v5781 = vunpack.c.l.b16 %v4645
    %v5782 = vunpack.c.h.b16 %v4645
    %v5783 = vunpack.c.l.b16 %v4646
    %v5784 = vunpack.c.h.b16 %v4646
    %v5785 = vunpack.c.l.b16 %v4647
    %v5786 = vunpack.c.h.b16 %v4647
    %v5787 = vunpack.c.l.b16 %v4648
    %v5788 = vunpack.c.h.b16 %v4648
    %v5789 = vunpack.c.l.b16 %v4649
    %v5790 = vunpack.c.h.b16 %v4649
    %v5791 = vunpack.c.l.b16 %v4650
    %v5792 = vunpack.c.h.b16 %v4650
    %v5793 = vunpack.c.l.b16 %v4651
    %v5794 = vunpack.c.h.b16 %v4651
    %v5795 = vunpack.c.l.b16 %v4652
    %v5796 = vunpack.c.h.b16 %v4652
    %v5797 = vunpack.c.l.b16 %v4653
    %v5798 = vunpack.c.h.b16 %v4653
    %v5799 = vunpack.c.l.b16 %v4654
    %v5800 = vunpack.c.h.b16 %v4654
    %v5801 = vunpack.c.l.b16 %v4655
    %v5802 = vunpack.c.h.b16 %v4655
    %v5803 = vunpack.c.l.b16 %v4656
    %v5804 = vunpack.c.h.b16 %v4656
    %v5805 = vunpack.c.l.b16 %v4657
    %v5806 = vunpack.c.h.b16 %v4657
    %v5807 = vunpack.c.l.b16 %v4658
    %v5808 = vunpack.c.h.b16 %v4658
    %v5809 = vunpack.c.l.b16 %v4659
    %v5810 = vunpack.c.h.b16 %v4659
    %v5811 = vunpack.c.l.b16 %v4660
    %v5812 = vunpack.c.h.b16 %v4660
    %v5813 = vunpack.c.l.b16 %v4661
    %v5814 = vunpack.c.h.b16 %v4661
    %v5815 = vunpack.c.l.b16 %v4662
    %v5816 = vunpack.c.h.b16 %v4662
    %v5817 = vunpack.c.l.b16 %v4663
    %v5818 = vunpack.c.h.b16 %v4663
    %v5819 = vunpack.c.l.b16 %v4664
    %v5820 = vunpack.c.h.b16 %v4664
    %v5821 = vunpack.c.l.b16 %v4665
    %v5822 = vunpack.c.h.b16 %v4665
    %v5823 = vunpack.c.l.b16 %v4666
    %v5824 = vunpack.c.h.b16 %v4666
    %v5825 = vunpack.c.l.b16 %v4667
    %v5826 = vunpack.c.h.b16 %v4667
    %v5827 = vunpack.c.l.b16 %v4668
    %v5828 = vunpack.c.h.b16 %v4668
    %v5829 = vunpack.c.l.b16 %v4669
    %v5830 = vunpack.c.h.b16 %v4669
    %v5831 = vunpack.c.l.b16 %v4670
    %v5832 = vunpack.c.h.b16 %v4670
    %v5833 = vunpack.c.l.b16 %v4671
    %v5834 = vunpack.c.h.b16 %v4671
    %v5835 = vunpack.c.l.b16 %v4672
    %v5836 = vunpack.c.h.b16 %v4672
    %v5837 = vunpack.c.l.b16 %v4673
    %v5838 = vunpack.c.h.b16 %v4673
    %v5839 = vunpack.c.l.b16 %v4674
    %v5840 = vunpack.c.h.b16 %v4674
    %v5841 = vunpack.c.l.b16 %v4675
    %v5842 = vunpack.c.h.b16 %v4675
    %v5843 = vunpack.c.l.b16 %v4676
    %v5844 = vunpack.c.h.b16 %v4676
    %v5845 = vunpack.c.l.b16 %v4677
    %v5846 = vunpack.c.h.b16 %v4677
    %v5847 = vunpack.c.l.b16 %v4678
    %v5848 = vunpack.c.h.b16 %v4678
    %v5849 = vunpack.c.l.b16 %v4679
    %v5850 = vunpack.c.h.b16 %v4679
    %v5851 = vunpack.c.l.b16 %v4680
    %v5852 = vunpack.c.h.b16 %v4680
    %v5853 = vunpack.c.l.b16 %v4681
    %v5854 = vunpack.c.h.b16 %v4681
    %v5855 = vunpack.c.l.b16 %v4682
    %v5856 = vunpack.c.h.b16 %v4682
    %v5857 = vunpack.c.l.b16 %v4683
    %v5858 = vunpack.c.h.b16 %v4683
    %v5859 = vunpack.c.l.b16 %v4684
    %v5860 = vunpack.c.h.b16 %v4684
    %v5861 = vunpack.c.l.b16 %v4685
    %v5862 = vunpack.c.h.b16 %v4685
    %v5863 = vunpack.c.l.b16 %v4686
    %v5864 = vunpack.c.h.b16 %v4686
    %v5865 = vunpack.c.l.b16 %v4687
    %v5866 = vunpack.c.h.b16 %v4687
    %v5867 = vunpack.c.l.b16 %v4688
    %v5868 = vunpack.c.h.b16 %v4688
    %v5869 = vunpack.c.l.b16 %v4689
    %v5870 = vunpack.c.h.b16 %v4689
    %v5871 = vunpack.c.l.b16 %v4690
    %v5872 = vunpack.c.h.b16 %v4690
    %v5873 = vunpack.c.l.b16 %v4691
    %v5874 = vunpack.c.h.b16 %v4691
    %v5875 = vunpack.c.l.b16 %v4692
    %v5876 = vunpack.c.h.b16 %v4692
    %v5877 = vunpack.c.l.b16 %v4693
    %v5878 = vunpack.c.h.b16 %v4693
    %v5879 = vunpack.c.l.b16 %v4694
    %v5880 = vunpack.c.h.b16 %v4694
    %v5881 = vunpack.c.l.b16 %v4695
    %v5882 = vunpack.c.h.b16 %v4695
    %v5883 = vunpack.c.l.b16 %v4696
    %v5884 = vunpack.c.h.b16 %v4696
    %v5885 = vunpack.c.l.b16 %v4697
    %v5886 = vunpack.c.h.b16 %v4697
    %v5887 = vunpack.c.l.b16 %v4698
    %v5888 = vunpack.c.h.b16 %v4698
    %v5889 = vunpack.c.l.b16 %v4699
    %v5890 = vunpack.c.h.b16 %v4699
    %v5891 = vunpack.c.l.b16 %v4700
    %v5892 = vunpack.c.h.b16 %v4700
    %v5893 = vunpack.c.l.b16 %v4701
    %v5894 = vunpack.c.h.b16 %v4701
    %v5895 = vunpack.c.l.b16 %v4702
    %v5896 = vunpack.c.h.b16 %v4702
    %v5897 = vunpack.c.l.b16 %v4703
    %v5898 = vunpack.c.h.b16 %v4703
    %v5899 = vunpack.c.l.b16 %v4704
    %v5900 = vunpack.c.h.b16 %v4704
    %v5901 = vunpack.c.l.b16 %v4705
    %v5902 = vunpack.c.h.b16 %v4705
    %v5903 = vunpack.c.l.b16 %v4706
    %v5904 = vunpack.c.h.b16 %v4706
    %v5905 = vunpack.c.l.b16 %v4707
    %v5906 = vunpack.c.h.b16 %v4707
    %v5907 = vunpack.c.l.b16 %v4708
    %v5908 = vunpack.c.h.b16 %v4708
    %v5909 = vunpack.c.l.b16 %v4709
    %v5910 = vunpack.c.h.b16 %v4709
    %v5911 = vunpack.c.l.b16 %v4710
    %v5912 = vunpack.c.h.b16 %v4710
    %v5913 = vunpack.c.l.b16 %v4711
    %v5914 = vunpack.c.h.b16 %v4711
    %v5915 = vunpack.c.l.b16 %v4712
    %v5916 = vunpack.c.h.b16 %v4712
    %v5917 = vunpack.c.l.b16 %v4713
    %v5918 = vunpack.c.h.b16 %v4713
    %v5919 = vunpack.c.l.b16 %v4714
    %v5920 = vunpack.c.h.b16 %v4714
    %v5921 = vunpack.c.l.b16 %v4715
    %v5922 = vunpack.c.h.b16 %v4715
    %v5923 = vunpack.c.l.b16 %v4716
    %v5924 = vunpack.c.h.b16 %v4716
    %v5925 = vunpack.c.l.b16 %v4717
    %v5926 = vunpack.c.h.b16 %v4717
    %v5927 = vunpack.c.l.b16 %v4718
    %v5928 = vunpack.c.h.b16 %v4718
    %v5929 = vunpack.c.l.b16 %v4719
    %v5930 = vunpack.c.h.b16 %v4719
    %v5931 = vunpack.c.l.b16 %v4720
    %v5932 = vunpack.c.h.b16 %v4720
    %v5933 = vunpack.c.l.b16 %v4721
    %v5934 = vunpack.c.h.b16 %v4721
    %v5935 = vunpack.c.l.b16 %v4722
    %v5936 = vunpack.c.h.b16 %v4722
    %v5937 = vunpack.c.l.b16 %v4723
    %v5938 = vunpack.c.h.b16 %v4723
    %v5939 = vunpack.c.l.b16 %v4724
    %v5940 = vunpack.c.h.b16 %v4724
    %v5941 = vunpack.c.l.b16 %v4725
    %v5942 = vunpack.c.h.b16 %v4725
    %v5943 = vunpack.c.l.b16 %v4726
    %v5944 = vunpack.c.h.b16 %v4726
    %v5945 = vunpack.c.l.b16 %v4727
    %v5946 = vunpack.c.h.b16 %v4727
    %v5947 = vunpack.c.l.b16 %v4728
    %v5948 = vunpack.c.h.b16 %v4728
    %v5949 = vunpack.c.l.b16 %v4729
    %v5950 = vunpack.c.h.b16 %v4729
    %v5951 = vunpack.c.l.b16 %v4730
    %v5952 = vunpack.c.h.b16 %v4730
    %v5953 = vunpack.c.l.b16 %v4731
    %v5954 = vunpack.c.h.b16 %v4731
    %v5955 = vunpack.c.l.b16 %v4732
    %v5956 = vunpack.c.h.b16 %v4732
    %v5957 = vunpack.c.l.b16 %v4733
    %v5958 = vunpack.c.h.b16 %v4733
    %v5959 = vunpack.c.l.b16 %v4734
    %v5960 = vunpack.c.h.b16 %v4734
    %v5961 = vunpack.c.l.b16 %v4735
    %v5962 = vunpack.c.h.b16 %v4735
    %v5963 = vunpack.c.l.b16 %v4736
    %v5964 = vunpack.c.h.b16 %v4736
    %v5965 = vunpack.c.l.b16 %v4737
    %v5966 = vunpack.c.h.b16 %v4737
    %v5967 = vunpack.c.l.b16 %v4738
    %v5968 = vunpack.c.h.b16 %v4738
    %v5969 = vunpack.c.l.b16 %v4739
    %v5970 = vunpack.c.h.b16 %v4739
    %v5971 = vunpack.c.l.b16 %v4740
    %v5972 = vunpack.c.h.b16 %v4740
    %v5973 = vunpack.c.l.b16 %v4741
    %v5974 = vunpack.c.h.b16 %v4741
    %v5975 = vunpack.c.l.b16 %v4742
    %v5976 = vunpack.c.h.b16 %v4742
    %v5977 = vunpack.c.l.b16 %v4743
    %v5978 = vunpack.c.h.b16 %v4743
    %v5979 = vunpack.c.l.b16 %v4744
    %v5980 = vunpack.c.h.b16 %v4744
    %v5981 = vunpack.c.l.b16 %v4745
    %v5982 = vunpack.c.h.b16 %v4745
    %v5983 = vunpack.c.l.b16 %v4746
    %v5984 = vunpack.c.h.b16 %v4746
    %v5985 = vunpack.c.l.b16 %v4747
    %v5986 = vunpack.c.h.b16 %v4747
    %v5987 = vunpack.c.l.b16 %v4748
    %v5988 = vunpack.c.h.b16 %v4748
    %v5989 = vunpack.c.l.b16 %v4749
    %v5990 = vunpack.c.h.b16 %v4749
    %v5991 = vunpack.c.l.b16 %v4750
    %v5992 = vunpack.c.h.b16 %v4750
    %v5993 = vunpack.c.l.b16 %v4751
    %v5994 = vunpack.c.h.b16 %v4751
    %v5995 = vunpack.c.l.b16 %v4752
    %v5996 = vunpack.c.h.b16 %v4752
    %v5997 = vunpack.c.l.b16 %v4753
    %v5998 = vunpack.c.h.b16 %v4753
    %v5999 = vunpack.c.l.b16 %v4754
    %v6000 = vunpack.c.h.b16 %v4754
    %v6001 = vunpack.c.l.b16 %v4755
    %v6002 = vunpack.c.h.b16 %v4755
    %v6003 = vunpack.c.l.b16 %v4756
    %v6004 = vunpack.c.h.b16 %v4756
    %v6005 = vunpack.c.l.b16 %v4757
    %v6006 = vunpack.c.h.b16 %v4757
    %v6007 = vunpack.c.l.b16 %v4758
    %v6008 = vunpack.c.h.b16 %v4758
    %v6009 = vunpack.c.l.b16 %v4759
    %v6010 = vunpack.c.h.b16 %v4759
    %v6011 = vunpack.c.l.b16 %v4760
    %v6012 = vunpack.c.h.b16 %v4760
    %v6013 = vunpack.c.l.b16 %v4761
    %v6014 = vunpack.c.h.b16 %v4761
    %v6015 = vunpack.c.l.b16 %v4762
    %v6016 = vunpack.c.h.b16 %v4762
    %v6017 = vunpack.c.l.b16 %v4763
    %v6018 = vunpack.c.h.b16 %v4763
    %v6019 = vunpack.c.l.b16 %v4764
    %v6020 = vunpack.c.h.b16 %v4764
    %v6021 = vunpack.c.l.b16 %v4765
    %v6022 = vunpack.c.h.b16 %v4765
    %v6023 = vunpack.c.l.b16 %v4766
    %v6024 = vunpack.c.h.b16 %v4766
    %v6025 = vunpack.c.l.b16 %v4767
    %v6026 = vunpack.c.h.b16 %v4767
    %v6027 = vunpack.c.l.b16 %v4768
    %v6028 = vunpack.c.h.b16 %v4768
    %v6029 = vunpack.c.l.b16 %v4769
    %v6030 = vunpack.c.h.b16 %v4769
    %v6031 = vunpack.c.l.b16 %v4770
    %v6032 = vunpack.c.h.b16 %v4770
    %v6033 = vunpack.c.l.b16 %v4771
    %v6034 = vunpack.c.h.b16 %v4771
    %v6035 = vunpack.c.l.b16 %v4772
    %v6036 = vunpack.c.h.b16 %v4772
    %v6037 = vunpack.c.l.b16 %v4773
    %v6038 = vunpack.c.h.b16 %v4773
    %v6039 = vunpack.c.l.b16 %v4774
    %v6040 = vunpack.c.h.b16 %v4774
    %v6041 = vunpack.c.l.b16 %v4775
    %v6042 = vunpack.c.h.b16 %v4775
    %v6043 = vunpack.c.l.b16 %v4776
    %v6044 = vunpack.c.h.b16 %v4776
    %v6045 = vunpack.c.l.b16 %v4777
    %v6046 = vunpack.c.h.b16 %v4777
    %v6047 = vunpack.c.l.b16 %v4778
    %v6048 = vunpack.c.h.b16 %v4778
    %v6049 = vunpack.c.l.b16 %v4779
    %v6050 = vunpack.c.h.b16 %v4779
    %v6051 = vunpack.c.l.b16 %v4780
    %v6052 = vunpack.c.h.b16 %v4780
    %v6053 = vunpack.c.l.b16 %v4781
    %v6054 = vunpack.c.h.b16 %v4781
    %v6055 = vunpack.c.l.b16 %v4782
    %v6056 = vunpack.c.h.b16 %v4782
    %v6057 = vunpack.c.l.b16 %v4783
    %v6058 = vunpack.c.h.b16 %v4783
    %v6059 = vunpack.c.l.b16 %v4784
    %v6060 = vunpack.c.h.b16 %v4784
    %v6061 = vunpack.c.l.b16 %v4785
    %v6062 = vunpack.c.h.b16 %v4785
    %v6063 = vunpack.c.l.b16 %v4786
    %v6064 = vunpack.c.h.b16 %v4786
    %v6065 = vunpack.c.l.b16 %v4787
    %v6066 = vunpack.c.h.b16 %v4787
    %v6067 = vunpack.c.l.b16 %v4788
    %v6068 = vunpack.c.h.b16 %v4788
    %v6069 = vunpack.c.l.b16 %v4789
    %v6070 = vunpack.c.h.b16 %v4789
    %v6071 = vunpack.c.l.b16 %v4790
    %v6072 = vunpack.c.h.b16 %v4790
    %v6073 = vunpack.c.l.b16 %v4791
    %v6074 = vunpack.c.h.b16 %v4791
    %v6075 = vunpack.c.l.b16 %v4792
    %v6076 = vunpack.c.h.b16 %v4792
    %v6077 = vunpack.c.l.b16 %v4793
    %v6078 = vunpack.c.h.b16 %v4793
    %v6079 = vunpack.c.l.b16 %v4794
    %v6080 = vunpack.c.h.b16 %v4794
    %v6081 = vunpack.c.l.b16 %v4795
    %v6082 = vunpack.c.h.b16 %v4795
    %v6083 = vunpack.c.l.b16 %v4796
    %v6084 = vunpack.c.h.b16 %v4796
    %v6085 = vunpack.c.l.b16 %v4797
    %v6086 = vunpack.c.h.b16 %v4797
    %v6087 = vunpack.c.l.b16 %v4798
    %v6088 = vunpack.c.h.b16 %v4798
    %v6089 = vunpack.c.l.b16 %v4799
    %v6090 = vunpack.c.h.b16 %v4799
    %v6091 = vunpack.c.l.b16 %v4800
    %v6092 = vunpack.c.h.b16 %v4800
    %v6093 = vunpack.c.l.b16 %v4801
    %v6094 = vunpack.c.h.b16 %v4801
    %v6095 = vunpack.c.l.b16 %v4802
    %v6096 = vunpack.c.h.b16 %v4802
    %v6097 = vunpack.c.l.b16 %v4803
    %v6098 = vunpack.c.h.b16 %v4803
    %v6099 = vunpack.c.l.b16 %v4804
    %v6100 = vunpack.c.h.b16 %v4804
    %v6101 = vunpack.c.l.b16 %v4805
    %v6102 = vunpack.c.h.b16 %v4805
    %v6103 = vunpack.c.l.b16 %v4806
    %v6104 = vunpack.c.h.b16 %v4806
    %v6105 = vunpack.c.l.b16 %v4807
    %v6106 = vunpack.c.h.b16 %v4807
    %v6107 = vunpack.c.l.b16 %v4808
    %v6108 = vunpack.c.h.b16 %v4808
    %v6109 = vunpack.c.l.b16 %v4809
    %v6110 = vunpack.c.h.b16 %v4809
    %v6111 = vunpack.c.l.b16 %v4810
    %v6112 = vunpack.c.h.b16 %v4810
    %v6113 = vunpack.c.l.b16 %v4811
    %v6114 = vunpack.c.h.b16 %v4811
    %v6115 = vunpack.c.l.b16 %v4812
    %v6116 = vunpack.c.h.b16 %v4812
    %v6117 = vunpack.c.l.b16 %v4813
    %v6118 = vunpack.c.h.b16 %v4813
    %v6119 = vunpack.c.l.b16 %v4814
    %v6120 = vunpack.c.h.b16 %v4814
    %v6121 = vunpack.c.l.b16 %v4815
    %v6122 = vunpack.c.h.b16 %v4815
    %v6123 = vunpack.c.l.b16 %v4816
    %v6124 = vunpack.c.h.b16 %v4816
    %v6125 = vunpack.c.l.b16 %v4817
    %v6126 = vunpack.c.h.b16 %v4817
    %v6127 = vunpack.c.l.b16 %v4818
    %v6128 = vunpack.c.h.b16 %v4818
    %v6129 = vunpack.c.l.b16 %v4819
    %v6130 = vunpack.c.h.b16 %v4819
    %v6131 = vunpack.c.l.b16 %v4820
    %v6132 = vunpack.c.h.b16 %v4820
    %v6133 = vunpack.c.l.b16 %v4821
    %v6134 = vunpack.c.h.b16 %v4821
    %v6135 = vunpack.c.l.b16 %v4822
    %v6136 = vunpack.c.h.b16 %v4822
    %v6137 = vunpack.c.l.b16 %v4823
    %v6138 = vunpack.c.h.b16 %v4823
    %v6139 = vunpack.c.l.b16 %v4824
    %v6140 = vunpack.c.h.b16 %v4824
    %v6141 = vunpack.c.l.b16 %v4825
    %v6142 = vunpack.c.h.b16 %v4825
    %v6143 = vunpack.c.l.b16 %v4826
    %v6144 = vunpack.c.h.b16 %v4826
    %v6145 = vunpack.c.l.b16 %v4827
    %v6146 = vunpack.c.h.b16 %v4827
    %v6147 = vunpack.c.l.b16 %v4828
    %v6148 = vunpack.c.h.b16 %v4828
    %v6149 = vunpack.c.l.b16 %v4829
    %v6150 = vunpack.c.h.b16 %v4829
    %v6151 = vunpack.c.l.b16 %v4830
    %v6152 = vunpack.c.h.b16 %v4830
    %v6153 = vunpack.c.l.b16 %v4831
    %v6154 = vunpack.c.h.b16 %v4831
    %v6155 = vunpack.c.l.b16 %v4832
    %v6156 = vunpack.c.h.b16 %v4832
    %v6157 = vunpack.c.l.b16 %v4833
    %v6158 = vunpack.c.h.b16 %v4833
    %v6159 = vunpack.c.l.b16 %v4834
    %v6160 = vunpack.c.h.b16 %v4834
    %v6161 = vunpack.c.l.b16 %v4835
    %v6162 = vunpack.c.h.b16 %v4835
    %v6163 = vunpack.c.l.b16 %v4836
    %v6164 = vunpack.c.h.b16 %v4836
    %v6165 = vunpack.c.l.b16 %v4837
    %v6166 = vunpack.c.h.b16 %v4837
    %v6167 = vunpack.c.l.b16 %v4838
    %v6168 = vunpack.c.h.b16 %v4838
    %v6169 = vunpack.c.l.b16 %v4839
    %v6170 = vunpack.c.h.b16 %v4839
    %v6171 = vunpack.c.l.b16 %v4840
    %v6172 = vunpack.c.h.b16 %v4840
    %v6173 = vunpack.c.l.b16 %v4841
    %v6174 = vunpack.c.h.b16 %v4841
    %v6175 = vunpack.c.l.b16 %v4842
    %v6176 = vunpack.c.h.b16 %v4842
    %v6177 = vunpack.c.l.b16 %v4843
    %v6178 = vunpack.c.h.b16 %v4843
    %v6179 = vunpack.c.l.b16 %v4844
    %v6180 = vunpack.c.h.b16 %v4844
    %v6181 = vunpack.c.l.b16 %v4845
    %v6182 = vunpack.c.h.b16 %v4845
    %v6183 = vunpack.c.l.b16 %v4846
    %v6184 = vunpack.c.h.b16 %v4846
    %v6185 = vunpack.c.l.b16 %v4847
    %v6186 = vunpack.c.h.b16 %v4847
    %v6187 = vunpack.c.l.b16 %v4848
    %v6188 = vunpack.c.h.b16 %v4848
    %v6189 = vunpack.c.l.b16 %v4849
    %v6190 = vunpack.c.h.b16 %v4849
    %v6191 = vunpack.c.l.b16 %v4850
    %v6192 = vunpack.c.h.b16 %v4850
    %v6193 = vunpack.c.l.b16 %v4851
    %v6194 = vunpack.c.h.b16 %v4851
    %v6195 = vunpack.c.l.b16 %v4852
    %v6196 = vunpack.c.h.b16 %v4852
    %v6197 = vunpack.c.l.b16 %v4853
    %v6198 = vunpack.c.h.b16 %v4853
    %v6199 = vunpack.c.l.b16 %v4854
    %v6200 = vunpack.c.h.b16 %v4854
    %v6201 = vunpack.c.l.b16 %v4855
    %v6202 = vunpack.c.h.b16 %v4855
    %v6203 = vunpack.c.l.b16 %v4856
    %v6204 = vunpack.c.h.b16 %v4856
    %v6205 = vunpack.c.l.b16 %v4857
    %v6206 = vunpack.c.h.b16 %v4857
    %v6207 = vunpack.c.l.b16 %v4858
    %v6208 = vunpack.c.h.b16 %v4858
    %v6209 = vunpack.c.l.b16 %v4859
    %v6210 = vunpack.c.h.b16 %v4859
    %v6211 = vunpack.c.l.b16 %v4860
    %v6212 = vunpack.c.h.b16 %v4860
    %v6213 = vunpack.c.l.b16 %v4861
    %v6214 = vunpack.c.h.b16 %v4861
    %v6215 = vunpack.c.l.b16 %v4862
    %v6216 = vunpack.c.h.b16 %v4862
    %v6217 = vunpack.c.l.b16 %v4863
    %v6218 = vunpack.c.h.b16 %v4863
    %v6219 = vunpack.c.l.b16 %v4864
    %v6220 = vunpack.c.h.b16 %v4864
    %v6221 = vunpack.c.l.b16 %v4865
    %v6222 = vunpack.c.h.b16 %v4865
    %v6223 = vunpack.c.l.b16 %v4866
    %v6224 = vunpack.c.h.b16 %v4866
    %v6225 = vunpack.c.l.b16 %v4867
    %v6226 = vunpack.c.h.b16 %v4867
    %v6227 = vunpack.c.l.b16 %v4868
    %v6228 = vunpack.c.h.b16 %v4868
    %v6229 = vunpack.c.l.b16 %v4869
    %v6230 = vunpack.c.h.b16 %v4869
    %v6231 = vunpack.c.l.b16 %v4870
    %v6232 = vunpack.c.h.b16 %v4870
    %v6233 = vunpack.c.l.b16 %v4871
    %v6234 = vunpack.c.h.b16 %v4871
    %v6235 = vunpack.c.l.b16 %v4872
    %v6236 = vunpack.c.h.b16 %v4872
    %v6237 = vunpack.c.l.b16 %v4873
    %v6238 = vunpack.c.h.b16 %v4873
    %v6239 = vunpack.c.l.b16 %v4874
    %v6240 = vunpack.c.h.b16 %v4874
    %v6241 = vunpack.c.l.b16 %v4875
    %v6242 = vunpack.c.h.b16 %v4875
    %v6243 = vunpack.c.l.b16 %v4876
    %v6244 = vunpack.c.h.b16 %v4876
    %v6245 = vunpack.c.l.b16 %v4877
    %v6246 = vunpack.c.h.b16 %v4877
    %v6247 = vunpack.c.l.b16 %v4878
    %v6248 = vunpack.c.h.b16 %v4878
    %v6249 = vunpack.c.l.b16 %v4879
    %v6250 = vunpack.c.h.b16 %v4879
    %v6251 = vunpack.c.l.b16 %v4880
    %v6252 = vunpack.c.h.b16 %v4880
    %v6253 = vunpack.c.l.b16 %v4881
    %v6254 = vunpack.c.h.b16 %v4881
    %v6255 = vunpack.c.l.b16 %v4882
    %v6256 = vunpack.c.h.b16 %v4882
    %v6257 = vunpack.c.l.b16 %v4883
    %v6258 = vunpack.c.h.b16 %v4883
    %v6259 = vunpack.c.l.b16 %v4884
    %v6260 = vunpack.c.h.b16 %v4884
    %v6261 = vunpack.c.l.b16 %v4885
    %v6262 = vunpack.c.h.b16 %v4885
    %v6263 = vunpack.c.l.b16 %v4886
    %v6264 = vunpack.c.h.b16 %v4886
    %v6265 = vunpack.c.l.b16 %v4887
    %v6266 = vunpack.c.h.b16 %v4887
    %v6267 = vunpack.c.l.b16 %v4888
    %v6268 = vunpack.c.h.b16 %v4888
    %v6269 = vunpack.c.l.b16 %v4889
    %v6270 = vunpack.c.h.b16 %v4889
    %v6271 = vunpack.c.l.b16 %v4890
    %v6272 = vunpack.c.h.b16 %v4890
    %v6273 = vunpack.c.l.b16 %v4891
    %v6274 = vunpack.c.h.b16 %v4891
    %v6275 = vunpack.c.l.b16 %v4892
    %v6276 = vunpack.c.h.b16 %v4892
    %v6277 = vunpack.c.l.b16 %v4893
    %v6278 = vunpack.c.h.b16 %v4893
    %v6279 = vunpack.c.l.b16 %v4894
    %v6280 = vunpack.c.h.b16 %v4894
    %v6281 = vunpack.c.l.b16 %v4895
    %v6282 = vunpack.c.h.b16 %v4895
    %v6283 = vunpack.c.l.b16 %v4896
    %v6284 = vunpack.c.h.b16 %v4896
    %v6285 = vunpack.c.l.b16 %v4897
    %v6286 = vunpack.c.h.b16 %v4897
    %v6287 = vunpack.c.l.b16 %v4898
    %v6288 = vunpack.c.h.b16 %v4898
    %v6289 = vunpack.c.l.b16 %v4899
    %v6290 = vunpack.c.h.b16 %v4899
    %v6291 = vunpack.c.l.b16 %v4900
    %v6292 = vunpack.c.h.b16 %v4900
    %v6293 = vunpack.c.l.b16 %v4901
    %v6294 = vunpack.c.h.b16 %v4901
    %v6295 = vunpack.c.l.b16 %v4902
    %v6296 = vunpack.c.h.b16 %v4902
    %v6297 = vunpack.c.l.b16 %v4903
    %v6298 = vunpack.c.h.b16 %v4903
    %v6299 = vunpack.c.l.b16 %v4904
    %v6300 = vunpack.c.h.b16 %v4904
    %v6301 = vunpack.c.l.b16 %v4905
    %v6302 = vunpack.c.h.b16 %v4905
    %v6303 = vunpack.c.l.b16 %v4906
    %v6304 = vunpack.c.h.b16 %v4906
    %v6305 = vunpack.c.l.b16 %v4907
    %v6306 = vunpack.c.h.b16 %v4907
    %v6307 = vunpack.c.l.b16 %v4908
    %v6308 = vunpack.c.h.b16 %v4908
    %v6309 = vunpack.c.l.b16 %v4909
    %v6310 = vunpack.c.h.b16 %v4909
    %v6311 = vunpack.c.l.b16 %v4910
    %v6312 = vunpack.c.h.b16 %v4910
    %v6313 = vunpack.c.l.b16 %v4911
    %v6314 = vunpack.c.h.b16 %v4911
    %v6315 = vunpack.c.l.b16 %v4912
    %v6316 = vunpack.c.h.b16 %v4912
    %v6317 = vunpack.c.l.b16 %v4913
    %v6318 = vunpack.c.h.b16 %v4913
    %v6319 = vunpack.c.l.b16 %v4914
    %v6320 = vunpack.c.h.b16 %v4914
    %v6321 = vunpack.c.l.b16 %v4915
    %v6322 = vunpack.c.h.b16 %v4915
    %v6323 = vunpack.c.l.b16 %v4916
    %v6324 = vunpack.c.h.b16 %v4916
    %v6325 = vunpack.c.l.b16 %v4917
    %v6326 = vunpack.c.h.b16 %v4917
    %v6327 = vunpack.c.l.b16 %v4918
    %v6328 = vunpack.c.h.b16 %v4918
    %v6329 = vunpack.c.l.b16 %v4919
    %v6330 = vunpack.c.h.b16 %v4919
    %v6331 = vunpack.c.l.b16 %v4920
    %v6332 = vunpack.c.h.b16 %v4920
    %v6333 = vunpack.c.l.b16 %v4921
    %v6334 = vunpack.c.h.b16 %v4921
    %v6335 = vunpack.c.l.b16 %v4922
    %v6336 = vunpack.c.h.b16 %v4922
    %v6337 = vunpack.c.l.b16 %v4923
    %v6338 = vunpack.c.h.b16 %v4923
    %v6339 = vunpack.c.l.b16 %v4924
    %v6340 = vunpack.c.h.b16 %v4924
    %v6341 = vunpack.c.l.b16 %v4925
    %v6342 = vunpack.c.h.b16 %v4925
    %v6343 = vunpack.c.l.b16 %v4926
    %v6344 = vunpack.c.h.b16 %v4926
    %v6345 = vunpack.c.l.b16 %v4927
    %v6346 = vunpack.c.h.b16 %v4927
    %v6347 = vunpack.c.l.b16 %v4928
    %v6348 = vunpack.c.h.b16 %v4928
    %v6349 = vunpack.c.l.b16 %v4929
    %v6350 = vunpack.c.h.b16 %v4929
    %v6351 = vunpack.c.l.b16 %v4930
    %v6352 = vunpack.c.h.b16 %v4930
    %v6353 = vunpack.c.l.b16 %v4931
    %v6354 = vunpack.c.h.b16 %v4931
    %v6355 = vunpack.c.l.b16 %v4932
    %v6356 = vunpack.c.h.b16 %v4932
    %v6357 = vunpack.c.l.b16 %v4933
    %v6358 = vunpack.c.h.b16 %v4933
    %v6359 = vunpack.c.l.b16 %v4934
    %v6360 = vunpack.c.h.b16 %v4934
    %v6361 = vunpack.c.l.b16 %v4935
    %v6362 = vunpack.c.h.b16 %v4935
    %v6363 = vunpack.c.l.b16 %v4936
    %v6364 = vunpack.c.h.b16 %v4936
    %v6365 = vunpack.c.l.b16 %v4937
    %v6366 = vunpack.c.h.b16 %v4937
    %v6367 = vunpack.c.l.b16 %v4938
    %v6368 = vunpack.c.h.b16 %v4938
    %v6369 = vunpack.c.l.b16 %v4939
    %v6370 = vunpack.c.h.b16 %v4939
    %v6371 = vunpack.c.l.b16 %v4940
    %v6372 = vunpack.c.h.b16 %v4940
    %v6373 = vunpack.c.l.b16 %v4941
    %v6374 = vunpack.c.h.b16 %v4941
    %v6375 = vunpack.c.l.b16 %v4942
    %v6376 = vunpack.c.h.b16 %v4942
    %v6377 = vunpack.c.l.b16 %v4943
    %v6378 = vunpack.c.h.b16 %v4943
    %v6379 = vunpack.c.l.b16 %v4944
    %v6380 = vunpack.c.h.b16 %v4944
    %v6381 = vunpack.c.l.b16 %v4945
    %v6382 = vunpack.c.h.b16 %v4945
    %v6383 = vunpack.c.l.b16 %v4946
    %v6384 = vunpack.c.h.b16 %v4946
    %v6385 = vunpack.c.l.b16 %v4947
    %v6386 = vunpack.c.h.b16 %v4947
    %v6387 = vunpack.c.l.b16 %v4948
    %v6388 = vunpack.c.h.b16 %v4948
    %v6389 = vunpack.c.l.b16 %v4949
    %v6390 = vunpack.c.h.b16 %v4949
    %v6391 = vunpack.c.l.b16 %v4950
    %v6392 = vunpack.c.h.b16 %v4950
    %v6393 = vunpack.c.l.b16 %v4951
    %v6394 = vunpack.c.h.b16 %v4951
    %v6395 = vunpack.c.l.b16 %v4952
    %v6396 = vunpack.c.h.b16 %v4952
    %v6397 = vunpack.c.l.b16 %v4953
    %v6398 = vunpack.c.h.b16 %v4953
    %v6399 = vunpack.c.l.b16 %v4954
    %v6400 = vunpack.c.h.b16 %v4954
    %v6401 = vunpack.c.l.b16 %v4955
    %v6402 = vunpack.c.h.b16 %v4955
    %v6403 = vunpack.c.l.b16 %v4956
    %v6404 = vunpack.c.h.b16 %v4956
    %v6405 = vunpack.c.l.b16 %v4957
    %v6406 = vunpack.c.h.b16 %v4957
    %v6407 = vunpack.c.l.b16 %v4958
    %v6408 = vunpack.c.h.b16 %v4958
    %v6409 = vunpack.c.l.b16 %v4959
    %v6410 = vunpack.c.h.b16 %v4959
    %v6411 = vunpack.c.l.b16 %v4960
    %v6412 = vunpack.c.h.b16 %v4960
    %v6413 = vunpack.c.l.b16 %v4961
    %v6414 = vunpack.c.h.b16 %v4961
    %v6415 = vunpack.c.l.b16 %v4962
    %v6416 = vunpack.c.h.b16 %v4962
    %v6417 = vunpack.c.l.b16 %v4963
    %v6418 = vunpack.c.h.b16 %v4963
    %v6419 = vunpack.c.l.b16 %v4964
    %v6420 = vunpack.c.h.b16 %v4964
    %v6421 = vunpack.c.l.b16 %v4965
    %v6422 = vunpack.c.h.b16 %v4965
    %v6423 = vunpack.c.l.b16 %v4966
    %v6424 = vunpack.c.h.b16 %v4966
    %v6425 = vunpack.c.l.b16 %v4967
    %v6426 = vunpack.c.h.b16 %v4967
    %v6427 = vunpack.c.l.b16 %v4968
    %v6428 = vunpack.c.h.b16 %v4968
    %v6429 = vunpack.c.l.b16 %v4969
    %v6430 = vunpack.c.h.b16 %v4969
    %v6431 = vunpack.c.l.b16 %v4970
    %v6432 = vunpack.c.h.b16 %v4970
    %v6433 = vunpack.c.l.b16 %v4971
    %v6434 = vunpack.c.h.b16 %v4971
    %v6435 = vunpack.c.l.b16 %v4972
    %v6436 = vunpack.c.h.b16 %v4972
    %v6437 = vunpack.c.l.b16 %v4973
    %v6438 = vunpack.c.h.b16 %v4973
    %v6439 = vunpack.c.l.b16 %v4974
    %v6440 = vunpack.c.h.b16 %v4974
    %v6441 = vunpack.c.l.b16 %v4975
    %v6442 = vunpack.c.h.b16 %v4975
    %v6443 = vunpack.c.l.b16 %v4976
    %v6444 = vunpack.c.h.b16 %v4976
    %v6445 = vunpack.c.l.b16 %v4977
    %v6446 = vunpack.c.h.b16 %v4977
    %v6447 = vunpack.c.l.b16 %v4978
    %v6448 = vunpack.c.h.b16 %v4978
    %v6449 = vunpack.c.l.b16 %v4979
    %v6450 = vunpack.c.h.b16 %v4979
    %v6451 = vunpack.c.l.b16 %v4980
    %v6452 = vunpack.c.h.b16 %v4980
    %v6453 = vunpack.c.l.b16 %v4981
    %v6454 = vunpack.c.h.b16 %v4981
    %v6455 = vunpack.c.l.b16 %v4982
    %v6456 = vunpack.c.h.b16 %v4982
    %v6457 = vunpack.c.l.b16 %v4983
    %v6458 = vunpack.c.h.b16 %v4983
    %v6459 = vunpack.c.l.b16 %v4984
    %v6460 = vunpack.c.h.b16 %v4984
    %v6461 = vunpack.c.l.b16 %v4985
    %v6462 = vunpack.c.h.b16 %v4985
    %v6463 = vunpack.c.l.b16 %v4986
    %v6464 = vunpack.c.h.b16 %v4986
    %v6465 = vunpack.c.l.b16 %v4987
    %v6466 = vunpack.c.h.b16 %v4987
    %v6467 = vunpack.c.l.b16 %v4988
    %v6468 = vunpack.c.h.b16 %v4988
    %v6469 = vunpack.c.l.b16 %v4989
    %v6470 = vunpack.c.h.b16 %v4989
    %v6471 = vunpack.c.l.b16 %v4990
    %v6472 = vunpack.c.h.b16 %v4990
    %v6473 = vunpack.c.l.b16 %v4991
    %v6474 = vunpack.c.h.b16 %v4991
    %v6475 = vunpack.c.l.b16 %v4992
    %v6476 = vunpack.c.h.b16 %v4992
    %v6477 = vunpack.c.l.b16 %v4993
    %v6478 = vunpack.c.h.b16 %v4993
    %v6479 = vunpack.c.l.b16 %v4994
    %v6480 = vunpack.c.h.b16 %v4994
    %v6481 = vunpack.c.l.b16 %v4995
    %v6482 = vunpack.c.h.b16 %v4995
    %v6483 = vunpack.c.l.b16 %v4996
    %v6484 = vunpack.c.h.b16 %v4996
    %v6485 = vunpack.c.l.b16 %v4997
    %v6486 = vunpack.c.h.b16 %v4997
    %v6487 = vunpack.c.l.b16 %v4998
    %v6488 = vunpack.c.h.b16 %v4998
    %v6489 = vunpack.c.l.b16 %v4999
    %v6490 = vunpack.c.h.b16 %v4999
    %v6491 = vunpack.c.l.b16 %v5000
    %v6492 = vunpack.c.h.b16 %v5000
    %v6493 = vunpack.c.l.b16 %v5001
    %v6494 = vunpack.c.h.b16 %v5001
    %v6495 = vunpack.c.l.b16 %v5002
    %v6496 = vunpack.c.h.b16 %v5002
    %v6497 = vunpack.c.l.b16 %v5003
    %v6498 = vunpack.c.h.b16 %v5003
    %v6499 = vunpack.c.l.b16 %v5004
    %v6500 = vunpack.c.h.b16 %v5004
    %v6501 = vunpack.c.l.b16 %v5005
    %v6502 = vunpack.c.h.b16 %v5005
    %v6503 = vunpack.c.l.b16 %v5006
    %v6504 = vunpack.c.h.b16 %v5006
    %v6505 = vunpack.c.l.b16 %v5007
    %v6506 = vunpack.c.h.b16 %v5007
    %v6507 = vunpack.c.l.b16 %v5008
    %v6508 = vunpack.c.h.b16 %v5008
    %v6509 = vunpack.c.l.b16 %v5009
    %v6510 = vunpack.c.h.b16 %v5009
    %v6511 = vunpack.c.l.b16 %v5010
    %v6512 = vunpack.c.h.b16 %v5010
    %v6513 = vunpack.c.l.b16 %v5011
    %v6514 = vunpack.c.h.b16 %v5011
    %v6515 = vunpack.c.l.b16 %v5012
    %v6516 = vunpack.c.h.b16 %v5012
    %v6517 = vunpack.c.l.b16 %v5013
    %v6518 = vunpack.c.h.b16 %v5013
    %v6519 = vunpack.c.l.b16 %v5014
    %v6520 = vunpack.c.h.b16 %v5014
    %v6521 = vunpack.c.l.b16 %v5015
    %v6522 = vunpack.c.h.b16 %v5015
    %v6523 = vunpack.c.l.b16 %v5016
    %v6524 = vunpack.c.h.b16 %v5016
    %v6525 = vunpack.c.l.b16 %v5017
    %v6526 = vunpack.c.h.b16 %v5017
    %v6527 = vunpack.c.l.b16 %v5018
    %v6528 = vunpack.c.h.b16 %v5018
    %v6529 = vunpack.c.l.b16 %v5019
    %v6530 = vunpack.c.h.b16 %v5019
    %v6531 = vunpack.c.l.b16 %v5020
    %v6532 = vunpack.c.h.b16 %v5020
    %v6533 = vunpack.c.l.b16 %v5021
    %v6534 = vunpack.c.h.b16 %v5021
    %v6535 = vunpack.c.l.b16 %v5022
    %v6536 = vunpack.c.h.b16 %v5022
    %v6537 = vunpack.c.l.b16 %v5023
    %v6538 = vunpack.c.h.b16 %v5023
    %v6539 = vunpack.c.l.b16 %v5024
    %v6540 = vunpack.c.h.b16 %v5024
    %v6541 = vunpack.c.l.b16 %v5025
    %v6542 = vunpack.c.h.b16 %v5025
    %v6543 = vunpack.c.l.b16 %v5026
    %v6544 = vunpack.c.h.b16 %v5026
    %v6545 = vunpack.c.l.b16 %v5027
    %v6546 = vunpack.c.h.b16 %v5027
    %v6547 = vunpack.c.l.b16 %v5028
    %v6548 = vunpack.c.h.b16 %v5028
    %v6549 = vunpack.c.l.b16 %v5029
    %v6550 = vunpack.c.h.b16 %v5029
    %v6551 = vunpack.c.l.b16 %v5030
    %v6552 = vunpack.c.h.b16 %v5030
    %v6553 = vunpack.c.l.b16 %v5031
    %v6554 = vunpack.c.h.b16 %v5031
    %v6555 = vunpack.c.l.b16 %v5032
    %v6556 = vunpack.c.h.b16 %v5032
    %v6557 = vunpack.c.l.b16 %v5033
    %v6558 = vunpack.c.h.b16 %v5033
    %v6559 = vunpack.c.l.b16 %v5034
    %v6560 = vunpack.c.h.b16 %v5034
    %v6561 = vunpack.c.l.b16 %v5035
    %v6562 = vunpack.c.h.b16 %v5035
    %v6563 = vunpack.c.l.b16 %v5036
    %v6564 = vunpack.c.h.b16 %v5036
    %v6565 = vunpack.c.l.b16 %v5037
    %v6566 = vunpack.c.h.b16 %v5037
    %v6567 = vunpack.c.l.b16 %v5038
    %v6568 = vunpack.c.h.b16 %v5038
    %v6569 = vunpack.c.l.b16 %v5039
    %v6570 = vunpack.c.h.b16 %v5039
    %v6571 = vunpack.c.l.b16 %v5040
    %v6572 = vunpack.c.h.b16 %v5040
    %v6573 = vunpack.c.l.b16 %v5041
    %v6574 = vunpack.c.h.b16 %v5041
    %v6575 = vunpack.c.l.b16 %v5042
    %v6576 = vunpack.c.h.b16 %v5042
    %v6577 = vunpack.c.l.b16 %v5043
    %v6578 = vunpack.c.h.b16 %v5043
    %v6579 = vunpack.c.l.b16 %v5044
    %v6580 = vunpack.c.h.b16 %v5044
    %v6581 = vunpack.c.l.b16 %v5045
    %v6582 = vunpack.c.h.b16 %v5045
    %v6583 = vunpack.c.l.b16 %v5046
    %v6584 = vunpack.c.h.b16 %v5046
    %v6585 = vunpack.c.l.b16 %v5047
    %v6586 = vunpack.c.h.b16 %v5047
    %v6587 = vunpack.c.l.b16 %v5048
    %v6588 = vunpack.c.h.b16 %v5048
    %v6589 = vunpack.c.l.b16 %v5049
    %v6590 = vunpack.c.h.b16 %v5049
    %v6591 = vunpack.c.l.b16 %v5050
    %v6592 = vunpack.c.h.b16 %v5050
    %v6593 = vunpack.c.l.b16 %v5051
    %v6594 = vunpack.c.h.b16 %v5051
    %v6595 = vunpack.c.l.b16 %v5052
    %v6596 = vunpack.c.h.b16 %v5052
    %v6597 = vunpack.c.l.b16 %v5053
    %v6598 = vunpack.c.h.b16 %v5053
    %v6599 = vunpack.c.l.b16 %v5054
    %v6600 = vunpack.c.h.b16 %v5054
    %v6601 = vunpack.c.l.b16 %v5055
    %v6602 = vunpack.c.h.b16 %v5055
    %v6603 = vunpack.c.l.b16 %v5056
    %v6604 = vunpack.c.h.b16 %v5056
    %v6605 = vunpack.c.l.b16 %v5057
    %v6606 = vunpack.c.h.b16 %v5057
    %v6607 = vunpack.c.l.b16 %v5058
    %v6608 = vunpack.c.h.b16 %v5058
    %v6609 = vunpack.c.l.b16 %v5059
    %v6610 = vunpack.c.h.b16 %v5059
    %v6611 = vunpack.c.l.b16 %v5060
    %v6612 = vunpack.c.h.b16 %v5060
    %v6613 = vunpack.c.l.b16 %v5061
    %v6614 = vunpack.c.h.b16 %v5061
    %v6615 = vunpack.c.l.b16 %v5062
    %v6616 = vunpack.c.h.b16 %v5062
    %v6617 = vunpack.c.l.b16 %v5063
    %v6618 = vunpack.c.h.b16 %v5063
    %v6619 = vunpack.c.l.b16 %v5064
    %v6620 = vunpack.c.h.b16 %v5064
    %v6621 = vunpack.c.l.b16 %v5065
    %v6622 = vunpack.c.h.b16 %v5065
    %v6623 = vunpack.c.l.b16 %v5066
    %v6624 = vunpack.c.h.b16 %v5066
    %v6625 = vunpack.c.l.b16 %v5067
    %v6626 = vunpack.c.h.b16 %v5067
    %v6627 = vunpack.c.l.b16 %v5068
    %v6628 = vunpack.c.h.b16 %v5068
    %v6629 = vunpack.c.l.b16 %v5069
    %v6630 = vunpack.c.h.b16 %v5069
    %v6631 = vunpack.c.l.b16 %v5070
    %v6632 = vunpack.c.h.b16 %v5070
    %v6633 = vunpack.c.l.b16 %v5071
    %v6634 = vunpack.c.h.b16 %v5071
    %v6635 = vunpack.c.l.b16 %v5072
    %v6636 = vunpack.c.h.b16 %v5072
    %v6637 = vunpack.c.l.b16 %v5073
    %v6638 = vunpack.c.h.b16 %v5073
    %v6639 = vunpack.c.l.b16 %v5074
    %v6640 = vunpack.c.h.b16 %v5074
    %v6641 = vunpack.c.l.b16 %v5075
    %v6642 = vunpack.c.h.b16 %v5075
    %v6643 = vunpack.c.l.b16 %v5076
    %v6644 = vunpack.c.h.b16 %v5076
    %v6645 = vunpack.c.l.b16 %v5077
    %v6646 = vunpack.c.h.b16 %v5077
    %v6647 = vunpack.c.l.b16 %v5078
    %v6648 = vunpack.c.h.b16 %v5078
    %v6649 = vunpack.c.l.b16 %v5079
    %v6650 = vunpack.c.h.b16 %v5079
    %v6651 = vunpack.c.l.b16 %v5080
    %v6652 = vunpack.c.h.b16 %v5080
    %v6653 = vunpack.c.l.b16 %v5081
    %v6654 = vunpack.c.h.b16 %v5081
    %v6655 = vunpack.c.l.b16 %v5082
    %v6656 = vunpack.c.h.b16 %v5082
    %v6657 = vunpack.c.l.b16 %v5083
    %v6658 = vunpack.c.h.b16 %v5083
    %v6659 = vunpack.c.l.b16 %v5084
    %v6660 = vunpack.c.h.b16 %v5084
    %v6661 = vunpack.c.l.b16 %v5085
    %v6662 = vunpack.c.h.b16 %v5085
    %v6663 = vunpack.c.l.b16 %v5086
    %v6664 = vunpack.c.h.b16 %v5086
    %v6665 = vpack.c.b16 %v5649, %v5641
    %v6666 = vpack.c.b16 %v5650, %v5642
    %v6667 = vpack.c.b16 %v5651, %v5643
    %v6668 = vpack.c.b16 %v5652, %v5644
    %v6669 = vpack.c.b16 %v5653, %v5645
    %v6670 = vpack.c.b16 %v5654, %v5646
    %v6671 = vpack.c.b16 %v5655, %v5647
    %v6672 = vpack.c.b16 %v5656, %v5648
    %v6673 = vpack.c.b16 %v5665, %v5657
    %v6674 = vpack.c.b16 %v5666, %v5658
    %v6675 = vpack.c.b16 %v5667, %v5659
    %v6676 = vpack.c.b16 %v5668, %v5660
    %v6677 = vpack.c.b16 %v5669, %v5661
    %v6678 = vpack.c.b16 %v5670, %v5662
    %v6679 = vpack.c.b16 %v5671, %v5663
    %v6680 = vpack.c.b16 %v5672, %v5664
    %v6681 = vpack.c.b16 %v5681, %v5673
    %v6682 = vpack.c.b16 %v5682, %v5674
    %v6683 = vpack.c.b16 %v5683, %v5675
    %v6684 = vpack.c.b16 %v5684, %v5676
    %v6685 = vpack.c.b16 %v5685, %v5677
    %v6686 = vpack.c.b16 %v5686, %v5678
    %v6687 = vpack.c.b16 %v5687, %v5679
    %v6688 = vpack.c.b16 %v5688, %v5680
    %v6689 = vpack.c.b16 %v5697, %v5689
    %v6690 = vpack.c.b16 %v5698, %v5690
    %v6691 = vpack.c.b16 %v5699, %v5691
    %v6692 = vpack.c.b16 %v5700, %v5692
    %v6693 = vpack.c.b16 %v5701, %v5693
    %v6694 = vpack.c.b16 %v5702, %v5694
    %v6695 = vpack.c.b16 %v5703, %v5695
    %v6696 = vpack.c.b16 %v5704, %v5696
    %v6697 = vpack.c.b16 %v5713, %v5705
    %v6698 = vpack.c.b16 %v5714, %v5706
    %v6699 = vpack.c.b16 %v5715, %v5707
    %v6700 = vpack.c.b16 %v5716, %v5708
    %v6701 = vpack.c.b16 %v5717, %v5709
    %v6702 = vpack.c.b16 %v5718, %v5710
    %v6703 = vpack.c.b16 %v5719, %v5711
    %v6704 = vpack.c.b16 %v5720, %v5712
    %v6705 = vpack.c.b16 %v5729, %v5721
    %v6706 = vpack.c.b16 %v5730, %v5722
    %v6707 = vpack.c.b16 %v5731, %v5723
    %v6708 = vpack.c.b16 %v5732, %v5724
    %v6709 = vpack.c.b16 %v5733, %v5725
    %v6710 = vpack.c.b16 %v5734, %v5726
    %v6711 = vpack.c.b16 %v5735, %v5727
    %v6712 = vpack.c.b16 %v5736, %v5728
    %v6713 = vpack.c.b16 %v5745, %v5737
    %v6714 = vpack.c.b16 %v5746, %v5738
    %v6715 = vpack.c.b16 %v5747, %v5739
    %v6716 = vpack.c.b16 %v5748, %v5740
    %v6717 = vpack.c.b16 %v5749, %v5741
    %v6718 = vpack.c.b16 %v5750, %v5742
    %v6719 = vpack.c.b16 %v5751, %v5743
    %v6720 = vpack.c.b16 %v5752, %v5744
    %v6721 = vpack.c.b16 %v5761, %v5753
    %v6722 = vpack.c.b16 %v5762, %v5754
    %v6723 = vpack.c.b16 %v5763, %v5755
    %v6724 = vpack.c.b16 %v5764, %v5756
    %v6725 = vpack.c.b16 %v5765, %v5757
    %v6726 = vpack.c.b16 %v5766, %v5758
    %v6727 = vpack.c.b16 %v5767, %v5759
    %v6728 = vpack.c.b16 %v5768, %v5760
    %v6729 = vpack.c.b16 %v5777, %v5769
    %v6730 = vpack.c.b16 %v5778, %v5770
    %v6731 = vpack.c.b16 %v5779, %v5771
    %v6732 = vpack.c.b16 %v5780, %v5772
    %v6733 = vpack.c.b16 %v5781, %v5773
    %v6734 = vpack.c.b16 %v5782, %v5774
    %v6735 = vpack.c.b16 %v5783, %v5775
    %v6736 = vpack.c.b16 %v5784, %v5776
    %v6737 = vpack.c.b16 %v5793, %v5785
    %v6738 = vpack.c.b16 %v5794, %v5786
    %v6739 = vpack.c.b16 %v5795, %v5787
    %v6740 = vpack.c.b16 %v5796, %v5788
    %v6741 = vpack.c.b16 %v5797, %v5789
    %v6742 = vpack.c.b16 %v5798, %v5790
    %v6743 = vpack.c.b16 %v5799, %v5791
    %v6744 = vpack.c.b16 %v5800, %v5792
    %v6745 = vpack.c.b16 %v5809, %v5801
    %v6746 = vpack.c.b16 %v5810, %v5802
    %v6747 = vpack.c.b16 %v5811, %v5803
    %v6748 = vpack.c.b16 %v5812, %v5804
    %v6749 = vpack.c.b16 %v5813, %v5805
    %v6750 = vpack.c.b16 %v5814, %v5806
    %v6751 = vpack.c.b16 %v5815, %v5807
    %v6752 = vpack.c.b16 %v5816, %v5808
    %v6753 = vpack.c.b16 %v5825, %v5817
    %v6754 = vpack.c.b16 %v5826, %v5818
    %v6755 = vpack.c.b16 %v5827, %v5819
    %v6756 = vpack.c.b16 %v5828, %v5820
    %v6757 = vpack.c.b16 %v5829, %v5821
    %v6758 = vpack.c.b16 %v5830, %v5822
    %v6759 = vpack.c.b16 %v5831, %v5823
    %v6760 = vpack.c.b16 %v5832, %v5824
    %v6761 = vpack.c.b16 %v5841, %v5833
    %v6762 = vpack.c.b16 %v5842, %v5834
    %v6763 = vpack.c.b16 %v5843, %v5835
    %v6764 = vpack.c.b16 %v5844, %v5836
    %v6765 = vpack.c.b16 %v5845, %v5837
    %v6766 = vpack.c.b16 %v5846, %v5838
    %v6767 = vpack.c.b16 %v5847, %v5839
    %v6768 = vpack.c.b16 %v5848, %v5840
    %v6769 = vpack.c.b16 %v5857, %v5849
    %v6770 = vpack.c.b16 %v5858, %v5850
    %v6771 = vpack.c.b16 %v5859, %v5851
    %v6772 = vpack.c.b16 %v5860, %v5852
    %v6773 = vpack.c.b16 %v5861, %v5853
    %v6774 = vpack.c.b16 %v5862, %v5854
    %v6775 = vpack.c.b16 %v5863, %v5855
    %v6776 = vpack.c.b16 %v5864, %v5856
    %v6777 = vpack.c.b16 %v5873, %v5865
    %v6778 = vpack.c.b16 %v5874, %v5866
    %v6779 = vpack.c.b16 %v5875, %v5867
    %v6780 = vpack.c.b16 %v5876, %v5868
    %v6781 = vpack.c.b16 %v5877, %v5869
    %v6782 = vpack.c.b16 %v5878, %v5870
    %v6783 = vpack.c.b16 %v5879, %v5871
    %v6784 = vpack.c.b16 %v5880, %v5872
    %v6785 = vpack.c.b16 %v5889, %v5881
    %v6786 = vpack.c.b16 %v5890, %v5882
    %v6787 = vpack.c.b16 %v5891, %v5883
    %v6788 = vpack.c.b16 %v5892, %v5884
    %v6789 = vpack.c.b16 %v5893, %v5885
    %v6790 = vpack.c.b16 %v5894, %v5886
    %v6791 = vpack.c.b16 %v5895, %v5887
    %v6792 = vpack.c.b16 %v5896, %v5888
    %v6793 = vpack.c.b16 %v5905, %v5897
    %v6794 = vpack.c.b16 %v5906, %v5898
    %v6795 = vpack.c.b16 %v5907, %v5899
    %v6796 = vpack.c.b16 %v5908, %v5900
    %v6797 = vpack.c.b16 %v5909, %v5901
    %v6798 = vpack.c.b16 %v5910, %v5902
    %v6799 = vpack.c.b16 %v5911, %v5903
    %v6800 = vpack.c.b16 %v5912, %v5904
    %v6801 = vpack.c.b16 %v5921, %v5913
    %v6802 = vpack.c.b16 %v5922, %v5914
    %v6803 = vpack.c.b16 %v5923, %v5915
    %v6804 = vpack.c.b16 %v5924, %v5916
    %v6805 = vpack.c.b16 %v5925, %v5917
    %v6806 = vpack.c.b16 %v5926, %v5918
    %v6807 = vpack.c.b16 %v5927, %v5919
    %v6808 = vpack.c.b16 %v5928, %v5920
    %v6809 = vpack.c.b16 %v5937, %v5929
    %v6810 = vpack.c.b16 %v5938, %v5930
    %v6811 = vpack.c.b16 %v5939, %v5931
    %v6812 = vpack.c.b16 %v5940, %v5932
    %v6813 = vpack.c.b16 %v5941, %v5933
    %v6814 = vpack.c.b16 %v5942, %v5934
    %v6815 = vpack.c.b16 %v5943, %v5935
    %v6816 = vpack.c.b16 %v5944, %v5936
    %v6817 = vpack.c.b16 %v5953, %v5945
    %v6818 = vpack.c.b16 %v5954, %v5946
    %v6819 = vpack.c.b16 %v5955, %v5947
    %v6820 = vpack.c.b16 %v5956, %v5948
    %v6821 = vpack.c.b16 %v5957, %v5949
    %v6822 = vpack.c.b16 %v5958, %v5950
    %v6823 = vpack.c.b16 %v5959, %v5951
    %v6824 = vpack.c.b16 %v5960, %v5952
    %v6825 = vpack.c.b16 %v5969, %v5961
    %v6826 = vpack.c.b16 %v5970, %v5962
    %v6827 = vpack.c.b16 %v5971, %v5963
    %v6828 = vpack.c.b16 %v5972, %v5964
    %v6829 = vpack.c.b16 %v5973, %v5965
    %v6830 = vpack.c.b16 %v5974, %v5966
    %v6831 = vpack.c.b16 %v5975, %v5967
    %v6832 = vpack.c.b16 %v5976, %v5968
    %v6833 = vpack.c.b16 %v5985, %v5977
    %v6834 = vpack.c.b16 %v5986, %v5978
    %v6835 = vpack.c.b16 %v5987, %v5979
    %v6836 = vpack.c.b16 %v5988, %v5980
    %v6837 = vpack.c.b16 %v5989, %v5981
    %v6838 = vpack.c.b16 %v5990, %v5982
    %v6839 = vpack.c.b16 %v5991, %v5983
    %v6840 = vpack.c.b16 %v5992, %v5984
    %v6841 = vpack.c.b16 %v6001, %v5993
    %v6842 = vpack.c.b16 %v6002, %v5994
    %v6843 = vpack.c.b16 %v6003, %v5995
    %v6844 = vpack.c.b16 %v6004, %v5996
    %v6845 = vpack.c.b16 %v6005, %v5997
    %v6846 = vpack.c.b16 %v6006, %v5998
    %v6847 = vpack.c.b16 %v6007, %v5999
    %v6848 = vpack.c.b16 %v6008, %v6000
    %v6849 = vpack.c.b16 %v6017, %v6009
    %v6850 = vpack.c.b16 %v6018, %v6010
    %v6851 = vpack.c.b16 %v6019, %v6011
    %v6852 = vpack.c.b16 %v6020, %v6012
    %v6853 = vpack.c.b16 %v6021, %v6013
    %v6854 = vpack.c.b16 %v6022, %v6014
    %v6855 = vpack.c.b16 %v6023, %v6015
    %v6856 = vpack.c.b16 %v6024, %v6016
    %v6857 = vpack.c.b16 %v6033, %v6025
    %v6858 = vpack.c.b16 %v6034, %v6026
    %v6859 = vpack.c.b16 %v6035, %v6027
    %v6860 = vpack.c.b16 %v6036, %v6028
    %v6861 = vpack.c.b16 %v6037, %v6029
    %v6862 = vpack.c.b16 %v6038, %v6030
    %v6863 = vpack.c.b16 %v6039, %v6031
    %v6864 = vpack.c.b16 %v6040, %v6032
    %v6865 = vpack.c.b16 %v6049, %v6041
    %v6866 = vpack.c.b16 %v6050, %v6042
    %v6867 = vpack.c.b16 %v6051, %v6043
    %v6868 = vpack.c.b16 %v6052, %v6044
    %v6869 = vpack.c.b16 %v6053, %v6045
    %v6870 = vpack.c.b16 %v6054, %v6046
    %v6871 = vpack.c.b16 %v6055, %v6047
    %v6872 = vpack.c.b16 %v6056, %v6048
    %v6873 = vpack.c.b16 %v6065, %v6057
    %v6874 = vpack.c.b16 %v6066, %v6058
    %v6875 = vpack.c.b16 %v6067, %v6059
    %v6876 = vpack.c.b16 %v6068, %v6060
    %v6877 = vpack.c.b16 %v6069, %v6061
    %v6878 = vpack.c.b16 %v6070, %v6062
    %v6879 = vpack.c.b16 %v6071, %v6063
    %v6880 = vpack.c.b16 %v6072, %v6064
    %v6881 = vpack.c.b16 %v6081, %v6073
    %v6882 = vpack.c.b16 %v6082, %v6074
    %v6883 = vpack.c.b16 %v6083, %v6075
    %v6884 = vpack.c.b16 %v6084, %v6076
    %v6885 = vpack.c.b16 %v6085, %v6077
    %v6886 = vpack.c.b16 %v6086, %v6078
    %v6887 = vpack.c.b16 %v6087, %v6079
    %v6888 = vpack.c.b16 %v6088, %v6080
    %v6889 = vpack.c.b16 %v6097, %v6089
    %v6890 = vpack.c.b16 %v6098, %v6090
    %v6891 = vpack.c.b16 %v6099, %v6091
    %v6892 = vpack.c.b16 %v6100, %v6092
    %v6893 = vpack.c.b16 %v6101, %v6093
    %v6894 = vpack.c.b16 %v6102, %v6094
    %v6895 = vpack.c.b16 %v6103, %v6095
    %v6896 = vpack.c.b16 %v6104, %v6096
    %v6897 = vpack.c.b16 %v6113, %v6105
    %v6898 = vpack.c.b16 %v6114, %v6106
    %v6899 = vpack.c.b16 %v6115, %v6107
    %v6900 = vpack.c.b16 %v6116, %v6108
    %v6901 = vpack.c.b16 %v6117, %v6109
    %v6902 = vpack.c.b16 %v6118, %v6110
    %v6903 = vpack.c.b16 %v6119, %v6111
    %v6904 = vpack.c.b16 %v6120, %v6112
    %v6905 = vpack.c.b16 %v6129, %v6121
    %v6906 = vpack.c.b16 %v6130, %v6122
    %v6907 = vpack.c.b16 %v6131, %v6123
    %v6908 = vpack.c.b16 %v6132, %v6124
    %v6909 = vpack.c.b16 %v6133, %v6125
    %v6910 = vpack.c.b16 %v6134, %v6126
    %v6911 = vpack.c.b16 %v6135, %v6127
    %v6912 = vpack.c.b16 %v6136, %v6128
    %v6913 = vpack.c.b16 %v6145, %v6137
    %v6914 = vpack.c.b16 %v6146, %v6138
    %v6915 = vpack.c.b16 %v6147, %v6139
    %v6916 = vpack.c.b16 %v6148, %v6140
    %v6917 = vpack.c.b16 %v6149, %v6141
    %v6918 = vpack.c.b16 %v6150, %v6142
    %v6919 = vpack.c.b16 %v6151, %v6143
    %v6920 = vpack.c.b16 %v6152, %v6144
    %v6921 = vpack.c.b16 %v6161, %v6153
    %v6922 = vpack.c.b16 %v6162, %v6154
    %v6923 = vpack.c.b16 %v6163, %v6155
    %v6924 = vpack.c.b16 %v6164, %v6156
    %v6925 = vpack.c.b16 %v6165, %v6157
    %v6926 = vpack.c.b16 %v6166, %v6158
    %v6927 = vpack.c.b16 %v6167, %v6159
    %v6928 = vpack.c.b16 %v6168, %v6160
    %v6929 = vpack.c.b16 %v6177, %v6169
    %v6930 = vpack.c.b16 %v6178, %v6170
    %v6931 = vpack.c.b16 %v6179, %v6171
    %v6932 = vpack.c.b16 %v6180, %v6172
    %v6933 = vpack.c.b16 %v6181, %v6173
    %v6934 = vpack.c.b16 %v6182, %v6174
    %v6935 = vpack.c.b16 %v6183, %v6175
    %v6936 = vpack.c.b16 %v6184, %v6176
    %v6937 = vpack.c.b16 %v6193, %v6185
    %v6938 = vpack.c.b16 %v6194, %v6186
    %v6939 = vpack.c.b16 %v6195, %v6187
    %v6940 = vpack.c.b16 %v6196, %v6188
    %v6941 = vpack.c.b16 %v6197, %v6189
    %v6942 = vpack.c.b16 %v6198, %v6190
    %v6943 = vpack.c.b16 %v6199, %v6191
    %v6944 = vpack.c.b16 %v6200, %v6192
    %v6945 = vpack.c.b16 %v6209, %v6201
    %v6946 = vpack.c.b16 %v6210, %v6202
    %v6947 = vpack.c.b16 %v6211, %v6203
    %v6948 = vpack.c.b16 %v6212, %v6204
    %v6949 = vpack.c.b16 %v6213, %v6205
    %v6950 = vpack.c.b16 %v6214, %v6206
    %v6951 = vpack.c.b16 %v6215, %v6207
    %v6952 = vpack.c.b16 %v6216, %v6208
    %v6953 = vpack.c.b16 %v6225, %v6217
    %v6954 = vpack.c.b16 %v6226, %v6218
    %v6955 = vpack.c.b16 %v6227, %v6219
    %v6956 = vpack.c.b16 %v6228, %v6220
    %v6957 = vpack.c.b16 %v6229, %v6221
    %v6958 = vpack.c.b16 %v6230, %v6222
    %v6959 = vpack.c.b16 %v6231, %v6223
    %v6960 = vpack.c.b16 %v6232, %v6224
    %v6961 = vpack.c.b16 %v6241, %v6233
    %v6962 = vpack.c.b16 %v6242, %v6234
    %v6963 = vpack.c.b16 %v6243, %v6235
    %v6964 = vpack.c.b16 %v6244, %v6236
    %v6965 = vpack.c.b16 %v6245, %v6237
    %v6966 = vpack.c.b16 %v6246, %v6238
    %v6967 = vpack.c.b16 %v6247, %v6239
    %v6968 = vpack.c.b16 %v6248, %v6240
    %v6969 = vpack.c.b16 %v6257, %v6249
    %v6970 = vpack.c.b16 %v6258, %v6250
    %v6971 = vpack.c.b16 %v6259, %v6251
    %v6972 = vpack.c.b16 %v6260, %v6252
    %v6973 = vpack.c.b16 %v6261, %v6253
    %v6974 = vpack.c.b16 %v6262, %v6254
    %v6975 = vpack.c.b16 %v6263, %v6255
    %v6976 = vpack.c.b16 %v6264, %v6256
    %v6977 = vpack.c.b16 %v6273, %v6265
    %v6978 = vpack.c.b16 %v6274, %v6266
    %v6979 = vpack.c.b16 %v6275, %v6267
    %v6980 = vpack.c.b16 %v6276, %v6268
    %v6981 = vpack.c.b16 %v6277, %v6269
    %v6982 = vpack.c.b16 %v6278, %v6270
    %v6983 = vpack.c.b16 %v6279, %v6271
    %v6984 = vpack.c.b16 %v6280, %v6272
    %v6985 = vpack.c.b16 %v6289, %v6281
    %v6986 = vpack.c.b16 %v6290, %v6282
    %v6987 = vpack.c.b16 %v6291, %v6283
    %v6988 = vpack.c.b16 %v6292, %v6284
    %v6989 = vpack.c.b16 %v6293, %v6285
    %v6990 = vpack.c.b16 %v6294, %v6286
    %v6991 = vpack.c.b16 %v6295, %v6287
    %v6992 = vpack.c.b16 %v6296, %v6288
    %v6993 = vpack.c.b16 %v6305, %v6297
    %v6994 = vpack.c.b16 %v6306, %v6298
    %v6995 = vpack.c.b16 %v6307, %v6299
    %v6996 = vpack.c.b16 %v6308, %v6300
    %v6997 = vpack.c.b16 %v6309, %v6301
    %v6998 = vpack.c.b16 %v6310, %v6302
    %v6999 = vpack.c.b16 %v6311, %v6303
    %v7000 = vpack.c.b16 %v6312, %v6304
    %v7001 = vpack.c.b16 %v6321, %v6313
    %v7002 = vpack.c.b16 %v6322, %v6314
    %v7003 = vpack.c.b16 %v6323, %v6315
    %v7004 = vpack.c.b16 %v6324, %v6316
    %v7005 = vpack.c.b16 %v6325, %v6317
    %v7006 = vpack.c.b16 %v6326, %v6318
    %v7007 = vpack.c.b16 %v6327, %v6319
    %v7008 = vpack.c.b16 %v6328, %v6320
    %v7009 = vpack.c.b16 %v6337, %v6329
    %v7010 = vpack.c.b16 %v6338, %v6330
    %v7011 = vpack.c.b16 %v6339, %v6331
    %v7012 = vpack.c.b16 %v6340, %v6332
    %v7013 = vpack.c.b16 %v6341, %v6333
    %v7014 = vpack.c.b16 %v6342, %v6334
    %v7015 = vpack.c.b16 %v6343, %v6335
    %v7016 = vpack.c.b16 %v6344, %v6336
    %v7017 = vpack.c.b16 %v6353, %v6345
    %v7018 = vpack.c.b16 %v6354, %v6346
    %v7019 = vpack.c.b16 %v6355, %v6347
    %v7020 = vpack.c.b16 %v6356, %v6348
    %v7021 = vpack.c.b16 %v6357, %v6349
    %v7022 = vpack.c.b16 %v6358, %v6350
    %v7023 = vpack.c.b16 %v6359, %v6351
    %v7024 = vpack.c.b16 %v6360, %v6352
    %v7025 = vpack.c.b16 %v6369, %v6361
    %v7026 = vpack.c.b16 %v6370, %v6362
    %v7027 = vpack.c.b16 %v6371, %v6363
    %v7028 = vpack.c.b16 %v6372, %v6364
    %v7029 = vpack.c.b16 %v6373, %v6365
    %v7030 = vpack.c.b16 %v6374, %v6366
    %v7031 = vpack.c.b16 %v6375, %v6367
    %v7032 = vpack.c.b16 %v6376, %v6368
    %v7033 = vpack.c.b16 %v6385, %v6377
    %v7034 = vpack.c.b16 %v6386, %v6378
    %v7035 = vpack.c.b16 %v6387, %v6379
    %v7036 = vpack.c.b16 %v6388, %v6380
    %v7037 = vpack.c.b16 %v6389, %v6381
    %v7038 = vpack.c.b16 %v6390, %v6382
    %v7039 = vpack.c.b16 %v6391, %v6383
    %v7040 = vpack.c.b16 %v6392, %v6384
    %v7041 = vpack.c.b16 %v6401, %v6393
    %v7042 = vpack.c.b16 %v6402, %v6394
    %v7043 = vpack.c.b16 %v6403, %v6395
    %v7044 = vpack.c.b16 %v6404, %v6396
    %v7045 = vpack.c.b16 %v6405, %v6397
    %v7046 = vpack.c.b16 %v6406, %v6398
    %v7047 = vpack.c.b16 %v6407, %v6399
    %v7048 = vpack.c.b16 %v6408, %v6400
    %v7049 = vpack.c.b16 %v6417, %v6409
    %v7050 = vpack.c.b16 %v6418, %v6410
    %v7051 = vpack.c.b16 %v6419, %v6411
    %v7052 = vpack.c.b16 %v6420, %v6412
    %v7053 = vpack.c.b16 %v6421, %v6413
    %v7054 = vpack.c.b16 %v6422, %v6414
    %v7055 = vpack.c.b16 %v6423, %v6415
    %v7056 = vpack.c.b16 %v6424, %v6416
    %v7057 = vpack.c.b16 %v6433, %v6425
    %v7058 = vpack.c.b16 %v6434, %v6426
    %v7059 = vpack.c.b16 %v6435, %v6427
    %v7060 = vpack.c.b16 %v6436, %v6428
    %v7061 = vpack.c.b16 %v6437, %v6429
    %v7062 = vpack.c.b16 %v6438, %v6430
    %v7063 = vpack.c.b16 %v6439, %v6431
    %v7064 = vpack.c.b16 %v6440, %v6432
    %v7065 = vpack.c.b16 %v6449, %v6441
    %v7066 = vpack.c.b16 %v6450, %v6442
    %v7067 = vpack.c.b16 %v6451, %v6443
    %v7068 = vpack.c.b16 %v6452, %v6444
    %v7069 = vpack.c.b16 %v6453, %v6445
    %v7070 = vpack.c.b16 %v6454, %v6446
    %v7071 = vpack.c.b16 %v6455, %v6447
    %v7072 = vpack.c.b16 %v6456, %v6448
    %v7073 = vpack.c.b16 %v6465, %v6457
    %v7074 = vpack.c.b16 %v6466, %v6458
    %v7075 = vpack.c.b16 %v6467, %v6459
    %v7076 = vpack.c.b16 %v6468, %v6460
    %v7077 = vpack.c.b16 %v6469, %v6461
    %v7078 = vpack.c.b16 %v6470, %v6462
    %v7079 = vpack.c.b16 %v6471, %v6463
    %v7080 = vpack.c.b16 %v6472, %v6464
    %v7081 = vpack.c.b16 %v6481, %v6473
    %v7082 = vpack.c.b16 %v6482, %v6474
    %v7083 = vpack.c.b16 %v6483, %v6475
    %v7084 = vpack.c.b16 %v6484, %v6476
    %v7085 = vpack.c.b16 %v6485, %v6477
    %v7086 = vpack.c.b16 %v6486, %v6478
    %v7087 = vpack.c.b16 %v6487, %v6479
    %v7088 = vpack.c.b16 %v6488, %v6480
    %v7089 = vpack.c.b16 %v6497, %v6489
    %v7090 = vpack.c.b16 %v6498, %v6490
    %v7091 = vpack.c.b16 %v6499, %v6491
    %v7092 = vpack.c.b16 %v6500, %v6492
    %v7093 = vpack.c.b16 %v6501, %v6493
    %v7094 = vpack.c.b16 %v6502, %v6494
    %v7095 = vpack.c.b16 %v6503, %v6495
    %v7096 = vpack.c.b16 %v6504, %v6496
    %v7097 = vpack.c.b16 %v6513, %v6505
    %v7098 = vpack.c.b16 %v6514, %v6506
    %v7099 = vpack.c.b16 %v6515, %v6507
    %v7100 = vpack.c.b16 %v6516, %v6508
    %v7101 = vpack.c.b16 %v6517, %v6509
    %v7102 = vpack.c.b16 %v6518, %v6510
    %v7103 = vpack.c.b16 %v6519, %v6511
    %v7104 = vpack.c.b16 %v6520, %v6512
    %v7105 = vpack.c.b16 %v6529, %v6521
    %v7106 = vpack.c.b16 %v6530, %v6522
    %v7107 = vpack.c.b16 %v6531, %v6523
    %v7108 = vpack.c.b16 %v6532, %v6524
    %v7109 = vpack.c.b16 %v6533, %v6525
    %v7110 = vpack.c.b16 %v6534, %v6526
    %v7111 = vpack.c.b16 %v6535, %v6527
    %v7112 = vpack.c.b16 %v6536, %v6528
    %v7113 = vpack.c.b16 %v6545, %v6537
    %v7114 = vpack.c.b16 %v6546, %v6538
    %v7115 = vpack.c.b16 %v6547, %v6539
    %v7116 = vpack.c.b16 %v6548, %v6540
    %v7117 = vpack.c.b16 %v6549, %v6541
    %v7118 = vpack.c.b16 %v6550, %v6542
    %v7119 = vpack.c.b16 %v6551, %v6543
    %v7120 = vpack.c.b16 %v6552, %v6544
    %v7121 = vpack.c.b16 %v6561, %v6553
    %v7122 = vpack.c.b16 %v6562, %v6554
    %v7123 = vpack.c.b16 %v6563, %v6555
    %v7124 = vpack.c.b16 %v6564, %v6556
    %v7125 = vpack.c.b16 %v6565, %v6557
    %v7126 = vpack.c.b16 %v6566, %v6558
    %v7127 = vpack.c.b16 %v6567, %v6559
    %v7128 = vpack.c.b16 %v6568, %v6560
    %v7129 = vpack.c.b16 %v6577, %v6569
    %v7130 = vpack.c.b16 %v6578, %v6570
    %v7131 = vpack.c.b16 %v6579, %v6571
    %v7132 = vpack.c.b16 %v6580, %v6572
    %v7133 = vpack.c.b16 %v6581, %v6573
    %v7134 = vpack.c.b16 %v6582, %v6574
    %v7135 = vpack.c.b16 %v6583, %v6575
    %v7136 = vpack.c.b16 %v6584, %v6576
    %v7137 = vpack.c.b16 %v6593, %v6585
    %v7138 = vpack.c.b16 %v6594, %v6586
    %v7139 = vpack.c.b16 %v6595, %v6587
    %v7140 = vpack.c.b16 %v6596, %v6588
    %v7141 = vpack.c.b16 %v6597, %v6589
    %v7142 = vpack.c.b16 %v6598, %v6590
    %v7143 = vpack.c.b16 %v6599, %v6591
    %v7144 = vpack.c.b16 %v6600, %v6592
    %v7145 = vpack.c.b16 %v6609, %v6601
    %v7146 = vpack.c.b16 %v6610, %v6602
    %v7147 = vpack.c.b16 %v6611, %v6603
    %v7148 = vpack.c.b16 %v6612, %v6604
    %v7149 = vpack.c.b16 %v6613, %v6605
    %v7150 = vpack.c.b16 %v6614, %v6606
    %v7151 = vpack.c.b16 %v6615, %v6607
    %v7152 = vpack.c.b16 %v6616, %v6608
    %v7153 = vpack.c.b16 %v6625, %v6617
    %v7154 = vpack.c.b16 %v6626, %v6618
    %v7155 = vpack.c.b16 %v6627, %v6619
    %v7156 = vpack.c.b16 %v6628, %v6620
    %v7157 = vpack.c.b16 %v6629, %v6621
    %v7158 = vpack.c.b16 %v6630, %v6622
    %v7159 = vpack.c.b16 %v6631, %v6623
    %v7160 = vpack.c.b16 %v6632, %v6624
    %v7161 = vpack.c.b16 %v6641, %v6633
    %v7162 = vpack.c.b16 %v6642, %v6634
    %v7163 = vpack.c.b16 %v6643, %v6635
    %v7164 = vpack.c.b16 %v6644, %v6636
    %v7165 = vpack.c.b16 %v6645, %v6637
    %v7166 = vpack.c.b16 %v6646, %v6638
    %v7167 = vpack.c.b16 %v6647, %v6639
    %v7168 = vpack.c.b16 %v6648, %v6640
    %v7169 = vpack.c.b16 %v6657, %v6649
    %v7170 = vpack.c.b16 %v6658, %v6650
    %v7171 = vpack.c.b16 %v6659, %v6651
    %v7172 = vpack.c.b16 %v6660, %v6652
    %v7173 = vpack.c.b16 %v6661, %v6653
    %v7174 = vpack.c.b16 %v6662, %v6654
    %v7175 = vpack.c.b16 %v6663, %v6655
    %v7176 = vpack.c.b16 %v6664, %v6656
    %7689 = vmatprep.subr.bf16.mxu0 %v6722
    %7690 = vmatpush1.bf16.msra.mxu0 %v6721
    %7691 = vmatprep.subr.bf16.mxu0 %v6714
    %7692 = vmatpush1.bf16.msra.mxu0 %v6713
    %7693 = vmatprep.subr.bf16.mxu0 %v6706
    %7694 = vmatpush1.bf16.msra.mxu0 %v6705
    %7695 = vmatprep.subr.bf16.mxu0 %v6698
    %7696 = vmatpush1.bf16.msra.mxu0 %v6697
    %7697 = vmatprep.subr.bf16.mxu0 %v6690
    %7698 = vmatpush1.bf16.msra.mxu0 %v6689
    %7699 = vmatprep.subr.bf16.mxu0 %v6682
    %7700 = vmatpush1.bf16.msra.mxu0 %v6681
    %7701 = vmatprep.subr.bf16.mxu0 %v6674
    %7702 = vmatpush1.bf16.msra.mxu0 %v6673
    %7703 = vmatprep.subr.bf16.mxu0 %v6666
    %7704 = vmatpush1.bf16.msra.mxu0 %v6665
    %7705 = vmatprep.subr.bf16.mxu0 %v6786
    %7706 = vmatpush2.bf16.msra.mxu0 %v6785
    %7707 = vmatprep.subr.bf16.mxu0 %v6778
    %7708 = vmatpush2.bf16.msra.mxu0 %v6777
    %7709 = vmatprep.subr.bf16.mxu0 %v6770
    %7710 = vmatpush2.bf16.msra.mxu0 %v6769
    %7711 = vmatprep.subr.bf16.mxu0 %v6762
    %7712 = vmatpush2.bf16.msra.mxu0 %v6761
    %7713 = vmatprep.subr.bf16.mxu0 %v6754
    %7714 = vmatpush2.bf16.msra.mxu0 %v6753
    %7715 = vmatprep.subr.bf16.mxu0 %v6746
    %7716 = vmatpush2.bf16.msra.mxu0 %v6745
    %7717 = vmatprep.subr.bf16.mxu0 %v6738
    %7718 = vmatpush2.bf16.msra.mxu0 %v6737
    %7719 = vmatprep.subr.bf16.mxu0 %v6730
    %7720 = vmatpush2.bf16.msra.mxu0 %v6729
    %7721 = vmatprep.mubr.bf16.mxu0 %v4568
    %7722 = vmatmul.mubr.bf16.gmra.mxu0 %v4567
    %v7723 = vpop.f32.mrf.mxu0
    %v7724 = vadd.f32 %v5092, %v7723
    %v7725 = vpop.f32.mrf.mxu0
    %v7726 = vadd.f32 %v5096, %v7725
    %v7727 = vpop.f32.mrf.mxu0
    %v7728 = vadd.f32 %v5092, %v7727
    %v7729 = vpop.f32.mrf.mxu0
    %v7730 = vadd.f32 %v5096, %v7729
    %7731 = vdwg.mxu0
    %7732 = vmatprep.subr.bf16.mxu0 %v6850
    %7733 = vmatpush1.bf16.msra.mxu0 %v6849
    %7734 = vmatprep.subr.bf16.mxu0 %v6842
    %7735 = vmatpush1.bf16.msra.mxu0 %v6841
    %7736 = vmatprep.subr.bf16.mxu0 %v6834
    %7737 = vmatpush1.bf16.msra.mxu0 %v6833
    %7738 = vmatprep.subr.bf16.mxu0 %v6826
    %7739 = vmatpush1.bf16.msra.mxu0 %v6825
    %7740 = vmatprep.subr.bf16.mxu0 %v6818
    %7741 = vmatpush1.bf16.msra.mxu0 %v6817
    %7742 = vmatprep.subr.bf16.mxu0 %v6810
    %7743 = vmatpush1.bf16.msra.mxu0 %v6809
    %7744 = vmatprep.subr.bf16.mxu0 %v6802
    %7745 = vmatpush1.bf16.msra.mxu0 %v6801
    %7746 = vmatprep.subr.bf16.mxu0 %v6794
    %7747 = vmatpush1.bf16.msra.mxu0 %v6793
    %7748 = vmatprep.subr.bf16.mxu0 %v6914
    %7749 = vmatpush2.bf16.msra.mxu0 %v6913
    %7750 = vmatprep.subr.bf16.mxu0 %v6906
    %7751 = vmatpush2.bf16.msra.mxu0 %v6905
    %7752 = vmatprep.subr.bf16.mxu0 %v6898
    %7753 = vmatpush2.bf16.msra.mxu0 %v6897
    %7754 = vmatprep.subr.bf16.mxu0 %v6890
    %7755 = vmatpush2.bf16.msra.mxu0 %v6889
    %7756 = vmatprep.subr.bf16.mxu0 %v6882
    %7757 = vmatpush2.bf16.msra.mxu0 %v6881
    %7758 = vmatprep.subr.bf16.mxu0 %v6874
    %7759 = vmatpush2.bf16.msra.mxu0 %v6873
    %7760 = vmatprep.subr.bf16.mxu0 %v6866
    %7761 = vmatpush2.bf16.msra.mxu0 %v6865
    %7762 = vmatprep.subr.bf16.mxu0 %v6858
    %7763 = vmatpush2.bf16.msra.mxu0 %v6857
    %7764 = vmatprep.mubr.bf16.mxu0 %v4570
    %7765 = vmatmul.mubr.bf16.gmra.mxu0 %v4569
    %v7766 = vpop.f32.mrf.mxu0
    %v7767 = vadd.f32 %v7724, %v7766
    %v7768 = vpop.f32.mrf.mxu0
    %v7769 = vadd.f32 %v7726, %v7768
    %v7770 = vpop.f32.mrf.mxu0
    %v7771 = vadd.f32 %v7728, %v7770
    %v7772 = vpop.f32.mrf.mxu0
    %v7773 = vadd.f32 %v7730, %v7772
    %7774 = vdwg.mxu0
    %7775 = vmatprep.subr.bf16.mxu0 %v6978
    %7776 = vmatpush1.bf16.msra.mxu0 %v6977
    %7777 = vmatprep.subr.bf16.mxu0 %v6970
    %7778 = vmatpush1.bf16.msra.mxu0 %v6969
    %7779 = vmatprep.subr.bf16.mxu0 %v6962
    %7780 = vmatpush1.bf16.msra.mxu0 %v6961
    %7781 = vmatprep.subr.bf16.mxu0 %v6954
    %7782 = vmatpush1.bf16.msra.mxu0 %v6953
    %7783 = vmatprep.subr.bf16.mxu0 %v6946
    %7784 = vmatpush1.bf16.msra.mxu0 %v6945
    %7785 = vmatprep.subr.bf16.mxu0 %v6938
    %7786 = vmatpush1.bf16.msra.mxu0 %v6937
    %7787 = vmatprep.subr.bf16.mxu0 %v6930
    %7788 = vmatpush1.bf16.msra.mxu0 %v6929
    %7789 = vmatprep.subr.bf16.mxu0 %v6922
    %7790 = vmatpush1.bf16.msra.mxu0 %v6921
    %7791 = vmatprep.subr.bf16.mxu0 %v7042
    %7792 = vmatpush2.bf16.msra.mxu0 %v7041
    %7793 = vmatprep.subr.bf16.mxu0 %v7034
    %7794 = vmatpush2.bf16.msra.mxu0 %v7033
    %7795 = vmatprep.subr.bf16.mxu0 %v7026
    %7796 = vmatpush2.bf16.msra.mxu0 %v7025
    %7797 = vmatprep.subr.bf16.mxu0 %v7018
    %7798 = vmatpush2.bf16.msra.mxu0 %v7017
    %7799 = vmatprep.subr.bf16.mxu0 %v7010
    %7800 = vmatpush2.bf16.msra.mxu0 %v7009
    %7801 = vmatprep.subr.bf16.mxu0 %v7002
    %7802 = vmatpush2.bf16.msra.mxu0 %v7001
    %7803 = vmatprep.subr.bf16.mxu0 %v6994
    %7804 = vmatpush2.bf16.msra.mxu0 %v6993
    %7805 = vmatprep.subr.bf16.mxu0 %v6986
    %7806 = vmatpush2.bf16.msra.mxu0 %v6985
    %7807 = vmatprep.mubr.bf16.mxu0 %v4572
    %7808 = vmatmul.mubr.bf16.gmra.mxu0 %v4571
    %v7809 = vpop.f32.mrf.mxu0
    %v7810 = vadd.f32 %v7767, %v7809
    %v7811 = vpop.f32.mrf.mxu0
    %v7812 = vadd.f32 %v7769, %v7811
    %v7813 = vpop.f32.mrf.mxu0
    %v7814 = vadd.f32 %v7771, %v7813
    %v7815 = vpop.f32.mrf.mxu0
    %v7816 = vadd.f32 %v7773, %v7815
    %7817 = vdwg.mxu0
    %7818 = vmatprep.subr.bf16.mxu0 %v7106
    %7819 = vmatpush1.bf16.msra.mxu0 %v7105
    %7820 = vmatprep.subr.bf16.mxu0 %v7098
    %7821 = vmatpush1.bf16.msra.mxu0 %v7097
    %7822 = vmatprep.subr.bf16.mxu0 %v7090
    %7823 = vmatpush1.bf16.msra.mxu0 %v7089
    %7824 = vmatprep.subr.bf16.mxu0 %v7082
    %7825 = vmatpush1.bf16.msra.mxu0 %v7081
    %7826 = vmatprep.subr.bf16.mxu0 %v7074
    %7827 = vmatpush1.bf16.msra.mxu0 %v7073
    %7828 = vmatprep.subr.bf16.mxu0 %v7066
    %7829 = vmatpush1.bf16.msra.mxu0 %v7065
    %7830 = vmatprep.subr.bf16.mxu0 %v7058
    %7831 = vmatpush1.bf16.msra.mxu0 %v7057
    %7832 = vmatprep.subr.bf16.mxu0 %v7050
    %7833 = vmatpush1.bf16.msra.mxu0 %v7049
    %7834 = vmatprep.subr.bf16.mxu0 %v7170
    %7835 = vmatpush2.bf16.msra.mxu0 %v7169
    %7836 = vmatprep.subr.bf16.mxu0 %v7162
    %7837 = vmatpush2.bf16.msra.mxu0 %v7161
    %7838 = vmatprep.subr.bf16.mxu0 %v7154
    %7839 = vmatpush2.bf16.msra.mxu0 %v7153
    %7840 = vmatprep.subr.bf16.mxu0 %v7146
    %7841 = vmatpush2.bf16.msra.mxu0 %v7145
    %7842 = vmatprep.subr.bf16.mxu0 %v7138
    %7843 = vmatpush2.bf16.msra.mxu0 %v7137
    %7844 = vmatprep.subr.bf16.mxu0 %v7130
    %7845 = vmatpush2.bf16.msra.mxu0 %v7129
    %7846 = vmatprep.subr.bf16.mxu0 %v7122
    %7847 = vmatpush2.bf16.msra.mxu0 %v7121
    %7848 = vmatprep.subr.bf16.mxu0 %v7114
    %7849 = vmatpush2.bf16.msra.mxu0 %v7113
    %7850 = vmatprep.mubr.bf16.mxu0 %v4574
    %7851 = vmatmul.mubr.bf16.gmra.mxu0 %v4573
    %v7852 = vpop.f32.mrf.mxu0
    %v7853 = vadd.f32 %v7810, %v7852
    %v7854 = vpop.f32.mrf.mxu0
    %v7855 = vadd.f32 %v7812, %v7854
    %v7856 = vpop.f32.mrf.mxu0
    %v7857 = vadd.f32 %v7814, %v7856
    %v7858 = vpop.f32.mrf.mxu0
    %v7859 = vadd.f32 %v7816, %v7858
    %7860 = vdwg.mxu0
    %7861 = vmatprep.subr.bf16.mxu0 %v6724
    %7862 = vmatpush1.bf16.msra.mxu0 %v6723
    %7863 = vmatprep.subr.bf16.mxu0 %v6716
    %7864 = vmatpush1.bf16.msra.mxu0 %v6715
    %7865 = vmatprep.subr.bf16.mxu0 %v6708
    %7866 = vmatpush1.bf16.msra.mxu0 %v6707
    %7867 = vmatprep.subr.bf16.mxu0 %v6700
    %7868 = vmatpush1.bf16.msra.mxu0 %v6699
    %7869 = vmatprep.subr.bf16.mxu0 %v6692
    %7870 = vmatpush1.bf16.msra.mxu0 %v6691
    %7871 = vmatprep.subr.bf16.mxu0 %v6684
    %7872 = vmatpush1.bf16.msra.mxu0 %v6683
    %7873 = vmatprep.subr.bf16.mxu0 %v6676
    %7874 = vmatpush1.bf16.msra.mxu0 %v6675
    %7875 = vmatprep.subr.bf16.mxu0 %v6668
    %7876 = vmatpush1.bf16.msra.mxu0 %v6667
    %7877 = vmatprep.subr.bf16.mxu0 %v6788
    %7878 = vmatpush2.bf16.msra.mxu0 %v6787
    %7879 = vmatprep.subr.bf16.mxu0 %v6780
    %7880 = vmatpush2.bf16.msra.mxu0 %v6779
    %7881 = vmatprep.subr.bf16.mxu0 %v6772
    %7882 = vmatpush2.bf16.msra.mxu0 %v6771
    %7883 = vmatprep.subr.bf16.mxu0 %v6764
    %7884 = vmatpush2.bf16.msra.mxu0 %v6763
    %7885 = vmatprep.subr.bf16.mxu0 %v6756
    %7886 = vmatpush2.bf16.msra.mxu0 %v6755
    %7887 = vmatprep.subr.bf16.mxu0 %v6748
    %7888 = vmatpush2.bf16.msra.mxu0 %v6747
    %7889 = vmatprep.subr.bf16.mxu0 %v6740
    %7890 = vmatpush2.bf16.msra.mxu0 %v6739
    %7891 = vmatprep.subr.bf16.mxu0 %v6732
    %7892 = vmatpush2.bf16.msra.mxu0 %v6731
    %7893 = vmatprep.mubr.bf16.mxu0 %v4568
    %7894 = vmatmul.mubr.bf16.gmra.mxu0 %v4567
    %v7895 = vpop.f32.mrf.mxu0
    %v7896 = vadd.f32 %v5100, %v7895
    %v7897 = vpop.f32.mrf.mxu0
    %v7898 = vadd.f32 %v5104, %v7897
    %v7899 = vpop.f32.mrf.mxu0
    %v7900 = vadd.f32 %v5100, %v7899
    %v7901 = vpop.f32.mrf.mxu0
    %v7902 = vadd.f32 %v5104, %v7901
    %7903 = vdwg.mxu0
    %7904 = vmatprep.subr.bf16.mxu0 %v6852
    %7905 = vmatpush1.bf16.msra.mxu0 %v6851
    %7906 = vmatprep.subr.bf16.mxu0 %v6844
    %7907 = vmatpush1.bf16.msra.mxu0 %v6843
    %7908 = vmatprep.subr.bf16.mxu0 %v6836
    %7909 = vmatpush1.bf16.msra.mxu0 %v6835
    %7910 = vmatprep.subr.bf16.mxu0 %v6828
    %7911 = vmatpush1.bf16.msra.mxu0 %v6827
    %7912 = vmatprep.subr.bf16.mxu0 %v6820
    %7913 = vmatpush1.bf16.msra.mxu0 %v6819
    %7914 = vmatprep.subr.bf16.mxu0 %v6812
    %7915 = vmatpush1.bf16.msra.mxu0 %v6811
    %7916 = vmatprep.subr.bf16.mxu0 %v6804
    %7917 = vmatpush1.bf16.msra.mxu0 %v6803
    %7918 = vmatprep.subr.bf16.mxu0 %v6796
    %7919 = vmatpush1.bf16.msra.mxu0 %v6795
    %7920 = vmatprep.subr.bf16.mxu0 %v6916
    %7921 = vmatpush2.bf16.msra.mxu0 %v6915
    %7922 = vmatprep.subr.bf16.mxu0 %v6908
    %7923 = vmatpush2.bf16.msra.mxu0 %v6907
    %7924 = vmatprep.subr.bf16.mxu0 %v6900
    %7925 = vmatpush2.bf16.msra.mxu0 %v6899
    %7926 = vmatprep.subr.bf16.mxu0 %v6892
    %7927 = vmatpush2.bf16.msra.mxu0 %v6891
    %7928 = vmatprep.subr.bf16.mxu0 %v6884
    %7929 = vmatpush2.bf16.msra.mxu0 %v6883
    %7930 = vmatprep.subr.bf16.mxu0 %v6876
    %7931 = vmatpush2.bf16.msra.mxu0 %v6875
    %7932 = vmatprep.subr.bf16.mxu0 %v6868
    %7933 = vmatpush2.bf16.msra.mxu0 %v6867
    %7934 = vmatprep.subr.bf16.mxu0 %v6860
    %7935 = vmatpush2.bf16.msra.mxu0 %v6859
    %7936 = vmatprep.mubr.bf16.mxu0 %v4570
    %7937 = vmatmul.mubr.bf16.gmra.mxu0 %v4569
    %v7938 = vpop.f32.mrf.mxu0
    %v7939 = vadd.f32 %v7896, %v7938
    %v7940 = vpop.f32.mrf.mxu0
    %v7941 = vadd.f32 %v7898, %v7940
    %v7942 = vpop.f32.mrf.mxu0
    %v7943 = vadd.f32 %v7900, %v7942
    %v7944 = vpop.f32.mrf.mxu0
    %v7945 = vadd.f32 %v7902, %v7944
    %7946 = vdwg.mxu0
    %7947 = vmatprep.subr.bf16.mxu0 %v6980
    %7948 = vmatpush1.bf16.msra.mxu0 %v6979
    %7949 = vmatprep.subr.bf16.mxu0 %v6972
    %7950 = vmatpush1.bf16.msra.mxu0 %v6971
    %7951 = vmatprep.subr.bf16.mxu0 %v6964
    %7952 = vmatpush1.bf16.msra.mxu0 %v6963
    %7953 = vmatprep.subr.bf16.mxu0 %v6956
    %7954 = vmatpush1.bf16.msra.mxu0 %v6955
    %7955 = vmatprep.subr.bf16.mxu0 %v6948
    %7956 = vmatpush1.bf16.msra.mxu0 %v6947
    %7957 = vmatprep.subr.bf16.mxu0 %v6940
    %7958 = vmatpush1.bf16.msra.mxu0 %v6939
    %7959 = vmatprep.subr.bf16.mxu0 %v6932
    %7960 = vmatpush1.bf16.msra.mxu0 %v6931
    %7961 = vmatprep.subr.bf16.mxu0 %v6924
    %7962 = vmatpush1.bf16.msra.mxu0 %v6923
    %7963 = vmatprep.subr.bf16.mxu0 %v7044
    %7964 = vmatpush2.bf16.msra.mxu0 %v7043
    %7965 = vmatprep.subr.bf16.mxu0 %v7036
    %7966 = vmatpush2.bf16.msra.mxu0 %v7035
    %7967 = vmatprep.subr.bf16.mxu0 %v7028
    %7968 = vmatpush2.bf16.msra.mxu0 %v7027
    %7969 = vmatprep.subr.bf16.mxu0 %v7020
    %7970 = vmatpush2.bf16.msra.mxu0 %v7019
    %7971 = vmatprep.subr.bf16.mxu0 %v7012
    %7972 = vmatpush2.bf16.msra.mxu0 %v7011
    %7973 = vmatprep.subr.bf16.mxu0 %v7004
    %7974 = vmatpush2.bf16.msra.mxu0 %v7003
    %7975 = vmatprep.subr.bf16.mxu0 %v6996
    %7976 = vmatpush2.bf16.msra.mxu0 %v6995
    %7977 = vmatprep.subr.bf16.mxu0 %v6988
    %7978 = vmatpush2.bf16.msra.mxu0 %v6987
    %7979 = vmatprep.mubr.bf16.mxu0 %v4572
    %7980 = vmatmul.mubr.bf16.gmra.mxu0 %v4571
    %v7981 = vpop.f32.mrf.mxu0
    %v7982 = vadd.f32 %v7939, %v7981
    %v7983 = vpop.f32.mrf.mxu0
    %v7984 = vadd.f32 %v7941, %v7983
    %v7985 = vpop.f32.mrf.mxu0
    %v7986 = vadd.f32 %v7943, %v7985
    %v7987 = vpop.f32.mrf.mxu0
    %v7988 = vadd.f32 %v7945, %v7987
    %7989 = vdwg.mxu0
    %7990 = vmatprep.subr.bf16.mxu0 %v7108
    %7991 = vmatpush1.bf16.msra.mxu0 %v7107
    %7992 = vmatprep.subr.bf16.mxu0 %v7100
    %7993 = vmatpush1.bf16.msra.mxu0 %v7099
    %7994 = vmatprep.subr.bf16.mxu0 %v7092
    %7995 = vmatpush1.bf16.msra.mxu0 %v7091
    %7996 = vmatprep.subr.bf16.mxu0 %v7084
    %7997 = vmatpush1.bf16.msra.mxu0 %v7083
    %7998 = vmatprep.subr.bf16.mxu0 %v7076
    %7999 = vmatpush1.bf16.msra.mxu0 %v7075
    %8000 = vmatprep.subr.bf16.mxu0 %v7068
    %8001 = vmatpush1.bf16.msra.mxu0 %v7067
    %8002 = vmatprep.subr.bf16.mxu0 %v7060
    %8003 = vmatpush1.bf16.msra.mxu0 %v7059
    %8004 = vmatprep.subr.bf16.mxu0 %v7052
    %8005 = vmatpush1.bf16.msra.mxu0 %v7051
    %8006 = vmatprep.subr.bf16.mxu0 %v7172
    %8007 = vmatpush2.bf16.msra.mxu0 %v7171
    %8008 = vmatprep.subr.bf16.mxu0 %v7164
    %8009 = vmatpush2.bf16.msra.mxu0 %v7163
    %8010 = vmatprep.subr.bf16.mxu0 %v7156
    %8011 = vmatpush2.bf16.msra.mxu0 %v7155
    %8012 = vmatprep.subr.bf16.mxu0 %v7148
    %8013 = vmatpush2.bf16.msra.mxu0 %v7147
    %8014 = vmatprep.subr.bf16.mxu0 %v7140
    %8015 = vmatpush2.bf16.msra.mxu0 %v7139
    %8016 = vmatprep.subr.bf16.mxu0 %v7132
    %8017 = vmatpush2.bf16.msra.mxu0 %v7131
    %8018 = vmatprep.subr.bf16.mxu0 %v7124
    %8019 = vmatpush2.bf16.msra.mxu0 %v7123
    %8020 = vmatprep.subr.bf16.mxu0 %v7116
    %8021 = vmatpush2.bf16.msra.mxu0 %v7115
    %8022 = vmatprep.mubr.bf16.mxu0 %v4574
    %8023 = vmatmul.mubr.bf16.gmra.mxu0 %v4573
    %v8024 = vpop.f32.mrf.mxu0
    %v8025 = vadd.f32 %v7982, %v8024
    %v8026 = vpop.f32.mrf.mxu0
    %v8027 = vadd.f32 %v7984, %v8026
    %v8028 = vpop.f32.mrf.mxu0
    %v8029 = vadd.f32 %v7986, %v8028
    %v8030 = vpop.f32.mrf.mxu0
    %v8031 = vadd.f32 %v7988, %v8030
    %8032 = vdwg.mxu0
    %8033 = vmatprep.subr.bf16.mxu0 %v6726
    %8034 = vmatpush1.bf16.msra.mxu0 %v6725
    %8035 = vmatprep.subr.bf16.mxu0 %v6718
    %8036 = vmatpush1.bf16.msra.mxu0 %v6717
    %8037 = vmatprep.subr.bf16.mxu0 %v6710
    %8038 = vmatpush1.bf16.msra.mxu0 %v6709
    %8039 = vmatprep.subr.bf16.mxu0 %v6702
    %8040 = vmatpush1.bf16.msra.mxu0 %v6701
    %8041 = vmatprep.subr.bf16.mxu0 %v6694
    %8042 = vmatpush1.bf16.msra.mxu0 %v6693
    %8043 = vmatprep.subr.bf16.mxu0 %v6686
    %8044 = vmatpush1.bf16.msra.mxu0 %v6685
    %8045 = vmatprep.subr.bf16.mxu0 %v6678
    %8046 = vmatpush1.bf16.msra.mxu0 %v6677
    %8047 = vmatprep.subr.bf16.mxu0 %v6670
    %8048 = vmatpush1.bf16.msra.mxu0 %v6669
    %8049 = vmatprep.subr.bf16.mxu0 %v6790
    %8050 = vmatpush2.bf16.msra.mxu0 %v6789
    %8051 = vmatprep.subr.bf16.mxu0 %v6782
    %8052 = vmatpush2.bf16.msra.mxu0 %v6781
    %8053 = vmatprep.subr.bf16.mxu0 %v6774
    %8054 = vmatpush2.bf16.msra.mxu0 %v6773
    %8055 = vmatprep.subr.bf16.mxu0 %v6766
    %8056 = vmatpush2.bf16.msra.mxu0 %v6765
    %8057 = vmatprep.subr.bf16.mxu0 %v6758
    %8058 = vmatpush2.bf16.msra.mxu0 %v6757
    %8059 = vmatprep.subr.bf16.mxu0 %v6750
    %8060 = vmatpush2.bf16.msra.mxu0 %v6749
    %8061 = vmatprep.subr.bf16.mxu0 %v6742
    %8062 = vmatpush2.bf16.msra.mxu0 %v6741
    %8063 = vmatprep.subr.bf16.mxu0 %v6734
    %8064 = vmatpush2.bf16.msra.mxu0 %v6733
    %8065 = vmatprep.mubr.bf16.mxu0 %v4568
    %8066 = vmatmul.mubr.bf16.gmra.mxu0 %v4567
    %v8067 = vpop.f32.mrf.mxu0
    %v8068 = vadd.f32 %v5108, %v8067
    %v8069 = vpop.f32.mrf.mxu0
    %v8070 = vadd.f32 %v5112, %v8069
    %v8071 = vpop.f32.mrf.mxu0
    %v8072 = vadd.f32 %v5108, %v8071
    %v8073 = vpop.f32.mrf.mxu0
    %v8074 = vadd.f32 %v5112, %v8073
    %8075 = vdwg.mxu0
    %8076 = vmatprep.subr.bf16.mxu0 %v6854
    %8077 = vmatpush1.bf16.msra.mxu0 %v6853
    %8078 = vmatprep.subr.bf16.mxu0 %v6846
    %8079 = vmatpush1.bf16.msra.mxu0 %v6845
    %8080 = vmatprep.subr.bf16.mxu0 %v6838
    %8081 = vmatpush1.bf16.msra.mxu0 %v6837
    %8082 = vmatprep.subr.bf16.mxu0 %v6830
    %8083 = vmatpush1.bf16.msra.mxu0 %v6829
    %8084 = vmatprep.subr.bf16.mxu0 %v6822
    %8085 = vmatpush1.bf16.msra.mxu0 %v6821
    %8086 = vmatprep.subr.bf16.mxu0 %v6814
    %8087 = vmatpush1.bf16.msra.mxu0 %v6813
    %8088 = vmatprep.subr.bf16.mxu0 %v6806
    %8089 = vmatpush1.bf16.msra.mxu0 %v6805
    %8090 = vmatprep.subr.bf16.mxu0 %v6798
    %8091 = vmatpush1.bf16.msra.mxu0 %v6797
    %8092 = vmatprep.subr.bf16.mxu0 %v6918
    %8093 = vmatpush2.bf16.msra.mxu0 %v6917
    %8094 = vmatprep.subr.bf16.mxu0 %v6910
    %8095 = vmatpush2.bf16.msra.mxu0 %v6909
    %8096 = vmatprep.subr.bf16.mxu0 %v6902
    %8097 = vmatpush2.bf16.msra.mxu0 %v6901
    %8098 = vmatprep.subr.bf16.mxu0 %v6894
    %8099 = vmatpush2.bf16.msra.mxu0 %v6893
    %8100 = vmatprep.subr.bf16.mxu0 %v6886
    %8101 = vmatpush2.bf16.msra.mxu0 %v6885
    %8102 = vmatprep.subr.bf16.mxu0 %v6878
    %8103 = vmatpush2.bf16.msra.mxu0 %v6877
    %8104 = vmatprep.subr.bf16.mxu0 %v6870
    %8105 = vmatpush2.bf16.msra.mxu0 %v6869
    %8106 = vmatprep.subr.bf16.mxu0 %v6862
    %8107 = vmatpush2.bf16.msra.mxu0 %v6861
    %8108 = vmatprep.mubr.bf16.mxu0 %v4570
    %8109 = vmatmul.mubr.bf16.gmra.mxu0 %v4569
    %v8110 = vpop.f32.mrf.mxu0
    %v8111 = vadd.f32 %v8068, %v8110
    %v8112 = vpop.f32.mrf.mxu0
    %v8113 = vadd.f32 %v8070, %v8112
    %v8114 = vpop.f32.mrf.mxu0
    %v8115 = vadd.f32 %v8072, %v8114
    %v8116 = vpop.f32.mrf.mxu0
    %v8117 = vadd.f32 %v8074, %v8116
    %8118 = vdwg.mxu0
    %8119 = vmatprep.subr.bf16.mxu0 %v6982
    %8120 = vmatpush1.bf16.msra.mxu0 %v6981
    %8121 = vmatprep.subr.bf16.mxu0 %v6974
    %8122 = vmatpush1.bf16.msra.mxu0 %v6973
    %8123 = vmatprep.subr.bf16.mxu0 %v6966
    %8124 = vmatpush1.bf16.msra.mxu0 %v6965
    %8125 = vmatprep.subr.bf16.mxu0 %v6958
    %8126 = vmatpush1.bf16.msra.mxu0 %v6957
    %8127 = vmatprep.subr.bf16.mxu0 %v6950
    %8128 = vmatpush1.bf16.msra.mxu0 %v6949
    %8129 = vmatprep.subr.bf16.mxu0 %v6942
    %8130 = vmatpush1.bf16.msra.mxu0 %v6941
    %8131 = vmatprep.subr.bf16.mxu0 %v6934
    %8132 = vmatpush1.bf16.msra.mxu0 %v6933
    %8133 = vmatprep.subr.bf16.mxu0 %v6926
    %8134 = vmatpush1.bf16.msra.mxu0 %v6925
    %8135 = vmatprep.subr.bf16.mxu0 %v7046
    %8136 = vmatpush2.bf16.msra.mxu0 %v7045
    %8137 = vmatprep.subr.bf16.mxu0 %v7038
    %8138 = vmatpush2.bf16.msra.mxu0 %v7037
    %8139 = vmatprep.subr.bf16.mxu0 %v7030
    %8140 = vmatpush2.bf16.msra.mxu0 %v7029
    %8141 = vmatprep.subr.bf16.mxu0 %v7022
    %8142 = vmatpush2.bf16.msra.mxu0 %v7021
    %8143 = vmatprep.subr.bf16.mxu0 %v7014
    %8144 = vmatpush2.bf16.msra.mxu0 %v7013
    %8145 = vmatprep.subr.bf16.mxu0 %v7006
    %8146 = vmatpush2.bf16.msra.mxu0 %v7005
    %8147 = vmatprep.subr.bf16.mxu0 %v6998
    %8148 = vmatpush2.bf16.msra.mxu0 %v6997
    %8149 = vmatprep.subr.bf16.mxu0 %v6990
    %8150 = vmatpush2.bf16.msra.mxu0 %v6989
    %8151 = vmatprep.mubr.bf16.mxu0 %v4572
    %8152 = vmatmul.mubr.bf16.gmra.mxu0 %v4571
    %v8153 = vpop.f32.mrf.mxu0
    %v8154 = vadd.f32 %v8111, %v8153
    %v8155 = vpop.f32.mrf.mxu0
    %v8156 = vadd.f32 %v8113, %v8155
    %v8157 = vpop.f32.mrf.mxu0
    %v8158 = vadd.f32 %v8115, %v8157
    %v8159 = vpop.f32.mrf.mxu0
    %v8160 = vadd.f32 %v8117, %v8159
    %8161 = vdwg.mxu0
    %8162 = vmatprep.subr.bf16.mxu0 %v7110
    %8163 = vmatpush1.bf16.msra.mxu0 %v7109
    %8164 = vmatprep.subr.bf16.mxu0 %v7102
    %8165 = vmatpush1.bf16.msra.mxu0 %v7101
    %8166 = vmatprep.subr.bf16.mxu0 %v7094
    %8167 = vmatpush1.bf16.msra.mxu0 %v7093
    %8168 = vmatprep.subr.bf16.mxu0 %v7086
    %8169 = vmatpush1.bf16.msra.mxu0 %v7085
    %8170 = vmatprep.subr.bf16.mxu0 %v7078
    %8171 = vmatpush1.bf16.msra.mxu0 %v7077
    %8172 = vmatprep.subr.bf16.mxu0 %v7070
    %8173 = vmatpush1.bf16.msra.mxu0 %v7069
    %8174 = vmatprep.subr.bf16.mxu0 %v7062
    %8175 = vmatpush1.bf16.msra.mxu0 %v7061
    %8176 = vmatprep.subr.bf16.mxu0 %v7054
    %8177 = vmatpush1.bf16.msra.mxu0 %v7053
    %8178 = vmatprep.subr.bf16.mxu0 %v7174
    %8179 = vmatpush2.bf16.msra.mxu0 %v7173
    %8180 = vmatprep.subr.bf16.mxu0 %v7166
    %8181 = vmatpush2.bf16.msra.mxu0 %v7165
    %8182 = vmatprep.subr.bf16.mxu0 %v7158
    %8183 = vmatpush2.bf16.msra.mxu0 %v7157
    %8184 = vmatprep.subr.bf16.mxu0 %v7150
    %8185 = vmatpush2.bf16.msra.mxu0 %v7149
    %8186 = vmatprep.subr.bf16.mxu0 %v7142
    %8187 = vmatpush2.bf16.msra.mxu0 %v7141
    %8188 = vmatprep.subr.bf16.mxu0 %v7134
    %8189 = vmatpush2.bf16.msra.mxu0 %v7133
    %8190 = vmatprep.subr.bf16.mxu0 %v7126
    %8191 = vmatpush2.bf16.msra.mxu0 %v7125
    %8192 = vmatprep.subr.bf16.mxu0 %v7118
    %8193 = vmatpush2.bf16.msra.mxu0 %v7117
    %8194 = vmatprep.mubr.bf16.mxu0 %v4574
    %8195 = vmatmul.mubr.bf16.gmra.mxu0 %v4573
    %v8196 = vpop.f32.mrf.mxu0
    %v8197 = vadd.f32 %v8154, %v8196
    %v8198 = vpop.f32.mrf.mxu0
    %v8199 = vadd.f32 %v8156, %v8198
    %v8200 = vpop.f32.mrf.mxu0
    %v8201 = vadd.f32 %v8158, %v8200
    %v8202 = vpop.f32.mrf.mxu0
    %v8203 = vadd.f32 %v8160, %v8202
    %8204 = vdwg.mxu0
    %8205 = vmatprep.subr.bf16.mxu0 %v6728
    %8206 = vmatpush1.bf16.msra.mxu0 %v6727
    %8207 = vmatprep.subr.bf16.mxu0 %v6720
    %8208 = vmatpush1.bf16.msra.mxu0 %v6719
    %8209 = vmatprep.subr.bf16.mxu0 %v6712
    %8210 = vmatpush1.bf16.msra.mxu0 %v6711
    %8211 = vmatprep.subr.bf16.mxu0 %v6704
    %8212 = vmatpush1.bf16.msra.mxu0 %v6703
    %8213 = vmatprep.subr.bf16.mxu0 %v6696
    %8214 = vmatpush1.bf16.msra.mxu0 %v6695
    %8215 = vmatprep.subr.bf16.mxu0 %v6688
    %8216 = vmatpush1.bf16.msra.mxu0 %v6687
    %8217 = vmatprep.subr.bf16.mxu0 %v6680
    %8218 = vmatpush1.bf16.msra.mxu0 %v6679
    %8219 = vmatprep.subr.bf16.mxu0 %v6672
    %8220 = vmatpush1.bf16.msra.mxu0 %v6671
    %8221 = vmatprep.subr.bf16.mxu0 %v6792
    %8222 = vmatpush2.bf16.msra.mxu0 %v6791
    %8223 = vmatprep.subr.bf16.mxu0 %v6784
    %8224 = vmatpush2.bf16.msra.mxu0 %v6783
    %8225 = vmatprep.subr.bf16.mxu0 %v6776
    %8226 = vmatpush2.bf16.msra.mxu0 %v6775
    %8227 = vmatprep.subr.bf16.mxu0 %v6768
    %8228 = vmatpush2.bf16.msra.mxu0 %v6767
    %8229 = vmatprep.subr.bf16.mxu0 %v6760
    %8230 = vmatpush2.bf16.msra.mxu0 %v6759
    %8231 = vmatprep.subr.bf16.mxu0 %v6752
    %8232 = vmatpush2.bf16.msra.mxu0 %v6751
    %8233 = vmatprep.subr.bf16.mxu0 %v6744
    %8234 = vmatpush2.bf16.msra.mxu0 %v6743
    %8235 = vmatprep.subr.bf16.mxu0 %v6736
    %8236 = vmatpush2.bf16.msra.mxu0 %v6735
    %8237 = vmatprep.mubr.bf16.mxu0 %v4568
    %8238 = vmatmul.mubr.bf16.gmra.mxu0 %v4567
    %v8239 = vpop.f32.mrf.mxu0
    %v8240 = vadd.f32 %v5116, %v8239
    %v8241 = vpop.f32.mrf.mxu0
    %v8242 = vadd.f32 %v5120, %v8241
    %v8243 = vpop.f32.mrf.mxu0
    %v8244 = vadd.f32 %v5116, %v8243
    %v8245 = vpop.f32.mrf.mxu0
    %v8246 = vadd.f32 %v5120, %v8245
    %8247 = vdwg.mxu0
    %8248 = vmatprep.subr.bf16.mxu0 %v6856
    %8249 = vmatpush1.bf16.msra.mxu0 %v6855
    %8250 = vmatprep.subr.bf16.mxu0 %v6848
    %8251 = vmatpush1.bf16.msra.mxu0 %v6847
    %8252 = vmatprep.subr.bf16.mxu0 %v6840
    %8253 = vmatpush1.bf16.msra.mxu0 %v6839
    %8254 = vmatprep.subr.bf16.mxu0 %v6832
    %8255 = vmatpush1.bf16.msra.mxu0 %v6831
    %8256 = vmatprep.subr.bf16.mxu0 %v6824
    %8257 = vmatpush1.bf16.msra.mxu0 %v6823
    %8258 = vmatprep.subr.bf16.mxu0 %v6816
    %8259 = vmatpush1.bf16.msra.mxu0 %v6815
    %8260 = vmatprep.subr.bf16.mxu0 %v6808
    %8261 = vmatpush1.bf16.msra.mxu0 %v6807
    %8262 = vmatprep.subr.bf16.mxu0 %v6800
    %8263 = vmatpush1.bf16.msra.mxu0 %v6799
    %8264 = vmatprep.subr.bf16.mxu0 %v6920
    %8265 = vmatpush2.bf16.msra.mxu0 %v6919
    %8266 = vmatprep.subr.bf16.mxu0 %v6912
    %8267 = vmatpush2.bf16.msra.mxu0 %v6911
    %8268 = vmatprep.subr.bf16.mxu0 %v6904
    %8269 = vmatpush2.bf16.msra.mxu0 %v6903
    %8270 = vmatprep.subr.bf16.mxu0 %v6896
    %8271 = vmatpush2.bf16.msra.mxu0 %v6895
    %8272 = vmatprep.subr.bf16.mxu0 %v6888
    %8273 = vmatpush2.bf16.msra.mxu0 %v6887
    %8274 = vmatprep.subr.bf16.mxu0 %v6880
    %8275 = vmatpush2.bf16.msra.mxu0 %v6879
    %8276 = vmatprep.subr.bf16.mxu0 %v6872
    %8277 = vmatpush2.bf16.msra.mxu0 %v6871
    %8278 = vmatprep.subr.bf16.mxu0 %v6864
    %8279 = vmatpush2.bf16.msra.mxu0 %v6863
    %8280 = vmatprep.mubr.bf16.mxu0 %v4570
    %8281 = vmatmul.mubr.bf16.gmra.mxu0 %v4569
    %v8282 = vpop.f32.mrf.mxu0
    %v8283 = vadd.f32 %v8240, %v8282
    %v8284 = vpop.f32.mrf.mxu0
    %v8285 = vadd.f32 %v8242, %v8284
    %v8286 = vpop.f32.mrf.mxu0
    %v8287 = vadd.f32 %v8244, %v8286
    %v8288 = vpop.f32.mrf.mxu0
    %v8289 = vadd.f32 %v8246, %v8288
    %8290 = vdwg.mxu0
    %8291 = vmatprep.subr.bf16.mxu0 %v6984
    %8292 = vmatpush1.bf16.msra.mxu0 %v6983
    %8293 = vmatprep.subr.bf16.mxu0 %v6976
    %8294 = vmatpush1.bf16.msra.mxu0 %v6975
    %8295 = vmatprep.subr.bf16.mxu0 %v6968
    %8296 = vmatpush1.bf16.msra.mxu0 %v6967
    %8297 = vmatprep.subr.bf16.mxu0 %v6960
    %8298 = vmatpush1.bf16.msra.mxu0 %v6959
    %8299 = vmatprep.subr.bf16.mxu0 %v6952
    %8300 = vmatpush1.bf16.msra.mxu0 %v6951
    %8301 = vmatprep.subr.bf16.mxu0 %v6944
    %8302 = vmatpush1.bf16.msra.mxu0 %v6943
    %8303 = vmatprep.subr.bf16.mxu0 %v6936
    %8304 = vmatpush1.bf16.msra.mxu0 %v6935
    %8305 = vmatprep.subr.bf16.mxu0 %v6928
    %8306 = vmatpush1.bf16.msra.mxu0 %v6927
    %8307 = vmatprep.subr.bf16.mxu0 %v7048
    %8308 = vmatpush2.bf16.msra.mxu0 %v7047
    %8309 = vmatprep.subr.bf16.mxu0 %v7040
    %8310 = vmatpush2.bf16.msra.mxu0 %v7039
    %8311 = vmatprep.subr.bf16.mxu0 %v7032
    %8312 = vmatpush2.bf16.msra.mxu0 %v7031
    %8313 = vmatprep.subr.bf16.mxu0 %v7024
    %8314 = vmatpush2.bf16.msra.mxu0 %v7023
    %8315 = vmatprep.subr.bf16.mxu0 %v7016
    %8316 = vmatpush2.bf16.msra.mxu0 %v7015
    %8317 = vmatprep.subr.bf16.mxu0 %v7008
    %8318 = vmatpush2.bf16.msra.mxu0 %v7007
    %8319 = vmatprep.subr.bf16.mxu0 %v7000
    %8320 = vmatpush2.bf16.msra.mxu0 %v6999
    %8321 = vmatprep.subr.bf16.mxu0 %v6992
    %8322 = vmatpush2.bf16.msra.mxu0 %v6991
    %8323 = vmatprep.mubr.bf16.mxu0 %v4572
    %8324 = vmatmul.mubr.bf16.gmra.mxu0 %v4571
    %v8325 = vpop.f32.mrf.mxu0
    %v8326 = vadd.f32 %v8283, %v8325
    %v8327 = vpop.f32.mrf.mxu0
    %v8328 = vadd.f32 %v8285, %v8327
    %v8329 = vpop.f32.mrf.mxu0
    %v8330 = vadd.f32 %v8287, %v8329
    %v8331 = vpop.f32.mrf.mxu0
    %v8332 = vadd.f32 %v8289, %v8331
    %8333 = vdwg.mxu0
    %8334 = vmatprep.subr.bf16.mxu0 %v7112
    %8335 = vmatpush1.bf16.msra.mxu0 %v7111
    %8336 = vmatprep.subr.bf16.mxu0 %v7104
    %8337 = vmatpush1.bf16.msra.mxu0 %v7103
    %8338 = vmatprep.subr.bf16.mxu0 %v7096
    %8339 = vmatpush1.bf16.msra.mxu0 %v7095
    %8340 = vmatprep.subr.bf16.mxu0 %v7088
    %8341 = vmatpush1.bf16.msra.mxu0 %v7087
    %8342 = vmatprep.subr.bf16.mxu0 %v7080
    %8343 = vmatpush1.bf16.msra.mxu0 %v7079
    %8344 = vmatprep.subr.bf16.mxu0 %v7072
    %8345 = vmatpush1.bf16.msra.mxu0 %v7071
    %8346 = vmatprep.subr.bf16.mxu0 %v7064
    %8347 = vmatpush1.bf16.msra.mxu0 %v7063
    %8348 = vmatprep.subr.bf16.mxu0 %v7056
    %8349 = vmatpush1.bf16.msra.mxu0 %v7055
    %8350 = vmatprep.subr.bf16.mxu0 %v7176
    %8351 = vmatpush2.bf16.msra.mxu0 %v7175
    %8352 = vmatprep.subr.bf16.mxu0 %v7168
    %8353 = vmatpush2.bf16.msra.mxu0 %v7167
    %8354 = vmatprep.subr.bf16.mxu0 %v7160
    %8355 = vmatpush2.bf16.msra.mxu0 %v7159
    %8356 = vmatprep.subr.bf16.mxu0 %v7152
    %8357 = vmatpush2.bf16.msra.mxu0 %v7151
    %8358 = vmatprep.subr.bf16.mxu0 %v7144
    %8359 = vmatpush2.bf16.msra.mxu0 %v7143
    %8360 = vmatprep.subr.bf16.mxu0 %v7136
    %8361 = vmatpush2.bf16.msra.mxu0 %v7135
    %8362 = vmatprep.subr.bf16.mxu0 %v7128
    %8363 = vmatpush2.bf16.msra.mxu0 %v7127
    %8364 = vmatprep.subr.bf16.mxu0 %v7120
    %8365 = vmatpush2.bf16.msra.mxu0 %v7119
    %8366 = vmatprep.mubr.bf16.mxu0 %v4574
    %8367 = vmatmul.mubr.bf16.gmra.mxu0 %v4573
    %v8368 = vpop.f32.mrf.mxu0
    %v8369 = vadd.f32 %v8326, %v8368
    %v8370 = vpop.f32.mrf.mxu0
    %v8371 = vadd.f32 %v8328, %v8370
    %v8372 = vpop.f32.mrf.mxu0
    %v8373 = vadd.f32 %v8330, %v8372
    %v8374 = vpop.f32.mrf.mxu0
    %v8375 = vadd.f32 %v8332, %v8374
    %8376 = vdwg.mxu0
    %v8377 = vrot.slane %v7853, 4
    %v8378 = vadd.f32 %v7853, %v8377
    %v8379 = vrot.slane %v8378, 2
    %v8380 = vadd.f32 %v8378, %v8379
    %v8381 = vrot.slane %v8380, 1
    %v8382 = vadd.f32 %v8380, %v8381
    %v8383 = vrot.slane %v7855, 4
    %v8384 = vadd.f32 %v7855, %v8383
    %v8385 = vrot.slane %v8384, 2
    %v8386 = vadd.f32 %v8384, %v8385
    %v8387 = vrot.slane %v8386, 1
    %v8388 = vadd.f32 %v8386, %v8387
    %v8389 = vrot.slane %v8025, 4
    %v8390 = vadd.f32 %v8025, %v8389
    %v8391 = vrot.slane %v8390, 2
    %v8392 = vadd.f32 %v8390, %v8391
    %v8393 = vrot.slane %v8392, 1
    %v8394 = vadd.f32 %v8392, %v8393
    %v8395 = vrot.slane %v8027, 4
    %v8396 = vadd.f32 %v8027, %v8395
    %v8397 = vrot.slane %v8396, 2
    %v8398 = vadd.f32 %v8396, %v8397
    %v8399 = vrot.slane %v8398, 1
    %v8400 = vadd.f32 %v8398, %v8399
    %v8401 = vrot.slane %v8197, 4
    %v8402 = vadd.f32 %v8197, %v8401
    %v8403 = vrot.slane %v8402, 2
    %v8404 = vadd.f32 %v8402, %v8403
    %v8405 = vrot.slane %v8404, 1
    %v8406 = vadd.f32 %v8404, %v8405
    %v8407 = vrot.slane %v8199, 4
    %v8408 = vadd.f32 %v8199, %v8407
    %v8409 = vrot.slane %v8408, 2
    %v8410 = vadd.f32 %v8408, %v8409
    %v8411 = vrot.slane %v8410, 1
    %v8412 = vadd.f32 %v8410, %v8411
    %v8413 = vrot.slane %v8369, 4
    %v8414 = vadd.f32 %v8369, %v8413
    %v8415 = vrot.slane %v8414, 2
    %v8416 = vadd.f32 %v8414, %v8415
    %v8417 = vrot.slane %v8416, 1
    %v8418 = vadd.f32 %v8416, %v8417
    %v8419 = vrot.slane %v8371, 4
    %v8420 = vadd.f32 %v8371, %v8419
    %v8421 = vrot.slane %v8420, 2
    %v8422 = vadd.f32 %v8420, %v8421
    %v8423 = vrot.slane %v8422, 1
    %v8424 = vadd.f32 %v8422, %v8423
    %v8425 = vrcp.pop 8.0
    %v8426 = vmul.f32 %v8382, %v8425
    %v8427 = vmul.f32 %v8388, %v8425
    %v8428 = vmul.f32 %v8394, %v8425
    %v8429 = vmul.f32 %v8400, %v8425
    %v8430 = vmul.f32 %v8406, %v8425
    %v8431 = vmul.f32 %v8412, %v8425
    %v8432 = vmul.f32 %v8418, %v8425
    %v8433 = vmul.f32 %v8424, %v8425
    %v8434 = vsub.f32 %v7853, %v8426
    %v8435 = vsub.f32 %v7855, %v8427
    %v8436 = vsub.f32 %v8025, %v8428
    %v8437 = vsub.f32 %v8027, %v8429
    %v8438 = vsub.f32 %v8197, %v8430
    %v8439 = vsub.f32 %v8199, %v8431
    %v8440 = vsub.f32 %v8369, %v8432
    %v8441 = vsub.f32 %v8371, %v8433
    %v8442 = vmul.f32 %v8434, %v8434
    %v8443 = vmul.f32 %v8435, %v8435
    %v8444 = vmul.f32 %v8436, %v8436
    %v8445 = vmul.f32 %v8437, %v8437
    %v8446 = vmul.f32 %v8438, %v8438
    %v8447 = vmul.f32 %v8439, %v8439
    %v8448 = vmul.f32 %v8440, %v8440
    %v8449 = vmul.f32 %v8441, %v8441
    %v8450 = vrot.slane %v8442, 4
    %v8451 = vadd.f32 %v8442, %v8450
    %v8452 = vrot.slane %v8451, 2
    %v8453 = vadd.f32 %v8451, %v8452
    %v8454 = vrot.slane %v8453, 1
    %v8455 = vadd.f32 %v8453, %v8454
    %v8456 = vrot.slane %v8443, 4
    %v8457 = vadd.f32 %v8443, %v8456
    %v8458 = vrot.slane %v8457, 2
    %v8459 = vadd.f32 %v8457, %v8458
    %v8460 = vrot.slane %v8459, 1
    %v8461 = vadd.f32 %v8459, %v8460
    %v8462 = vrot.slane %v8444, 4
    %v8463 = vadd.f32 %v8444, %v8462
    %v8464 = vrot.slane %v8463, 2
    %v8465 = vadd.f32 %v8463, %v8464
    %v8466 = vrot.slane %v8465, 1
    %v8467 = vadd.f32 %v8465, %v8466
    %v8468 = vrot.slane %v8445, 4
    %v8469 = vadd.f32 %v8445, %v8468
    %v8470 = vrot.slane %v8469, 2
    %v8471 = vadd.f32 %v8469, %v8470
    %v8472 = vrot.slane %v8471, 1
    %v8473 = vadd.f32 %v8471, %v8472
    %v8474 = vrot.slane %v8446, 4
    %v8475 = vadd.f32 %v8446, %v8474
    %v8476 = vrot.slane %v8475, 2
    %v8477 = vadd.f32 %v8475, %v8476
    %v8478 = vrot.slane %v8477, 1
    %v8479 = vadd.f32 %v8477, %v8478
    %v8480 = vrot.slane %v8447, 4
    %v8481 = vadd.f32 %v8447, %v8480
    %v8482 = vrot.slane %v8481, 2
    %v8483 = vadd.f32 %v8481, %v8482
    %v8484 = vrot.slane %v8483, 1
    %v8485 = vadd.f32 %v8483, %v8484
    %v8486 = vrot.slane %v8448, 4
    %v8487 = vadd.f32 %v8448, %v8486
    %v8488 = vrot.slane %v8487, 2
    %v8489 = vadd.f32 %v8487, %v8488
    %v8490 = vrot.slane %v8489, 1
    %v8491 = vadd.f32 %v8489, %v8490
    %v8492 = vrot.slane %v8449, 4
    %v8493 = vadd.f32 %v8449, %v8492
    %v8494 = vrot.slane %v8493, 2
    %v8495 = vadd.f32 %v8493, %v8494
    %v8496 = vrot.slane %v8495, 1
    %v8497 = vadd.f32 %v8495, %v8496
    %v8498 = vmul.f32 %v8455, %v8425
    %v8499 = vmul.f32 %v8461, %v8425
    %v8500 = vmul.f32 %v8467, %v8425
    %v8501 = vmul.f32 %v8473, %v8425
    %v8502 = vmul.f32 %v8479, %v8425
    %v8503 = vmul.f32 %v8485, %v8425
    %v8504 = vmul.f32 %v8491, %v8425
    %v8505 = vmul.f32 %v8497, %v8425
    %v8506 = vadd.f32 %v8498, 1e-05
    %v8507 = vadd.f32 %v8499, 1e-05
    %v8508 = vadd.f32 %v8500, 1e-05
    %v8509 = vadd.f32 %v8501, 1e-05
    %v8510 = vadd.f32 %v8502, 1e-05
    %v8511 = vadd.f32 %v8503, 1e-05
    %v8512 = vadd.f32 %v8504, 1e-05
    %v8513 = vadd.f32 %v8505, 1e-05
    %v8514 = vrsqrt.pop %v8506
    %v8515 = vrsqrt.pop %v8507
    %v8516 = vrsqrt.pop %v8508
    %v8517 = vrsqrt.pop %v8509
    %v8518 = vrsqrt.pop %v8510
    %v8519 = vrsqrt.pop %v8511
    %v8520 = vrsqrt.pop %v8512
    %v8521 = vrsqrt.pop %v8513
    %v8522 = vmul.f32 %v8434, %v8514
    %v8523 = vmul.f32 %v8435, %v8515
    %v8524 = vmul.f32 %v8436, %v8516
    %v8525 = vmul.f32 %v8437, %v8517
    %v8526 = vmul.f32 %v8438, %v8518
    %v8527 = vmul.f32 %v8439, %v8519
    %v8528 = vmul.f32 %v8440, %v8520
    %v8529 = vmul.f32 %v8441, %v8521
    %v8530 = vrot.slane %v7857, 4
    %v8531 = vadd.f32 %v7857, %v8530
    %v8532 = vrot.slane %v8531, 2
    %v8533 = vadd.f32 %v8531, %v8532
    %v8534 = vrot.slane %v8533, 1
    %v8535 = vadd.f32 %v8533, %v8534
    %v8536 = vrot.slane %v7859, 4
    %v8537 = vadd.f32 %v7859, %v8536
    %v8538 = vrot.slane %v8537, 2
    %v8539 = vadd.f32 %v8537, %v8538
    %v8540 = vrot.slane %v8539, 1
    %v8541 = vadd.f32 %v8539, %v8540
    %v8542 = vrot.slane %v8029, 4
    %v8543 = vadd.f32 %v8029, %v8542
    %v8544 = vrot.slane %v8543, 2
    %v8545 = vadd.f32 %v8543, %v8544
    %v8546 = vrot.slane %v8545, 1
    %v8547 = vadd.f32 %v8545, %v8546
    %v8548 = vrot.slane %v8031, 4
    %v8549 = vadd.f32 %v8031, %v8548
    %v8550 = vrot.slane %v8549, 2
    %v8551 = vadd.f32 %v8549, %v8550
    %v8552 = vrot.slane %v8551, 1
    %v8553 = vadd.f32 %v8551, %v8552
    %v8554 = vrot.slane %v8201, 4
    %v8555 = vadd.f32 %v8201, %v8554
    %v8556 = vrot.slane %v8555, 2
    %v8557 = vadd.f32 %v8555, %v8556
    %v8558 = vrot.slane %v8557, 1
    %v8559 = vadd.f32 %v8557, %v8558
    %v8560 = vrot.slane %v8203, 4
    %v8561 = vadd.f32 %v8203, %v8560
    %v8562 = vrot.slane %v8561, 2
    %v8563 = vadd.f32 %v8561, %v8562
    %v8564 = vrot.slane %v8563, 1
    %v8565 = vadd.f32 %v8563, %v8564
    %v8566 = vrot.slane %v8373, 4
    %v8567 = vadd.f32 %v8373, %v8566
    %v8568 = vrot.slane %v8567, 2
    %v8569 = vadd.f32 %v8567, %v8568
    %v8570 = vrot.slane %v8569, 1
    %v8571 = vadd.f32 %v8569, %v8570
    %v8572 = vrot.slane %v8375, 4
    %v8573 = vadd.f32 %v8375, %v8572
    %v8574 = vrot.slane %v8573, 2
    %v8575 = vadd.f32 %v8573, %v8574
    %v8576 = vrot.slane %v8575, 1
    %v8577 = vadd.f32 %v8575, %v8576
    %v8578 = vmul.f32 %v8535, %v8425
    %v8579 = vmul.f32 %v8541, %v8425
    %v8580 = vmul.f32 %v8547, %v8425
    %v8581 = vmul.f32 %v8553, %v8425
    %v8582 = vmul.f32 %v8559, %v8425
    %v8583 = vmul.f32 %v8565, %v8425
    %v8584 = vmul.f32 %v8571, %v8425
    %v8585 = vmul.f32 %v8577, %v8425
    %v8586 = vsub.f32 %v7857, %v8578
    %v8587 = vsub.f32 %v7859, %v8579
    %v8588 = vsub.f32 %v8029, %v8580
    %v8589 = vsub.f32 %v8031, %v8581
    %v8590 = vsub.f32 %v8201, %v8582
    %v8591 = vsub.f32 %v8203, %v8583
    %v8592 = vsub.f32 %v8373, %v8584
    %v8593 = vsub.f32 %v8375, %v8585
    %v8594 = vmul.f32 %v8586, %v8586
    %v8595 = vmul.f32 %v8587, %v8587
    %v8596 = vmul.f32 %v8588, %v8588
    %v8597 = vmul.f32 %v8589, %v8589
    %v8598 = vmul.f32 %v8590, %v8590
    %v8599 = vmul.f32 %v8591, %v8591
    %v8600 = vmul.f32 %v8592, %v8592
    %v8601 = vmul.f32 %v8593, %v8593
    %v8602 = vrot.slane %v8594, 4
    %v8603 = vadd.f32 %v8594, %v8602
    %v8604 = vrot.slane %v8603, 2
    %v8605 = vadd.f32 %v8603, %v8604
    %v8606 = vrot.slane %v8605, 1
    %v8607 = vadd.f32 %v8605, %v8606
    %v8608 = vrot.slane %v8595, 4
    %v8609 = vadd.f32 %v8595, %v8608
    %v8610 = vrot.slane %v8609, 2
    %v8611 = vadd.f32 %v8609, %v8610
    %v8612 = vrot.slane %v8611, 1
    %v8613 = vadd.f32 %v8611, %v8612
    %v8614 = vrot.slane %v8596, 4
    %v8615 = vadd.f32 %v8596, %v8614
    %v8616 = vrot.slane %v8615, 2
    %v8617 = vadd.f32 %v8615, %v8616
    %v8618 = vrot.slane %v8617, 1
    %v8619 = vadd.f32 %v8617, %v8618
    %v8620 = vrot.slane %v8597, 4
    %v8621 = vadd.f32 %v8597, %v8620
    %v8622 = vrot.slane %v8621, 2
    %v8623 = vadd.f32 %v8621, %v8622
    %v8624 = vrot.slane %v8623, 1
    %v8625 = vadd.f32 %v8623, %v8624
    %v8626 = vrot.slane %v8598, 4
    %v8627 = vadd.f32 %v8598, %v8626
    %v8628 = vrot.slane %v8627, 2
    %v8629 = vadd.f32 %v8627, %v8628
    %v8630 = vrot.slane %v8629, 1
    %v8631 = vadd.f32 %v8629, %v8630
    %v8632 = vrot.slane %v8599, 4
    %v8633 = vadd.f32 %v8599, %v8632
    %v8634 = vrot.slane %v8633, 2
    %v8635 = vadd.f32 %v8633, %v8634
    %v8636 = vrot.slane %v8635, 1
    %v8637 = vadd.f32 %v8635, %v8636
    %v8638 = vrot.slane %v8600, 4
    %v8639 = vadd.f32 %v8600, %v8638
    %v8640 = vrot.slane %v8639, 2
    %v8641 = vadd.f32 %v8639, %v8640
    %v8642 = vrot.slane %v8641, 1
    %v8643 = vadd.f32 %v8641, %v8642
    %v8644 = vrot.slane %v8601, 4
    %v8645 = vadd.f32 %v8601, %v8644
    %v8646 = vrot.slane %v8645, 2
    %v8647 = vadd.f32 %v8645, %v8646
    %v8648 = vrot.slane %v8647, 1
    %v8649 = vadd.f32 %v8647, %v8648
    %v8650 = vmul.f32 %v8607, %v8425
    %v8651 = vmul.f32 %v8613, %v8425
    %v8652 = vmul.f32 %v8619, %v8425
    %v8653 = vmul.f32 %v8625, %v8425
    %v8654 = vmul.f32 %v8631, %v8425
    %v8655 = vmul.f32 %v8637, %v8425
    %v8656 = vmul.f32 %v8643, %v8425
    %v8657 = vmul.f32 %v8649, %v8425
    %v8658 = vadd.f32 %v8650, 1e-05
    %v8659 = vadd.f32 %v8651, 1e-05
    %v8660 = vadd.f32 %v8652, 1e-05
    %v8661 = vadd.f32 %v8653, 1e-05
    %v8662 = vadd.f32 %v8654, 1e-05
    %v8663 = vadd.f32 %v8655, 1e-05
    %v8664 = vadd.f32 %v8656, 1e-05
    %v8665 = vadd.f32 %v8657, 1e-05
    %v8666 = vrsqrt.pop %v8658
    %v8667 = vrsqrt.pop %v8659
    %v8668 = vrsqrt.pop %v8660
    %v8669 = vrsqrt.pop %v8661
    %v8670 = vrsqrt.pop %v8662
    %v8671 = vrsqrt.pop %v8663
    %v8672 = vrsqrt.pop %v8664
    %v8673 = vrsqrt.pop %v8665
    %v8674 = vmul.f32 %v8586, %v8666
    %v8675 = vmul.f32 %v8587, %v8667
    %v8676 = vmul.f32 %v8588, %v8668
    %v8677 = vmul.f32 %v8589, %v8669
    %v8678 = vmul.f32 %v8590, %v8670
    %v8679 = vmul.f32 %v8591, %v8671
    %v8680 = vmul.f32 %v8592, %v8672
    %v8681 = vmul.f32 %v8593, %v8673
    %v8682 = vmul.f32 %v8522, %v8522
    %v8683 = vmul.f32 %v8523, %v8523
    %v8684 = vmul.f32 %v8524, %v8524
    %v8685 = vmul.f32 %v8525, %v8525
    %v8686 = vmul.f32 %v8526, %v8526
    %v8687 = vmul.f32 %v8527, %v8527
    %v8688 = vmul.f32 %v8528, %v8528
    %v8689 = vmul.f32 %v8529, %v8529
    %v8690 = vadd.f32 %v8682, %v8683
    %v8691 = vadd.f32 %v8690, %v8684
    %v8692 = vadd.f32 %v8691, %v8685
    %v8693 = vadd.f32 %v8692, %v8686
    %v8694 = vadd.f32 %v8693, %v8687
    %v8695 = vadd.f32 %v8694, %v8688
    %v8696 = vadd.f32 %v8695, %v8689
    %8697 = vadd.xlane.f32.xlu0 %v8696
    %v8698 = vpop.xlane.xlu0 %8697
    %v8699 = vmul.f32 %v8674, %v8674
    %v8700 = vmul.f32 %v8675, %v8675
    %v8701 = vmul.f32 %v8676, %v8676
    %v8702 = vmul.f32 %v8677, %v8677
    %v8703 = vmul.f32 %v8678, %v8678
    %v8704 = vmul.f32 %v8679, %v8679
    %v8705 = vmul.f32 %v8680, %v8680
    %v8706 = vmul.f32 %v8681, %v8681
    %v8707 = vadd.f32 %v8699, %v8700
    %v8708 = vadd.f32 %v8707, %v8701
    %v8709 = vadd.f32 %v8708, %v8702
    %v8710 = vadd.f32 %v8709, %v8703
    %v8711 = vadd.f32 %v8710, %v8704
    %v8712 = vadd.f32 %v8711, %v8705
    %v8713 = vadd.f32 %v8712, %v8706
    %8714 = vadd.xlane.f32.xlu0 %v8713
    %v8715 = vpop.xlane.xlu0 %8714
    %v8716 = vmax.f32 %v8698, 1e-16
    %v8717 = vrsqrt.pop %v8716
    %v8718 = vmul.f32 %v8522, %v8717
    %v8719 = vmul.f32 %v8523, %v8717
    %v8720 = vmul.f32 %v8524, %v8717
    %v8721 = vmul.f32 %v8525, %v8717
    %v8722 = vmul.f32 %v8526, %v8717
    %v8723 = vmul.f32 %v8527, %v8717
    %v8724 = vmul.f32 %v8528, %v8717
    %v8725 = vmul.f32 %v8529, %v8717
    %v8726 = vmax.f32 %v8715, 1e-16
    %v8727 = vrsqrt.pop %v8726
    %v8728 = vmul.f32 %v8674, %v8727
    %v8729 = vmul.f32 %v8675, %v8727
    %v8730 = vmul.f32 %v8676, %v8727
    %v8731 = vmul.f32 %v8677, %v8727
    %v8732 = vmul.f32 %v8678, %v8727
    %v8733 = vmul.f32 %v8679, %v8727
    %v8734 = vmul.f32 %v8680, %v8727
    %v8735 = vmul.f32 %v8681, %v8727
    %8736 = vmatprep.subr.mxu0 0.0
    %8737 = vmatpush1.xpose.msra.mxu0 0.0
    %8738 = vmatprep.subr.mxu0 0.0
    %8739 = vmatpush1.xpose.msra.mxu0 0.0
    %8740 = vmatprep.subr.mxu0 0.0
    %8741 = vmatpush1.xpose.msra.mxu0 0.0
    %8742 = vmatprep.subr.mxu0 0.0
    %8743 = vmatpush1.xpose.msra.mxu0 0.0
    %8744 = vmatprep.subr.mxu0 0.0
    %8745 = vmatpush1.xpose.msra.mxu0 0.0
    %8746 = vmatprep.subr.mxu0 0.0
    %8747 = vmatpush1.xpose.msra.mxu0 0.0
    %8748 = vmatprep.subr.mxu0 0.0
    %8749 = vmatpush1.xpose.msra.mxu0 0.0
    %8750 = vmatprep.subr.mxu0 0.0
    %8751 = vmatpush1.xpose.msra.mxu0 0.0
    %8752 = vmatprep.subr.mxu0 0.0
    %8753 = vmatpush1.xpose.msra.mxu0 0.0
    %8754 = vmatprep.subr.mxu0 0.0
    %8755 = vmatpush1.xpose.msra.mxu0 0.0
    %8756 = vmatprep.subr.mxu0 0.0
    %8757 = vmatpush1.xpose.msra.mxu0 0.0
    %8758 = vmatprep.subr.mxu0 0.0
    %8759 = vmatpush1.xpose.msra.mxu0 0.0
    %8760 = vmatprep.subr.mxu0 0.0
    %8761 = vmatpush1.xpose.msra.mxu0 0.0
    %8762 = vmatprep.subr.mxu0 0.0
    %8763 = vmatpush1.xpose.msra.mxu0 0.0
    %8764 = vmatprep.subr.mxu0 0.0
    %8765 = vmatpush1.xpose.msra.mxu0 0.0
    %8766 = vmatprep.subr.mxu0 %v8719
    %8767 = vmatpush1.xpose.msra.mxu0 %v8718
    %8768 = vmatprep.subr.mxu0 0.0
    %8769 = vmatpush2.xpose.msra.mxu0 0.0
    %8770 = vmatprep.subr.mxu0 0.0
    %8771 = vmatpush2.xpose.msra.mxu0 0.0
    %8772 = vmatprep.subr.mxu0 0.0
    %8773 = vmatpush2.xpose.msra.mxu0 0.0
    %8774 = vmatprep.subr.mxu0 0.0
    %8775 = vmatpush2.xpose.msra.mxu0 0.0
    %8776 = vmatprep.subr.mxu0 0.0
    %8777 = vmatpush2.xpose.msra.mxu0 0.0
    %8778 = vmatprep.subr.mxu0 0.0
    %8779 = vmatpush2.xpose.msra.mxu0 0.0
    %8780 = vmatprep.subr.mxu0 0.0
    %8781 = vmatpush2.xpose.msra.mxu0 0.0
    %8782 = vmatprep.subr.mxu0 0.0
    %8783 = vmatpush2.xpose.msra.mxu0 0.0
    %8784 = vmatprep.subr.mxu0 0.0
    %8785 = vmatpush2.xpose.msra.mxu0 0.0
    %8786 = vmatprep.subr.mxu0 0.0
    %8787 = vmatpush2.xpose.msra.mxu0 0.0
    %8788 = vmatprep.subr.mxu0 0.0
    %8789 = vmatpush2.xpose.msra.mxu0 0.0
    %8790 = vmatprep.subr.mxu0 0.0
    %8791 = vmatpush2.xpose.msra.mxu0 0.0
    %8792 = vmatprep.subr.mxu0 0.0
    %8793 = vmatpush2.xpose.msra.mxu0 0.0
    %8794 = vmatprep.subr.mxu0 0.0
    %8795 = vmatpush2.xpose.msra.mxu0 0.0
    %8796 = vmatprep.subr.mxu0 0.0
    %8797 = vmatpush2.xpose.msra.mxu0 0.0
    %8798 = vmatprep.subr.mxu0 0.0
    %8799 = vmatpush2.xpose.msra.mxu0 0.0
    %8800 = vmatprep.mubr.f32.mxu0 %v8729
    %8801 = vmatmul.mubr.f32.gmra.mxu0 %v8728
    %v8802 = vpop.f32.mrf.mxu0
    %v8803 = vadd.f32 0.0, %v8802
    %v8804 = vpop.f32.mrf.mxu0
    %8805 = vdwg.mxu0
    %8806 = vmatprep.subr.mxu0 0.0
    %8807 = vmatpush1.xpose.msra.mxu0 0.0
    %8808 = vmatprep.subr.mxu0 0.0
    %8809 = vmatpush1.xpose.msra.mxu0 0.0
    %8810 = vmatprep.subr.mxu0 0.0
    %8811 = vmatpush1.xpose.msra.mxu0 0.0
    %8812 = vmatprep.subr.mxu0 0.0
    %8813 = vmatpush1.xpose.msra.mxu0 0.0
    %8814 = vmatprep.subr.mxu0 0.0
    %8815 = vmatpush1.xpose.msra.mxu0 0.0
    %8816 = vmatprep.subr.mxu0 0.0
    %8817 = vmatpush1.xpose.msra.mxu0 0.0
    %8818 = vmatprep.subr.mxu0 0.0
    %8819 = vmatpush1.xpose.msra.mxu0 0.0
    %8820 = vmatprep.subr.mxu0 0.0
    %8821 = vmatpush1.xpose.msra.mxu0 0.0
    %8822 = vmatprep.subr.mxu0 0.0
    %8823 = vmatpush1.xpose.msra.mxu0 0.0
    %8824 = vmatprep.subr.mxu0 0.0
    %8825 = vmatpush1.xpose.msra.mxu0 0.0
    %8826 = vmatprep.subr.mxu0 0.0
    %8827 = vmatpush1.xpose.msra.mxu0 0.0
    %8828 = vmatprep.subr.mxu0 0.0
    %8829 = vmatpush1.xpose.msra.mxu0 0.0
    %8830 = vmatprep.subr.mxu0 0.0
    %8831 = vmatpush1.xpose.msra.mxu0 0.0
    %8832 = vmatprep.subr.mxu0 0.0
    %8833 = vmatpush1.xpose.msra.mxu0 0.0
    %8834 = vmatprep.subr.mxu0 0.0
    %8835 = vmatpush1.xpose.msra.mxu0 0.0
    %8836 = vmatprep.subr.mxu0 %v8721
    %8837 = vmatpush1.xpose.msra.mxu0 %v8720
    %8838 = vmatprep.subr.mxu0 0.0
    %8839 = vmatpush2.xpose.msra.mxu0 0.0
    %8840 = vmatprep.subr.mxu0 0.0
    %8841 = vmatpush2.xpose.msra.mxu0 0.0
    %8842 = vmatprep.subr.mxu0 0.0
    %8843 = vmatpush2.xpose.msra.mxu0 0.0
    %8844 = vmatprep.subr.mxu0 0.0
    %8845 = vmatpush2.xpose.msra.mxu0 0.0
    %8846 = vmatprep.subr.mxu0 0.0
    %8847 = vmatpush2.xpose.msra.mxu0 0.0
    %8848 = vmatprep.subr.mxu0 0.0
    %8849 = vmatpush2.xpose.msra.mxu0 0.0
    %8850 = vmatprep.subr.mxu0 0.0
    %8851 = vmatpush2.xpose.msra.mxu0 0.0
    %8852 = vmatprep.subr.mxu0 0.0
    %8853 = vmatpush2.xpose.msra.mxu0 0.0
    %8854 = vmatprep.subr.mxu0 0.0
    %8855 = vmatpush2.xpose.msra.mxu0 0.0
    %8856 = vmatprep.subr.mxu0 0.0
    %8857 = vmatpush2.xpose.msra.mxu0 0.0
    %8858 = vmatprep.subr.mxu0 0.0
    %8859 = vmatpush2.xpose.msra.mxu0 0.0
    %8860 = vmatprep.subr.mxu0 0.0
    %8861 = vmatpush2.xpose.msra.mxu0 0.0
    %8862 = vmatprep.subr.mxu0 0.0
    %8863 = vmatpush2.xpose.msra.mxu0 0.0
    %8864 = vmatprep.subr.mxu0 0.0
    %8865 = vmatpush2.xpose.msra.mxu0 0.0
    %8866 = vmatprep.subr.mxu0 0.0
    %8867 = vmatpush2.xpose.msra.mxu0 0.0
    %8868 = vmatprep.subr.mxu0 0.0
    %8869 = vmatpush2.xpose.msra.mxu0 0.0
    %8870 = vmatprep.mubr.f32.mxu0 %v8731
    %8871 = vmatmul.mubr.f32.gmra.mxu0 %v8730
    %v8872 = vpop.f32.mrf.mxu0
    %v8873 = vadd.f32 %v8803, %v8872
    %v8874 = vpop.f32.mrf.mxu0
    %8875 = vdwg.mxu0
    %8876 = vmatprep.subr.mxu0 0.0
    %8877 = vmatpush1.xpose.msra.mxu0 0.0
    %8878 = vmatprep.subr.mxu0 0.0
    %8879 = vmatpush1.xpose.msra.mxu0 0.0
    %8880 = vmatprep.subr.mxu0 0.0
    %8881 = vmatpush1.xpose.msra.mxu0 0.0
    %8882 = vmatprep.subr.mxu0 0.0
    %8883 = vmatpush1.xpose.msra.mxu0 0.0
    %8884 = vmatprep.subr.mxu0 0.0
    %8885 = vmatpush1.xpose.msra.mxu0 0.0
    %8886 = vmatprep.subr.mxu0 0.0
    %8887 = vmatpush1.xpose.msra.mxu0 0.0
    %8888 = vmatprep.subr.mxu0 0.0
    %8889 = vmatpush1.xpose.msra.mxu0 0.0
    %8890 = vmatprep.subr.mxu0 0.0
    %8891 = vmatpush1.xpose.msra.mxu0 0.0
    %8892 = vmatprep.subr.mxu0 0.0
    %8893 = vmatpush1.xpose.msra.mxu0 0.0
    %8894 = vmatprep.subr.mxu0 0.0
    %8895 = vmatpush1.xpose.msra.mxu0 0.0
    %8896 = vmatprep.subr.mxu0 0.0
    %8897 = vmatpush1.xpose.msra.mxu0 0.0
    %8898 = vmatprep.subr.mxu0 0.0
    %8899 = vmatpush1.xpose.msra.mxu0 0.0
    %8900 = vmatprep.subr.mxu0 0.0
    %8901 = vmatpush1.xpose.msra.mxu0 0.0
    %8902 = vmatprep.subr.mxu0 0.0
    %8903 = vmatpush1.xpose.msra.mxu0 0.0
    %8904 = vmatprep.subr.mxu0 0.0
    %8905 = vmatpush1.xpose.msra.mxu0 0.0
    %8906 = vmatprep.subr.mxu0 %v8723
    %8907 = vmatpush1.xpose.msra.mxu0 %v8722
    %8908 = vmatprep.subr.mxu0 0.0
    %8909 = vmatpush2.xpose.msra.mxu0 0.0
    %8910 = vmatprep.subr.mxu0 0.0
    %8911 = vmatpush2.xpose.msra.mxu0 0.0
    %8912 = vmatprep.subr.mxu0 0.0
    %8913 = vmatpush2.xpose.msra.mxu0 0.0
    %8914 = vmatprep.subr.mxu0 0.0
    %8915 = vmatpush2.xpose.msra.mxu0 0.0
    %8916 = vmatprep.subr.mxu0 0.0
    %8917 = vmatpush2.xpose.msra.mxu0 0.0
    %8918 = vmatprep.subr.mxu0 0.0
    %8919 = vmatpush2.xpose.msra.mxu0 0.0
    %8920 = vmatprep.subr.mxu0 0.0
    %8921 = vmatpush2.xpose.msra.mxu0 0.0
    %8922 = vmatprep.subr.mxu0 0.0
    %8923 = vmatpush2.xpose.msra.mxu0 0.0
    %8924 = vmatprep.subr.mxu0 0.0
    %8925 = vmatpush2.xpose.msra.mxu0 0.0
    %8926 = vmatprep.subr.mxu0 0.0
    %8927 = vmatpush2.xpose.msra.mxu0 0.0
    %8928 = vmatprep.subr.mxu0 0.0
    %8929 = vmatpush2.xpose.msra.mxu0 0.0
    %8930 = vmatprep.subr.mxu0 0.0
    %8931 = vmatpush2.xpose.msra.mxu0 0.0
    %8932 = vmatprep.subr.mxu0 0.0
    %8933 = vmatpush2.xpose.msra.mxu0 0.0
    %8934 = vmatprep.subr.mxu0 0.0
    %8935 = vmatpush2.xpose.msra.mxu0 0.0
    %8936 = vmatprep.subr.mxu0 0.0
    %8937 = vmatpush2.xpose.msra.mxu0 0.0
    %8938 = vmatprep.subr.mxu0 0.0
    %8939 = vmatpush2.xpose.msra.mxu0 0.0
    %8940 = vmatprep.mubr.f32.mxu0 %v8733
    %8941 = vmatmul.mubr.f32.gmra.mxu0 %v8732
    %v8942 = vpop.f32.mrf.mxu0
    %v8943 = vadd.f32 %v8873, %v8942
    %v8944 = vpop.f32.mrf.mxu0
    %8945 = vdwg.mxu0
    %8946 = vmatprep.subr.mxu0 0.0
    %8947 = vmatpush1.xpose.msra.mxu0 0.0
    %8948 = vmatprep.subr.mxu0 0.0
    %8949 = vmatpush1.xpose.msra.mxu0 0.0
    %8950 = vmatprep.subr.mxu0 0.0
    %8951 = vmatpush1.xpose.msra.mxu0 0.0
    %8952 = vmatprep.subr.mxu0 0.0
    %8953 = vmatpush1.xpose.msra.mxu0 0.0
    %8954 = vmatprep.subr.mxu0 0.0
    %8955 = vmatpush1.xpose.msra.mxu0 0.0
    %8956 = vmatprep.subr.mxu0 0.0
    %8957 = vmatpush1.xpose.msra.mxu0 0.0
    %8958 = vmatprep.subr.mxu0 0.0
    %8959 = vmatpush1.xpose.msra.mxu0 0.0
    %8960 = vmatprep.subr.mxu0 0.0
    %8961 = vmatpush1.xpose.msra.mxu0 0.0
    %8962 = vmatprep.subr.mxu0 0.0
    %8963 = vmatpush1.xpose.msra.mxu0 0.0
    %8964 = vmatprep.subr.mxu0 0.0
    %8965 = vmatpush1.xpose.msra.mxu0 0.0
    %8966 = vmatprep.subr.mxu0 0.0
    %8967 = vmatpush1.xpose.msra.mxu0 0.0
    %8968 = vmatprep.subr.mxu0 0.0
    %8969 = vmatpush1.xpose.msra.mxu0 0.0
    %8970 = vmatprep.subr.mxu0 0.0
    %8971 = vmatpush1.xpose.msra.mxu0 0.0
    %8972 = vmatprep.subr.mxu0 0.0
    %8973 = vmatpush1.xpose.msra.mxu0 0.0
    %8974 = vmatprep.subr.mxu0 0.0
    %8975 = vmatpush1.xpose.msra.mxu0 0.0
    %8976 = vmatprep.subr.mxu0 %v8725
    %8977 = vmatpush1.xpose.msra.mxu0 %v8724
    %8978 = vmatprep.subr.mxu0 0.0
    %8979 = vmatpush2.xpose.msra.mxu0 0.0
    %8980 = vmatprep.subr.mxu0 0.0
    %8981 = vmatpush2.xpose.msra.mxu0 0.0
    %8982 = vmatprep.subr.mxu0 0.0
    %8983 = vmatpush2.xpose.msra.mxu0 0.0
    %8984 = vmatprep.subr.mxu0 0.0
    %8985 = vmatpush2.xpose.msra.mxu0 0.0
    %8986 = vmatprep.subr.mxu0 0.0
    %8987 = vmatpush2.xpose.msra.mxu0 0.0
    %8988 = vmatprep.subr.mxu0 0.0
    %8989 = vmatpush2.xpose.msra.mxu0 0.0
    %8990 = vmatprep.subr.mxu0 0.0
    %8991 = vmatpush2.xpose.msra.mxu0 0.0
    %8992 = vmatprep.subr.mxu0 0.0
    %8993 = vmatpush2.xpose.msra.mxu0 0.0
    %8994 = vmatprep.subr.mxu0 0.0
    %8995 = vmatpush2.xpose.msra.mxu0 0.0
    %8996 = vmatprep.subr.mxu0 0.0
    %8997 = vmatpush2.xpose.msra.mxu0 0.0
    %8998 = vmatprep.subr.mxu0 0.0
    %8999 = vmatpush2.xpose.msra.mxu0 0.0
    %9000 = vmatprep.subr.mxu0 0.0
    %9001 = vmatpush2.xpose.msra.mxu0 0.0
    %9002 = vmatprep.subr.mxu0 0.0
    %9003 = vmatpush2.xpose.msra.mxu0 0.0
    %9004 = vmatprep.subr.mxu0 0.0
    %9005 = vmatpush2.xpose.msra.mxu0 0.0
    %9006 = vmatprep.subr.mxu0 0.0
    %9007 = vmatpush2.xpose.msra.mxu0 0.0
    %9008 = vmatprep.subr.mxu0 0.0
    %9009 = vmatpush2.xpose.msra.mxu0 0.0
    %9010 = vmatprep.mubr.f32.mxu0 %v8735
    %9011 = vmatmul.mubr.f32.gmra.mxu0 %v8734
    %v9012 = vpop.f32.mrf.mxu0
    %v9013 = vadd.f32 %v8943, %v9012
    %v9014 = vpop.f32.mrf.mxu0
    %9015 = vdwg.mxu0
    %vm9016 = vcmask 64512
    %v9017 = vsel %vm9016, %v9013, -inf
    %9018 = vmax.xlane.f32.xlu0 %v9017
    %v9019 = vpop.xlane.xlu0 %9018
    %v9020 = vsub.f32 %v9013, %v9019
    %v9021 = vmul.f32 %v9020, 1.442695
    %v9022 = vpow.pop %v9021
    %v9023 = vsel %vm9016, %v9022, 0.0
    %9024 = vadd.xlane.f32.xlu0 %v9023
    %v9025 = vpop.xlane.xlu0 %9024
    %v9026 = vrcp.pop %v9025
    %v9027 = vmul.f32 %v9022, %v9026
    %v9028 = vld [vmem:[%s7] sm:$0xff]
    %v9030 = vsel %vm9016, %v9027, 0
    %9032 = vmatprep.subr.mxu0 0.0
    %9033 = vmatpush1.msra.mxu0 0.0
    %9034 = vmatprep.subr.mxu0 0.0
    %9035 = vmatpush1.msra.mxu0 0.0
    %9036 = vmatprep.subr.mxu0 0.0
    %9037 = vmatpush1.msra.mxu0 0.0
    %9038 = vmatprep.subr.mxu0 0.0
    %9039 = vmatpush1.msra.mxu0 0.0
    %9040 = vmatprep.subr.mxu0 0.0
    %9041 = vmatpush1.msra.mxu0 0.0
    %9042 = vmatprep.subr.mxu0 0.0
    %9043 = vmatpush1.msra.mxu0 0.0
    %9044 = vmatprep.subr.mxu0 0.0
    %9045 = vmatpush1.msra.mxu0 0.0
    %9046 = vmatprep.subr.mxu0 0.0
    %9047 = vmatpush1.msra.mxu0 0.0
    %9048 = vmatprep.subr.mxu0 0.0
    %9049 = vmatpush1.msra.mxu0 0.0
    %9050 = vmatprep.subr.mxu0 0.0
    %9051 = vmatpush1.msra.mxu0 0.0
    %9052 = vmatprep.subr.mxu0 0.0
    %9053 = vmatpush1.msra.mxu0 0.0
    %9054 = vmatprep.subr.mxu0 0.0
    %9055 = vmatpush1.msra.mxu0 0.0
    %9056 = vmatprep.subr.mxu0 0.0
    %9057 = vmatpush1.msra.mxu0 0.0
    %9058 = vmatprep.subr.mxu0 0.0
    %9059 = vmatpush1.msra.mxu0 0.0
    %9060 = vmatprep.subr.mxu0 0.0
    %9061 = vmatpush1.msra.mxu0 0.0
    %9062 = vmatprep.subr.mxu0 0.0
    %9063 = vmatpush1.msra.mxu0 %v9028
    %9064 = vmatprep.subr.mxu0 0.0
    %9065 = vmatpush2.msra.mxu0 0.0
    %9066 = vmatprep.subr.mxu0 0.0
    %9067 = vmatpush2.msra.mxu0 0.0
    %9068 = vmatprep.subr.mxu0 0.0
    %9069 = vmatpush2.msra.mxu0 0.0
    %9070 = vmatprep.subr.mxu0 0.0
    %9071 = vmatpush2.msra.mxu0 0.0
    %9072 = vmatprep.subr.mxu0 0.0
    %9073 = vmatpush2.msra.mxu0 0.0
    %9074 = vmatprep.subr.mxu0 0.0
    %9075 = vmatpush2.msra.mxu0 0.0
    %9076 = vmatprep.subr.mxu0 0.0
    %9077 = vmatpush2.msra.mxu0 0.0
    %9078 = vmatprep.subr.mxu0 0.0
    %9079 = vmatpush2.msra.mxu0 0.0
    %9080 = vmatprep.subr.mxu0 0.0
    %9081 = vmatpush2.msra.mxu0 0.0
    %9082 = vmatprep.subr.mxu0 0.0
    %9083 = vmatpush2.msra.mxu0 0.0
    %9084 = vmatprep.subr.mxu0 0.0
    %9085 = vmatpush2.msra.mxu0 0.0
    %9086 = vmatprep.subr.mxu0 0.0
    %9087 = vmatpush2.msra.mxu0 0.0
    %9088 = vmatprep.subr.mxu0 0.0
    %9089 = vmatpush2.msra.mxu0 0.0
    %9090 = vmatprep.subr.mxu0 0.0
    %9091 = vmatpush2.msra.mxu0 0.0
    %9092 = vmatprep.subr.mxu0 0.0
    %9093 = vmatpush2.msra.mxu0 0.0
    %9094 = vmatprep.subr.mxu0 0.0
    %9095 = vmatpush2.msra.mxu0 0.0
    %9096 = vmatprep.mubr.f32.mxu0 0.0
    %9097 = vmatmul.mubr.f32.gmra.mxu0 %v9030
    %v9098 = vpop.f32.mrf.mxu0
    %v9099 = vadd.f32 0.0, %v9098
    %v9100 = vpop.f32.mrf.mxu0
    %9101 = vdwg.mxu0
    %vm9102 = vcmask 31744
    %9103 = vst.msk [vmem:[%s8] sm:$0xff] %vm9102, %v9099
    // Predicated region
    $region62: #{tpu_custom_call.1} parent=1 // pred_check
      _
    $region63: #{tpu_custom_call.1} parent=1 // pred_check_branch
      %9105 = sbr.rel (0) target = $region65
    $region64: #{tpu_custom_call.1} parent=1 // pred_region
      _
    $region65: #{tpu_custom_call.1} parent=1 // pred_fallthru
      _
    // Predicated region
    $region66: #{tpu_custom_call.1} parent=1 // pred_check
      _
    $region67: #{tpu_custom_call.1} parent=1 // pred_check_branch
      %9107 = sbr.rel (0) target = $region69
    $region68: #{tpu_custom_call.1} parent=1 // pred_region
      _
    $region69: #{tpu_custom_call.1} parent=1 // pred_fallthru
      _
    %9108 = vsyncpa [#allocation3], 1
    %9109 = vsyncpa [#allocation5], 1
    %9110 = vsyncpa [#allocation8], 1
    %9111 = vsyncpa [#allocation11], 1

</llo_original>
